<compile_context>
chip_gen: v7x
topology: tpu7x:2x2x1
jax: 0.10.0
libtpu: 0.0.40
codegen_flags: <defaults>
</compile_context>

<pallas_src>
import jax
import jax.numpy as jnp
import numpy as np
from jax.experimental import pallas as pl
from jax.experimental.pallas import tpu as pltpu

# Scoped-VMEM budget: all blocks below are < 4 MB double-buffered, so 32 MiB is
# safe on v5e/v6e (128 MiB physical) and v7x (64 MiB physical).
_VMEM_LIMIT = 32 * 1024 * 1024


def _round_up(x, m):
    return (x + m - 1) // m * m


def _pick_row_tiles(n, target=4):
    """Divisor of n (>=2 when possible) nearest `target`, for parallel grid steps."""
    divs = [d for d in range(2, n + 1) if n % d == 0]
    if not divs:
        return 1
    return min(divs, key=lambda d: (abs(d - target), d))


# ----------------------------------------------------------------------------
# fused 3x3 conv + BN + ReLU  (im2col fused in-kernel, NHWC, Cout-tiled grid)
# ----------------------------------------------------------------------------
def _conv3x3_bn_relu(x_nhwc, w_taps_bf16, bias, k=3):
    """Valid 3x3 conv + folded-BN + ReLU.

    x_nhwc:      (B, H, W, Cin) float32
    w_taps_bf16: (k*k, Cin, Cout) bfloat16, BN scale folded on Cout
    bias:        (Cout,) float32 (folded BN bias)

    Returns (y, w_valid): y is (B, Ho, W, Cout) float32 where only the first
    w_valid = W-k+1 columns of each row are valid.  Output stays at full width
    so the consumer can read the valid window directly (no HBM slice copy).
    """
    B, H, W, Cin = x_nhwc.shape
    Cout = w_taps_bf16.shape[-1]
    Ho = H - k + 1
    L = Ho * W                       # rows computed at full width W
    pad = k - 1
    HWp = H * W + pad

    # Flatten spatial dims (free for NHWC) + tiny tail pad so every shifted tap
    # slice stays in bounds; cast once to bf16 (this tensor only feeds the MXU).
    # TODO(synk): the pad+cast is one small extra HBM copy; could be folded into
    # the producing op for a fully latency-tuned B=1 tracking loop.
    x_flat = jnp.pad(x_nhwc.reshape(B, H * W, Cin),
                     ((0, 0), (0, pad), (0, 0))).astype(jnp.bfloat16)

    tile_co = 128 if Cout % 128 == 0 else Cout
    n_co = Cout // tile_co

    def kernel(x_ref, w_ref, b_ref, o_ref):
        # x_ref: (HWp, Cin) bf16; w_ref: (k*k, Cin, tile_co) bf16;
        # b_ref: (1, tile_co) f32;  o_ref: (L, tile_co) f32
        acc = None
        for u in range(k):                       # fused im2col: k*k shifted dots
            for v in range(k):
                off = u * W + v                  # static offset -> plain vld sub-tile load
                d = jnp.dot(x_ref[pl.ds(off, L), :], w_ref[u * k + v],
                            preferred_element_type=jnp.float32)
                acc = d if acc is None else acc + d
        o_ref[...] = jnp.maximum(acc + b_ref[...], 0.0)

    y = pl.pallas_call(
        kernel,
        out_shape=jax.ShapeDtypeStruct((B, L, Cout), jnp.float32),
        grid=(B, n_co),
        in_specs=[
            pl.BlockSpec((None, HWp, Cin), lambda b, c: (b, 0, 0)),      # image resident over c
            pl.BlockSpec((k * k, Cin, tile_co), lambda b, c: (0, 0, c)),
            pl.BlockSpec((1, tile_co), lambda b, c: (0, c)),
        ],
        out_specs=pl.BlockSpec((None, L, tile_co), lambda b, c: (b, 0, c)),
        compiler_params=pltpu.CompilerParams(
            dimension_semantics=("parallel", "parallel"),
            vmem_limit_bytes=_VMEM_LIMIT),
    )(x_flat, w_taps_bf16, bias.reshape(1, Cout))

    return y.reshape(B, Ho, W, Cout), W - k + 1


# ----------------------------------------------------------------------------
# fused depthwise xcorr + 1x1 conv + BN + ReLU + 1x1 conv (+bias)
# ----------------------------------------------------------------------------
def _xcorr_head(sf, sf_wvalid, kf, kf_wvalid, w1_bf16, b1, w2p_bf16, b2p):
    """sf: (B, Hs, Wsf, C) search features (first sf_wvalid cols valid);
       kf: (B, Hk, Wkf, C) template features (first kf_wvalid cols valid);
       w1_bf16: (C, C); w2p_bf16: (C, Mp) lane-padded; returns (B, Ho, Wo, Mp)."""
    B, Hs, _, C = sf.shape
    _, Hk, _, _ = kf.shape
    Ws, Wk = sf_wvalid, kf_wvalid
    Ho, Wo = Hs - Hk + 1, Ws - Wk + 1
    Mp = w2p_bf16.shape[1]

    n_rt = _pick_row_tiles(Ho)                   # row tiles -> extra parallel grid steps
    TR = Ho // n_rt

    def kernel(s_ref, k_ref, w1_ref, b1_ref, w2_ref, b2_ref, o_ref):
        r0 = pl.program_id(1) * TR
        # depthwise cross-correlation for TR output rows (f32 VPU work,
        # ref-sliced taps, channels on the 128-lane axis).
        feat = None
        for u in range(Hk):
            for v in range(Wk):
                t = (s_ref[pl.ds(r0 + u, TR), pl.ds(v, Wo), :]
                     * k_ref[u:u + 1, v:v + 1, :])
                feat = t if feat is None else feat + t
        # fused 1x1 head, one output row at a time -> only 2-D MXU dots,
        # no in-kernel reshape/relayout required.
        w1 = w1_ref[...]
        w2 = w2_ref[...]
        b1v = b1_ref[...]
        b2v = b2_ref[...]
        for r in range(TR):
            h = jnp.dot(feat[r].astype(jnp.bfloat16), w1,
                        preferred_element_type=jnp.float32)
            h = jnp.maximum(h + b1v, 0.0)
            o_ref[r] = jnp.dot(h.astype(jnp.bfloat16), w2,
                               preferred_element_type=jnp.float32) + b2v

    return pl.pallas_call(
        kernel,
        out_shape=jax.ShapeDtypeStruct((B, Ho, Wo, Mp), jnp.float32),
        grid=(B, n_rt),
        in_specs=[
            pl.BlockSpec((None,) + sf.shape[1:], lambda b, r: (b, 0, 0, 0)),  # resident over r
            pl.BlockSpec((None,) + kf.shape[1:], lambda b, r: (b, 0, 0, 0)),
            pl.BlockSpec(w1_bf16.shape, lambda b, r: (0, 0)),                 # weights resident
            pl.BlockSpec((1, C), lambda b, r: (0, 0)),
            pl.BlockSpec(w2p_bf16.shape, lambda b, r: (0, 0)),
            pl.BlockSpec((1, Mp), lambda b, r: (0, 0)),
        ],
        out_specs=pl.BlockSpec((None, TR, Wo, Mp), lambda b, r: (b, r, 0, 0)),
        compiler_params=pltpu.CompilerParams(
            dimension_semantics=("parallel", "parallel"),
            vmem_limit_bytes=_VMEM_LIMIT),
    )(sf, kf, w1_bf16, b1.reshape(1, C), w2p_bf16, b2p.reshape(1, Mp))


# ----------------------------------------------------------------------------
# parameter folding (inference-mode BN folded into weights, MXU weights in bf16)
# ----------------------------------------------------------------------------
def _prepare_params(p, k=3):
    def fold_conv3x3(w, scale):
        # OIHW (Cout,Cin,k,k) -> (k,k,Cin,Cout) with BN scale folded on Cout -> (k*k,Cin,Cout)
        w_t = jnp.transpose(w, (2, 3, 1, 0)) * scale[None, None, None, :]
        return w_t.reshape(k * k, w.shape[1], w.shape[0]).astype(jnp.bfloat16)

    cout = p["h2_w"].shape[0]
    mp = _round_up(cout, 128)                    # lane-dense head output stores

    q = {}
    q["ck_w_taps"] = fold_conv3x3(p["ck_w"], p["ck_scale"])
    q["ck_bias"] = p["ck_bias"]
    q["cs_w_taps"] = fold_conv3x3(p["cs_w"], p["cs_scale"])
    q["cs_bias"] = p["cs_bias"]
    q["h1_wm"] = (p["h1_w"][:, :, 0, 0].T * p["h1_scale"][None, :]).astype(jnp.bfloat16)
    q["h1_bias"] = p["h1_bias"]
    w2 = p["h2_w"][:, :, 0, 0].T                                  # (hidden, cout)
    q["h2_wm"] = jnp.pad(w2, ((0, 0), (0, mp - cout))).astype(jnp.bfloat16)
    q["h2_b"] = jnp.pad(p["h2_b"], ((0, mp - cout),))
    q["out_channels"] = cout
    return q


def depthwise_xcorr_forward(params, kernel_img, search_img):
    """Equivalent of DepthwiseXCorr.forward(kernel, search) in eval mode (NCHW I/O)."""
    q = _prepare_params(params)
    # one NCHW -> NHWC transpose per raw input; the whole pipeline stays NHWC.
    k_nhwc = jnp.transpose(kernel_img, (0, 2, 3, 1))
    s_nhwc = jnp.transpose(search_img, (0, 2, 3, 1))
    kf, kf_wv = _conv3x3_bn_relu(k_nhwc, q["ck_w_taps"], q["ck_bias"])
    sf, sf_wv = _conv3x3_bn_relu(s_nhwc, q["cs_w_taps"], q["cs_bias"])
    out_p = _xcorr_head(sf, sf_wv, kf, kf_wv,
                        q["h1_wm"], q["h1_bias"], q["h2_wm"], q["h2_b"])
    out = out_p[..., :q["out_channels"]]                          # drop lane padding
    return jnp.transpose(out, (0, 3, 1, 2))                       # back to NCHW


# ----------------------------------------------------------------------------
# Pure-JAX f32 reference (correctness check)
# ----------------------------------------------------------------------------
def _ref_forward(params, kimg, simg):
    def conv(x, w, groups=1):
        return jax.lax.conv_general_dilated(
            x, w, (1, 1), "VALID",
            dimension_numbers=("NCHW", "OIHW", "NCHW"),
            feature_group_count=groups)

    def bnrelu(x, scale, bias):
        return jnp.maximum(x * scale[None, :, None, None] + bias[None, :, None, None], 0.0)

    kf = bnrelu(conv(kimg, params["ck_w"]), params["ck_scale"], params["ck_bias"])
    sf = bnrelu(conv(simg, params["cs_w"]), params["cs_scale"], params["cs_bias"])
    B, C = kf.shape[:2]
    x = sf.reshape(1, B * C, sf.shape[2], sf.shape[3])
    k = kf.reshape(B * C, 1, kf.shape[2], kf.shape[3])
    o = conv(x, k, groups=B * C)
    feat = o.reshape(B, C, o.shape[2], o.shape[3])
    h = bnrelu(conv(feat, params["h1_w"]), params["h1_scale"], params["h1_bias"])
    return conv(h, params["h2_w"]) + params["h2_b"][None, :, None, None]


# ----------------------------------------------------------------------------
def _init_params(key, in_channels, hidden, out_channels, ksize=3, eps=1e-5):
    ks = jax.random.split(key, 16)

    def bn_fold(kg, kb, km, kv, c):
        gamma = 1.0 + 0.1 * jax.random.normal(kg, (c,), jnp.float32)
        beta = 0.1 * jax.random.normal(kb, (c,), jnp.float32)
        mean = 0.1 * jax.random.normal(km, (c,), jnp.float32)
        var = jax.random.uniform(kv, (c,), jnp.float32, 0.5, 1.5)
        scale = gamma / jnp.sqrt(var + eps)
        bias = beta - mean * scale
        return scale, bias

    p = {}
    p["ck_w"] = 0.1 * jax.random.normal(ks[0], (hidden, in_channels, ksize, ksize), jnp.float32)
    p["ck_scale"], p["ck_bias"] = bn_fold(ks[1], ks[2], ks[3], ks[4], hidden)
    p["cs_w"] = 0.1 * jax.random.normal(ks[5], (hidden, in_channels, ksize, ksize), jnp.float32)
    p["cs_scale"], p["cs_bias"] = bn_fold(ks[6], ks[7], ks[8], ks[9], hidden)
    p["h1_w"] = 0.1 * jax.random.normal(ks[10], (hidden, hidden, 1, 1), jnp.float32)
    p["h1_scale"], p["h1_bias"] = bn_fold(ks[11], ks[12], ks[13], ks[14], hidden)
    p["h2_w"] = 0.1 * jax.random.normal(ks[15], (out_channels, hidden, 1, 1), jnp.float32)
    p["h2_b"] = 0.01 * jnp.arange(out_channels, dtype=jnp.float32)
    return p


if __name__ == "__main__":
    in_channels, hidden, out_channels = 4, 16, 8
    B = 2
    key = jax.random.PRNGKey(0)
    kp, kk, ks = jax.random.split(key, 3)

    params = _init_params(kp, in_channels, hidden, out_channels)
    # template ("kernel") and search inputs, NCHW (PyTorch layout)
    kernel_img = jax.random.normal(kk, (B, in_channels, 8, 8), jnp.float32)
    search_img = jax.random.normal(ks, (B, in_channels, 16, 16), jnp.float32)

    out = jax.jit(depthwise_xcorr_forward)(params, kernel_img, search_img)
    out = jax.block_until_ready(out)

    ref = _ref_forward(params, kernel_img, search_img)
    assert out.shape == (B, out_channels, 9, 9), out.shape
    # bf16 MXU operands vs f32 reference -> loosened tolerance (review note).
    assert np.allclose(np.asarray(out), np.asarray(ref), atol=3e-2, rtol=3e-2), (
        float(np.max(np.abs(np.asarray(out) - np.asarray(ref)))))

    print("KERNEL_OK")
</pallas_src>

<mosaic_0001>
module attributes {stable_mosaic.version = 11 : i64} {
  func.func @kernel(%arg0: i32, %arg1: i32, %arg2: memref<1x66x4xbf16, #tpu.memory_space<vmem>>, %arg3: memref<9x4x16xbf16, #tpu.memory_space<vmem>>, %arg4: memref<1x16xf32, #tpu.memory_space<vmem>>, %arg5: memref<1x48x16xf32, #tpu.memory_space<vmem>>) attributes {dimension_semantics = [#tpu.dimension_semantics<parallel>, #tpu.dimension_semantics<parallel>], iteration_bounds = array<i64: 2, 1>, scalar_prefetch = 0 : i64, scratch_operands = 0 : i64, tpu.core_type = #tpu.core_type<tc>, window_params = [{transform_indices = @transform_0, window_bounds = array<i64: 1, 66, 4>}, {transform_indices = @transform_1, window_bounds = array<i64: 9, 4, 16>}, {transform_indices = @transform_2, window_bounds = array<i64: 1, 16>}, {transform_indices = @transform_3, window_bounds = array<i64: 1, 48, 16>}]} {
    %c0 = arith.constant 0 : index
    %c0_0 = arith.constant 0 : index
    %c0_1 = arith.constant 0 : index
    %0 = vector.load %arg2[%c0, %c0_0, %c0_1] : memref<1x66x4xbf16, #tpu.memory_space<vmem>>, vector<1x48x4xbf16>
    %1 = vector.shape_cast %0 : vector<1x48x4xbf16> to vector<48x4xbf16>
    %c0_2 = arith.constant 0 : index
    %c0_3 = arith.constant 0 : index
    %c0_4 = arith.constant 0 : index
    %2 = vector.load %arg3[%c0_2, %c0_3, %c0_4] : memref<9x4x16xbf16, #tpu.memory_space<vmem>>, vector<1x4x16xbf16>
    %3 = vector.shape_cast %2 : vector<1x4x16xbf16> to vector<4x16xbf16>
    %cst = arith.constant dense<0.000000e+00> : vector<48x16xf32>
    %4 = tpu.matmul %1, %3, %cst {dimension_numbers = #tpu.dot_dimension_numbers<[1], [0], [0], [1], [0, 0, 1, 1], [], []>} : vector<48x4xbf16>, vector<4x16xbf16>, vector<48x16xf32> -> vector<48x16xf32>
    %c0_5 = arith.constant 0 : index
    %c1 = arith.constant 1 : index
    %c0_6 = arith.constant 0 : index
    %5 = vector.load %arg2[%c0_5, %c1, %c0_6] : memref<1x66x4xbf16, #tpu.memory_space<vmem>>, vector<1x48x4xbf16>
    %6 = vector.shape_cast %5 : vector<1x48x4xbf16> to vector<48x4xbf16>
    %c1_7 = arith.constant 1 : index
    %c0_8 = arith.constant 0 : index
    %c0_9 = arith.constant 0 : index
    %7 = vector.load %arg3[%c1_7, %c0_8, %c0_9] : memref<9x4x16xbf16, #tpu.memory_space<vmem>>, vector<1x4x16xbf16>
    %8 = vector.shape_cast %7 : vector<1x4x16xbf16> to vector<4x16xbf16>
    %cst_10 = arith.constant dense<0.000000e+00> : vector<48x16xf32>
    %9 = tpu.matmul %6, %8, %cst_10 {dimension_numbers = #tpu.dot_dimension_numbers<[1], [0], [0], [1], [0, 0, 1, 1], [], []>} : vector<48x4xbf16>, vector<4x16xbf16>, vector<48x16xf32> -> vector<48x16xf32>
    %10 = arith.addf %4, %9 : vector<48x16xf32>
    %c0_11 = arith.constant 0 : index
    %c2 = arith.constant 2 : index
    %c0_12 = arith.constant 0 : index
    %11 = vector.load %arg2[%c0_11, %c2, %c0_12] : memref<1x66x4xbf16, #tpu.memory_space<vmem>>, vector<1x48x4xbf16>
    %12 = vector.shape_cast %11 : vector<1x48x4xbf16> to vector<48x4xbf16>
    %c2_13 = arith.constant 2 : index
    %c0_14 = arith.constant 0 : index
    %c0_15 = arith.constant 0 : index
    %13 = vector.load %arg3[%c2_13, %c0_14, %c0_15] : memref<9x4x16xbf16, #tpu.memory_space<vmem>>, vector<1x4x16xbf16>
    %14 = vector.shape_cast %13 : vector<1x4x16xbf16> to vector<4x16xbf16>
    %cst_16 = arith.constant dense<0.000000e+00> : vector<48x16xf32>
    %15 = tpu.matmul %12, %14, %cst_16 {dimension_numbers = #tpu.dot_dimension_numbers<[1], [0], [0], [1], [0, 0, 1, 1], [], []>} : vector<48x4xbf16>, vector<4x16xbf16>, vector<48x16xf32> -> vector<48x16xf32>
    %16 = arith.addf %10, %15 : vector<48x16xf32>
    %c0_17 = arith.constant 0 : index
    %c8 = arith.constant 8 : index
    %c0_18 = arith.constant 0 : index
    %17 = vector.load %arg2[%c0_17, %c8, %c0_18] : memref<1x66x4xbf16, #tpu.memory_space<vmem>>, vector<1x48x4xbf16>
    %18 = vector.shape_cast %17 : vector<1x48x4xbf16> to vector<48x4xbf16>
    %c3 = arith.constant 3 : index
    %c0_19 = arith.constant 0 : index
    %c0_20 = arith.constant 0 : index
    %19 = vector.load %arg3[%c3, %c0_19, %c0_20] : memref<9x4x16xbf16, #tpu.memory_space<vmem>>, vector<1x4x16xbf16>
    %20 = vector.shape_cast %19 : vector<1x4x16xbf16> to vector<4x16xbf16>
    %cst_21 = arith.constant dense<0.000000e+00> : vector<48x16xf32>
    %21 = tpu.matmul %18, %20, %cst_21 {dimension_numbers = #tpu.dot_dimension_numbers<[1], [0], [0], [1], [0, 0, 1, 1], [], []>} : vector<48x4xbf16>, vector<4x16xbf16>, vector<48x16xf32> -> vector<48x16xf32>
    %22 = arith.addf %16, %21 : vector<48x16xf32>
    %c0_22 = arith.constant 0 : index
    %c9 = arith.constant 9 : index
    %c0_23 = arith.constant 0 : index
    %23 = vector.load %arg2[%c0_22, %c9, %c0_23] : memref<1x66x4xbf16, #tpu.memory_space<vmem>>, vector<1x48x4xbf16>
    %24 = vector.shape_cast %23 : vector<1x48x4xbf16> to vector<48x4xbf16>
    %c4 = arith.constant 4 : index
    %c0_24 = arith.constant 0 : index
    %c0_25 = arith.constant 0 : index
    %25 = vector.load %arg3[%c4, %c0_24, %c0_25] : memref<9x4x16xbf16, #tpu.memory_space<vmem>>, vector<1x4x16xbf16>
    %26 = vector.shape_cast %25 : vector<1x4x16xbf16> to vector<4x16xbf16>
    %cst_26 = arith.constant dense<0.000000e+00> : vector<48x16xf32>
    %27 = tpu.matmul %24, %26, %cst_26 {dimension_numbers = #tpu.dot_dimension_numbers<[1], [0], [0], [1], [0, 0, 1, 1], [], []>} : vector<48x4xbf16>, vector<4x16xbf16>, vector<48x16xf32> -> vector<48x16xf32>
    %28 = arith.addf %22, %27 : vector<48x16xf32>
    %c0_27 = arith.constant 0 : index
    %c10 = arith.constant 10 : index
    %c0_28 = arith.constant 0 : index
    %29 = vector.load %arg2[%c0_27, %c10, %c0_28] : memref<1x66x4xbf16, #tpu.memory_space<vmem>>, vector<1x48x4xbf16>
    %30 = vector.shape_cast %29 : vector<1x48x4xbf16> to vector<48x4xbf16>
    %c5 = arith.constant 5 : index
    %c0_29 = arith.constant 0 : index
    %c0_30 = arith.constant 0 : index
    %31 = vector.load %arg3[%c5, %c0_29, %c0_30] : memref<9x4x16xbf16, #tpu.memory_space<vmem>>, vector<1x4x16xbf16>
    %32 = vector.shape_cast %31 : vector<1x4x16xbf16> to vector<4x16xbf16>
    %cst_31 = arith.constant dense<0.000000e+00> : vector<48x16xf32>
    %33 = tpu.matmul %30, %32, %cst_31 {dimension_numbers = #tpu.dot_dimension_numbers<[1], [0], [0], [1], [0, 0, 1, 1], [], []>} : vector<48x4xbf16>, vector<4x16xbf16>, vector<48x16xf32> -> vector<48x16xf32>
    %34 = arith.addf %28, %33 : vector<48x16xf32>
    %c0_32 = arith.constant 0 : index
    %c16 = arith.constant 16 : index
    %c0_33 = arith.constant 0 : index
    %35 = vector.load %arg2[%c0_32, %c16, %c0_33] : memref<1x66x4xbf16, #tpu.memory_space<vmem>>, vector<1x48x4xbf16>
    %36 = vector.shape_cast %35 : vector<1x48x4xbf16> to vector<48x4xbf16>
    %c6 = arith.constant 6 : index
    %c0_34 = arith.constant 0 : index
    %c0_35 = arith.constant 0 : index
    %37 = vector.load %arg3[%c6, %c0_34, %c0_35] : memref<9x4x16xbf16, #tpu.memory_space<vmem>>, vector<1x4x16xbf16>
    %38 = vector.shape_cast %37 : vector<1x4x16xbf16> to vector<4x16xbf16>
    %cst_36 = arith.constant dense<0.000000e+00> : vector<48x16xf32>
    %39 = tpu.matmul %36, %38, %cst_36 {dimension_numbers = #tpu.dot_dimension_numbers<[1], [0], [0], [1], [0, 0, 1, 1], [], []>} : vector<48x4xbf16>, vector<4x16xbf16>, vector<48x16xf32> -> vector<48x16xf32>
    %40 = arith.addf %34, %39 : vector<48x16xf32>
    %c0_37 = arith.constant 0 : index
    %c17 = arith.constant 17 : index
    %c0_38 = arith.constant 0 : index
    %41 = vector.load %arg2[%c0_37, %c17, %c0_38] : memref<1x66x4xbf16, #tpu.memory_space<vmem>>, vector<1x48x4xbf16>
    %42 = vector.shape_cast %41 : vector<1x48x4xbf16> to vector<48x4xbf16>
    %c7 = arith.constant 7 : index
    %c0_39 = arith.constant 0 : index
    %c0_40 = arith.constant 0 : index
    %43 = vector.load %arg3[%c7, %c0_39, %c0_40] : memref<9x4x16xbf16, #tpu.memory_space<vmem>>, vector<1x4x16xbf16>
    %44 = vector.shape_cast %43 : vector<1x4x16xbf16> to vector<4x16xbf16>
    %cst_41 = arith.constant dense<0.000000e+00> : vector<48x16xf32>
    %45 = tpu.matmul %42, %44, %cst_41 {dimension_numbers = #tpu.dot_dimension_numbers<[1], [0], [0], [1], [0, 0, 1, 1], [], []>} : vector<48x4xbf16>, vector<4x16xbf16>, vector<48x16xf32> -> vector<48x16xf32>
    %46 = arith.addf %40, %45 : vector<48x16xf32>
    %c0_42 = arith.constant 0 : index
    %c18 = arith.constant 18 : index
    %c0_43 = arith.constant 0 : index
    %47 = vector.load %arg2[%c0_42, %c18, %c0_43] : memref<1x66x4xbf16, #tpu.memory_space<vmem>>, vector<1x48x4xbf16>
    %48 = vector.shape_cast %47 : vector<1x48x4xbf16> to vector<48x4xbf16>
    %c8_44 = arith.constant 8 : index
    %c0_45 = arith.constant 0 : index
    %c0_46 = arith.constant 0 : index
    %49 = vector.load %arg3[%c8_44, %c0_45, %c0_46] : memref<9x4x16xbf16, #tpu.memory_space<vmem>>, vector<1x4x16xbf16>
    %50 = vector.shape_cast %49 : vector<1x4x16xbf16> to vector<4x16xbf16>
    %cst_47 = arith.constant dense<0.000000e+00> : vector<48x16xf32>
    %51 = tpu.matmul %48, %50, %cst_47 {dimension_numbers = #tpu.dot_dimension_numbers<[1], [0], [0], [1], [0, 0, 1, 1], [], []>} : vector<48x4xbf16>, vector<4x16xbf16>, vector<48x16xf32> -> vector<48x16xf32>
    %52 = arith.addf %46, %51 : vector<48x16xf32>
    %c0_48 = arith.constant 0 : index
    %c0_49 = arith.constant 0 : index
    %53 = vector.load %arg4[%c0_48, %c0_49] : memref<1x16xf32, #tpu.memory_space<vmem>>, vector<1x16xf32>
    %54 = vector.broadcast %53 : vector<1x16xf32> to vector<48x16xf32>
    %55 = arith.addf %52, %54 : vector<48x16xf32>
    %cst_50 = arith.constant 0.000000e+00 : f32
    %56 = vector.broadcast %cst_50 : f32 to vector<48x16xf32>
    %57 = arith.maximumf %55, %56 : vector<48x16xf32>
    %c0_51 = arith.constant 0 : index
    %c0_52 = arith.constant 0 : index
    %c0_53 = arith.constant 0 : index
    %58 = vector.load %arg5[%c0_51, %c0_52, %c0_53] : memref<1x48x16xf32, #tpu.memory_space<vmem>>, vector<1x48x16xf32>
    %59 = vector.shape_cast %58 : vector<1x48x16xf32> to vector<48x16xf32>
    %60 = vector.shape_cast %57 : vector<48x16xf32> to vector<1x48x16xf32>
    tpu.vector_store %arg5[%c0_51, %c0_52, %c0_53], %60 {strides = array<i32>} : memref<1x48x16xf32, #tpu.memory_space<vmem>>, vector<1x48x16xf32>,
    return
  }
  func.func @transform_0(%arg0: i32, %arg1: i32) -> (i32, i32, i32) {
    %c0_i32 = arith.constant 0 : i32
    %c0_i32_0 = arith.constant 0 : i32
    %c0_i32_1 = arith.constant 0 : i32
    return %arg0, %c0_i32, %c0_i32_0 : i32, i32, i32
  }
  func.func @transform_1(%arg0: i32, %arg1: i32) -> (i32, i32, i32) {
    %c0_i32 = arith.constant 0 : i32
    %c0_i32_0 = arith.constant 0 : i32
    %c0_i32_1 = arith.constant 0 : i32
    return %c0_i32, %c0_i32_0, %arg1 : i32, i32, i32
  }
  func.func @transform_2(%arg0: i32, %arg1: i32) -> (i32, i32) {
    %c0_i32 = arith.constant 0 : i32
    %c0_i32_0 = arith.constant 0 : i32
    return %c0_i32, %arg1 : i32, i32
  }
  func.func @transform_3(%arg0: i32, %arg1: i32) -> (i32, i32, i32) {
    %c0_i32 = arith.constant 0 : i32
    %c0_i32_0 = arith.constant 0 : i32
    return %arg0, %c0_i32, %arg1 : i32, i32, i32
  }
}

module attributes {stable_mosaic.version = 11 : i64} {
  func.func @kernel(%arg0: i32, %arg1: i32, %arg2: memref<1x258x4xbf16, #tpu.memory_space<vmem>>, %arg3: memref<9x4x16xbf16, #tpu.memory_space<vmem>>, %arg4: memref<1x16xf32, #tpu.memory_space<vmem>>, %arg5: memref<1x224x16xf32, #tpu.memory_space<vmem>>) attributes {dimension_semantics = [#tpu.dimension_semantics<parallel>, #tpu.dimension_semantics<parallel>], iteration_bounds = array<i64: 2, 1>, scalar_prefetch = 0 : i64, scratch_operands = 0 : i64, tpu.core_type = #tpu.core_type<tc>, window_params = [{transform_indices = @transform_0, window_bounds = array<i64: 1, 258, 4>}, {transform_indices = @transform_1, window_bounds = array<i64: 9, 4, 16>}, {transform_indices = @transform_2, window_bounds = array<i64: 1, 16>}, {transform_indices = @transform_3, window_bounds = array<i64: 1, 224, 16>}]} {
    %c0 = arith.constant 0 : index
    %c0_0 = arith.constant 0 : index
    %c0_1 = arith.constant 0 : index
    %0 = vector.load %arg2[%c0, %c0_0, %c0_1] : memref<1x258x4xbf16, #tpu.memory_space<vmem>>, vector<1x224x4xbf16>
    %1 = vector.shape_cast %0 : vector<1x224x4xbf16> to vector<224x4xbf16>
    %c0_2 = arith.constant 0 : index
    %c0_3 = arith.constant 0 : index
    %c0_4 = arith.constant 0 : index
    %2 = vector.load %arg3[%c0_2, %c0_3, %c0_4] : memref<9x4x16xbf16, #tpu.memory_space<vmem>>, vector<1x4x16xbf16>
    %3 = vector.shape_cast %2 : vector<1x4x16xbf16> to vector<4x16xbf16>
    %cst = arith.constant dense<0.000000e+00> : vector<224x16xf32>
    %4 = tpu.matmul %1, %3, %cst {dimension_numbers = #tpu.dot_dimension_numbers<[1], [0], [0], [1], [0, 0, 1, 1], [], []>} : vector<224x4xbf16>, vector<4x16xbf16>, vector<224x16xf32> -> vector<224x16xf32>
    %c0_5 = arith.constant 0 : index
    %c1 = arith.constant 1 : index
    %c0_6 = arith.constant 0 : index
    %5 = vector.load %arg2[%c0_5, %c1, %c0_6] : memref<1x258x4xbf16, #tpu.memory_space<vmem>>, vector<1x224x4xbf16>
    %6 = vector.shape_cast %5 : vector<1x224x4xbf16> to vector<224x4xbf16>
    %c1_7 = arith.constant 1 : index
    %c0_8 = arith.constant 0 : index
    %c0_9 = arith.constant 0 : index
    %7 = vector.load %arg3[%c1_7, %c0_8, %c0_9] : memref<9x4x16xbf16, #tpu.memory_space<vmem>>, vector<1x4x16xbf16>
    %8 = vector.shape_cast %7 : vector<1x4x16xbf16> to vector<4x16xbf16>
    %cst_10 = arith.constant dense<0.000000e+00> : vector<224x16xf32>
    %9 = tpu.matmul %6, %8, %cst_10 {dimension_numbers = #tpu.dot_dimension_numbers<[1], [0], [0], [1], [0, 0, 1, 1], [], []>} : vector<224x4xbf16>, vector<4x16xbf16>, vector<224x16xf32> -> vector<224x16xf32>
    %10 = arith.addf %4, %9 : vector<224x16xf32>
    %c0_11 = arith.constant 0 : index
    %c2 = arith.constant 2 : index
    %c0_12 = arith.constant 0 : index
    %11 = vector.load %arg2[%c0_11, %c2, %c0_12] : memref<1x258x4xbf16, #tpu.memory_space<vmem>>, vector<1x224x4xbf16>
    %12 = vector.shape_cast %11 : vector<1x224x4xbf16> to vector<224x4xbf16>
    %c2_13 = arith.constant 2 : index
    %c0_14 = arith.constant 0 : index
    %c0_15 = arith.constant 0 : index
    %13 = vector.load %arg3[%c2_13, %c0_14, %c0_15] : memref<9x4x16xbf16, #tpu.memory_space<vmem>>, vector<1x4x16xbf16>
    %14 = vector.shape_cast %13 : vector<1x4x16xbf16> to vector<4x16xbf16>
    %cst_16 = arith.constant dense<0.000000e+00> : vector<224x16xf32>
    %15 = tpu.matmul %12, %14, %cst_16 {dimension_numbers = #tpu.dot_dimension_numbers<[1], [0], [0], [1], [0, 0, 1, 1], [], []>} : vector<224x4xbf16>, vector<4x16xbf16>, vector<224x16xf32> -> vector<224x16xf32>
    %16 = arith.addf %10, %15 : vector<224x16xf32>
    %c0_17 = arith.constant 0 : index
    %c16 = arith.constant 16 : index
    %c0_18 = arith.constant 0 : index
    %17 = vector.load %arg2[%c0_17, %c16, %c0_18] : memref<1x258x4xbf16, #tpu.memory_space<vmem>>, vector<1x224x4xbf16>
    %18 = vector.shape_cast %17 : vector<1x224x4xbf16> to vector<224x4xbf16>
    %c3 = arith.constant 3 : index
    %c0_19 = arith.constant 0 : index
    %c0_20 = arith.constant 0 : index
    %19 = vector.load %arg3[%c3, %c0_19, %c0_20] : memref<9x4x16xbf16, #tpu.memory_space<vmem>>, vector<1x4x16xbf16>
    %20 = vector.shape_cast %19 : vector<1x4x16xbf16> to vector<4x16xbf16>
    %cst_21 = arith.constant dense<0.000000e+00> : vector<224x16xf32>
    %21 = tpu.matmul %18, %20, %cst_21 {dimension_numbers = #tpu.dot_dimension_numbers<[1], [0], [0], [1], [0, 0, 1, 1], [], []>} : vector<224x4xbf16>, vector<4x16xbf16>, vector<224x16xf32> -> vector<224x16xf32>
    %22 = arith.addf %16, %21 : vector<224x16xf32>
    %c0_22 = arith.constant 0 : index
    %c17 = arith.constant 17 : index
    %c0_23 = arith.constant 0 : index
    %23 = vector.load %arg2[%c0_22, %c17, %c0_23] : memref<1x258x4xbf16, #tpu.memory_space<vmem>>, vector<1x224x4xbf16>
    %24 = vector.shape_cast %23 : vector<1x224x4xbf16> to vector<224x4xbf16>
    %c4 = arith.constant 4 : index
    %c0_24 = arith.constant 0 : index
    %c0_25 = arith.constant 0 : index
    %25 = vector.load %arg3[%c4, %c0_24, %c0_25] : memref<9x4x16xbf16, #tpu.memory_space<vmem>>, vector<1x4x16xbf16>
    %26 = vector.shape_cast %25 : vector<1x4x16xbf16> to vector<4x16xbf16>
    %cst_26 = arith.constant dense<0.000000e+00> : vector<224x16xf32>
    %27 = tpu.matmul %24, %26, %cst_26 {dimension_numbers = #tpu.dot_dimension_numbers<[1], [0], [0], [1], [0, 0, 1, 1], [], []>} : vector<224x4xbf16>, vector<4x16xbf16>, vector<224x16xf32> -> vector<224x16xf32>
    %28 = arith.addf %22, %27 : vector<224x16xf32>
    %c0_27 = arith.constant 0 : index
    %c18 = arith.constant 18 : index
    %c0_28 = arith.constant 0 : index
    %29 = vector.load %arg2[%c0_27, %c18, %c0_28] : memref<1x258x4xbf16, #tpu.memory_space<vmem>>, vector<1x224x4xbf16>
    %30 = vector.shape_cast %29 : vector<1x224x4xbf16> to vector<224x4xbf16>
    %c5 = arith.constant 5 : index
    %c0_29 = arith.constant 0 : index
    %c0_30 = arith.constant 0 : index
    %31 = vector.load %arg3[%c5, %c0_29, %c0_30] : memref<9x4x16xbf16, #tpu.memory_space<vmem>>, vector<1x4x16xbf16>
    %32 = vector.shape_cast %31 : vector<1x4x16xbf16> to vector<4x16xbf16>
    %cst_31 = arith.constant dense<0.000000e+00> : vector<224x16xf32>
    %33 = tpu.matmul %30, %32, %cst_31 {dimension_numbers = #tpu.dot_dimension_numbers<[1], [0], [0], [1], [0, 0, 1, 1], [], []>} : vector<224x4xbf16>, vector<4x16xbf16>, vector<224x16xf32> -> vector<224x16xf32>
    %34 = arith.addf %28, %33 : vector<224x16xf32>
    %c0_32 = arith.constant 0 : index
    %c32 = arith.constant 32 : index
    %c0_33 = arith.constant 0 : index
    %35 = vector.load %arg2[%c0_32, %c32, %c0_33] : memref<1x258x4xbf16, #tpu.memory_space<vmem>>, vector<1x224x4xbf16>
    %36 = vector.shape_cast %35 : vector<1x224x4xbf16> to vector<224x4xbf16>
    %c6 = arith.constant 6 : index
    %c0_34 = arith.constant 0 : index
    %c0_35 = arith.constant 0 : index
    %37 = vector.load %arg3[%c6, %c0_34, %c0_35] : memref<9x4x16xbf16, #tpu.memory_space<vmem>>, vector<1x4x16xbf16>
    %38 = vector.shape_cast %37 : vector<1x4x16xbf16> to vector<4x16xbf16>
    %cst_36 = arith.constant dense<0.000000e+00> : vector<224x16xf32>
    %39 = tpu.matmul %36, %38, %cst_36 {dimension_numbers = #tpu.dot_dimension_numbers<[1], [0], [0], [1], [0, 0, 1, 1], [], []>} : vector<224x4xbf16>, vector<4x16xbf16>, vector<224x16xf32> -> vector<224x16xf32>
    %40 = arith.addf %34, %39 : vector<224x16xf32>
    %c0_37 = arith.constant 0 : index
    %c33 = arith.constant 33 : index
    %c0_38 = arith.constant 0 : index
    %41 = vector.load %arg2[%c0_37, %c33, %c0_38] : memref<1x258x4xbf16, #tpu.memory_space<vmem>>, vector<1x224x4xbf16>
    %42 = vector.shape_cast %41 : vector<1x224x4xbf16> to vector<224x4xbf16>
    %c7 = arith.constant 7 : index
    %c0_39 = arith.constant 0 : index
    %c0_40 = arith.constant 0 : index
    %43 = vector.load %arg3[%c7, %c0_39, %c0_40] : memref<9x4x16xbf16, #tpu.memory_space<vmem>>, vector<1x4x16xbf16>
    %44 = vector.shape_cast %43 : vector<1x4x16xbf16> to vector<4x16xbf16>
    %cst_41 = arith.constant dense<0.000000e+00> : vector<224x16xf32>
    %45 = tpu.matmul %42, %44, %cst_41 {dimension_numbers = #tpu.dot_dimension_numbers<[1], [0], [0], [1], [0, 0, 1, 1], [], []>} : vector<224x4xbf16>, vector<4x16xbf16>, vector<224x16xf32> -> vector<224x16xf32>
    %46 = arith.addf %40, %45 : vector<224x16xf32>
    %c0_42 = arith.constant 0 : index
    %c34 = arith.constant 34 : index
    %c0_43 = arith.constant 0 : index
    %47 = vector.load %arg2[%c0_42, %c34, %c0_43] : memref<1x258x4xbf16, #tpu.memory_space<vmem>>, vector<1x224x4xbf16>
    %48 = vector.shape_cast %47 : vector<1x224x4xbf16> to vector<224x4xbf16>
    %c8 = arith.constant 8 : index
    %c0_44 = arith.constant 0 : index
    %c0_45 = arith.constant 0 : index
    %49 = vector.load %arg3[%c8, %c0_44, %c0_45] : memref<9x4x16xbf16, #tpu.memory_space<vmem>>, vector<1x4x16xbf16>
    %50 = vector.shape_cast %49 : vector<1x4x16xbf16> to vector<4x16xbf16>
    %cst_46 = arith.constant dense<0.000000e+00> : vector<224x16xf32>
    %51 = tpu.matmul %48, %50, %cst_46 {dimension_numbers = #tpu.dot_dimension_numbers<[1], [0], [0], [1], [0, 0, 1, 1], [], []>} : vector<224x4xbf16>, vector<4x16xbf16>, vector<224x16xf32> -> vector<224x16xf32>
    %52 = arith.addf %46, %51 : vector<224x16xf32>
    %c0_47 = arith.constant 0 : index
    %c0_48 = arith.constant 0 : index
    %53 = vector.load %arg4[%c0_47, %c0_48] : memref<1x16xf32, #tpu.memory_space<vmem>>, vector<1x16xf32>
    %54 = vector.broadcast %53 : vector<1x16xf32> to vector<224x16xf32>
    %55 = arith.addf %52, %54 : vector<224x16xf32>
    %cst_49 = arith.constant 0.000000e+00 : f32
    %56 = vector.broadcast %cst_49 : f32 to vector<224x16xf32>
    %57 = arith.maximumf %55, %56 : vector<224x16xf32>
    %c0_50 = arith.constant 0 : index
    %c0_51 = arith.constant 0 : index
    %c0_52 = arith.constant 0 : index
    %58 = vector.load %arg5[%c0_50, %c0_51, %c0_52] : memref<1x224x16xf32, #tpu.memory_space<vmem>>, vector<1x224x16xf32>
    %59 = vector.shape_cast %58 : vector<1x224x16xf32> to vector<224x16xf32>
    %60 = vector.shape_cast %57 : vector<224x16xf32> to vector<1x224x16xf32>
    tpu.vector_store %arg5[%c0_50, %c0_51, %c0_52], %60 {strides = array<i32>} : memref<1x224x16xf32, #tpu.memory_space<vmem>>, vector<1x224x16xf32>,
    return
  }
  func.func @transform_0(%arg0: i32, %arg1: i32) -> (i32, i32, i32) {
    %c0_i32 = arith.constant 0 : i32
    %c0_i32_0 = arith.constant 0 : i32
    %c0_i32_1 = arith.constant 0 : i32
    return %arg0, %c0_i32, %c0_i32_0 : i32, i32, i32
  }
  func.func @transform_1(%arg0: i32, %arg1: i32) -> (i32, i32, i32) {
    %c0_i32 = arith.constant 0 : i32
    %c0_i32_0 = arith.constant 0 : i32
    %c0_i32_1 = arith.constant 0 : i32
    return %c0_i32, %c0_i32_0, %arg1 : i32, i32, i32
  }
  func.func @transform_2(%arg0: i32, %arg1: i32) -> (i32, i32) {
    %c0_i32 = arith.constant 0 : i32
    %c0_i32_0 = arith.constant 0 : i32
    return %c0_i32, %arg1 : i32, i32
  }
  func.func @transform_3(%arg0: i32, %arg1: i32) -> (i32, i32, i32) {
    %c0_i32 = arith.constant 0 : i32
    %c0_i32_0 = arith.constant 0 : i32
    return %arg0, %c0_i32, %arg1 : i32, i32, i32
  }
}

module attributes {stable_mosaic.version = 11 : i64} {
  func.func @kernel(%arg0: i32, %arg1: i32, %arg2: memref<1x14x16x16xf32, #tpu.memory_space<vmem>>, %arg3: memref<1x6x8x16xf32, #tpu.memory_space<vmem>>, %arg4: memref<16x16xbf16, #tpu.memory_space<vmem>>, %arg5: memref<1x16xf32, #tpu.memory_space<vmem>>, %arg6: memref<16x128xbf16, #tpu.memory_space<vmem>>, %arg7: memref<1x128xf32, #tpu.memory_space<vmem>>, %arg8: memref<1x3x9x128xf32, #tpu.memory_space<vmem>>) attributes {dimension_semantics = [#tpu.dimension_semantics<parallel>, #tpu.dimension_semantics<parallel>], iteration_bounds = array<i64: 2, 3>, scalar_prefetch = 0 : i64, scratch_operands = 0 : i64, tpu.core_type = #tpu.core_type<tc>, window_params = [{transform_indices = @transform_0, window_bounds = array<i64: 1, 14, 16, 16>}, {transform_indices = @transform_1, window_bounds = array<i64: 1, 6, 8, 16>}, {pipeline_mode = #tpu.pipeline_mode<synchronous>, transform_indices = @transform_2, window_bounds = array<i64: 16, 16>}, {pipeline_mode = #tpu.pipeline_mode<synchronous>, transform_indices = @transform_3, window_bounds = array<i64: 1, 16>}, {pipeline_mode = #tpu.pipeline_mode<synchronous>, transform_indices = @transform_4, window_bounds = array<i64: 16, 128>}, {pipeline_mode = #tpu.pipeline_mode<synchronous>, transform_indices = @transform_5, window_bounds = array<i64: 1, 128>}, {transform_indices = @transform_6, window_bounds = array<i64: 1, 3, 9, 128>}]} {
    %c3_i32 = arith.constant 3 : i32
    %0 = arith.muli %arg1, %c3_i32 : i32
    %c0_i32 = arith.constant 0 : i32
    %1 = arith.addi %0, %c0_i32 : i32
    %c0 = arith.constant 0 : index
    %2 = arith.index_cast %1 : i32 to index
    %c0_0 = arith.constant 0 : index
    %c0_1 = arith.constant 0 : index
    %3 = vector.load %arg2[%c0, %2, %c0_0, %c0_1] : memref<1x14x16x16xf32, #tpu.memory_space<vmem>>, vector<1x3x9x16xf32>
    %4 = vector.shape_cast %3 : vector<1x3x9x16xf32> to vector<3x9x16xf32>
    %c0_2 = arith.constant 0 : index
    %c0_3 = arith.constant 0 : index
    %c0_4 = arith.constant 0 : index
    %c0_5 = arith.constant 0 : index
    %5 = vector.load %arg3[%c0_2, %c0_3, %c0_4, %c0_5] : memref<1x6x8x16xf32, #tpu.memory_space<vmem>>, vector<1x1x1x16xf32>
    %6 = vector.shape_cast %5 : vector<1x1x1x16xf32> to vector<1x1x16xf32>
    %7 = vector.broadcast %6 : vector<1x1x16xf32> to vector<3x9x16xf32>
    %8 = arith.mulf %4, %7 : vector<3x9x16xf32>
    %c0_i32_6 = arith.constant 0 : i32
    %9 = arith.addi %0, %c0_i32_6 : i32
    %c0_7 = arith.constant 0 : index
    %10 = arith.index_cast %9 : i32 to index
    %c1 = arith.constant 1 : index
    %c0_8 = arith.constant 0 : index
    %11 = vector.load %arg2[%c0_7, %10, %c1, %c0_8] : memref<1x14x16x16xf32, #tpu.memory_space<vmem>>, vector<1x3x9x16xf32>
    %12 = vector.shape_cast %11 : vector<1x3x9x16xf32> to vector<3x9x16xf32>
    %c0_9 = arith.constant 0 : index
    %c0_10 = arith.constant 0 : index
    %c1_11 = arith.constant 1 : index
    %c0_12 = arith.constant 0 : index
    %13 = vector.load %arg3[%c0_9, %c0_10, %c1_11, %c0_12] : memref<1x6x8x16xf32, #tpu.memory_space<vmem>>, vector<1x1x1x16xf32>
    %14 = vector.shape_cast %13 : vector<1x1x1x16xf32> to vector<1x1x16xf32>
    %15 = vector.broadcast %14 : vector<1x1x16xf32> to vector<3x9x16xf32>
    %16 = arith.mulf %12, %15 : vector<3x9x16xf32>
    %17 = arith.addf %8, %16 : vector<3x9x16xf32>
    %c0_i32_13 = arith.constant 0 : i32
    %18 = arith.addi %0, %c0_i32_13 : i32
    %c0_14 = arith.constant 0 : index
    %19 = arith.index_cast %18 : i32 to index
    %c2 = arith.constant 2 : index
    %c0_15 = arith.constant 0 : index
    %20 = vector.load %arg2[%c0_14, %19, %c2, %c0_15] : memref<1x14x16x16xf32, #tpu.memory_space<vmem>>, vector<1x3x9x16xf32>
    %21 = vector.shape_cast %20 : vector<1x3x9x16xf32> to vector<3x9x16xf32>
    %c0_16 = arith.constant 0 : index
    %c0_17 = arith.constant 0 : index
    %c2_18 = arith.constant 2 : index
    %c0_19 = arith.constant 0 : index
    %22 = vector.load %arg3[%c0_16, %c0_17, %c2_18, %c0_19] : memref<1x6x8x16xf32, #tpu.memory_space<vmem>>, vector<1x1x1x16xf32>
    %23 = vector.shape_cast %22 : vector<1x1x1x16xf32> to vector<1x1x16xf32>
    %24 = vector.broadcast %23 : vector<1x1x16xf32> to vector<3x9x16xf32>
    %25 = arith.mulf %21, %24 : vector<3x9x16xf32>
    %26 = arith.addf %17, %25 : vector<3x9x16xf32>
    %c0_i32_20 = arith.constant 0 : i32
    %27 = arith.addi %0, %c0_i32_20 : i32
    %c0_21 = arith.constant 0 : index
    %28 = arith.index_cast %27 : i32 to index
    %c3 = arith.constant 3 : index
    %c0_22 = arith.constant 0 : index
    %29 = vector.load %arg2[%c0_21, %28, %c3, %c0_22] : memref<1x14x16x16xf32, #tpu.memory_space<vmem>>, vector<1x3x9x16xf32>
    %30 = vector.shape_cast %29 : vector<1x3x9x16xf32> to vector<3x9x16xf32>
    %c0_23 = arith.constant 0 : index
    %c0_24 = arith.constant 0 : index
    %c3_25 = arith.constant 3 : index
    %c0_26 = arith.constant 0 : index
    %31 = vector.load %arg3[%c0_23, %c0_24, %c3_25, %c0_26] : memref<1x6x8x16xf32, #tpu.memory_space<vmem>>, vector<1x1x1x16xf32>
    %32 = vector.shape_cast %31 : vector<1x1x1x16xf32> to vector<1x1x16xf32>
    %33 = vector.broadcast %32 : vector<1x1x16xf32> to vector<3x9x16xf32>
    %34 = arith.mulf %30, %33 : vector<3x9x16xf32>
    %35 = arith.addf %26, %34 : vector<3x9x16xf32>
    %c0_i32_27 = arith.constant 0 : i32
    %36 = arith.addi %0, %c0_i32_27 : i32
    %c0_28 = arith.constant 0 : index
    %37 = arith.index_cast %36 : i32 to index
    %c4 = arith.constant 4 : index
    %c0_29 = arith.constant 0 : index
    %38 = vector.load %arg2[%c0_28, %37, %c4, %c0_29] : memref<1x14x16x16xf32, #tpu.memory_space<vmem>>, vector<1x3x9x16xf32>
    %39 = vector.shape_cast %38 : vector<1x3x9x16xf32> to vector<3x9x16xf32>
    %c0_30 = arith.constant 0 : index
    %c0_31 = arith.constant 0 : index
    %c4_32 = arith.constant 4 : index
    %c0_33 = arith.constant 0 : index
    %40 = vector.load %arg3[%c0_30, %c0_31, %c4_32, %c0_33] : memref<1x6x8x16xf32, #tpu.memory_space<vmem>>, vector<1x1x1x16xf32>
    %41 = vector.shape_cast %40 : vector<1x1x1x16xf32> to vector<1x1x16xf32>
    %42 = vector.broadcast %41 : vector<1x1x16xf32> to vector<3x9x16xf32>
    %43 = arith.mulf %39, %42 : vector<3x9x16xf32>
    %44 = arith.addf %35, %43 : vector<3x9x16xf32>
    %c0_i32_34 = arith.constant 0 : i32
    %45 = arith.addi %0, %c0_i32_34 : i32
    %c0_35 = arith.constant 0 : index
    %46 = arith.index_cast %45 : i32 to index
    %c5 = arith.constant 5 : index
    %c0_36 = arith.constant 0 : index
    %47 = vector.load %arg2[%c0_35, %46, %c5, %c0_36] : memref<1x14x16x16xf32, #tpu.memory_space<vmem>>, vector<1x3x9x16xf32>
    %48 = vector.shape_cast %47 : vector<1x3x9x16xf32> to vector<3x9x16xf32>
    %c0_37 = arith.constant 0 : index
    %c0_38 = arith.constant 0 : index
    %c5_39 = arith.constant 5 : index
    %c0_40 = arith.constant 0 : index
    %49 = vector.load %arg3[%c0_37, %c0_38, %c5_39, %c0_40] : memref<1x6x8x16xf32, #tpu.memory_space<vmem>>, vector<1x1x1x16xf32>
    %50 = vector.shape_cast %49 : vector<1x1x1x16xf32> to vector<1x1x16xf32>
    %51 = vector.broadcast %50 : vector<1x1x16xf32> to vector<3x9x16xf32>
    %52 = arith.mulf %48, %51 : vector<3x9x16xf32>
    %53 = arith.addf %44, %52 : vector<3x9x16xf32>
    %c1_i32 = arith.constant 1 : i32
    %54 = arith.addi %0, %c1_i32 : i32
    %c0_41 = arith.constant 0 : index
    %55 = arith.index_cast %54 : i32 to index
    %c0_42 = arith.constant 0 : index
    %c0_43 = arith.constant 0 : index
    %56 = vector.load %arg2[%c0_41, %55, %c0_42, %c0_43] : memref<1x14x16x16xf32, #tpu.memory_space<vmem>>, vector<1x3x9x16xf32>
    %57 = vector.shape_cast %56 : vector<1x3x9x16xf32> to vector<3x9x16xf32>
    %c0_44 = arith.constant 0 : index
    %c1_45 = arith.constant 1 : index
    %c0_46 = arith.constant 0 : index
    %c0_47 = arith.constant 0 : index
    %58 = vector.load %arg3[%c0_44, %c1_45, %c0_46, %c0_47] : memref<1x6x8x16xf32, #tpu.memory_space<vmem>>, vector<1x1x1x16xf32>
    %59 = vector.shape_cast %58 : vector<1x1x1x16xf32> to vector<1x1x16xf32>
    %60 = vector.broadcast %59 : vector<1x1x16xf32> to vector<3x9x16xf32>
    %61 = arith.mulf %57, %60 : vector<3x9x16xf32>
    %62 = arith.addf %53, %61 : vector<3x9x16xf32>
    %c1_i32_48 = arith.constant 1 : i32
    %63 = arith.addi %0, %c1_i32_48 : i32
    %c0_49 = arith.constant 0 : index
    %64 = arith.index_cast %63 : i32 to index
    %c1_50 = arith.constant 1 : index
    %c0_51 = arith.constant 0 : index
    %65 = vector.load %arg2[%c0_49, %64, %c1_50, %c0_51] : memref<1x14x16x16xf32, #tpu.memory_space<vmem>>, vector<1x3x9x16xf32>
    %66 = vector.shape_cast %65 : vector<1x3x9x16xf32> to vector<3x9x16xf32>
    %c0_52 = arith.constant 0 : index
    %c1_53 = arith.constant 1 : index
    %c1_54 = arith.constant 1 : index
    %c0_55 = arith.constant 0 : index
    %67 = vector.load %arg3[%c0_52, %c1_53, %c1_54, %c0_55] : memref<1x6x8x16xf32, #tpu.memory_space<vmem>>, vector<1x1x1x16xf32>
    %68 = vector.shape_cast %67 : vector<1x1x1x16xf32> to vector<1x1x16xf32>
    %69 = vector.broadcast %68 : vector<1x1x16xf32> to vector<3x9x16xf32>
    %70 = arith.mulf %66, %69 : vector<3x9x16xf32>
    %71 = arith.addf %62, %70 : vector<3x9x16xf32>
    %c1_i32_56 = arith.constant 1 : i32
    %72 = arith.addi %0, %c1_i32_56 : i32
    %c0_57 = arith.constant 0 : index
    %73 = arith.index_cast %72 : i32 to index
    %c2_58 = arith.constant 2 : index
    %c0_59 = arith.constant 0 : index
    %74 = vector.load %arg2[%c0_57, %73, %c2_58, %c0_59] : memref<1x14x16x16xf32, #tpu.memory_space<vmem>>, vector<1x3x9x16xf32>
    %75 = vector.shape_cast %74 : vector<1x3x9x16xf32> to vector<3x9x16xf32>
    %c0_60 = arith.constant 0 : index
    %c1_61 = arith.constant 1 : index
    %c2_62 = arith.constant 2 : index
    %c0_63 = arith.constant 0 : index
    %76 = vector.load %arg3[%c0_60, %c1_61, %c2_62, %c0_63] : memref<1x6x8x16xf32, #tpu.memory_space<vmem>>, vector<1x1x1x16xf32>
    %77 = vector.shape_cast %76 : vector<1x1x1x16xf32> to vector<1x1x16xf32>
    %78 = vector.broadcast %77 : vector<1x1x16xf32> to vector<3x9x16xf32>
    %79 = arith.mulf %75, %78 : vector<3x9x16xf32>
    %80 = arith.addf %71, %79 : vector<3x9x16xf32>
    %c1_i32_64 = arith.constant 1 : i32
    %81 = arith.addi %0, %c1_i32_64 : i32
    %c0_65 = arith.constant 0 : index
    %82 = arith.index_cast %81 : i32 to index
    %c3_66 = arith.constant 3 : index
    %c0_67 = arith.constant 0 : index
    %83 = vector.load %arg2[%c0_65, %82, %c3_66, %c0_67] : memref<1x14x16x16xf32, #tpu.memory_space<vmem>>, vector<1x3x9x16xf32>
    %84 = vector.shape_cast %83 : vector<1x3x9x16xf32> to vector<3x9x16xf32>
    %c0_68 = arith.constant 0 : index
    %c1_69 = arith.constant 1 : index
    %c3_70 = arith.constant 3 : index
    %c0_71 = arith.constant 0 : index
    %85 = vector.load %arg3[%c0_68, %c1_69, %c3_70, %c0_71] : memref<1x6x8x16xf32, #tpu.memory_space<vmem>>, vector<1x1x1x16xf32>
    %86 = vector.shape_cast %85 : vector<1x1x1x16xf32> to vector<1x1x16xf32>
    %87 = vector.broadcast %86 : vector<1x1x16xf32> to vector<3x9x16xf32>
    %88 = arith.mulf %84, %87 : vector<3x9x16xf32>
    %89 = arith.addf %80, %88 : vector<3x9x16xf32>
    %c1_i32_72 = arith.constant 1 : i32
    %90 = arith.addi %0, %c1_i32_72 : i32
    %c0_73 = arith.constant 0 : index
    %91 = arith.index_cast %90 : i32 to index
    %c4_74 = arith.constant 4 : index
    %c0_75 = arith.constant 0 : index
    %92 = vector.load %arg2[%c0_73, %91, %c4_74, %c0_75] : memref<1x14x16x16xf32, #tpu.memory_space<vmem>>, vector<1x3x9x16xf32>
    %93 = vector.shape_cast %92 : vector<1x3x9x16xf32> to vector<3x9x16xf32>
    %c0_76 = arith.constant 0 : index
    %c1_77 = arith.constant 1 : index
    %c4_78 = arith.constant 4 : index
    %c0_79 = arith.constant 0 : index
    %94 = vector.load %arg3[%c0_76, %c1_77, %c4_78, %c0_79] : memref<1x6x8x16xf32, #tpu.memory_space<vmem>>, vector<1x1x1x16xf32>
    %95 = vector.shape_cast %94 : vector<1x1x1x16xf32> to vector<1x1x16xf32>
    %96 = vector.broadcast %95 : vector<1x1x16xf32> to vector<3x9x16xf32>
    %97 = arith.mulf %93, %96 : vector<3x9x16xf32>
    %98 = arith.addf %89, %97 : vector<3x9x16xf32>
    %c1_i32_80 = arith.constant 1 : i32
    %99 = arith.addi %0, %c1_i32_80 : i32
    %c0_81 = arith.constant 0 : index
    %100 = arith.index_cast %99 : i32 to index
    %c5_82 = arith.constant 5 : index
    %c0_83 = arith.constant 0 : index
    %101 = vector.load %arg2[%c0_81, %100, %c5_82, %c0_83] : memref<1x14x16x16xf32, #tpu.memory_space<vmem>>, vector<1x3x9x16xf32>
    %102 = vector.shape_cast %101 : vector<1x3x9x16xf32> to vector<3x9x16xf32>
    %c0_84 = arith.constant 0 : index
    %c1_85 = arith.constant 1 : index
    %c5_86 = arith.constant 5 : index
    %c0_87 = arith.constant 0 : index
    %103 = vector.load %arg3[%c0_84, %c1_85, %c5_86, %c0_87] : memref<1x6x8x16xf32, #tpu.memory_space<vmem>>, vector<1x1x1x16xf32>
    %104 = vector.shape_cast %103 : vector<1x1x1x16xf32> to vector<1x1x16xf32>
    %105 = vector.broadcast %104 : vector<1x1x16xf32> to vector<3x9x16xf32>
    %106 = arith.mulf %102, %105 : vector<3x9x16xf32>
    %107 = arith.addf %98, %106 : vector<3x9x16xf32>
    %c2_i32 = arith.constant 2 : i32
    %108 = arith.addi %0, %c2_i32 : i32
    %c0_88 = arith.constant 0 : index
    %109 = arith.index_cast %108 : i32 to index
    %c0_89 = arith.constant 0 : index
    %c0_90 = arith.constant 0 : index
    %110 = vector.load %arg2[%c0_88, %109, %c0_89, %c0_90] : memref<1x14x16x16xf32, #tpu.memory_space<vmem>>, vector<1x3x9x16xf32>
    %111 = vector.shape_cast %110 : vector<1x3x9x16xf32> to vector<3x9x16xf32>
    %c0_91 = arith.constant 0 : index
    %c2_92 = arith.constant 2 : index
    %c0_93 = arith.constant 0 : index
    %c0_94 = arith.constant 0 : index
    %112 = vector.load %arg3[%c0_91, %c2_92, %c0_93, %c0_94] : memref<1x6x8x16xf32, #tpu.memory_space<vmem>>, vector<1x1x1x16xf32>
    %113 = vector.shape_cast %112 : vector<1x1x1x16xf32> to vector<1x1x16xf32>
    %114 = vector.broadcast %113 : vector<1x1x16xf32> to vector<3x9x16xf32>
    %115 = arith.mulf %111, %114 : vector<3x9x16xf32>
    %116 = arith.addf %107, %115 : vector<3x9x16xf32>
    %c2_i32_95 = arith.constant 2 : i32
    %117 = arith.addi %0, %c2_i32_95 : i32
    %c0_96 = arith.constant 0 : index
    %118 = arith.index_cast %117 : i32 to index
    %c1_97 = arith.constant 1 : index
    %c0_98 = arith.constant 0 : index
    %119 = vector.load %arg2[%c0_96, %118, %c1_97, %c0_98] : memref<1x14x16x16xf32, #tpu.memory_space<vmem>>, vector<1x3x9x16xf32>
    %120 = vector.shape_cast %119 : vector<1x3x9x16xf32> to vector<3x9x16xf32>
    %c0_99 = arith.constant 0 : index
    %c2_100 = arith.constant 2 : index
    %c1_101 = arith.constant 1 : index
    %c0_102 = arith.constant 0 : index
    %121 = vector.load %arg3[%c0_99, %c2_100, %c1_101, %c0_102] : memref<1x6x8x16xf32, #tpu.memory_space<vmem>>, vector<1x1x1x16xf32>
    %122 = vector.shape_cast %121 : vector<1x1x1x16xf32> to vector<1x1x16xf32>
    %123 = vector.broadcast %122 : vector<1x1x16xf32> to vector<3x9x16xf32>
    %124 = arith.mulf %120, %123 : vector<3x9x16xf32>
    %125 = arith.addf %116, %124 : vector<3x9x16xf32>
    %c2_i32_103 = arith.constant 2 : i32
    %126 = arith.addi %0, %c2_i32_103 : i32
    %c0_104 = arith.constant 0 : index
    %127 = arith.index_cast %126 : i32 to index
    %c2_105 = arith.constant 2 : index
    %c0_106 = arith.constant 0 : index
    %128 = vector.load %arg2[%c0_104, %127, %c2_105, %c0_106] : memref<1x14x16x16xf32, #tpu.memory_space<vmem>>, vector<1x3x9x16xf32>
    %129 = vector.shape_cast %128 : vector<1x3x9x16xf32> to vector<3x9x16xf32>
    %c0_107 = arith.constant 0 : index
    %c2_108 = arith.constant 2 : index
    %c2_109 = arith.constant 2 : index
    %c0_110 = arith.constant 0 : index
    %130 = vector.load %arg3[%c0_107, %c2_108, %c2_109, %c0_110] : memref<1x6x8x16xf32, #tpu.memory_space<vmem>>, vector<1x1x1x16xf32>
    %131 = vector.shape_cast %130 : vector<1x1x1x16xf32> to vector<1x1x16xf32>
    %132 = vector.broadcast %131 : vector<1x1x16xf32> to vector<3x9x16xf32>
    %133 = arith.mulf %129, %132 : vector<3x9x16xf32>
    %134 = arith.addf %125, %133 : vector<3x9x16xf32>
    %c2_i32_111 = arith.constant 2 : i32
    %135 = arith.addi %0, %c2_i32_111 : i32
    %c0_112 = arith.constant 0 : index
    %136 = arith.index_cast %135 : i32 to index
    %c3_113 = arith.constant 3 : index
    %c0_114 = arith.constant 0 : index
    %137 = vector.load %arg2[%c0_112, %136, %c3_113, %c0_114] : memref<1x14x16x16xf32, #tpu.memory_space<vmem>>, vector<1x3x9x16xf32>
    %138 = vector.shape_cast %137 : vector<1x3x9x16xf32> to vector<3x9x16xf32>
    %c0_115 = arith.constant 0 : index
    %c2_116 = arith.constant 2 : index
    %c3_117 = arith.constant 3 : index
    %c0_118 = arith.constant 0 : index
    %139 = vector.load %arg3[%c0_115, %c2_116, %c3_117, %c0_118] : memref<1x6x8x16xf32, #tpu.memory_space<vmem>>, vector<1x1x1x16xf32>
    %140 = vector.shape_cast %139 : vector<1x1x1x16xf32> to vector<1x1x16xf32>
    %141 = vector.broadcast %140 : vector<1x1x16xf32> to vector<3x9x16xf32>
    %142 = arith.mulf %138, %141 : vector<3x9x16xf32>
    %143 = arith.addf %134, %142 : vector<3x9x16xf32>
    %c2_i32_119 = arith.constant 2 : i32
    %144 = arith.addi %0, %c2_i32_119 : i32
    %c0_120 = arith.constant 0 : index
    %145 = arith.index_cast %144 : i32 to index
    %c4_121 = arith.constant 4 : index
    %c0_122 = arith.constant 0 : index
    %146 = vector.load %arg2[%c0_120, %145, %c4_121, %c0_122] : memref<1x14x16x16xf32, #tpu.memory_space<vmem>>, vector<1x3x9x16xf32>
    %147 = vector.shape_cast %146 : vector<1x3x9x16xf32> to vector<3x9x16xf32>
    %c0_123 = arith.constant 0 : index
    %c2_124 = arith.constant 2 : index
    %c4_125 = arith.constant 4 : index
    %c0_126 = arith.constant 0 : index
    %148 = vector.load %arg3[%c0_123, %c2_124, %c4_125, %c0_126] : memref<1x6x8x16xf32, #tpu.memory_space<vmem>>, vector<1x1x1x16xf32>
    %149 = vector.shape_cast %148 : vector<1x1x1x16xf32> to vector<1x1x16xf32>
    %150 = vector.broadcast %149 : vector<1x1x16xf32> to vector<3x9x16xf32>
    %151 = arith.mulf %147, %150 : vector<3x9x16xf32>
    %152 = arith.addf %143, %151 : vector<3x9x16xf32>
    %c2_i32_127 = arith.constant 2 : i32
    %153 = arith.addi %0, %c2_i32_127 : i32
    %c0_128 = arith.constant 0 : index
    %154 = arith.index_cast %153 : i32 to index
    %c5_129 = arith.constant 5 : index
    %c0_130 = arith.constant 0 : index
    %155 = vector.load %arg2[%c0_128, %154, %c5_129, %c0_130] : memref<1x14x16x16xf32, #tpu.memory_space<vmem>>, vector<1x3x9x16xf32>
    %156 = vector.shape_cast %155 : vector<1x3x9x16xf32> to vector<3x9x16xf32>
    %c0_131 = arith.constant 0 : index
    %c2_132 = arith.constant 2 : index
    %c5_133 = arith.constant 5 : index
    %c0_134 = arith.constant 0 : index
    %157 = vector.load %arg3[%c0_131, %c2_132, %c5_133, %c0_134] : memref<1x6x8x16xf32, #tpu.memory_space<vmem>>, vector<1x1x1x16xf32>
    %158 = vector.shape_cast %157 : vector<1x1x1x16xf32> to vector<1x1x16xf32>
    %159 = vector.broadcast %158 : vector<1x1x16xf32> to vector<3x9x16xf32>
    %160 = arith.mulf %156, %159 : vector<3x9x16xf32>
    %161 = arith.addf %152, %160 : vector<3x9x16xf32>
    %c3_i32_135 = arith.constant 3 : i32
    %162 = arith.addi %0, %c3_i32_135 : i32
    %c0_136 = arith.constant 0 : index
    %163 = arith.index_cast %162 : i32 to index
    %c0_137 = arith.constant 0 : index
    %c0_138 = arith.constant 0 : index
    %164 = vector.load %arg2[%c0_136, %163, %c0_137, %c0_138] : memref<1x14x16x16xf32, #tpu.memory_space<vmem>>, vector<1x3x9x16xf32>
    %165 = vector.shape_cast %164 : vector<1x3x9x16xf32> to vector<3x9x16xf32>
    %c0_139 = arith.constant 0 : index
    %c3_140 = arith.constant 3 : index
    %c0_141 = arith.constant 0 : index
    %c0_142 = arith.constant 0 : index
    %166 = vector.load %arg3[%c0_139, %c3_140, %c0_141, %c0_142] : memref<1x6x8x16xf32, #tpu.memory_space<vmem>>, vector<1x1x1x16xf32>
    %167 = vector.shape_cast %166 : vector<1x1x1x16xf32> to vector<1x1x16xf32>
    %168 = vector.broadcast %167 : vector<1x1x16xf32> to vector<3x9x16xf32>
    %169 = arith.mulf %165, %168 : vector<3x9x16xf32>
    %170 = arith.addf %161, %169 : vector<3x9x16xf32>
    %c3_i32_143 = arith.constant 3 : i32
    %171 = arith.addi %0, %c3_i32_143 : i32
    %c0_144 = arith.constant 0 : index
    %172 = arith.index_cast %171 : i32 to index
    %c1_145 = arith.constant 1 : index
    %c0_146 = arith.constant 0 : index
    %173 = vector.load %arg2[%c0_144, %172, %c1_145, %c0_146] : memref<1x14x16x16xf32, #tpu.memory_space<vmem>>, vector<1x3x9x16xf32>
    %174 = vector.shape_cast %173 : vector<1x3x9x16xf32> to vector<3x9x16xf32>
    %c0_147 = arith.constant 0 : index
    %c3_148 = arith.constant 3 : index
    %c1_149 = arith.constant 1 : index
    %c0_150 = arith.constant 0 : index
    %175 = vector.load %arg3[%c0_147, %c3_148, %c1_149, %c0_150] : memref<1x6x8x16xf32, #tpu.memory_space<vmem>>, vector<1x1x1x16xf32>
    %176 = vector.shape_cast %175 : vector<1x1x1x16xf32> to vector<1x1x16xf32>
    %177 = vector.broadcast %176 : vector<1x1x16xf32> to vector<3x9x16xf32>
    %178 = arith.mulf %174, %177 : vector<3x9x16xf32>
    %179 = arith.addf %170, %178 : vector<3x9x16xf32>
    %c3_i32_151 = arith.constant 3 : i32
    %180 = arith.addi %0, %c3_i32_151 : i32
    %c0_152 = arith.constant 0 : index
    %181 = arith.index_cast %180 : i32 to index
    %c2_153 = arith.constant 2 : index
    %c0_154 = arith.constant 0 : index
    %182 = vector.load %arg2[%c0_152, %181, %c2_153, %c0_154] : memref<1x14x16x16xf32, #tpu.memory_space<vmem>>, vector<1x3x9x16xf32>
    %183 = vector.shape_cast %182 : vector<1x3x9x16xf32> to vector<3x9x16xf32>
    %c0_155 = arith.constant 0 : index
    %c3_156 = arith.constant 3 : index
    %c2_157 = arith.constant 2 : index
    %c0_158 = arith.constant 0 : index
    %184 = vector.load %arg3[%c0_155, %c3_156, %c2_157, %c0_158] : memref<1x6x8x16xf32, #tpu.memory_space<vmem>>, vector<1x1x1x16xf32>
    %185 = vector.shape_cast %184 : vector<1x1x1x16xf32> to vector<1x1x16xf32>
    %186 = vector.broadcast %185 : vector<1x1x16xf32> to vector<3x9x16xf32>
    %187 = arith.mulf %183, %186 : vector<3x9x16xf32>
    %188 = arith.addf %179, %187 : vector<3x9x16xf32>
    %c3_i32_159 = arith.constant 3 : i32
    %189 = arith.addi %0, %c3_i32_159 : i32
    %c0_160 = arith.constant 0 : index
    %190 = arith.index_cast %189 : i32 to index
    %c3_161 = arith.constant 3 : index
    %c0_162 = arith.constant 0 : index
    %191 = vector.load %arg2[%c0_160, %190, %c3_161, %c0_162] : memref<1x14x16x16xf32, #tpu.memory_space<vmem>>, vector<1x3x9x16xf32>
    %192 = vector.shape_cast %191 : vector<1x3x9x16xf32> to vector<3x9x16xf32>
    %c0_163 = arith.constant 0 : index
    %c3_164 = arith.constant 3 : index
    %c3_165 = arith.constant 3 : index
    %c0_166 = arith.constant 0 : index
    %193 = vector.load %arg3[%c0_163, %c3_164, %c3_165, %c0_166] : memref<1x6x8x16xf32, #tpu.memory_space<vmem>>, vector<1x1x1x16xf32>
    %194 = vector.shape_cast %193 : vector<1x1x1x16xf32> to vector<1x1x16xf32>
    %195 = vector.broadcast %194 : vector<1x1x16xf32> to vector<3x9x16xf32>
    %196 = arith.mulf %192, %195 : vector<3x9x16xf32>
    %197 = arith.addf %188, %196 : vector<3x9x16xf32>
    %c3_i32_167 = arith.constant 3 : i32
    %198 = arith.addi %0, %c3_i32_167 : i32
    %c0_168 = arith.constant 0 : index
    %199 = arith.index_cast %198 : i32 to index
    %c4_169 = arith.constant 4 : index
    %c0_170 = arith.constant 0 : index
    %200 = vector.load %arg2[%c0_168, %199, %c4_169, %c0_170] : memref<1x14x16x16xf32, #tpu.memory_space<vmem>>, vector<1x3x9x16xf32>
    %201 = vector.shape_cast %200 : vector<1x3x9x16xf32> to vector<3x9x16xf32>
    %c0_171 = arith.constant 0 : index
    %c3_172 = arith.constant 3 : index
    %c4_173 = arith.constant 4 : index
    %c0_174 = arith.constant 0 : index
    %202 = vector.load %arg3[%c0_171, %c3_172, %c4_173, %c0_174] : memref<1x6x8x16xf32, #tpu.memory_space<vmem>>, vector<1x1x1x16xf32>
    %203 = vector.shape_cast %202 : vector<1x1x1x16xf32> to vector<1x1x16xf32>
    %204 = vector.broadcast %203 : vector<1x1x16xf32> to vector<3x9x16xf32>
    %205 = arith.mulf %201, %204 : vector<3x9x16xf32>
    %206 = arith.addf %197, %205 : vector<3x9x16xf32>
    %c3_i32_175 = arith.constant 3 : i32
    %207 = arith.addi %0, %c3_i32_175 : i32
    %c0_176 = arith.constant 0 : index
    %208 = arith.index_cast %207 : i32 to index
    %c5_177 = arith.constant 5 : index
    %c0_178 = arith.constant 0 : index
    %209 = vector.load %arg2[%c0_176, %208, %c5_177, %c0_178] : memref<1x14x16x16xf32, #tpu.memory_space<vmem>>, vector<1x3x9x16xf32>
    %210 = vector.shape_cast %209 : vector<1x3x9x16xf32> to vector<3x9x16xf32>
    %c0_179 = arith.constant 0 : index
    %c3_180 = arith.constant 3 : index
    %c5_181 = arith.constant 5 : index
    %c0_182 = arith.constant 0 : index
    %211 = vector.load %arg3[%c0_179, %c3_180, %c5_181, %c0_182] : memref<1x6x8x16xf32, #tpu.memory_space<vmem>>, vector<1x1x1x16xf32>
    %212 = vector.shape_cast %211 : vector<1x1x1x16xf32> to vector<1x1x16xf32>
    %213 = vector.broadcast %212 : vector<1x1x16xf32> to vector<3x9x16xf32>
    %214 = arith.mulf %210, %213 : vector<3x9x16xf32>
    %215 = arith.addf %206, %214 : vector<3x9x16xf32>
    %c4_i32 = arith.constant 4 : i32
    %216 = arith.addi %0, %c4_i32 : i32
    %c0_183 = arith.constant 0 : index
    %217 = arith.index_cast %216 : i32 to index
    %c0_184 = arith.constant 0 : index
    %c0_185 = arith.constant 0 : index
    %218 = vector.load %arg2[%c0_183, %217, %c0_184, %c0_185] : memref<1x14x16x16xf32, #tpu.memory_space<vmem>>, vector<1x3x9x16xf32>
    %219 = vector.shape_cast %218 : vector<1x3x9x16xf32> to vector<3x9x16xf32>
    %c0_186 = arith.constant 0 : index
    %c4_187 = arith.constant 4 : index
    %c0_188 = arith.constant 0 : index
    %c0_189 = arith.constant 0 : index
    %220 = vector.load %arg3[%c0_186, %c4_187, %c0_188, %c0_189] : memref<1x6x8x16xf32, #tpu.memory_space<vmem>>, vector<1x1x1x16xf32>
    %221 = vector.shape_cast %220 : vector<1x1x1x16xf32> to vector<1x1x16xf32>
    %222 = vector.broadcast %221 : vector<1x1x16xf32> to vector<3x9x16xf32>
    %223 = arith.mulf %219, %222 : vector<3x9x16xf32>
    %224 = arith.addf %215, %223 : vector<3x9x16xf32>
    %c4_i32_190 = arith.constant 4 : i32
    %225 = arith.addi %0, %c4_i32_190 : i32
    %c0_191 = arith.constant 0 : index
    %226 = arith.index_cast %225 : i32 to index
    %c1_192 = arith.constant 1 : index
    %c0_193 = arith.constant 0 : index
    %227 = vector.load %arg2[%c0_191, %226, %c1_192, %c0_193] : memref<1x14x16x16xf32, #tpu.memory_space<vmem>>, vector<1x3x9x16xf32>
    %228 = vector.shape_cast %227 : vector<1x3x9x16xf32> to vector<3x9x16xf32>
    %c0_194 = arith.constant 0 : index
    %c4_195 = arith.constant 4 : index
    %c1_196 = arith.constant 1 : index
    %c0_197 = arith.constant 0 : index
    %229 = vector.load %arg3[%c0_194, %c4_195, %c1_196, %c0_197] : memref<1x6x8x16xf32, #tpu.memory_space<vmem>>, vector<1x1x1x16xf32>
    %230 = vector.shape_cast %229 : vector<1x1x1x16xf32> to vector<1x1x16xf32>
    %231 = vector.broadcast %230 : vector<1x1x16xf32> to vector<3x9x16xf32>
    %232 = arith.mulf %228, %231 : vector<3x9x16xf32>
    %233 = arith.addf %224, %232 : vector<3x9x16xf32>
    %c4_i32_198 = arith.constant 4 : i32
    %234 = arith.addi %0, %c4_i32_198 : i32
    %c0_199 = arith.constant 0 : index
    %235 = arith.index_cast %234 : i32 to index
    %c2_200 = arith.constant 2 : index
    %c0_201 = arith.constant 0 : index
    %236 = vector.load %arg2[%c0_199, %235, %c2_200, %c0_201] : memref<1x14x16x16xf32, #tpu.memory_space<vmem>>, vector<1x3x9x16xf32>
    %237 = vector.shape_cast %236 : vector<1x3x9x16xf32> to vector<3x9x16xf32>
    %c0_202 = arith.constant 0 : index
    %c4_203 = arith.constant 4 : index
    %c2_204 = arith.constant 2 : index
    %c0_205 = arith.constant 0 : index
    %238 = vector.load %arg3[%c0_202, %c4_203, %c2_204, %c0_205] : memref<1x6x8x16xf32, #tpu.memory_space<vmem>>, vector<1x1x1x16xf32>
    %239 = vector.shape_cast %238 : vector<1x1x1x16xf32> to vector<1x1x16xf32>
    %240 = vector.broadcast %239 : vector<1x1x16xf32> to vector<3x9x16xf32>
    %241 = arith.mulf %237, %240 : vector<3x9x16xf32>
    %242 = arith.addf %233, %241 : vector<3x9x16xf32>
    %c4_i32_206 = arith.constant 4 : i32
    %243 = arith.addi %0, %c4_i32_206 : i32
    %c0_207 = arith.constant 0 : index
    %244 = arith.index_cast %243 : i32 to index
    %c3_208 = arith.constant 3 : index
    %c0_209 = arith.constant 0 : index
    %245 = vector.load %arg2[%c0_207, %244, %c3_208, %c0_209] : memref<1x14x16x16xf32, #tpu.memory_space<vmem>>, vector<1x3x9x16xf32>
    %246 = vector.shape_cast %245 : vector<1x3x9x16xf32> to vector<3x9x16xf32>
    %c0_210 = arith.constant 0 : index
    %c4_211 = arith.constant 4 : index
    %c3_212 = arith.constant 3 : index
    %c0_213 = arith.constant 0 : index
    %247 = vector.load %arg3[%c0_210, %c4_211, %c3_212, %c0_213] : memref<1x6x8x16xf32, #tpu.memory_space<vmem>>, vector<1x1x1x16xf32>
    %248 = vector.shape_cast %247 : vector<1x1x1x16xf32> to vector<1x1x16xf32>
    %249 = vector.broadcast %248 : vector<1x1x16xf32> to vector<3x9x16xf32>
    %250 = arith.mulf %246, %249 : vector<3x9x16xf32>
    %251 = arith.addf %242, %250 : vector<3x9x16xf32>
    %c4_i32_214 = arith.constant 4 : i32
    %252 = arith.addi %0, %c4_i32_214 : i32
    %c0_215 = arith.constant 0 : index
    %253 = arith.index_cast %252 : i32 to index
    %c4_216 = arith.constant 4 : index
    %c0_217 = arith.constant 0 : index
    %254 = vector.load %arg2[%c0_215, %253, %c4_216, %c0_217] : memref<1x14x16x16xf32, #tpu.memory_space<vmem>>, vector<1x3x9x16xf32>
    %255 = vector.shape_cast %254 : vector<1x3x9x16xf32> to vector<3x9x16xf32>
    %c0_218 = arith.constant 0 : index
    %c4_219 = arith.constant 4 : index
    %c4_220 = arith.constant 4 : index
    %c0_221 = arith.constant 0 : index
    %256 = vector.load %arg3[%c0_218, %c4_219, %c4_220, %c0_221] : memref<1x6x8x16xf32, #tpu.memory_space<vmem>>, vector<1x1x1x16xf32>
    %257 = vector.shape_cast %256 : vector<1x1x1x16xf32> to vector<1x1x16xf32>
    %258 = vector.broadcast %257 : vector<1x1x16xf32> to vector<3x9x16xf32>
    %259 = arith.mulf %255, %258 : vector<3x9x16xf32>
    %260 = arith.addf %251, %259 : vector<3x9x16xf32>
    %c4_i32_222 = arith.constant 4 : i32
    %261 = arith.addi %0, %c4_i32_222 : i32
    %c0_223 = arith.constant 0 : index
    %262 = arith.index_cast %261 : i32 to index
    %c5_224 = arith.constant 5 : index
    %c0_225 = arith.constant 0 : index
    %263 = vector.load %arg2[%c0_223, %262, %c5_224, %c0_225] : memref<1x14x16x16xf32, #tpu.memory_space<vmem>>, vector<1x3x9x16xf32>
    %264 = vector.shape_cast %263 : vector<1x3x9x16xf32> to vector<3x9x16xf32>
    %c0_226 = arith.constant 0 : index
    %c4_227 = arith.constant 4 : index
    %c5_228 = arith.constant 5 : index
    %c0_229 = arith.constant 0 : index
    %265 = vector.load %arg3[%c0_226, %c4_227, %c5_228, %c0_229] : memref<1x6x8x16xf32, #tpu.memory_space<vmem>>, vector<1x1x1x16xf32>
    %266 = vector.shape_cast %265 : vector<1x1x1x16xf32> to vector<1x1x16xf32>
    %267 = vector.broadcast %266 : vector<1x1x16xf32> to vector<3x9x16xf32>
    %268 = arith.mulf %264, %267 : vector<3x9x16xf32>
    %269 = arith.addf %260, %268 : vector<3x9x16xf32>
    %c5_i32 = arith.constant 5 : i32
    %270 = arith.addi %0, %c5_i32 : i32
    %c0_230 = arith.constant 0 : index
    %271 = arith.index_cast %270 : i32 to index
    %c0_231 = arith.constant 0 : index
    %c0_232 = arith.constant 0 : index
    %272 = vector.load %arg2[%c0_230, %271, %c0_231, %c0_232] : memref<1x14x16x16xf32, #tpu.memory_space<vmem>>, vector<1x3x9x16xf32>
    %273 = vector.shape_cast %272 : vector<1x3x9x16xf32> to vector<3x9x16xf32>
    %c0_233 = arith.constant 0 : index
    %c5_234 = arith.constant 5 : index
    %c0_235 = arith.constant 0 : index
    %c0_236 = arith.constant 0 : index
    %274 = vector.load %arg3[%c0_233, %c5_234, %c0_235, %c0_236] : memref<1x6x8x16xf32, #tpu.memory_space<vmem>>, vector<1x1x1x16xf32>
    %275 = vector.shape_cast %274 : vector<1x1x1x16xf32> to vector<1x1x16xf32>
    %276 = vector.broadcast %275 : vector<1x1x16xf32> to vector<3x9x16xf32>
    %277 = arith.mulf %273, %276 : vector<3x9x16xf32>
    %278 = arith.addf %269, %277 : vector<3x9x16xf32>
    %c5_i32_237 = arith.constant 5 : i32
    %279 = arith.addi %0, %c5_i32_237 : i32
    %c0_238 = arith.constant 0 : index
    %280 = arith.index_cast %279 : i32 to index
    %c1_239 = arith.constant 1 : index
    %c0_240 = arith.constant 0 : index
    %281 = vector.load %arg2[%c0_238, %280, %c1_239, %c0_240] : memref<1x14x16x16xf32, #tpu.memory_space<vmem>>, vector<1x3x9x16xf32>
    %282 = vector.shape_cast %281 : vector<1x3x9x16xf32> to vector<3x9x16xf32>
    %c0_241 = arith.constant 0 : index
    %c5_242 = arith.constant 5 : index
    %c1_243 = arith.constant 1 : index
    %c0_244 = arith.constant 0 : index
    %283 = vector.load %arg3[%c0_241, %c5_242, %c1_243, %c0_244] : memref<1x6x8x16xf32, #tpu.memory_space<vmem>>, vector<1x1x1x16xf32>
    %284 = vector.shape_cast %283 : vector<1x1x1x16xf32> to vector<1x1x16xf32>
    %285 = vector.broadcast %284 : vector<1x1x16xf32> to vector<3x9x16xf32>
    %286 = arith.mulf %282, %285 : vector<3x9x16xf32>
    %287 = arith.addf %278, %286 : vector<3x9x16xf32>
    %c5_i32_245 = arith.constant 5 : i32
    %288 = arith.addi %0, %c5_i32_245 : i32
    %c0_246 = arith.constant 0 : index
    %289 = arith.index_cast %288 : i32 to index
    %c2_247 = arith.constant 2 : index
    %c0_248 = arith.constant 0 : index
    %290 = vector.load %arg2[%c0_246, %289, %c2_247, %c0_248] : memref<1x14x16x16xf32, #tpu.memory_space<vmem>>, vector<1x3x9x16xf32>
    %291 = vector.shape_cast %290 : vector<1x3x9x16xf32> to vector<3x9x16xf32>
    %c0_249 = arith.constant 0 : index
    %c5_250 = arith.constant 5 : index
    %c2_251 = arith.constant 2 : index
    %c0_252 = arith.constant 0 : index
    %292 = vector.load %arg3[%c0_249, %c5_250, %c2_251, %c0_252] : memref<1x6x8x16xf32, #tpu.memory_space<vmem>>, vector<1x1x1x16xf32>
    %293 = vector.shape_cast %292 : vector<1x1x1x16xf32> to vector<1x1x16xf32>
    %294 = vector.broadcast %293 : vector<1x1x16xf32> to vector<3x9x16xf32>
    %295 = arith.mulf %291, %294 : vector<3x9x16xf32>
    %296 = arith.addf %287, %295 : vector<3x9x16xf32>
    %c5_i32_253 = arith.constant 5 : i32
    %297 = arith.addi %0, %c5_i32_253 : i32
    %c0_254 = arith.constant 0 : index
    %298 = arith.index_cast %297 : i32 to index
    %c3_255 = arith.constant 3 : index
    %c0_256 = arith.constant 0 : index
    %299 = vector.load %arg2[%c0_254, %298, %c3_255, %c0_256] : memref<1x14x16x16xf32, #tpu.memory_space<vmem>>, vector<1x3x9x16xf32>
    %300 = vector.shape_cast %299 : vector<1x3x9x16xf32> to vector<3x9x16xf32>
    %c0_257 = arith.constant 0 : index
    %c5_258 = arith.constant 5 : index
    %c3_259 = arith.constant 3 : index
    %c0_260 = arith.constant 0 : index
    %301 = vector.load %arg3[%c0_257, %c5_258, %c3_259, %c0_260] : memref<1x6x8x16xf32, #tpu.memory_space<vmem>>, vector<1x1x1x16xf32>
    %302 = vector.shape_cast %301 : vector<1x1x1x16xf32> to vector<1x1x16xf32>
    %303 = vector.broadcast %302 : vector<1x1x16xf32> to vector<3x9x16xf32>
    %304 = arith.mulf %300, %303 : vector<3x9x16xf32>
    %305 = arith.addf %296, %304 : vector<3x9x16xf32>
    %c5_i32_261 = arith.constant 5 : i32
    %306 = arith.addi %0, %c5_i32_261 : i32
    %c0_262 = arith.constant 0 : index
    %307 = arith.index_cast %306 : i32 to index
    %c4_263 = arith.constant 4 : index
    %c0_264 = arith.constant 0 : index
    %308 = vector.load %arg2[%c0_262, %307, %c4_263, %c0_264] : memref<1x14x16x16xf32, #tpu.memory_space<vmem>>, vector<1x3x9x16xf32>
    %309 = vector.shape_cast %308 : vector<1x3x9x16xf32> to vector<3x9x16xf32>
    %c0_265 = arith.constant 0 : index
    %c5_266 = arith.constant 5 : index
    %c4_267 = arith.constant 4 : index
    %c0_268 = arith.constant 0 : index
    %310 = vector.load %arg3[%c0_265, %c5_266, %c4_267, %c0_268] : memref<1x6x8x16xf32, #tpu.memory_space<vmem>>, vector<1x1x1x16xf32>
    %311 = vector.shape_cast %310 : vector<1x1x1x16xf32> to vector<1x1x16xf32>
    %312 = vector.broadcast %311 : vector<1x1x16xf32> to vector<3x9x16xf32>
    %313 = arith.mulf %309, %312 : vector<3x9x16xf32>
    %314 = arith.addf %305, %313 : vector<3x9x16xf32>
    %c5_i32_269 = arith.constant 5 : i32
    %315 = arith.addi %0, %c5_i32_269 : i32
    %c0_270 = arith.constant 0 : index
    %316 = arith.index_cast %315 : i32 to index
    %c5_271 = arith.constant 5 : index
    %c0_272 = arith.constant 0 : index
    %317 = vector.load %arg2[%c0_270, %316, %c5_271, %c0_272] : memref<1x14x16x16xf32, #tpu.memory_space<vmem>>, vector<1x3x9x16xf32>
    %318 = vector.shape_cast %317 : vector<1x3x9x16xf32> to vector<3x9x16xf32>
    %c0_273 = arith.constant 0 : index
    %c5_274 = arith.constant 5 : index
    %c5_275 = arith.constant 5 : index
    %c0_276 = arith.constant 0 : index
    %319 = vector.load %arg3[%c0_273, %c5_274, %c5_275, %c0_276] : memref<1x6x8x16xf32, #tpu.memory_space<vmem>>, vector<1x1x1x16xf32>
    %320 = vector.shape_cast %319 : vector<1x1x1x16xf32> to vector<1x1x16xf32>
    %321 = vector.broadcast %320 : vector<1x1x16xf32> to vector<3x9x16xf32>
    %322 = arith.mulf %318, %321 : vector<3x9x16xf32>
    %323 = arith.addf %314, %322 : vector<3x9x16xf32>
    %c0_277 = arith.constant 0 : index
    %c0_278 = arith.constant 0 : index
    %324 = vector.load %arg4[%c0_277, %c0_278] : memref<16x16xbf16, #tpu.memory_space<vmem>>, vector<16x16xbf16>
    %c0_279 = arith.constant 0 : index
    %c0_280 = arith.constant 0 : index
    %325 = vector.load %arg6[%c0_279, %c0_280] : memref<16x128xbf16, #tpu.memory_space<vmem>>, vector<16x128xbf16>
    %c0_281 = arith.constant 0 : index
    %c0_282 = arith.constant 0 : index
    %326 = vector.load %arg5[%c0_281, %c0_282] : memref<1x16xf32, #tpu.memory_space<vmem>>, vector<1x16xf32>
    %c0_283 = arith.constant 0 : index
    %c0_284 = arith.constant 0 : index
    %327 = vector.load %arg7[%c0_283, %c0_284] : memref<1x128xf32, #tpu.memory_space<vmem>>, vector<1x128xf32>
    %328 = vector.extract_strided_slice %323 {offsets = [0, 0, 0], sizes = [1, 9, 16], strides = [1, 1, 1]} : vector<3x9x16xf32> to vector<1x9x16xf32>
    %329 = vector.shape_cast %328 : vector<1x9x16xf32> to vector<9x16xf32>
    %330 = arith.truncf %329 : vector<9x16xf32> to vector<9x16xbf16>
    %cst = arith.constant dense<0.000000e+00> : vector<9x16xf32>
    %331 = tpu.matmul %330, %324, %cst {dimension_numbers = #tpu.dot_dimension_numbers<[1], [0], [0], [1], [0, 0, 1, 1], [], []>} : vector<9x16xbf16>, vector<16x16xbf16>, vector<9x16xf32> -> vector<9x16xf32>
    %332 = vector.broadcast %326 : vector<1x16xf32> to vector<9x16xf32>
    %333 = arith.addf %331, %332 : vector<9x16xf32>
    %cst_285 = arith.constant 0.000000e+00 : f32
    %334 = vector.broadcast %cst_285 : f32 to vector<9x16xf32>
    %335 = arith.maximumf %333, %334 : vector<9x16xf32>
    %336 = arith.truncf %335 : vector<9x16xf32> to vector<9x16xbf16>
    %cst_286 = arith.constant dense<0.000000e+00> : vector<9x128xf32>
    %337 = tpu.matmul %336, %325, %cst_286 {dimension_numbers = #tpu.dot_dimension_numbers<[1], [0], [0], [1], [0, 0, 1, 1], [], []>} : vector<9x16xbf16>, vector<16x128xbf16>, vector<9x128xf32> -> vector<9x128xf32>
    %338 = vector.broadcast %327 : vector<1x128xf32> to vector<9x128xf32>
    %339 = arith.addf %337, %338 : vector<9x128xf32>
    %c0_287 = arith.constant 0 : index
    %c0_288 = arith.constant 0 : index
    %c0_289 = arith.constant 0 : index
    %c0_290 = arith.constant 0 : index
    %340 = vector.load %arg8[%c0_287, %c0_288, %c0_289, %c0_290] : memref<1x3x9x128xf32, #tpu.memory_space<vmem>>, vector<1x1x9x128xf32>
    %341 = vector.shape_cast %340 : vector<1x1x9x128xf32> to vector<9x128xf32>
    %342 = vector.shape_cast %339 : vector<9x128xf32> to vector<1x1x9x128xf32>
    tpu.vector_store %arg8[%c0_287, %c0_288, %c0_289, %c0_290], %342 {strides = array<i32>} : memref<1x3x9x128xf32, #tpu.memory_space<vmem>>, vector<1x1x9x128xf32>,
    %343 = vector.extract_strided_slice %323 {offsets = [1, 0, 0], sizes = [1, 9, 16], strides = [1, 1, 1]} : vector<3x9x16xf32> to vector<1x9x16xf32>
    %344 = vector.shape_cast %343 : vector<1x9x16xf32> to vector<9x16xf32>
    %345 = arith.truncf %344 : vector<9x16xf32> to vector<9x16xbf16>
    %cst_291 = arith.constant dense<0.000000e+00> : vector<9x16xf32>
    %346 = tpu.matmul %345, %324, %cst_291 {dimension_numbers = #tpu.dot_dimension_numbers<[1], [0], [0], [1], [0, 0, 1, 1], [], []>} : vector<9x16xbf16>, vector<16x16xbf16>, vector<9x16xf32> -> vector<9x16xf32>
    %347 = vector.broadcast %326 : vector<1x16xf32> to vector<9x16xf32>
    %348 = arith.addf %346, %347 : vector<9x16xf32>
    %cst_292 = arith.constant 0.000000e+00 : f32
    %349 = vector.broadcast %cst_292 : f32 to vector<9x16xf32>
    %350 = arith.maximumf %348, %349 : vector<9x16xf32>
    %351 = arith.truncf %350 : vector<9x16xf32> to vector<9x16xbf16>
    %cst_293 = arith.constant dense<0.000000e+00> : vector<9x128xf32>
    %352 = tpu.matmul %351, %325, %cst_293 {dimension_numbers = #tpu.dot_dimension_numbers<[1], [0], [0], [1], [0, 0, 1, 1], [], []>} : vector<9x16xbf16>, vector<16x128xbf16>, vector<9x128xf32> -> vector<9x128xf32>
    %353 = vector.broadcast %327 : vector<1x128xf32> to vector<9x128xf32>
    %354 = arith.addf %352, %353 : vector<9x128xf32>
    %c0_294 = arith.constant 0 : index
    %c1_295 = arith.constant 1 : index
    %c0_296 = arith.constant 0 : index
    %c0_297 = arith.constant 0 : index
    %355 = vector.load %arg8[%c0_294, %c1_295, %c0_296, %c0_297] : memref<1x3x9x128xf32, #tpu.memory_space<vmem>>, vector<1x1x9x128xf32>
    %356 = vector.shape_cast %355 : vector<1x1x9x128xf32> to vector<9x128xf32>
    %357 = vector.shape_cast %354 : vector<9x128xf32> to vector<1x1x9x128xf32>
    tpu.vector_store %arg8[%c0_294, %c1_295, %c0_296, %c0_297], %357 {strides = array<i32>} : memref<1x3x9x128xf32, #tpu.memory_space<vmem>>, vector<1x1x9x128xf32>,
    %358 = vector.extract_strided_slice %323 {offsets = [2, 0, 0], sizes = [1, 9, 16], strides = [1, 1, 1]} : vector<3x9x16xf32> to vector<1x9x16xf32>
    %359 = vector.shape_cast %358 : vector<1x9x16xf32> to vector<9x16xf32>
    %360 = arith.truncf %359 : vector<9x16xf32> to vector<9x16xbf16>
    %cst_298 = arith.constant dense<0.000000e+00> : vector<9x16xf32>
    %361 = tpu.matmul %360, %324, %cst_298 {dimension_numbers = #tpu.dot_dimension_numbers<[1], [0], [0], [1], [0, 0, 1, 1], [], []>} : vector<9x16xbf16>, vector<16x16xbf16>, vector<9x16xf32> -> vector<9x16xf32>
    %362 = vector.broadcast %326 : vector<1x16xf32> to vector<9x16xf32>
    %363 = arith.addf %361, %362 : vector<9x16xf32>
    %cst_299 = arith.constant 0.000000e+00 : f32
    %364 = vector.broadcast %cst_299 : f32 to vector<9x16xf32>
    %365 = arith.maximumf %363, %364 : vector<9x16xf32>
    %366 = arith.truncf %365 : vector<9x16xf32> to vector<9x16xbf16>
    %cst_300 = arith.constant dense<0.000000e+00> : vector<9x128xf32>
    %367 = tpu.matmul %366, %325, %cst_300 {dimension_numbers = #tpu.dot_dimension_numbers<[1], [0], [0], [1], [0, 0, 1, 1], [], []>} : vector<9x16xbf16>, vector<16x128xbf16>, vector<9x128xf32> -> vector<9x128xf32>
    %368 = vector.broadcast %327 : vector<1x128xf32> to vector<9x128xf32>
    %369 = arith.addf %367, %368 : vector<9x128xf32>
    %c0_301 = arith.constant 0 : index
    %c2_302 = arith.constant 2 : index
    %c0_303 = arith.constant 0 : index
    %c0_304 = arith.constant 0 : index
    %370 = vector.load %arg8[%c0_301, %c2_302, %c0_303, %c0_304] : memref<1x3x9x128xf32, #tpu.memory_space<vmem>>, vector<1x1x9x128xf32>
    %371 = vector.shape_cast %370 : vector<1x1x9x128xf32> to vector<9x128xf32>
    %372 = vector.shape_cast %369 : vector<9x128xf32> to vector<1x1x9x128xf32>
    tpu.vector_store %arg8[%c0_301, %c2_302, %c0_303, %c0_304], %372 {strides = array<i32>} : memref<1x3x9x128xf32, #tpu.memory_space<vmem>>, vector<1x1x9x128xf32>,
    return
  }
  func.func @transform_0(%arg0: i32, %arg1: i32) -> (i32, i32, i32, i32) {
    %c0_i32 = arith.constant 0 : i32
    %c0_i32_0 = arith.constant 0 : i32
    %c0_i32_1 = arith.constant 0 : i32
    %c0_i32_2 = arith.constant 0 : i32
    return %arg0, %c0_i32, %c0_i32_0, %c0_i32_1 : i32, i32, i32, i32
  }
  func.func @transform_1(%arg0: i32, %arg1: i32) -> (i32, i32, i32, i32) {
    %c0_i32 = arith.constant 0 : i32
    %c0_i32_0 = arith.constant 0 : i32
    %c0_i32_1 = arith.constant 0 : i32
    %c0_i32_2 = arith.constant 0 : i32
    return %arg0, %c0_i32, %c0_i32_0, %c0_i32_1 : i32, i32, i32, i32
  }
  func.func @transform_2(%arg0: i32, %arg1: i32) -> (i32, i32) {
    %c0_i32 = arith.constant 0 : i32
    %c0_i32_0 = arith.constant 0 : i32
    %c0_i32_1 = arith.constant 0 : i32
    return %c0_i32, %c0_i32_0 : i32, i32
  }
  func.func @transform_3(%arg0: i32, %arg1: i32) -> (i32, i32) {
    %c0_i32 = arith.constant 0 : i32
    %c0_i32_0 = arith.constant 0 : i32
    %c0_i32_1 = arith.constant 0 : i32
    return %c0_i32, %c0_i32_0 : i32, i32
  }
  func.func @transform_4(%arg0: i32, %arg1: i32) -> (i32, i32) {
    %c0_i32 = arith.constant 0 : i32
    %c0_i32_0 = arith.constant 0 : i32
    %c0_i32_1 = arith.constant 0 : i32
    return %c0_i32, %c0_i32_0 : i32, i32
  }
  func.func @transform_5(%arg0: i32, %arg1: i32) -> (i32, i32) {
    %c0_i32 = arith.constant 0 : i32
    %c0_i32_0 = arith.constant 0 : i32
    %c0_i32_1 = arith.constant 0 : i32
    return %c0_i32, %c0_i32_0 : i32, i32
  }
  func.func @transform_6(%arg0: i32, %arg1: i32) -> (i32, i32, i32, i32) {
    %c0_i32 = arith.constant 0 : i32
    %c0_i32_0 = arith.constant 0 : i32
    %c0_i32_1 = arith.constant 0 : i32
    return %arg0, %arg1, %c0_i32, %c0_i32_0 : i32, i32, i32, i32
  }
}

</mosaic_0001>

<llo_original>
// kernel: depthwise_xcorr_forward.3
$region0: #{depthwise_xcorr_forward.3}
  #allocation0 [shape = 'u32[]', space=smem, size = 0x4, offset = 0x4, fixed_abs, tag = 'smem constant byte address 0x4 - core index']
  #allocation1 [shape = 'u32[144,128]{1,0:T(1,128)}', space=vmem, size = 0x12000, scoped, tag = 'internal scratch']
  %s0 = inlined_call_operand.vmem [shape: bf16[2,66,4], index: 0, kind: input, shape index: {}]
  %s1 = inlined_call_operand.vmem [shape: bf16[9,4,16], index: 1, kind: input, shape index: {}]
  %s2 = inlined_call_operand.vmem [shape: f32[1,16], index: 2, kind: input, shape index: {}]
  %s3 = inlined_call_operand.vmem [shape: f32[2,48,16], index: 3, kind: output, shape index: {}]
  %s4 = sld [smem:[#allocation0]]
  $region45: #{depthwise_xcorr_forward.3} parent=0
    _
  %s6 = ssub.s32 1, %s4
  %s7 = scalar_select 0, %s6, %s4
  loop: start=0, step=1, limit=4
  $region2: #{depthwise_xcorr_forward.3} parent=0 // loop_pre_header
    _
  $region3: #{depthwise_xcorr_forward.3} parent=0 // loop_header
    %s9 = sphi 0, %s13
    %p10 = scmp.ge.s32.totalorder %s9, 4
    %s16 = sphi 0, %s28
    %s17 = sphi 0, %s24
    %s18 = sphi 0, %s16
    %s19 = sphi 0, %s17
    %s20 = sphi 0, %s18
    %s21 = sphi 0, %s19
    %s31 = sphi 0, %s33
    %s34 = sphi 0, %s31
    %s35 = sphi 0, %s34
    %s51 = sphi 0, %s35
    %s57 = sphi 0, %s59
    %s60 = sphi 0, %s57
    %s61 = sphi 0, %s60
    %s77 = sphi 0, %s61
    %s83 = sphi 0, %s85
    %s86 = sphi 0, %s83
    %s87 = sphi 0, %s86
    %s103 = sphi 0, %s87
    %s111 = sphi 0, %s113
    %s114 = sphi 0, %s111
    %s115 = sphi 0, %s114
    %s131 = sphi 0, %s115
  $region4: #{depthwise_xcorr_forward.3} parent=0 // loop_header_branch
    %12 = sbr.rel (%p10) target = $region8
  $region5: #{depthwise_xcorr_forward.3} parent=0 // loop_body
    %s14 = ssub.s32 %s9, 1
    %s15 = ssub.s32 %s9, 2
    %s22 = sadd.s32 1, %s17
    %p23 = scmp.ge.s32.totalorder %s22, 1
    %s24 = scalar_select %p23, 0, %s22
    %s25 = sadd.s32 1, %s16
    %s26 = scalar_select %p23, %s25, %s16
    %p27 = scmp.ge.s32.totalorder %s26, 2
    %s28 = scalar_select %p27, 0, %s26
    %s29 = ssub.s32 %s16, %s28
    %p30 = scmp.eq.s32.totalorder %s29, 0
    %s32 = sadd.s32 %s31, 1
    %s33 = scalar_select %p30, %s31, %s32
    %p36 = pneg %p30
    %p37 = scmp.eq.s32.totalorder %s9, 1
    %p38 = por %p36, %p37
    %p39 = scmp.ne.s32.totalorder %s31, %s34
    %p40 = scmp.eq.s32.totalorder %s9, 0
    %p41 = por %p39, %p40
    %p42 = scmp.ne.s32.totalorder %s31, %s34
    %p43 = scmp.eq.s32.totalorder %s14, 1
    %p44 = por %p42, %p43
    %p45 = scmp.ne.s32.totalorder %s34, %s35
    %p46 = scmp.eq.s32.totalorder %s14, 0
    %p47 = por %p45, %p46
    %p48 = scmp.ne.s32.totalorder %s34, %s35
    %p49 = scmp.eq.s32.totalorder %s15, 1
    %p50 = por %p48, %p49
    %p52 = scmp.ne.s32.totalorder %s35, %s51
    %p53 = scmp.eq.s32.totalorder %s15, 0
    %p54 = por %p52, %p53
    %s55 = ssub.s32 %s17, %s24
    %p56 = scmp.eq.s32.totalorder %s55, 0
    %s58 = sadd.s32 %s57, 1
    %s59 = scalar_select %p56, %s57, %s58
    %p62 = pneg %p56
    %p63 = scmp.eq.s32.totalorder %s9, 1
    %p64 = por %p62, %p63
    %p65 = scmp.ne.s32.totalorder %s57, %s60
    %p66 = scmp.eq.s32.totalorder %s9, 0
    %p67 = por %p65, %p66
    %p68 = scmp.ne.s32.totalorder %s57, %s60
    %p69 = scmp.eq.s32.totalorder %s14, 1
    %p70 = por %p68, %p69
    %p71 = scmp.ne.s32.totalorder %s60, %s61
    %p72 = scmp.eq.s32.totalorder %s14, 0
    %p73 = por %p71, %p72
    %p74 = scmp.ne.s32.totalorder %s60, %s61
    %p75 = scmp.eq.s32.totalorder %s15, 1
    %p76 = por %p74, %p75
    %p78 = scmp.ne.s32.totalorder %s61, %s77
    %p79 = scmp.eq.s32.totalorder %s15, 0
    %p80 = por %p78, %p79
    %s81 = ssub.s32 %s17, %s24
    %p82 = scmp.eq.s32.totalorder %s81, 0
    %s84 = sadd.s32 %s83, 1
    %s85 = scalar_select %p82, %s83, %s84
    %p88 = pneg %p82
    %p89 = scmp.eq.s32.totalorder %s9, 1
    %p90 = por %p88, %p89
    %p91 = scmp.ne.s32.totalorder %s83, %s86
    %p92 = scmp.eq.s32.totalorder %s9, 0
    %p93 = por %p91, %p92
    %p94 = scmp.ne.s32.totalorder %s83, %s86
    %p95 = scmp.eq.s32.totalorder %s14, 1
    %p96 = por %p94, %p95
    %p97 = scmp.ne.s32.totalorder %s86, %s87
    %p98 = scmp.eq.s32.totalorder %s14, 0
    %p99 = por %p97, %p98
    %p100 = scmp.ne.s32.totalorder %s86, %s87
    %p101 = scmp.eq.s32.totalorder %s15, 1
    %p102 = por %p100, %p101
    %p104 = scmp.ne.s32.totalorder %s87, %s103
    %p105 = scmp.eq.s32.totalorder %s15, 0
    %p106 = por %p104, %p105
    %s107 = ssub.s32 %s16, %s28
    %s108 = ssub.s32 %s17, %s24
    %s109 = sor.u32 %s107, %s108
    %p110 = scmp.eq.s32.totalorder %s109, 0
    %s112 = sadd.s32 %s111, 1
    %s113 = scalar_select %p110, %s111, %s112
    %p116 = pneg %p110
    %p117 = scmp.eq.s32.totalorder %s9, 1
    %p118 = por %p116, %p117
    %p119 = scmp.ne.s32.totalorder %s111, %s114
    %p120 = scmp.eq.s32.totalorder %s9, 0
    %p121 = por %p119, %p120
    %p122 = scmp.ne.s32.totalorder %s111, %s114
    %p123 = scmp.eq.s32.totalorder %s14, 1
    %p124 = por %p122, %p123
    %p125 = scmp.ne.s32.totalorder %s114, %s115
    %p126 = scmp.eq.s32.totalorder %s14, 0
    %p127 = por %p125, %p126
    %p128 = scmp.ne.s32.totalorder %s114, %s115
    %p129 = scmp.eq.s32.totalorder %s15, 1
    %p130 = por %p128, %p129
    %p132 = scmp.ne.s32.totalorder %s115, %s131
    %p133 = scmp.eq.s32.totalorder %s15, 0
    %p134 = por %p132, %p133
    %p135 = scmp.le.s32.totalorder 1, %s9
    %p136 = scmp.lt.s32.totalorder %s9, 3
    %p137 = pnand %p135, %p136
    %p138 = pneg %p137
    // Predicated region
    $region9: #{depthwise_xcorr_forward.3} parent=5 // pred_check
      _
    $region10: #{depthwise_xcorr_forward.3} parent=5 // pred_check_branch
      %140 = sbr.rel (%p137) target = $region12
    $region11: #{depthwise_xcorr_forward.3} parent=5 // pred_region
      %s141 = ssub.s32 %s9, 1
      // Predicated region
      $region13: #{depthwise_xcorr_forward.3} parent=11 // pred_check
        %p142 = pneg %p73
      $region14: #{depthwise_xcorr_forward.3} parent=11 // pred_check_branch
        %144 = sbr.rel (%p142) target = $region16
      $region15: #{depthwise_xcorr_forward.3} parent=11 // pred_region
        %p145 = scmp.lt.s32.totalorder %s19, 0
        %s146 = scalar_select %p145, %s19, 0
        %s147 = smul.addr %s146, 2
        %s148 = scalar_lea.vmem %s1, %s147
      $region16: #{depthwise_xcorr_forward.3} parent=11 // pred_fallthru
        _
      // Predicated region
      $region17: #{depthwise_xcorr_forward.3} parent=11 // pred_check
        %p149 = pneg %p99
      $region18: #{depthwise_xcorr_forward.3} parent=11 // pred_check_branch
        %151 = sbr.rel (%p149) target = $region20
      $region19: #{depthwise_xcorr_forward.3} parent=11 // pred_region
        %p152 = scmp.lt.s32.totalorder %s19, 0
        %s153 = scalar_select %p152, %s19, 0
        %s154 = scalar_lea.vmem %s2, %s153
      $region20: #{depthwise_xcorr_forward.3} parent=11 // pred_fallthru
        _
    $region12: #{depthwise_xcorr_forward.3} parent=5 // pred_fallthru
      _
    %p155 = scmp.lt.s32.totalorder %s9, 2
    // Predicated region
    $region21: #{depthwise_xcorr_forward.3} parent=5 // pred_check
      %p156 = pneg %p155
    $region22: #{depthwise_xcorr_forward.3} parent=5 // pred_check_branch
      %158 = sbr.rel (%p156) target = $region24
    $region23: #{depthwise_xcorr_forward.3} parent=5 // pred_region
      // Predicated region
      $region25: #{depthwise_xcorr_forward.3} parent=23 // pred_check
        %p159 = pneg %p41
      $region26: #{depthwise_xcorr_forward.3} parent=23 // pred_check_branch
        %161 = sbr.rel (%p159) target = $region28
      $region27: #{depthwise_xcorr_forward.3} parent=23 // pred_region
        %p162 = scmp.lt.s32.totalorder %s16, 1
        %s163 = scalar_select %p162, %s16, 1
        %s164 = smul.addr %s163, 9
        %s165 = smul.addr %s164, 4
        %s166 = scalar_lea.vmem %s0, %s165
      $region28: #{depthwise_xcorr_forward.3} parent=23 // pred_fallthru
        _
    $region24: #{depthwise_xcorr_forward.3} parent=5 // pred_fallthru
      _
    %p167 = scmp.le.s32.totalorder 1, %s9
    %p168 = scmp.lt.s32.totalorder %s9, 3
    %p169 = pnand %p167, %p168
    %p170 = pneg %p169
    // Predicated region
    $region29: #{depthwise_xcorr_forward.3} parent=5 // pred_check
      _
    $region30: #{depthwise_xcorr_forward.3} parent=5 // pred_check_branch
      %172 = sbr.rel (%p169) target = $region32
    $region31: #{depthwise_xcorr_forward.3} parent=5 // pred_region
      %s173 = ssub.s32 %s9, 1
      %p174 = scmp.lt.s32.totalorder %s18, 1
      %s175 = scalar_select %p174, %s18, 1
      %s176 = smul.addr %s175, 9
      %s177 = smul.addr %s176, 4
      %s178 = scalar_lea.vmem %s0, %s177
      %p179 = pneg %p47
      %p180 = pneg %p44
      %p181 = scmp.lt.s32.totalorder %s19, 0
      %s182 = scalar_select %p181, %s19, 0
      %s183 = smul.addr %s182, 2
      %s184 = scalar_lea.vmem %s1, %s183
      %p185 = pneg %p73
      %p186 = pneg %p70
      %p187 = scmp.lt.s32.totalorder %s19, 0
      %s188 = scalar_select %p187, %s19, 0
      %s189 = scalar_lea.vmem %s2, %s188
      %p190 = pneg %p99
      %p191 = pneg %p96
      %p192 = pneg %p127
      %p193 = pneg %p124
      %p194 = scmp.lt.s32.totalorder %s18, 1
      %s195 = scalar_select %p194, %s18, 1
      %p196 = scmp.lt.s32.totalorder %s19, 0
      %s197 = scalar_select %p196, %s19, 0
      %s198 = smul.addr %s195, 6
      %s199 = sadd.s32 %s197, %s198
      %s200 = smul.addr %s199, 8
      %s201 = scalar_lea.vmem %s3, %s200
      %p202 = scmp.lt.s32.totalorder %s18, 1
      %s203 = scalar_select %p202, %s18, 1
      %s204 = smul.addr %s203, 9
      %s205 = smul.addr %s204, 4
      %s206 = scalar_lea.vmem %s0, %s205
      %p207 = scmp.lt.s32.totalorder %s19, 0
      %s208 = scalar_select %p207, %s19, 0
      %s209 = smul.addr %s208, 2
      %s210 = scalar_lea.vmem %s1, %s209
      %p211 = scmp.lt.s32.totalorder %s19, 0
      %s212 = scalar_select %p211, %s19, 0
      %s213 = scalar_lea.vmem %s2, %s212
      %p214 = scmp.lt.s32.totalorder %s18, 1
      %s215 = scalar_select %p214, %s18, 1
      %p216 = scmp.lt.s32.totalorder %s19, 0
      %s217 = scalar_select %p216, %s19, 0
      %s218 = smul.addr %s215, 6
      %s219 = sadd.s32 %s217, %s218
      %s220 = smul.addr %s219, 8
      %s221 = scalar_lea.vmem %s3, %s220
      %v223 = vld [vmem:[%s206] sm:$0xf]
      %v224 = vld [vmem:[%s206 + $0x4] sm:$0xf]
      %v225 = vld [vmem:[%s206 + $0x8] sm:$0xf]
      %v226 = vld [vmem:[%s206 + $0xc] sm:$0xf]
      %v227 = vld [vmem:[%s206 + $0x10] sm:$0xf]
      %v228 = vld [vmem:[%s206 + $0x14] sm:$0xf]
      %v229 = vld [vmem:[%s210] sm:$0x3]
      %v230 = vld [vmem:[%s206 + $0x18] sm:$0x1]
      %s231 = scalar_lea.vmem %s210, 2
      %v232 = vld [vmem:[%s231] sm:$0x3]
      %v240 = vunpack.c.l.b16 %v223
      %v241 = vunpack.c.l.b16 %v224
      %v242 = vunpack.c.l.b16 %v225
      %v243 = vunpack.c.l.b16 %v226
      %v244 = vunpack.c.l.b16 %v227
      %v245 = vunpack.c.l.b16 %v228
      %v246 = vunpack.c.l.b16 %v230
      %v247 = vpack.c.b16 %v241, %v240
      %v248 = vpack.c.b16 %v243, %v242
      %v249 = vpack.c.b16 %v245, %v244
      %v250 = vpack.c.b16 %v246, %v246
      %vm251 = vsmask.f32 7424
      %v253 = vshrl.u32 %v247, 16
      %v255 = vshll.u32 %v247, 16
      %v257 = vrot.slane %v255, 1
      %v258 = vor.u32 %v253, %v257
      %v260 = vshll.u32 %v248, 16
      %v262 = vrot.slane %v260, 1
      %v263 = vsel %vm251, %v258, %v262
      %v264 = vshrl.u32 %v248, 16
      %v266 = vor.u32 %v264, %v262
      %v268 = vshll.u32 %v249, 16
      %v270 = vrot.slane %v268, 1
      %v271 = vsel %vm251, %v266, %v270
      %v272 = vshrl.u32 %v249, 16
      %v274 = vor.u32 %v272, %v270
      %v276 = vshll.u32 %v250, 16
      %v278 = vrot.slane %v276, 1
      %v279 = vsel %vm251, %v274, %v278
      %vm280 = vcmask 31744
      %v282 = vsel %vm280, %v263, 0
      %v285 = vsel %vm280, %v271, 0
      %v288 = vsel %vm280, %v279, 0
      %vm290 = vcmask 1041408
      %v292 = vsel %vm290, %v232, 0
      %294 = vmatprep.subr.bf16.mxu0 0
      %295 = vmatpush1.bf16.msra.mxu0 %v292
      %296 = vmatprep.subr.bf16.mxu0 0
      %297 = vmatpush1.bf16.msra.mxu0 0
      %298 = vmatprep.subr.bf16.mxu0 0
      %299 = vmatpush1.bf16.msra.mxu0 0
      %300 = vmatprep.subr.bf16.mxu0 0
      %301 = vmatpush1.bf16.msra.mxu0 0
      %302 = vmatprep.subr.bf16.mxu0 0
      %303 = vmatpush1.bf16.msra.mxu0 0
      %304 = vmatprep.subr.bf16.mxu0 0
      %305 = vmatpush1.bf16.msra.mxu0 0
      %306 = vmatprep.subr.bf16.mxu0 0
      %307 = vmatpush1.bf16.msra.mxu0 0
      %308 = vmatprep.subr.bf16.mxu0 0
      %309 = vmatpush1.bf16.msra.mxu0 0
      %310 = vmatprep.subr.bf16.mxu0 0
      %311 = vmatpush1.bf16.msra.mxu0 0
      %312 = vmatprep.subr.bf16.mxu0 0
      %313 = vmatpush1.bf16.msra.mxu0 0
      %314 = vmatprep.subr.bf16.mxu0 0
      %315 = vmatpush1.bf16.msra.mxu0 0
      %316 = vmatprep.subr.bf16.mxu0 0
      %317 = vmatpush1.bf16.msra.mxu0 0
      %318 = vmatprep.subr.bf16.mxu0 0
      %319 = vmatpush1.bf16.msra.mxu0 0
      %320 = vmatprep.subr.bf16.mxu0 0
      %321 = vmatpush1.bf16.msra.mxu0 0
      %322 = vmatprep.subr.bf16.mxu0 0
      %323 = vmatpush1.bf16.msra.mxu0 0
      %324 = vmatprep.subr.bf16.mxu0 0
      %325 = vmatpush1.bf16.msra.mxu0 0
      %326 = vmatprep.mubr.bf16.mxu0 0
      %327 = vmatmul.mubr.bf16.gmra.mrb[0].mxu0 %v282
      %v328 = vpop.f32.mrb[0].mxu0
      %v329 = vadd.f32 0.0, %v328
      %v330 = vpop.f32.mrb[0].mxu0
      %v331 = vpop.f32.mrb[0].mxu0
      %v332 = vadd.f32 0.0, %v331
      %v333 = vpop.f32.mrb[0].mxu0
      %334 = vmatprep.mubr.bf16.mxu0 0
      %335 = vmatmul.mubr.bf16.gmra.mrb[0].mxu0 %v285
      %v336 = vpop.f32.mrb[0].mxu0
      %v337 = vadd.f32 0.0, %v336
      %v338 = vpop.f32.mrb[0].mxu0
      %v339 = vpop.f32.mrb[0].mxu0
      %v340 = vadd.f32 0.0, %v339
      %v341 = vpop.f32.mrb[0].mxu0
      %342 = vmatprep.mubr.bf16.mxu0 0
      %343 = vmatmul.mubr.bf16.gmra.mrb[0].mxu0 %v288
      %v344 = vpop.f32.mrb[0].mxu0
      %v345 = vadd.f32 0.0, %v344
      %v346 = vpop.f32.mrb[0].mxu0
      %v347 = vpop.f32.mrb[0].mxu0
      %v348 = vadd.f32 0.0, %v347
      %v349 = vpop.f32.mrb[0].mxu0
      %350 = vdwg.mxu0
      %v351 = vsel %vm280, %v247, 0
      %v353 = vsel %vm280, %v248, 0
      %v355 = vsel %vm280, %v249, 0
      %v358 = vsel %vm290, %v229, 0
      %360 = vmatprep.subr.bf16.mxu0 0
      %361 = vmatpush1.bf16.msra.mxu0 %v358
      %362 = vmatprep.subr.bf16.mxu0 0
      %363 = vmatpush1.bf16.msra.mxu0 0
      %364 = vmatprep.subr.bf16.mxu0 0
      %365 = vmatpush1.bf16.msra.mxu0 0
      %366 = vmatprep.subr.bf16.mxu0 0
      %367 = vmatpush1.bf16.msra.mxu0 0
      %368 = vmatprep.subr.bf16.mxu0 0
      %369 = vmatpush1.bf16.msra.mxu0 0
      %370 = vmatprep.subr.bf16.mxu0 0
      %371 = vmatpush1.bf16.msra.mxu0 0
      %372 = vmatprep.subr.bf16.mxu0 0
      %373 = vmatpush1.bf16.msra.mxu0 0
      %374 = vmatprep.subr.bf16.mxu0 0
      %375 = vmatpush1.bf16.msra.mxu0 0
      %376 = vmatprep.subr.bf16.mxu0 0
      %377 = vmatpush1.bf16.msra.mxu0 0
      %378 = vmatprep.subr.bf16.mxu0 0
      %379 = vmatpush1.bf16.msra.mxu0 0
      %380 = vmatprep.subr.bf16.mxu0 0
      %381 = vmatpush1.bf16.msra.mxu0 0
      %382 = vmatprep.subr.bf16.mxu0 0
      %383 = vmatpush1.bf16.msra.mxu0 0
      %384 = vmatprep.subr.bf16.mxu0 0
      %385 = vmatpush1.bf16.msra.mxu0 0
      %386 = vmatprep.subr.bf16.mxu0 0
      %387 = vmatpush1.bf16.msra.mxu0 0
      %388 = vmatprep.subr.bf16.mxu0 0
      %389 = vmatpush1.bf16.msra.mxu0 0
      %390 = vmatprep.subr.bf16.mxu0 0
      %391 = vmatpush1.bf16.msra.mxu0 0
      %392 = vmatprep.mubr.bf16.mxu0 0
      %393 = vmatmul.mubr.bf16.gmra.mrb[0].mxu0 %v351
      %v394 = vpop.f32.mrb[0].mxu0
      %v395 = vadd.f32 %v329, %v394
      %v396 = vpop.f32.mrb[0].mxu0
      %v397 = vpop.f32.mrb[0].mxu0
      %v398 = vadd.f32 %v332, %v397
      %v399 = vpop.f32.mrb[0].mxu0
      %400 = vmatprep.mubr.bf16.mxu0 0
      %401 = vmatmul.mubr.bf16.gmra.mrb[0].mxu0 %v353
      %v402 = vpop.f32.mrb[0].mxu0
      %v403 = vadd.f32 %v337, %v402
      %v404 = vpop.f32.mrb[0].mxu0
      %v405 = vpop.f32.mrb[0].mxu0
      %v406 = vadd.f32 %v340, %v405
      %v407 = vpop.f32.mrb[0].mxu0
      %408 = vmatprep.mubr.bf16.mxu0 0
      %409 = vmatmul.mubr.bf16.gmra.mrb[0].mxu0 %v355
      %v410 = vpop.f32.mrb[0].mxu0
      %v411 = vadd.f32 %v345, %v410
      %v412 = vpop.f32.mrb[0].mxu0
      %v413 = vpop.f32.mrb[0].mxu0
      %v414 = vadd.f32 %v348, %v413
      %v415 = vpop.f32.mrb[0].mxu0
      %416 = vdwg.mxu0
      %v417 = vld [vmem:[%s206] sm:$0xe]
      %s418 = scalar_lea.vmem %s210, 4
      %v419 = vld [vmem:[%s418] sm:$0x3]
      %v421 = vunpack.c.l.b16 %v417
      %v422 = vpack.c.b16 %v241, %v421
      %vm423 = vcmask 1046528
      %v424 = vrot.slane %v422, 1
      %v425 = vrot.slane %v248, 1
      %v426 = vsel %vm423, %v424, %v425
      %v427 = vrot.slane %v249, 1
      %v428 = vsel %vm423, %v425, %v427
      %v429 = vrot.slane %v250, 1
      %v430 = vsel %vm423, %v427, %v429
      %v432 = vsel %vm280, %v426, 0
      %v435 = vsel %vm280, %v428, 0
      %v438 = vsel %vm280, %v430, 0
      %v441 = vsel %vm290, %v419, 0
      %443 = vmatprep.subr.bf16.mxu0 0
      %444 = vmatpush1.bf16.msra.mxu0 %v441
      %445 = vmatprep.subr.bf16.mxu0 0
      %446 = vmatpush1.bf16.msra.mxu0 0
      %447 = vmatprep.subr.bf16.mxu0 0
      %448 = vmatpush1.bf16.msra.mxu0 0
      %449 = vmatprep.subr.bf16.mxu0 0
      %450 = vmatpush1.bf16.msra.mxu0 0
      %451 = vmatprep.subr.bf16.mxu0 0
      %452 = vmatpush1.bf16.msra.mxu0 0
      %453 = vmatprep.subr.bf16.mxu0 0
      %454 = vmatpush1.bf16.msra.mxu0 0
      %455 = vmatprep.subr.bf16.mxu0 0
      %456 = vmatpush1.bf16.msra.mxu0 0
      %457 = vmatprep.subr.bf16.mxu0 0
      %458 = vmatpush1.bf16.msra.mxu0 0
      %459 = vmatprep.subr.bf16.mxu0 0
      %460 = vmatpush1.bf16.msra.mxu0 0
      %461 = vmatprep.subr.bf16.mxu0 0
      %462 = vmatpush1.bf16.msra.mxu0 0
      %463 = vmatprep.subr.bf16.mxu0 0
      %464 = vmatpush1.bf16.msra.mxu0 0
      %465 = vmatprep.subr.bf16.mxu0 0
      %466 = vmatpush1.bf16.msra.mxu0 0
      %467 = vmatprep.subr.bf16.mxu0 0
      %468 = vmatpush1.bf16.msra.mxu0 0
      %469 = vmatprep.subr.bf16.mxu0 0
      %470 = vmatpush1.bf16.msra.mxu0 0
      %471 = vmatprep.subr.bf16.mxu0 0
      %472 = vmatpush1.bf16.msra.mxu0 0
      %473 = vmatprep.subr.bf16.mxu0 0
      %474 = vmatpush1.bf16.msra.mxu0 0
      %475 = vmatprep.mubr.bf16.mxu0 0
      %476 = vmatmul.mubr.bf16.gmra.mrb[0].mxu0 %v432
      %v477 = vpop.f32.mrb[0].mxu0
      %v478 = vadd.f32 0.0, %v477
      %v479 = vpop.f32.mrb[0].mxu0
      %v480 = vpop.f32.mrb[0].mxu0
      %v481 = vadd.f32 0.0, %v480
      %v482 = vpop.f32.mrb[0].mxu0
      %483 = vmatprep.mubr.bf16.mxu0 0
      %484 = vmatmul.mubr.bf16.gmra.mrb[0].mxu0 %v435
      %v485 = vpop.f32.mrb[0].mxu0
      %v486 = vadd.f32 0.0, %v485
      %v487 = vpop.f32.mrb[0].mxu0
      %v488 = vpop.f32.mrb[0].mxu0
      %v489 = vadd.f32 0.0, %v488
      %v490 = vpop.f32.mrb[0].mxu0
      %491 = vmatprep.mubr.bf16.mxu0 0
      %492 = vmatmul.mubr.bf16.gmra.mrb[0].mxu0 %v438
      %v493 = vpop.f32.mrb[0].mxu0
      %v494 = vadd.f32 0.0, %v493
      %v495 = vpop.f32.mrb[0].mxu0
      %v496 = vpop.f32.mrb[0].mxu0
      %v497 = vadd.f32 0.0, %v496
      %v498 = vpop.f32.mrb[0].mxu0
      %499 = vdwg.mxu0
      %v500 = vadd.f32 %v395, %v478
      %v501 = vadd.f32 %v398, %v481
      %v502 = vadd.f32 %v403, %v486
      %v503 = vadd.f32 %v406, %v489
      %v504 = vadd.f32 %v411, %v494
      %v505 = vadd.f32 %v414, %v497
      %v506 = vld [vmem:[%s206 + $0x18] sm:$0xf]
      %s507 = scalar_lea.vmem %s210, 6
      %v508 = vld [vmem:[%s507] sm:$0x3]
      %v510 = vunpack.c.l.b16 %v506
      %v511 = vpack.c.b16 %v242, %v241
      %v512 = vpack.c.b16 %v244, %v243
      %v513 = vpack.c.b16 %v510, %v245
      %v515 = vsel %vm280, %v511, 0
      %v518 = vsel %vm280, %v512, 0
      %v521 = vsel %vm280, %v513, 0
      %v524 = vsel %vm290, %v508, 0
      %526 = vmatprep.subr.bf16.mxu0 0
      %527 = vmatpush1.bf16.msra.mxu0 %v524
      %528 = vmatprep.subr.bf16.mxu0 0
      %529 = vmatpush1.bf16.msra.mxu0 0
      %530 = vmatprep.subr.bf16.mxu0 0
      %531 = vmatpush1.bf16.msra.mxu0 0
      %532 = vmatprep.subr.bf16.mxu0 0
      %533 = vmatpush1.bf16.msra.mxu0 0
      %534 = vmatprep.subr.bf16.mxu0 0
      %535 = vmatpush1.bf16.msra.mxu0 0
      %536 = vmatprep.subr.bf16.mxu0 0
      %537 = vmatpush1.bf16.msra.mxu0 0
      %538 = vmatprep.subr.bf16.mxu0 0
      %539 = vmatpush1.bf16.msra.mxu0 0
      %540 = vmatprep.subr.bf16.mxu0 0
      %541 = vmatpush1.bf16.msra.mxu0 0
      %542 = vmatprep.subr.bf16.mxu0 0
      %543 = vmatpush1.bf16.msra.mxu0 0
      %544 = vmatprep.subr.bf16.mxu0 0
      %545 = vmatpush1.bf16.msra.mxu0 0
      %546 = vmatprep.subr.bf16.mxu0 0
      %547 = vmatpush1.bf16.msra.mxu0 0
      %548 = vmatprep.subr.bf16.mxu0 0
      %549 = vmatpush1.bf16.msra.mxu0 0
      %550 = vmatprep.subr.bf16.mxu0 0
      %551 = vmatpush1.bf16.msra.mxu0 0
      %552 = vmatprep.subr.bf16.mxu0 0
      %553 = vmatpush1.bf16.msra.mxu0 0
      %554 = vmatprep.subr.bf16.mxu0 0
      %555 = vmatpush1.bf16.msra.mxu0 0
      %556 = vmatprep.subr.bf16.mxu0 0
      %557 = vmatpush1.bf16.msra.mxu0 0
      %558 = vmatprep.mubr.bf16.mxu0 0
      %559 = vmatmul.mubr.bf16.gmra.mrb[0].mxu0 %v515
      %v560 = vpop.f32.mrb[0].mxu0
      %v561 = vadd.f32 0.0, %v560
      %v562 = vpop.f32.mrb[0].mxu0
      %v563 = vpop.f32.mrb[0].mxu0
      %v564 = vadd.f32 0.0, %v563
      %v565 = vpop.f32.mrb[0].mxu0
      %566 = vmatprep.mubr.bf16.mxu0 0
      %567 = vmatmul.mubr.bf16.gmra.mrb[0].mxu0 %v518
      %v568 = vpop.f32.mrb[0].mxu0
      %v569 = vadd.f32 0.0, %v568
      %v570 = vpop.f32.mrb[0].mxu0
      %v571 = vpop.f32.mrb[0].mxu0
      %v572 = vadd.f32 0.0, %v571
      %v573 = vpop.f32.mrb[0].mxu0
      %574 = vmatprep.mubr.bf16.mxu0 0
      %575 = vmatmul.mubr.bf16.gmra.mrb[0].mxu0 %v521
      %v576 = vpop.f32.mrb[0].mxu0
      %v577 = vadd.f32 0.0, %v576
      %v578 = vpop.f32.mrb[0].mxu0
      %v579 = vpop.f32.mrb[0].mxu0
      %v580 = vadd.f32 0.0, %v579
      %v581 = vpop.f32.mrb[0].mxu0
      %582 = vdwg.mxu0
      %v583 = vadd.f32 %v500, %v561
      %v584 = vadd.f32 %v501, %v564
      %v585 = vadd.f32 %v502, %v569
      %v586 = vadd.f32 %v503, %v572
      %v587 = vadd.f32 %v504, %v577
      %v588 = vadd.f32 %v505, %v580
      %v589 = vld [vmem:[%s206 + $0x4] sm:$0xf]
      %v590 = vld [vmem:[%s206 + $0x8] sm:$0xf]
      %v591 = vld [vmem:[%s206 + $0xc] sm:$0xf]
      %v592 = vld [vmem:[%s206 + $0x10] sm:$0xf]
      %v593 = vld [vmem:[%s206 + $0x14] sm:$0xf]
      %v594 = vld [vmem:[%s206 + $0x18] sm:$0xf]
      %v595 = vld [vmem:[%s206 + $0x1c] sm:$0x1]
      %s596 = scalar_lea.vmem %s210, 8
      %v597 = vld [vmem:[%s596] sm:$0x3]
      %v605 = vunpack.c.l.b16 %v589
      %v606 = vunpack.c.l.b16 %v590
      %v607 = vunpack.c.l.b16 %v591
      %v608 = vunpack.c.l.b16 %v592
      %v609 = vunpack.c.l.b16 %v593
      %v610 = vunpack.c.l.b16 %v594
      %v611 = vunpack.c.l.b16 %v595
      %v612 = vpack.c.b16 %v606, %v605
      %v613 = vpack.c.b16 %v608, %v607
      %v614 = vpack.c.b16 %v610, %v609
      %v615 = vpack.c.b16 %v611, %v611
      %v617 = vshrl.u32 %v612, 16
      %v619 = vshll.u32 %v612, 16
      %v621 = vrot.slane %v619, 1
      %v622 = vor.u32 %v617, %v621
      %v624 = vshll.u32 %v613, 16
      %v626 = vrot.slane %v624, 1
      %v627 = vsel %vm251, %v622, %v626
      %v628 = vshrl.u32 %v613, 16
      %v630 = vor.u32 %v628, %v626
      %v632 = vshll.u32 %v614, 16
      %v634 = vrot.slane %v632, 1
      %v635 = vsel %vm251, %v630, %v634
      %v636 = vshrl.u32 %v614, 16
      %v638 = vor.u32 %v636, %v634
      %v640 = vshll.u32 %v615, 16
      %v642 = vrot.slane %v640, 1
      %v643 = vsel %vm251, %v638, %v642
      %v645 = vsel %vm280, %v627, 0
      %v648 = vsel %vm280, %v635, 0
      %v651 = vsel %vm280, %v643, 0
      %v654 = vsel %vm290, %v597, 0
      %656 = vmatprep.subr.bf16.mxu0 0
      %657 = vmatpush1.bf16.msra.mxu0 %v654
      %658 = vmatprep.subr.bf16.mxu0 0
      %659 = vmatpush1.bf16.msra.mxu0 0
      %660 = vmatprep.subr.bf16.mxu0 0
      %661 = vmatpush1.bf16.msra.mxu0 0
      %662 = vmatprep.subr.bf16.mxu0 0
      %663 = vmatpush1.bf16.msra.mxu0 0
      %664 = vmatprep.subr.bf16.mxu0 0
      %665 = vmatpush1.bf16.msra.mxu0 0
      %666 = vmatprep.subr.bf16.mxu0 0
      %667 = vmatpush1.bf16.msra.mxu0 0
      %668 = vmatprep.subr.bf16.mxu0 0
      %669 = vmatpush1.bf16.msra.mxu0 0
      %670 = vmatprep.subr.bf16.mxu0 0
      %671 = vmatpush1.bf16.msra.mxu0 0
      %672 = vmatprep.subr.bf16.mxu0 0
      %673 = vmatpush1.bf16.msra.mxu0 0
      %674 = vmatprep.subr.bf16.mxu0 0
      %675 = vmatpush1.bf16.msra.mxu0 0
      %676 = vmatprep.subr.bf16.mxu0 0
      %677 = vmatpush1.bf16.msra.mxu0 0
      %678 = vmatprep.subr.bf16.mxu0 0
      %679 = vmatpush1.bf16.msra.mxu0 0
      %680 = vmatprep.subr.bf16.mxu0 0
      %681 = vmatpush1.bf16.msra.mxu0 0
      %682 = vmatprep.subr.bf16.mxu0 0
      %683 = vmatpush1.bf16.msra.mxu0 0
      %684 = vmatprep.subr.bf16.mxu0 0
      %685 = vmatpush1.bf16.msra.mxu0 0
      %686 = vmatprep.subr.bf16.mxu0 0
      %687 = vmatpush1.bf16.msra.mxu0 0
      %688 = vmatprep.mubr.bf16.mxu0 0
      %689 = vmatmul.mubr.bf16.gmra.mrb[0].mxu0 %v645
      %v690 = vpop.f32.mrb[0].mxu0
      %v691 = vadd.f32 0.0, %v690
      %v692 = vpop.f32.mrb[0].mxu0
      %v693 = vpop.f32.mrb[0].mxu0
      %v694 = vadd.f32 0.0, %v693
      %v695 = vpop.f32.mrb[0].mxu0
      %696 = vmatprep.mubr.bf16.mxu0 0
      %697 = vmatmul.mubr.bf16.gmra.mrb[0].mxu0 %v648
      %v698 = vpop.f32.mrb[0].mxu0
      %v699 = vadd.f32 0.0, %v698
      %v700 = vpop.f32.mrb[0].mxu0
      %v701 = vpop.f32.mrb[0].mxu0
      %v702 = vadd.f32 0.0, %v701
      %v703 = vpop.f32.mrb[0].mxu0
      %704 = vmatprep.mubr.bf16.mxu0 0
      %705 = vmatmul.mubr.bf16.gmra.mrb[0].mxu0 %v651
      %v706 = vpop.f32.mrb[0].mxu0
      %v707 = vadd.f32 0.0, %v706
      %v708 = vpop.f32.mrb[0].mxu0
      %v709 = vpop.f32.mrb[0].mxu0
      %v710 = vadd.f32 0.0, %v709
      %v711 = vpop.f32.mrb[0].mxu0
      %712 = vdwg.mxu0
      %v713 = vadd.f32 %v583, %v691
      %v714 = vadd.f32 %v584, %v694
      %v715 = vadd.f32 %v585, %v699
      %v716 = vadd.f32 %v586, %v702
      %v717 = vadd.f32 %v587, %v707
      %v718 = vadd.f32 %v588, %v710
      %v719 = vld [vmem:[%s206 + $0x4] sm:$0xe]
      %s720 = scalar_lea.vmem %s210, 10
      %v721 = vld [vmem:[%s720] sm:$0x3]
      %v723 = vunpack.c.l.b16 %v719
      %v724 = vpack.c.b16 %v606, %v723
      %v725 = vrot.slane %v724, 1
      %v726 = vrot.slane %v613, 1
      %v727 = vsel %vm423, %v725, %v726
      %v728 = vrot.slane %v614, 1
      %v729 = vsel %vm423, %v726, %v728
      %v730 = vrot.slane %v615, 1
      %v731 = vsel %vm423, %v728, %v730
      %v733 = vsel %vm280, %v727, 0
      %v736 = vsel %vm280, %v729, 0
      %v739 = vsel %vm280, %v731, 0
      %v742 = vsel %vm290, %v721, 0
      %744 = vmatprep.subr.bf16.mxu0 0
      %745 = vmatpush1.bf16.msra.mxu0 %v742
      %746 = vmatprep.subr.bf16.mxu0 0
      %747 = vmatpush1.bf16.msra.mxu0 0
      %748 = vmatprep.subr.bf16.mxu0 0
      %749 = vmatpush1.bf16.msra.mxu0 0
      %750 = vmatprep.subr.bf16.mxu0 0
      %751 = vmatpush1.bf16.msra.mxu0 0
      %752 = vmatprep.subr.bf16.mxu0 0
      %753 = vmatpush1.bf16.msra.mxu0 0
      %754 = vmatprep.subr.bf16.mxu0 0
      %755 = vmatpush1.bf16.msra.mxu0 0
      %756 = vmatprep.subr.bf16.mxu0 0
      %757 = vmatpush1.bf16.msra.mxu0 0
      %758 = vmatprep.subr.bf16.mxu0 0
      %759 = vmatpush1.bf16.msra.mxu0 0
      %760 = vmatprep.subr.bf16.mxu0 0
      %761 = vmatpush1.bf16.msra.mxu0 0
      %762 = vmatprep.subr.bf16.mxu0 0
      %763 = vmatpush1.bf16.msra.mxu0 0
      %764 = vmatprep.subr.bf16.mxu0 0
      %765 = vmatpush1.bf16.msra.mxu0 0
      %766 = vmatprep.subr.bf16.mxu0 0
      %767 = vmatpush1.bf16.msra.mxu0 0
      %768 = vmatprep.subr.bf16.mxu0 0
      %769 = vmatpush1.bf16.msra.mxu0 0
      %770 = vmatprep.subr.bf16.mxu0 0
      %771 = vmatpush1.bf16.msra.mxu0 0
      %772 = vmatprep.subr.bf16.mxu0 0
      %773 = vmatpush1.bf16.msra.mxu0 0
      %774 = vmatprep.subr.bf16.mxu0 0
      %775 = vmatpush1.bf16.msra.mxu0 0
      %776 = vmatprep.mubr.bf16.mxu0 0
      %777 = vmatmul.mubr.bf16.gmra.mrb[0].mxu0 %v733
      %v778 = vpop.f32.mrb[0].mxu0
      %v779 = vadd.f32 0.0, %v778
      %v780 = vpop.f32.mrb[0].mxu0
      %v781 = vpop.f32.mrb[0].mxu0
      %v782 = vadd.f32 0.0, %v781
      %v783 = vpop.f32.mrb[0].mxu0
      %784 = vmatprep.mubr.bf16.mxu0 0
      %785 = vmatmul.mubr.bf16.gmra.mrb[0].mxu0 %v736
      %v786 = vpop.f32.mrb[0].mxu0
      %v787 = vadd.f32 0.0, %v786
      %v788 = vpop.f32.mrb[0].mxu0
      %v789 = vpop.f32.mrb[0].mxu0
      %v790 = vadd.f32 0.0, %v789
      %v791 = vpop.f32.mrb[0].mxu0
      %792 = vmatprep.mubr.bf16.mxu0 0
      %793 = vmatmul.mubr.bf16.gmra.mrb[0].mxu0 %v739
      %v794 = vpop.f32.mrb[0].mxu0
      %v795 = vadd.f32 0.0, %v794
      %v796 = vpop.f32.mrb[0].mxu0
      %v797 = vpop.f32.mrb[0].mxu0
      %v798 = vadd.f32 0.0, %v797
      %v799 = vpop.f32.mrb[0].mxu0
      %800 = vdwg.mxu0
      %v801 = vadd.f32 %v713, %v779
      %v802 = vadd.f32 %v714, %v782
      %v803 = vadd.f32 %v715, %v787
      %v804 = vadd.f32 %v716, %v790
      %v805 = vadd.f32 %v717, %v795
      %v806 = vadd.f32 %v718, %v798
      %v807 = vld [vmem:[%s206 + $0x1c] sm:$0xf]
      %s808 = scalar_lea.vmem %s210, 12
      %v809 = vld [vmem:[%s808] sm:$0x3]
      %v811 = vunpack.c.l.b16 %v807
      %v812 = vpack.c.b16 %v607, %v606
      %v813 = vpack.c.b16 %v609, %v608
      %v814 = vpack.c.b16 %v811, %v610
      %v816 = vsel %vm280, %v812, 0
      %v819 = vsel %vm280, %v813, 0
      %v822 = vsel %vm280, %v814, 0
      %v825 = vsel %vm290, %v809, 0
      %827 = vmatprep.subr.bf16.mxu0 0
      %828 = vmatpush1.bf16.msra.mxu0 %v825
      %829 = vmatprep.subr.bf16.mxu0 0
      %830 = vmatpush1.bf16.msra.mxu0 0
      %831 = vmatprep.subr.bf16.mxu0 0
      %832 = vmatpush1.bf16.msra.mxu0 0
      %833 = vmatprep.subr.bf16.mxu0 0
      %834 = vmatpush1.bf16.msra.mxu0 0
      %835 = vmatprep.subr.bf16.mxu0 0
      %836 = vmatpush1.bf16.msra.mxu0 0
      %837 = vmatprep.subr.bf16.mxu0 0
      %838 = vmatpush1.bf16.msra.mxu0 0
      %839 = vmatprep.subr.bf16.mxu0 0
      %840 = vmatpush1.bf16.msra.mxu0 0
      %841 = vmatprep.subr.bf16.mxu0 0
      %842 = vmatpush1.bf16.msra.mxu0 0
      %843 = vmatprep.subr.bf16.mxu0 0
      %844 = vmatpush1.bf16.msra.mxu0 0
      %845 = vmatprep.subr.bf16.mxu0 0
      %846 = vmatpush1.bf16.msra.mxu0 0
      %847 = vmatprep.subr.bf16.mxu0 0
      %848 = vmatpush1.bf16.msra.mxu0 0
      %849 = vmatprep.subr.bf16.mxu0 0
      %850 = vmatpush1.bf16.msra.mxu0 0
      %851 = vmatprep.subr.bf16.mxu0 0
      %852 = vmatpush1.bf16.msra.mxu0 0
      %853 = vmatprep.subr.bf16.mxu0 0
      %854 = vmatpush1.bf16.msra.mxu0 0
      %855 = vmatprep.subr.bf16.mxu0 0
      %856 = vmatpush1.bf16.msra.mxu0 0
      %857 = vmatprep.subr.bf16.mxu0 0
      %858 = vmatpush1.bf16.msra.mxu0 0
      %859 = vmatprep.mubr.bf16.mxu0 0
      %860 = vmatmul.mubr.bf16.gmra.mrb[0].mxu0 %v816
      %v861 = vpop.f32.mrb[0].mxu0
      %v862 = vadd.f32 0.0, %v861
      %v863 = vpop.f32.mrb[0].mxu0
      %v864 = vpop.f32.mrb[0].mxu0
      %v865 = vadd.f32 0.0, %v864
      %v866 = vpop.f32.mrb[0].mxu0
      %867 = vmatprep.mubr.bf16.mxu0 0
      %868 = vmatmul.mubr.bf16.gmra.mrb[0].mxu0 %v819
      %v869 = vpop.f32.mrb[0].mxu0
      %v870 = vadd.f32 0.0, %v869
      %v871 = vpop.f32.mrb[0].mxu0
      %v872 = vpop.f32.mrb[0].mxu0
      %v873 = vadd.f32 0.0, %v872
      %v874 = vpop.f32.mrb[0].mxu0
      %875 = vmatprep.mubr.bf16.mxu0 0
      %876 = vmatmul.mubr.bf16.gmra.mrb[0].mxu0 %v822
      %v877 = vpop.f32.mrb[0].mxu0
      %v878 = vadd.f32 0.0, %v877
      %v879 = vpop.f32.mrb[0].mxu0
      %v880 = vpop.f32.mrb[0].mxu0
      %v881 = vadd.f32 0.0, %v880
      %v882 = vpop.f32.mrb[0].mxu0
      %883 = vdwg.mxu0
      %v884 = vadd.f32 %v801, %v862
      %v885 = vadd.f32 %v802, %v865
      %v886 = vadd.f32 %v803, %v870
      %v887 = vadd.f32 %v804, %v873
      %v888 = vadd.f32 %v805, %v878
      %v889 = vadd.f32 %v806, %v881
      %v890 = vld [vmem:[%s206 + $0x8] sm:$0xf]
      %v891 = vld [vmem:[%s206 + $0xc] sm:$0xf]
      %v892 = vld [vmem:[%s206 + $0x10] sm:$0xf]
      %v893 = vld [vmem:[%s206 + $0x14] sm:$0xf]
      %v894 = vld [vmem:[%s206 + $0x18] sm:$0xf]
      %v895 = vld [vmem:[%s206 + $0x1c] sm:$0xf]
      %v896 = vld [vmem:[%s206 + $0x20] sm:$0x1]
      %s897 = scalar_lea.vmem %s210, 14
      %v898 = vld [vmem:[%s897] sm:$0x3]
      %v906 = vunpack.c.l.b16 %v890
      %v907 = vunpack.c.l.b16 %v891
      %v908 = vunpack.c.l.b16 %v892
      %v909 = vunpack.c.l.b16 %v893
      %v910 = vunpack.c.l.b16 %v894
      %v911 = vunpack.c.l.b16 %v895
      %v912 = vunpack.c.l.b16 %v896
      %v913 = vpack.c.b16 %v907, %v906
      %v914 = vpack.c.b16 %v909, %v908
      %v915 = vpack.c.b16 %v911, %v910
      %v916 = vpack.c.b16 %v912, %v912
      %v918 = vshrl.u32 %v913, 16
      %v920 = vshll.u32 %v913, 16
      %v922 = vrot.slane %v920, 1
      %v923 = vor.u32 %v918, %v922
      %v925 = vshll.u32 %v914, 16
      %v927 = vrot.slane %v925, 1
      %v928 = vsel %vm251, %v923, %v927
      %v929 = vshrl.u32 %v914, 16
      %v931 = vor.u32 %v929, %v927
      %v933 = vshll.u32 %v915, 16
      %v935 = vrot.slane %v933, 1
      %v936 = vsel %vm251, %v931, %v935
      %v937 = vshrl.u32 %v915, 16
      %v939 = vor.u32 %v937, %v935
      %v941 = vshll.u32 %v916, 16
      %v943 = vrot.slane %v941, 1
      %v944 = vsel %vm251, %v939, %v943
      %v946 = vsel %vm280, %v928, 0
      %v949 = vsel %vm280, %v936, 0
      %v952 = vsel %vm280, %v944, 0
      %v955 = vsel %vm290, %v898, 0
      %957 = vmatprep.subr.bf16.mxu0 0
      %958 = vmatpush1.bf16.msra.mxu0 %v955
      %959 = vmatprep.subr.bf16.mxu0 0
      %960 = vmatpush1.bf16.msra.mxu0 0
      %961 = vmatprep.subr.bf16.mxu0 0
      %962 = vmatpush1.bf16.msra.mxu0 0
      %963 = vmatprep.subr.bf16.mxu0 0
      %964 = vmatpush1.bf16.msra.mxu0 0
      %965 = vmatprep.subr.bf16.mxu0 0
      %966 = vmatpush1.bf16.msra.mxu0 0
      %967 = vmatprep.subr.bf16.mxu0 0
      %968 = vmatpush1.bf16.msra.mxu0 0
      %969 = vmatprep.subr.bf16.mxu0 0
      %970 = vmatpush1.bf16.msra.mxu0 0
      %971 = vmatprep.subr.bf16.mxu0 0
      %972 = vmatpush1.bf16.msra.mxu0 0
      %973 = vmatprep.subr.bf16.mxu0 0
      %974 = vmatpush1.bf16.msra.mxu0 0
      %975 = vmatprep.subr.bf16.mxu0 0
      %976 = vmatpush1.bf16.msra.mxu0 0
      %977 = vmatprep.subr.bf16.mxu0 0
      %978 = vmatpush1.bf16.msra.mxu0 0
      %979 = vmatprep.subr.bf16.mxu0 0
      %980 = vmatpush1.bf16.msra.mxu0 0
      %981 = vmatprep.subr.bf16.mxu0 0
      %982 = vmatpush1.bf16.msra.mxu0 0
      %983 = vmatprep.subr.bf16.mxu0 0
      %984 = vmatpush1.bf16.msra.mxu0 0
      %985 = vmatprep.subr.bf16.mxu0 0
      %986 = vmatpush1.bf16.msra.mxu0 0
      %987 = vmatprep.subr.bf16.mxu0 0
      %988 = vmatpush1.bf16.msra.mxu0 0
      %989 = vmatprep.mubr.bf16.mxu0 0
      %990 = vmatmul.mubr.bf16.gmra.mrb[0].mxu0 %v946
      %v991 = vpop.f32.mrb[0].mxu0
      %v992 = vadd.f32 0.0, %v991
      %v993 = vpop.f32.mrb[0].mxu0
      %v994 = vpop.f32.mrb[0].mxu0
      %v995 = vadd.f32 0.0, %v994
      %v996 = vpop.f32.mrb[0].mxu0
      %997 = vmatprep.mubr.bf16.mxu0 0
      %998 = vmatmul.mubr.bf16.gmra.mrb[0].mxu0 %v949
      %v999 = vpop.f32.mrb[0].mxu0
      %v1000 = vadd.f32 0.0, %v999
      %v1001 = vpop.f32.mrb[0].mxu0
      %v1002 = vpop.f32.mrb[0].mxu0
      %v1003 = vadd.f32 0.0, %v1002
      %v1004 = vpop.f32.mrb[0].mxu0
      %1005 = vmatprep.mubr.bf16.mxu0 0
      %1006 = vmatmul.mubr.bf16.gmra.mrb[0].mxu0 %v952
      %v1007 = vpop.f32.mrb[0].mxu0
      %v1008 = vadd.f32 0.0, %v1007
      %v1009 = vpop.f32.mrb[0].mxu0
      %v1010 = vpop.f32.mrb[0].mxu0
      %v1011 = vadd.f32 0.0, %v1010
      %v1012 = vpop.f32.mrb[0].mxu0
      %1013 = vdwg.mxu0
      %v1014 = vadd.f32 %v884, %v992
      %v1015 = vadd.f32 %v885, %v995
      %v1016 = vadd.f32 %v886, %v1000
      %v1017 = vadd.f32 %v887, %v1003
      %v1018 = vadd.f32 %v888, %v1008
      %v1019 = vadd.f32 %v889, %v1011
      %v1020 = vld [vmem:[%s206 + $0x8] sm:$0xe]
      %s1021 = scalar_lea.vmem %s210, 16
      %v1022 = vld [vmem:[%s1021] sm:$0x3]
      %v1024 = vunpack.c.l.b16 %v1020
      %v1025 = vpack.c.b16 %v907, %v1024
      %v1026 = vrot.slane %v1025, 1
      %v1027 = vrot.slane %v914, 1
      %v1028 = vsel %vm423, %v1026, %v1027
      %v1029 = vrot.slane %v915, 1
      %v1030 = vsel %vm423, %v1027, %v1029
      %v1031 = vrot.slane %v916, 1
      %v1032 = vsel %vm423, %v1029, %v1031
      %v1034 = vsel %vm280, %v1028, 0
      %v1037 = vsel %vm280, %v1030, 0
      %v1040 = vsel %vm280, %v1032, 0
      %v1043 = vsel %vm290, %v1022, 0
      %1045 = vmatprep.subr.bf16.mxu0 0
      %1046 = vmatpush1.bf16.msra.mxu0 %v1043
      %1047 = vmatprep.subr.bf16.mxu0 0
      %1048 = vmatpush1.bf16.msra.mxu0 0
      %1049 = vmatprep.subr.bf16.mxu0 0
      %1050 = vmatpush1.bf16.msra.mxu0 0
      %1051 = vmatprep.subr.bf16.mxu0 0
      %1052 = vmatpush1.bf16.msra.mxu0 0
      %1053 = vmatprep.subr.bf16.mxu0 0
      %1054 = vmatpush1.bf16.msra.mxu0 0
      %1055 = vmatprep.subr.bf16.mxu0 0
      %1056 = vmatpush1.bf16.msra.mxu0 0
      %1057 = vmatprep.subr.bf16.mxu0 0
      %1058 = vmatpush1.bf16.msra.mxu0 0
      %1059 = vmatprep.subr.bf16.mxu0 0
      %1060 = vmatpush1.bf16.msra.mxu0 0
      %1061 = vmatprep.subr.bf16.mxu0 0
      %1062 = vmatpush1.bf16.msra.mxu0 0
      %1063 = vmatprep.subr.bf16.mxu0 0
      %1064 = vmatpush1.bf16.msra.mxu0 0
      %1065 = vmatprep.subr.bf16.mxu0 0
      %1066 = vmatpush1.bf16.msra.mxu0 0
      %1067 = vmatprep.subr.bf16.mxu0 0
      %1068 = vmatpush1.bf16.msra.mxu0 0
      %1069 = vmatprep.subr.bf16.mxu0 0
      %1070 = vmatpush1.bf16.msra.mxu0 0
      %1071 = vmatprep.subr.bf16.mxu0 0
      %1072 = vmatpush1.bf16.msra.mxu0 0
      %1073 = vmatprep.subr.bf16.mxu0 0
      %1074 = vmatpush1.bf16.msra.mxu0 0
      %1075 = vmatprep.subr.bf16.mxu0 0
      %1076 = vmatpush1.bf16.msra.mxu0 0
      %1077 = vmatprep.mubr.bf16.mxu0 0
      %1078 = vmatmul.mubr.bf16.gmra.mrb[0].mxu0 %v1034
      %v1079 = vpop.f32.mrb[0].mxu0
      %v1080 = vadd.f32 0.0, %v1079
      %v1081 = vpop.f32.mrb[0].mxu0
      %v1082 = vpop.f32.mrb[0].mxu0
      %v1083 = vadd.f32 0.0, %v1082
      %v1084 = vpop.f32.mrb[0].mxu0
      %1085 = vmatprep.mubr.bf16.mxu0 0
      %1086 = vmatmul.mubr.bf16.gmra.mrb[0].mxu0 %v1037
      %v1087 = vpop.f32.mrb[0].mxu0
      %v1088 = vadd.f32 0.0, %v1087
      %v1089 = vpop.f32.mrb[0].mxu0
      %v1090 = vpop.f32.mrb[0].mxu0
      %v1091 = vadd.f32 0.0, %v1090
      %v1092 = vpop.f32.mrb[0].mxu0
      %1093 = vmatprep.mubr.bf16.mxu0 0
      %1094 = vmatmul.mubr.bf16.gmra.mrb[0].mxu0 %v1040
      %v1095 = vpop.f32.mrb[0].mxu0
      %v1096 = vadd.f32 0.0, %v1095
      %v1097 = vpop.f32.mrb[0].mxu0
      %v1098 = vpop.f32.mrb[0].mxu0
      %v1099 = vadd.f32 0.0, %v1098
      %v1100 = vpop.f32.mrb[0].mxu0
      %1101 = vdwg.mxu0
      %v1102 = vadd.f32 %v1014, %v1080
      %v1103 = vadd.f32 %v1015, %v1083
      %v1104 = vadd.f32 %v1016, %v1088
      %v1105 = vadd.f32 %v1017, %v1091
      %v1106 = vadd.f32 %v1018, %v1096
      %v1107 = vadd.f32 %v1019, %v1099
      %v1108 = vld [vmem:[%s213] sm:$0x1]
      %v1110 = vlaneseq
      %v1111 = vshrl.u32 %v1110, 7
      %v1112 = vsub.s32 0, %v1111
      %v1113 = vrot.slane %v1108, %v1112
      %v1115 = vadd.f32 %v1102, %v1113
      %v1116 = vadd.f32 %v1103, %v1113
      %v1117 = vadd.f32 %v1104, %v1113
      %v1118 = vadd.f32 %v1105, %v1113
      %v1119 = vadd.f32 %v1106, %v1113
      %v1120 = vadd.f32 %v1107, %v1113
      %v1121 = vmax.f32 %v1115, 0.0
      %v1122 = vmax.f32 %v1116, 0.0
      %v1123 = vmax.f32 %v1117, 0.0
      %v1124 = vmax.f32 %v1118, 0.0
      %v1125 = vmax.f32 %v1119, 0.0
      %v1126 = vmax.f32 %v1120, 0.0
      %vm1127 = vcmask 130048
      %1128 = vst.msk [vmem:[%s221] sm:$0xff] %vm1127, %v1121
      %1129 = vst.msk [vmem:[%s221 + $0x8] sm:$0xff] %vm1127, %v1122
      %1130 = vst.msk [vmem:[%s221 + $0x10] sm:$0xff] %vm1127, %v1123
      %1131 = vst.msk [vmem:[%s221 + $0x18] sm:$0xff] %vm1127, %v1124
      %1132 = vst.msk [vmem:[%s221 + $0x20] sm:$0xff] %vm1127, %v1125
      %1133 = vst.msk [vmem:[%s221 + $0x28] sm:$0xff] %vm1127, %v1126
      %p1134 = scmp.lt.s32.totalorder %s18, 1
      %s1135 = scalar_select %p1134, %s18, 1
      %p1136 = scmp.lt.s32.totalorder %s19, 0
      %s1137 = scalar_select %p1136, %s19, 0
      %s1138 = smul.addr %s1135, 6
      %s1139 = sadd.s32 %s1137, %s1138
      %s1140 = smul.addr %s1139, 8
      %s1141 = scalar_lea.vmem %s3, %s1140
      // Predicated region
      $region33: #{depthwise_xcorr_forward.3} parent=31 // pred_check
        %p1142 = pneg %p124
      $region34: #{depthwise_xcorr_forward.3} parent=31 // pred_check_branch
        %1144 = sbr.rel (%p1142) target = $region36
      $region35: #{depthwise_xcorr_forward.3} parent=31 // pred_region
        _
      $region36: #{depthwise_xcorr_forward.3} parent=31 // pred_fallthru
        _
    $region32: #{depthwise_xcorr_forward.3} parent=5 // pred_fallthru
      _
    %p1145 = scmp.le.s32.totalorder 2, %s9
    // Predicated region
    $region37: #{depthwise_xcorr_forward.3} parent=5 // pred_check
      %p1146 = pneg %p1145
    $region38: #{depthwise_xcorr_forward.3} parent=5 // pred_check_branch
      %1148 = sbr.rel (%p1146) target = $region40
    $region39: #{depthwise_xcorr_forward.3} parent=5 // pred_region
      %s1149 = ssub.s32 %s9, 2
      // Predicated region
      $region41: #{depthwise_xcorr_forward.3} parent=39 // pred_check
        %p1150 = pneg %p130
      $region42: #{depthwise_xcorr_forward.3} parent=39 // pred_check_branch
        %1152 = sbr.rel (%p1150) target = $region44
      $region43: #{depthwise_xcorr_forward.3} parent=39 // pred_region
        %p1153 = scmp.lt.s32.totalorder %s20, 1
        %s1154 = scalar_select %p1153, %s20, 1
        %p1155 = scmp.lt.s32.totalorder %s21, 0
        %s1156 = scalar_select %p1155, %s21, 0
        %s1157 = smul.addr %s1154, 6
        %s1158 = sadd.s32 %s1156, %s1157
        %s1159 = smul.addr %s1158, 8
        %s1160 = scalar_lea.vmem %s3, %s1159
      $region44: #{depthwise_xcorr_forward.3} parent=39 // pred_fallthru
        _
    $region40: #{depthwise_xcorr_forward.3} parent=5 // pred_fallthru
      _
  $region6: #{depthwise_xcorr_forward.3} parent=0 // loop_footer
    %s13 = sadd.s32 1, %s9
  $region7: #{depthwise_xcorr_forward.3} parent=0 // loop_footer_branch
    %8 = sbr.rel target = $region3
  $region8: #{depthwise_xcorr_forward.3} parent=0 // loop_exit
    _

// kernel: depthwise_xcorr_forward.4
$region0: #{depthwise_xcorr_forward.4}
  #allocation0 [shape = 'u32[]', space=smem, size = 0x4, offset = 0x4, fixed_abs, tag = 'smem constant byte address 0x4 - core index']
  #allocation1 [shape = 'u32[144,128]{1,0:T(1,128)}', space=vmem, size = 0x12000, scoped, tag = 'internal scratch']
  %s0 = inlined_call_operand.vmem [shape: bf16[2,258,4], index: 0, kind: input, shape index: {}]
  %s1 = inlined_call_operand.vmem [shape: bf16[9,4,16], index: 1, kind: input, shape index: {}]
  %s2 = inlined_call_operand.vmem [shape: f32[1,16], index: 2, kind: input, shape index: {}]
  %s3 = inlined_call_operand.vmem [shape: f32[2,224,16], index: 3, kind: output, shape index: {}]
  %s4 = sld [smem:[#allocation0]]
  $region45: #{depthwise_xcorr_forward.4} parent=0
    _
  %s6 = ssub.s32 1, %s4
  %s7 = scalar_select 0, %s6, %s4
  loop: start=0, step=1, limit=4
  $region2: #{depthwise_xcorr_forward.4} parent=0 // loop_pre_header
    _
  $region3: #{depthwise_xcorr_forward.4} parent=0 // loop_header
    %s9 = sphi 0, %s13
    %p10 = scmp.ge.s32.totalorder %s9, 4
    %s16 = sphi 0, %s28
    %s17 = sphi 0, %s24
    %s18 = sphi 0, %s16
    %s19 = sphi 0, %s17
    %s20 = sphi 0, %s18
    %s21 = sphi 0, %s19
    %s31 = sphi 0, %s33
    %s34 = sphi 0, %s31
    %s35 = sphi 0, %s34
    %s51 = sphi 0, %s35
    %s57 = sphi 0, %s59
    %s60 = sphi 0, %s57
    %s61 = sphi 0, %s60
    %s77 = sphi 0, %s61
    %s83 = sphi 0, %s85
    %s86 = sphi 0, %s83
    %s87 = sphi 0, %s86
    %s103 = sphi 0, %s87
    %s111 = sphi 0, %s113
    %s114 = sphi 0, %s111
    %s115 = sphi 0, %s114
    %s131 = sphi 0, %s115
  $region4: #{depthwise_xcorr_forward.4} parent=0 // loop_header_branch
    %12 = sbr.rel (%p10) target = $region8
  $region5: #{depthwise_xcorr_forward.4} parent=0 // loop_body
    %s14 = ssub.s32 %s9, 1
    %s15 = ssub.s32 %s9, 2
    %s22 = sadd.s32 1, %s17
    %p23 = scmp.ge.s32.totalorder %s22, 1
    %s24 = scalar_select %p23, 0, %s22
    %s25 = sadd.s32 1, %s16
    %s26 = scalar_select %p23, %s25, %s16
    %p27 = scmp.ge.s32.totalorder %s26, 2
    %s28 = scalar_select %p27, 0, %s26
    %s29 = ssub.s32 %s16, %s28
    %p30 = scmp.eq.s32.totalorder %s29, 0
    %s32 = sadd.s32 %s31, 1
    %s33 = scalar_select %p30, %s31, %s32
    %p36 = pneg %p30
    %p37 = scmp.eq.s32.totalorder %s9, 1
    %p38 = por %p36, %p37
    %p39 = scmp.ne.s32.totalorder %s31, %s34
    %p40 = scmp.eq.s32.totalorder %s9, 0
    %p41 = por %p39, %p40
    %p42 = scmp.ne.s32.totalorder %s31, %s34
    %p43 = scmp.eq.s32.totalorder %s14, 1
    %p44 = por %p42, %p43
    %p45 = scmp.ne.s32.totalorder %s34, %s35
    %p46 = scmp.eq.s32.totalorder %s14, 0
    %p47 = por %p45, %p46
    %p48 = scmp.ne.s32.totalorder %s34, %s35
    %p49 = scmp.eq.s32.totalorder %s15, 1
    %p50 = por %p48, %p49
    %p52 = scmp.ne.s32.totalorder %s35, %s51
    %p53 = scmp.eq.s32.totalorder %s15, 0
    %p54 = por %p52, %p53
    %s55 = ssub.s32 %s17, %s24
    %p56 = scmp.eq.s32.totalorder %s55, 0
    %s58 = sadd.s32 %s57, 1
    %s59 = scalar_select %p56, %s57, %s58
    %p62 = pneg %p56
    %p63 = scmp.eq.s32.totalorder %s9, 1
    %p64 = por %p62, %p63
    %p65 = scmp.ne.s32.totalorder %s57, %s60
    %p66 = scmp.eq.s32.totalorder %s9, 0
    %p67 = por %p65, %p66
    %p68 = scmp.ne.s32.totalorder %s57, %s60
    %p69 = scmp.eq.s32.totalorder %s14, 1
    %p70 = por %p68, %p69
    %p71 = scmp.ne.s32.totalorder %s60, %s61
    %p72 = scmp.eq.s32.totalorder %s14, 0
    %p73 = por %p71, %p72
    %p74 = scmp.ne.s32.totalorder %s60, %s61
    %p75 = scmp.eq.s32.totalorder %s15, 1
    %p76 = por %p74, %p75
    %p78 = scmp.ne.s32.totalorder %s61, %s77
    %p79 = scmp.eq.s32.totalorder %s15, 0
    %p80 = por %p78, %p79
    %s81 = ssub.s32 %s17, %s24
    %p82 = scmp.eq.s32.totalorder %s81, 0
    %s84 = sadd.s32 %s83, 1
    %s85 = scalar_select %p82, %s83, %s84
    %p88 = pneg %p82
    %p89 = scmp.eq.s32.totalorder %s9, 1
    %p90 = por %p88, %p89
    %p91 = scmp.ne.s32.totalorder %s83, %s86
    %p92 = scmp.eq.s32.totalorder %s9, 0
    %p93 = por %p91, %p92
    %p94 = scmp.ne.s32.totalorder %s83, %s86
    %p95 = scmp.eq.s32.totalorder %s14, 1
    %p96 = por %p94, %p95
    %p97 = scmp.ne.s32.totalorder %s86, %s87
    %p98 = scmp.eq.s32.totalorder %s14, 0
    %p99 = por %p97, %p98
    %p100 = scmp.ne.s32.totalorder %s86, %s87
    %p101 = scmp.eq.s32.totalorder %s15, 1
    %p102 = por %p100, %p101
    %p104 = scmp.ne.s32.totalorder %s87, %s103
    %p105 = scmp.eq.s32.totalorder %s15, 0
    %p106 = por %p104, %p105
    %s107 = ssub.s32 %s16, %s28
    %s108 = ssub.s32 %s17, %s24
    %s109 = sor.u32 %s107, %s108
    %p110 = scmp.eq.s32.totalorder %s109, 0
    %s112 = sadd.s32 %s111, 1
    %s113 = scalar_select %p110, %s111, %s112
    %p116 = pneg %p110
    %p117 = scmp.eq.s32.totalorder %s9, 1
    %p118 = por %p116, %p117
    %p119 = scmp.ne.s32.totalorder %s111, %s114
    %p120 = scmp.eq.s32.totalorder %s9, 0
    %p121 = por %p119, %p120
    %p122 = scmp.ne.s32.totalorder %s111, %s114
    %p123 = scmp.eq.s32.totalorder %s14, 1
    %p124 = por %p122, %p123
    %p125 = scmp.ne.s32.totalorder %s114, %s115
    %p126 = scmp.eq.s32.totalorder %s14, 0
    %p127 = por %p125, %p126
    %p128 = scmp.ne.s32.totalorder %s114, %s115
    %p129 = scmp.eq.s32.totalorder %s15, 1
    %p130 = por %p128, %p129
    %p132 = scmp.ne.s32.totalorder %s115, %s131
    %p133 = scmp.eq.s32.totalorder %s15, 0
    %p134 = por %p132, %p133
    %p135 = scmp.le.s32.totalorder 1, %s9
    %p136 = scmp.lt.s32.totalorder %s9, 3
    %p137 = pnand %p135, %p136
    %p138 = pneg %p137
    // Predicated region
    $region9: #{depthwise_xcorr_forward.4} parent=5 // pred_check
      _
    $region10: #{depthwise_xcorr_forward.4} parent=5 // pred_check_branch
      %140 = sbr.rel (%p137) target = $region12
    $region11: #{depthwise_xcorr_forward.4} parent=5 // pred_region
      %s141 = ssub.s32 %s9, 1
      // Predicated region
      $region13: #{depthwise_xcorr_forward.4} parent=11 // pred_check
        %p142 = pneg %p73
      $region14: #{depthwise_xcorr_forward.4} parent=11 // pred_check_branch
        %144 = sbr.rel (%p142) target = $region16
      $region15: #{depthwise_xcorr_forward.4} parent=11 // pred_region
        %p145 = scmp.lt.s32.totalorder %s19, 0
        %s146 = scalar_select %p145, %s19, 0
        %s147 = smul.addr %s146, 2
        %s148 = scalar_lea.vmem %s1, %s147
      $region16: #{depthwise_xcorr_forward.4} parent=11 // pred_fallthru
        _
      // Predicated region
      $region17: #{depthwise_xcorr_forward.4} parent=11 // pred_check
        %p149 = pneg %p99
      $region18: #{depthwise_xcorr_forward.4} parent=11 // pred_check_branch
        %151 = sbr.rel (%p149) target = $region20
      $region19: #{depthwise_xcorr_forward.4} parent=11 // pred_region
        %p152 = scmp.lt.s32.totalorder %s19, 0
        %s153 = scalar_select %p152, %s19, 0
        %s154 = scalar_lea.vmem %s2, %s153
      $region20: #{depthwise_xcorr_forward.4} parent=11 // pred_fallthru
        _
    $region12: #{depthwise_xcorr_forward.4} parent=5 // pred_fallthru
      _
    %p155 = scmp.lt.s32.totalorder %s9, 2
    // Predicated region
    $region21: #{depthwise_xcorr_forward.4} parent=5 // pred_check
      %p156 = pneg %p155
    $region22: #{depthwise_xcorr_forward.4} parent=5 // pred_check_branch
      %158 = sbr.rel (%p156) target = $region24
    $region23: #{depthwise_xcorr_forward.4} parent=5 // pred_region
      // Predicated region
      $region25: #{depthwise_xcorr_forward.4} parent=23 // pred_check
        %p159 = pneg %p41
      $region26: #{depthwise_xcorr_forward.4} parent=23 // pred_check_branch
        %161 = sbr.rel (%p159) target = $region28
      $region27: #{depthwise_xcorr_forward.4} parent=23 // pred_region
        %p162 = scmp.lt.s32.totalorder %s16, 1
        %s163 = scalar_select %p162, %s16, 1
        %s164 = smul.addr %s163, 33
        %s165 = smul.addr %s164, 4
        %s166 = scalar_lea.vmem %s0, %s165
      $region28: #{depthwise_xcorr_forward.4} parent=23 // pred_fallthru
        _
    $region24: #{depthwise_xcorr_forward.4} parent=5 // pred_fallthru
      _
    %p167 = scmp.le.s32.totalorder 1, %s9
    %p168 = scmp.lt.s32.totalorder %s9, 3
    %p169 = pnand %p167, %p168
    %p170 = pneg %p169
    // Predicated region
    $region29: #{depthwise_xcorr_forward.4} parent=5 // pred_check
      _
    $region30: #{depthwise_xcorr_forward.4} parent=5 // pred_check_branch
      %172 = sbr.rel (%p169) target = $region32
    $region31: #{depthwise_xcorr_forward.4} parent=5 // pred_region
      %s173 = ssub.s32 %s9, 1
      %p174 = scmp.lt.s32.totalorder %s18, 1
      %s175 = scalar_select %p174, %s18, 1
      %s176 = smul.addr %s175, 33
      %s177 = smul.addr %s176, 4
      %s178 = scalar_lea.vmem %s0, %s177
      %p179 = pneg %p47
      %p180 = pneg %p44
      %p181 = scmp.lt.s32.totalorder %s19, 0
      %s182 = scalar_select %p181, %s19, 0
      %s183 = smul.addr %s182, 2
      %s184 = scalar_lea.vmem %s1, %s183
      %p185 = pneg %p73
      %p186 = pneg %p70
      %p187 = scmp.lt.s32.totalorder %s19, 0
      %s188 = scalar_select %p187, %s19, 0
      %s189 = scalar_lea.vmem %s2, %s188
      %p190 = pneg %p99
      %p191 = pneg %p96
      %p192 = pneg %p127
      %p193 = pneg %p124
      %p194 = scmp.lt.s32.totalorder %s18, 1
      %s195 = scalar_select %p194, %s18, 1
      %p196 = scmp.lt.s32.totalorder %s19, 0
      %s197 = scalar_select %p196, %s19, 0
      %s198 = smul.addr %s195, 28
      %s199 = sadd.s32 %s197, %s198
      %s200 = smul.addr %s199, 8
      %s201 = scalar_lea.vmem %s3, %s200
      %p202 = scmp.lt.s32.totalorder %s18, 1
      %s203 = scalar_select %p202, %s18, 1
      %s204 = smul.addr %s203, 33
      %s205 = smul.addr %s204, 4
      %s206 = scalar_lea.vmem %s0, %s205
      %p207 = scmp.lt.s32.totalorder %s19, 0
      %s208 = scalar_select %p207, %s19, 0
      %s209 = smul.addr %s208, 2
      %s210 = scalar_lea.vmem %s1, %s209
      %p211 = scmp.lt.s32.totalorder %s19, 0
      %s212 = scalar_select %p211, %s19, 0
      %s213 = scalar_lea.vmem %s2, %s212
      %p214 = scmp.lt.s32.totalorder %s18, 1
      %s215 = scalar_select %p214, %s18, 1
      %p216 = scmp.lt.s32.totalorder %s19, 0
      %s217 = scalar_select %p216, %s19, 0
      %s218 = smul.addr %s215, 28
      %s219 = sadd.s32 %s217, %s218
      %s220 = smul.addr %s219, 8
      %s221 = scalar_lea.vmem %s3, %s220
      %v223 = vld [vmem:[%s206] sm:$0xf]
      %v224 = vld [vmem:[%s206 + $0x4] sm:$0xf]
      %v225 = vld [vmem:[%s206 + $0x8] sm:$0xf]
      %v226 = vld [vmem:[%s206 + $0xc] sm:$0xf]
      %v227 = vld [vmem:[%s206 + $0x10] sm:$0xf]
      %v228 = vld [vmem:[%s206 + $0x14] sm:$0xf]
      %v229 = vld [vmem:[%s206 + $0x18] sm:$0xf]
      %v230 = vld [vmem:[%s206 + $0x1c] sm:$0xf]
      %v231 = vld [vmem:[%s206 + $0x20] sm:$0xf]
      %v232 = vld [vmem:[%s206 + $0x24] sm:$0xf]
      %v233 = vld [vmem:[%s206 + $0x28] sm:$0xf]
      %v234 = vld [vmem:[%s206 + $0x2c] sm:$0xf]
      %v235 = vld [vmem:[%s206 + $0x30] sm:$0xf]
      %v236 = vld [vmem:[%s206 + $0x34] sm:$0xf]
      %v237 = vld [vmem:[%s206 + $0x38] sm:$0xf]
      %v238 = vld [vmem:[%s206 + $0x3c] sm:$0xf]
      %v239 = vld [vmem:[%s206 + $0x40] sm:$0xf]
      %v240 = vld [vmem:[%s206 + $0x44] sm:$0xf]
      %v241 = vld [vmem:[%s206 + $0x48] sm:$0xf]
      %v242 = vld [vmem:[%s206 + $0x4c] sm:$0xf]
      %v243 = vld [vmem:[%s206 + $0x50] sm:$0xf]
      %v244 = vld [vmem:[%s206 + $0x54] sm:$0xf]
      %v245 = vld [vmem:[%s206 + $0x58] sm:$0xf]
      %v246 = vld [vmem:[%s206 + $0x5c] sm:$0xf]
      %v247 = vld [vmem:[%s206 + $0x60] sm:$0xf]
      %v248 = vld [vmem:[%s206 + $0x64] sm:$0xf]
      %v249 = vld [vmem:[%s206 + $0x68] sm:$0xf]
      %v250 = vld [vmem:[%s206 + $0x6c] sm:$0xf]
      %v251 = vld [vmem:[%s210] sm:$0x3]
      %v252 = vld [vmem:[%s206 + $0x70] sm:$0x1]
      %s253 = scalar_lea.vmem %s210, 2
      %v254 = vld [vmem:[%s253] sm:$0x3]
      %v284 = vunpack.c.l.b16 %v223
      %v285 = vunpack.c.l.b16 %v224
      %v286 = vunpack.c.l.b16 %v225
      %v287 = vunpack.c.l.b16 %v226
      %v288 = vunpack.c.l.b16 %v227
      %v289 = vunpack.c.l.b16 %v228
      %v290 = vunpack.c.l.b16 %v229
      %v291 = vunpack.c.l.b16 %v230
      %v292 = vunpack.c.l.b16 %v231
      %v293 = vunpack.c.l.b16 %v232
      %v294 = vunpack.c.l.b16 %v233
      %v295 = vunpack.c.l.b16 %v234
      %v296 = vunpack.c.l.b16 %v235
      %v297 = vunpack.c.l.b16 %v236
      %v298 = vunpack.c.l.b16 %v237
      %v299 = vunpack.c.l.b16 %v238
      %v300 = vunpack.c.l.b16 %v239
      %v301 = vunpack.c.l.b16 %v240
      %v302 = vunpack.c.l.b16 %v241
      %v303 = vunpack.c.l.b16 %v242
      %v304 = vunpack.c.l.b16 %v243
      %v305 = vunpack.c.l.b16 %v244
      %v306 = vunpack.c.l.b16 %v245
      %v307 = vunpack.c.l.b16 %v246
      %v308 = vunpack.c.l.b16 %v247
      %v309 = vunpack.c.l.b16 %v248
      %v310 = vunpack.c.l.b16 %v249
      %v311 = vunpack.c.l.b16 %v250
      %v312 = vunpack.c.l.b16 %v252
      %v313 = vpack.c.b16 %v285, %v284
      %v314 = vpack.c.b16 %v287, %v286
      %v315 = vpack.c.b16 %v289, %v288
      %v316 = vpack.c.b16 %v291, %v290
      %v317 = vpack.c.b16 %v293, %v292
      %v318 = vpack.c.b16 %v295, %v294
      %v319 = vpack.c.b16 %v297, %v296
      %v320 = vpack.c.b16 %v299, %v298
      %v321 = vpack.c.b16 %v301, %v300
      %v322 = vpack.c.b16 %v303, %v302
      %v323 = vpack.c.b16 %v305, %v304
      %v324 = vpack.c.b16 %v307, %v306
      %v325 = vpack.c.b16 %v309, %v308
      %v326 = vpack.c.b16 %v311, %v310
      %v327 = vpack.c.b16 %v312, %v312
      %vm328 = vsmask.f32 7424
      %v330 = vshrl.u32 %v313, 16
      %v332 = vshll.u32 %v313, 16
      %v334 = vrot.slane %v332, 1
      %v335 = vor.u32 %v330, %v334
      %v337 = vshll.u32 %v314, 16
      %v339 = vrot.slane %v337, 1
      %v340 = vsel %vm328, %v335, %v339
      %v341 = vshrl.u32 %v314, 16
      %v343 = vor.u32 %v341, %v339
      %v345 = vshll.u32 %v315, 16
      %v347 = vrot.slane %v345, 1
      %v348 = vsel %vm328, %v343, %v347
      %v349 = vshrl.u32 %v315, 16
      %v351 = vor.u32 %v349, %v347
      %v353 = vshll.u32 %v316, 16
      %v355 = vrot.slane %v353, 1
      %v356 = vsel %vm328, %v351, %v355
      %v357 = vshrl.u32 %v316, 16
      %v359 = vor.u32 %v357, %v355
      %v361 = vshll.u32 %v317, 16
      %v363 = vrot.slane %v361, 1
      %v364 = vsel %vm328, %v359, %v363
      %v365 = vshrl.u32 %v317, 16
      %v367 = vor.u32 %v365, %v363
      %v369 = vshll.u32 %v318, 16
      %v371 = vrot.slane %v369, 1
      %v372 = vsel %vm328, %v367, %v371
      %v373 = vshrl.u32 %v318, 16
      %v375 = vor.u32 %v373, %v371
      %v377 = vshll.u32 %v319, 16
      %v379 = vrot.slane %v377, 1
      %v380 = vsel %vm328, %v375, %v379
      %v381 = vshrl.u32 %v319, 16
      %v383 = vor.u32 %v381, %v379
      %v385 = vshll.u32 %v320, 16
      %v387 = vrot.slane %v385, 1
      %v388 = vsel %vm328, %v383, %v387
      %v389 = vshrl.u32 %v320, 16
      %v391 = vor.u32 %v389, %v387
      %v393 = vshll.u32 %v321, 16
      %v395 = vrot.slane %v393, 1
      %v396 = vsel %vm328, %v391, %v395
      %v397 = vshrl.u32 %v321, 16
      %v399 = vor.u32 %v397, %v395
      %v401 = vshll.u32 %v322, 16
      %v403 = vrot.slane %v401, 1
      %v404 = vsel %vm328, %v399, %v403
      %v405 = vshrl.u32 %v322, 16
      %v407 = vor.u32 %v405, %v403
      %v409 = vshll.u32 %v323, 16
      %v411 = vrot.slane %v409, 1
      %v412 = vsel %vm328, %v407, %v411
      %v413 = vshrl.u32 %v323, 16
      %v415 = vor.u32 %v413, %v411
      %v417 = vshll.u32 %v324, 16
      %v419 = vrot.slane %v417, 1
      %v420 = vsel %vm328, %v415, %v419
      %v421 = vshrl.u32 %v324, 16
      %v423 = vor.u32 %v421, %v419
      %v425 = vshll.u32 %v325, 16
      %v427 = vrot.slane %v425, 1
      %v428 = vsel %vm328, %v423, %v427
      %v429 = vshrl.u32 %v325, 16
      %v431 = vor.u32 %v429, %v427
      %v433 = vshll.u32 %v326, 16
      %v435 = vrot.slane %v433, 1
      %v436 = vsel %vm328, %v431, %v435
      %v437 = vshrl.u32 %v326, 16
      %v439 = vor.u32 %v437, %v435
      %v441 = vshll.u32 %v327, 16
      %v443 = vrot.slane %v441, 1
      %v444 = vsel %vm328, %v439, %v443
      %vm445 = vcmask 31744
      %v447 = vsel %vm445, %v340, 0
      %v450 = vsel %vm445, %v348, 0
      %v453 = vsel %vm445, %v356, 0
      %v456 = vsel %vm445, %v364, 0
      %v459 = vsel %vm445, %v372, 0
      %v462 = vsel %vm445, %v380, 0
      %v465 = vsel %vm445, %v388, 0
      %v468 = vsel %vm445, %v396, 0
      %v471 = vsel %vm445, %v404, 0
      %v474 = vsel %vm445, %v412, 0
      %v477 = vsel %vm445, %v420, 0
      %v480 = vsel %vm445, %v428, 0
      %v483 = vsel %vm445, %v436, 0
      %v486 = vsel %vm445, %v444, 0
      %vm488 = vcmask 1041408
      %v490 = vsel %vm488, %v254, 0
      %492 = vmatprep.subr.bf16.mxu0 0
      %493 = vmatpush1.bf16.msra.mxu0 %v490
      %494 = vmatprep.subr.bf16.mxu0 0
      %495 = vmatpush1.bf16.msra.mxu0 0
      %496 = vmatprep.subr.bf16.mxu0 0
      %497 = vmatpush1.bf16.msra.mxu0 0
      %498 = vmatprep.subr.bf16.mxu0 0
      %499 = vmatpush1.bf16.msra.mxu0 0
      %500 = vmatprep.subr.bf16.mxu0 0
      %501 = vmatpush1.bf16.msra.mxu0 0
      %502 = vmatprep.subr.bf16.mxu0 0
      %503 = vmatpush1.bf16.msra.mxu0 0
      %504 = vmatprep.subr.bf16.mxu0 0
      %505 = vmatpush1.bf16.msra.mxu0 0
      %506 = vmatprep.subr.bf16.mxu0 0
      %507 = vmatpush1.bf16.msra.mxu0 0
      %508 = vmatprep.subr.bf16.mxu0 0
      %509 = vmatpush1.bf16.msra.mxu0 0
      %510 = vmatprep.subr.bf16.mxu0 0
      %511 = vmatpush1.bf16.msra.mxu0 0
      %512 = vmatprep.subr.bf16.mxu0 0
      %513 = vmatpush1.bf16.msra.mxu0 0
      %514 = vmatprep.subr.bf16.mxu0 0
      %515 = vmatpush1.bf16.msra.mxu0 0
      %516 = vmatprep.subr.bf16.mxu0 0
      %517 = vmatpush1.bf16.msra.mxu0 0
      %518 = vmatprep.subr.bf16.mxu0 0
      %519 = vmatpush1.bf16.msra.mxu0 0
      %520 = vmatprep.subr.bf16.mxu0 0
      %521 = vmatpush1.bf16.msra.mxu0 0
      %522 = vmatprep.subr.bf16.mxu0 0
      %523 = vmatpush1.bf16.msra.mxu0 0
      %524 = vmatprep.mubr.bf16.mxu0 0
      %525 = vmatmul.mubr.bf16.gmra.mrb[0].mxu0 %v447
      %v526 = vpop.f32.mrb[0].mxu0
      %v527 = vadd.f32 0.0, %v526
      %v528 = vpop.f32.mrb[0].mxu0
      %v529 = vpop.f32.mrb[0].mxu0
      %v530 = vadd.f32 0.0, %v529
      %v531 = vpop.f32.mrb[0].mxu0
      %532 = vmatprep.mubr.bf16.mxu0 0
      %533 = vmatmul.mubr.bf16.gmra.mrb[0].mxu0 %v450
      %v534 = vpop.f32.mrb[0].mxu0
      %v535 = vadd.f32 0.0, %v534
      %v536 = vpop.f32.mrb[0].mxu0
      %v537 = vpop.f32.mrb[0].mxu0
      %v538 = vadd.f32 0.0, %v537
      %v539 = vpop.f32.mrb[0].mxu0
      %540 = vmatprep.mubr.bf16.mxu0 0
      %541 = vmatmul.mubr.bf16.gmra.mrb[0].mxu0 %v453
      %v542 = vpop.f32.mrb[0].mxu0
      %v543 = vadd.f32 0.0, %v542
      %v544 = vpop.f32.mrb[0].mxu0
      %v545 = vpop.f32.mrb[0].mxu0
      %v546 = vadd.f32 0.0, %v545
      %v547 = vpop.f32.mrb[0].mxu0
      %548 = vmatprep.mubr.bf16.mxu0 0
      %549 = vmatmul.mubr.bf16.gmra.mrb[0].mxu0 %v456
      %v550 = vpop.f32.mrb[0].mxu0
      %v551 = vadd.f32 0.0, %v550
      %v552 = vpop.f32.mrb[0].mxu0
      %v553 = vpop.f32.mrb[0].mxu0
      %v554 = vadd.f32 0.0, %v553
      %v555 = vpop.f32.mrb[0].mxu0
      %556 = vmatprep.mubr.bf16.mxu0 0
      %557 = vmatmul.mubr.bf16.gmra.mrb[0].mxu0 %v459
      %v558 = vpop.f32.mrb[0].mxu0
      %v559 = vadd.f32 0.0, %v558
      %v560 = vpop.f32.mrb[0].mxu0
      %v561 = vpop.f32.mrb[0].mxu0
      %v562 = vadd.f32 0.0, %v561
      %v563 = vpop.f32.mrb[0].mxu0
      %564 = vmatprep.mubr.bf16.mxu0 0
      %565 = vmatmul.mubr.bf16.gmra.mrb[0].mxu0 %v462
      %v566 = vpop.f32.mrb[0].mxu0
      %v567 = vadd.f32 0.0, %v566
      %v568 = vpop.f32.mrb[0].mxu0
      %v569 = vpop.f32.mrb[0].mxu0
      %v570 = vadd.f32 0.0, %v569
      %v571 = vpop.f32.mrb[0].mxu0
      %572 = vmatprep.mubr.bf16.mxu0 0
      %573 = vmatmul.mubr.bf16.gmra.mrb[0].mxu0 %v465
      %v574 = vpop.f32.mrb[0].mxu0
      %v575 = vadd.f32 0.0, %v574
      %v576 = vpop.f32.mrb[0].mxu0
      %v577 = vpop.f32.mrb[0].mxu0
      %v578 = vadd.f32 0.0, %v577
      %v579 = vpop.f32.mrb[0].mxu0
      %580 = vmatprep.mubr.bf16.mxu0 0
      %581 = vmatmul.mubr.bf16.gmra.mrb[0].mxu0 %v468
      %v582 = vpop.f32.mrb[0].mxu0
      %v583 = vadd.f32 0.0, %v582
      %v584 = vpop.f32.mrb[0].mxu0
      %v585 = vpop.f32.mrb[0].mxu0
      %v586 = vadd.f32 0.0, %v585
      %v587 = vpop.f32.mrb[0].mxu0
      %588 = vmatprep.mubr.bf16.mxu0 0
      %589 = vmatmul.mubr.bf16.gmra.mrb[0].mxu0 %v471
      %v590 = vpop.f32.mrb[0].mxu0
      %v591 = vadd.f32 0.0, %v590
      %v592 = vpop.f32.mrb[0].mxu0
      %v593 = vpop.f32.mrb[0].mxu0
      %v594 = vadd.f32 0.0, %v593
      %v595 = vpop.f32.mrb[0].mxu0
      %596 = vmatprep.mubr.bf16.mxu0 0
      %597 = vmatmul.mubr.bf16.gmra.mrb[0].mxu0 %v474
      %v598 = vpop.f32.mrb[0].mxu0
      %v599 = vadd.f32 0.0, %v598
      %v600 = vpop.f32.mrb[0].mxu0
      %v601 = vpop.f32.mrb[0].mxu0
      %v602 = vadd.f32 0.0, %v601
      %v603 = vpop.f32.mrb[0].mxu0
      %604 = vmatprep.mubr.bf16.mxu0 0
      %605 = vmatmul.mubr.bf16.gmra.mrb[0].mxu0 %v477
      %v606 = vpop.f32.mrb[0].mxu0
      %v607 = vadd.f32 0.0, %v606
      %v608 = vpop.f32.mrb[0].mxu0
      %v609 = vpop.f32.mrb[0].mxu0
      %v610 = vadd.f32 0.0, %v609
      %v611 = vpop.f32.mrb[0].mxu0
      %612 = vmatprep.mubr.bf16.mxu0 0
      %613 = vmatmul.mubr.bf16.gmra.mrb[0].mxu0 %v480
      %v614 = vpop.f32.mrb[0].mxu0
      %v615 = vadd.f32 0.0, %v614
      %v616 = vpop.f32.mrb[0].mxu0
      %v617 = vpop.f32.mrb[0].mxu0
      %v618 = vadd.f32 0.0, %v617
      %v619 = vpop.f32.mrb[0].mxu0
      %620 = vmatprep.mubr.bf16.mxu0 0
      %621 = vmatmul.mubr.bf16.gmra.mrb[0].mxu0 %v483
      %v622 = vpop.f32.mrb[0].mxu0
      %v623 = vadd.f32 0.0, %v622
      %v624 = vpop.f32.mrb[0].mxu0
      %v625 = vpop.f32.mrb[0].mxu0
      %v626 = vadd.f32 0.0, %v625
      %v627 = vpop.f32.mrb[0].mxu0
      %628 = vmatprep.mubr.bf16.mxu0 0
      %629 = vmatmul.mubr.bf16.gmra.mrb[0].mxu0 %v486
      %v630 = vpop.f32.mrb[0].mxu0
      %v631 = vadd.f32 0.0, %v630
      %v632 = vpop.f32.mrb[0].mxu0
      %v633 = vpop.f32.mrb[0].mxu0
      %v634 = vadd.f32 0.0, %v633
      %v635 = vpop.f32.mrb[0].mxu0
      %636 = vdwg.mxu0
      %v637 = vsel %vm445, %v313, 0
      %v639 = vsel %vm445, %v314, 0
      %v641 = vsel %vm445, %v315, 0
      %v643 = vsel %vm445, %v316, 0
      %v645 = vsel %vm445, %v317, 0
      %v647 = vsel %vm445, %v318, 0
      %v649 = vsel %vm445, %v319, 0
      %v651 = vsel %vm445, %v320, 0
      %v653 = vsel %vm445, %v321, 0
      %v655 = vsel %vm445, %v322, 0
      %v657 = vsel %vm445, %v323, 0
      %v659 = vsel %vm445, %v324, 0
      %v661 = vsel %vm445, %v325, 0
      %v663 = vsel %vm445, %v326, 0
      %v666 = vsel %vm488, %v251, 0
      %668 = vmatprep.subr.bf16.mxu0 0
      %669 = vmatpush1.bf16.msra.mxu0 %v666
      %670 = vmatprep.subr.bf16.mxu0 0
      %671 = vmatpush1.bf16.msra.mxu0 0
      %672 = vmatprep.subr.bf16.mxu0 0
      %673 = vmatpush1.bf16.msra.mxu0 0
      %674 = vmatprep.subr.bf16.mxu0 0
      %675 = vmatpush1.bf16.msra.mxu0 0
      %676 = vmatprep.subr.bf16.mxu0 0
      %677 = vmatpush1.bf16.msra.mxu0 0
      %678 = vmatprep.subr.bf16.mxu0 0
      %679 = vmatpush1.bf16.msra.mxu0 0
      %680 = vmatprep.subr.bf16.mxu0 0
      %681 = vmatpush1.bf16.msra.mxu0 0
      %682 = vmatprep.subr.bf16.mxu0 0
      %683 = vmatpush1.bf16.msra.mxu0 0
      %684 = vmatprep.subr.bf16.mxu0 0
      %685 = vmatpush1.bf16.msra.mxu0 0
      %686 = vmatprep.subr.bf16.mxu0 0
      %687 = vmatpush1.bf16.msra.mxu0 0
      %688 = vmatprep.subr.bf16.mxu0 0
      %689 = vmatpush1.bf16.msra.mxu0 0
      %690 = vmatprep.subr.bf16.mxu0 0
      %691 = vmatpush1.bf16.msra.mxu0 0
      %692 = vmatprep.subr.bf16.mxu0 0
      %693 = vmatpush1.bf16.msra.mxu0 0
      %694 = vmatprep.subr.bf16.mxu0 0
      %695 = vmatpush1.bf16.msra.mxu0 0
      %696 = vmatprep.subr.bf16.mxu0 0
      %697 = vmatpush1.bf16.msra.mxu0 0
      %698 = vmatprep.subr.bf16.mxu0 0
      %699 = vmatpush1.bf16.msra.mxu0 0
      %700 = vmatprep.mubr.bf16.mxu0 0
      %701 = vmatmul.mubr.bf16.gmra.mrb[0].mxu0 %v637
      %v702 = vpop.f32.mrb[0].mxu0
      %v703 = vadd.f32 %v527, %v702
      %v704 = vpop.f32.mrb[0].mxu0
      %v705 = vpop.f32.mrb[0].mxu0
      %v706 = vadd.f32 %v530, %v705
      %v707 = vpop.f32.mrb[0].mxu0
      %708 = vmatprep.mubr.bf16.mxu0 0
      %709 = vmatmul.mubr.bf16.gmra.mrb[0].mxu0 %v639
      %v710 = vpop.f32.mrb[0].mxu0
      %v711 = vadd.f32 %v535, %v710
      %v712 = vpop.f32.mrb[0].mxu0
      %v713 = vpop.f32.mrb[0].mxu0
      %v714 = vadd.f32 %v538, %v713
      %v715 = vpop.f32.mrb[0].mxu0
      %716 = vmatprep.mubr.bf16.mxu0 0
      %717 = vmatmul.mubr.bf16.gmra.mrb[0].mxu0 %v641
      %v718 = vpop.f32.mrb[0].mxu0
      %v719 = vadd.f32 %v543, %v718
      %v720 = vpop.f32.mrb[0].mxu0
      %v721 = vpop.f32.mrb[0].mxu0
      %v722 = vadd.f32 %v546, %v721
      %v723 = vpop.f32.mrb[0].mxu0
      %724 = vmatprep.mubr.bf16.mxu0 0
      %725 = vmatmul.mubr.bf16.gmra.mrb[0].mxu0 %v643
      %v726 = vpop.f32.mrb[0].mxu0
      %v727 = vadd.f32 %v551, %v726
      %v728 = vpop.f32.mrb[0].mxu0
      %v729 = vpop.f32.mrb[0].mxu0
      %v730 = vadd.f32 %v554, %v729
      %v731 = vpop.f32.mrb[0].mxu0
      %732 = vmatprep.mubr.bf16.mxu0 0
      %733 = vmatmul.mubr.bf16.gmra.mrb[0].mxu0 %v645
      %v734 = vpop.f32.mrb[0].mxu0
      %v735 = vadd.f32 %v559, %v734
      %v736 = vpop.f32.mrb[0].mxu0
      %v737 = vpop.f32.mrb[0].mxu0
      %v738 = vadd.f32 %v562, %v737
      %v739 = vpop.f32.mrb[0].mxu0
      %740 = vmatprep.mubr.bf16.mxu0 0
      %741 = vmatmul.mubr.bf16.gmra.mrb[0].mxu0 %v647
      %v742 = vpop.f32.mrb[0].mxu0
      %v743 = vadd.f32 %v567, %v742
      %v744 = vpop.f32.mrb[0].mxu0
      %v745 = vpop.f32.mrb[0].mxu0
      %v746 = vadd.f32 %v570, %v745
      %v747 = vpop.f32.mrb[0].mxu0
      %748 = vmatprep.mubr.bf16.mxu0 0
      %749 = vmatmul.mubr.bf16.gmra.mrb[0].mxu0 %v649
      %v750 = vpop.f32.mrb[0].mxu0
      %v751 = vadd.f32 %v575, %v750
      %v752 = vpop.f32.mrb[0].mxu0
      %v753 = vpop.f32.mrb[0].mxu0
      %v754 = vadd.f32 %v578, %v753
      %v755 = vpop.f32.mrb[0].mxu0
      %756 = vmatprep.mubr.bf16.mxu0 0
      %757 = vmatmul.mubr.bf16.gmra.mrb[0].mxu0 %v651
      %v758 = vpop.f32.mrb[0].mxu0
      %v759 = vadd.f32 %v583, %v758
      %v760 = vpop.f32.mrb[0].mxu0
      %v761 = vpop.f32.mrb[0].mxu0
      %v762 = vadd.f32 %v586, %v761
      %v763 = vpop.f32.mrb[0].mxu0
      %764 = vmatprep.mubr.bf16.mxu0 0
      %765 = vmatmul.mubr.bf16.gmra.mrb[0].mxu0 %v653
      %v766 = vpop.f32.mrb[0].mxu0
      %v767 = vadd.f32 %v591, %v766
      %v768 = vpop.f32.mrb[0].mxu0
      %v769 = vpop.f32.mrb[0].mxu0
      %v770 = vadd.f32 %v594, %v769
      %v771 = vpop.f32.mrb[0].mxu0
      %772 = vmatprep.mubr.bf16.mxu0 0
      %773 = vmatmul.mubr.bf16.gmra.mrb[0].mxu0 %v655
      %v774 = vpop.f32.mrb[0].mxu0
      %v775 = vadd.f32 %v599, %v774
      %v776 = vpop.f32.mrb[0].mxu0
      %v777 = vpop.f32.mrb[0].mxu0
      %v778 = vadd.f32 %v602, %v777
      %v779 = vpop.f32.mrb[0].mxu0
      %780 = vmatprep.mubr.bf16.mxu0 0
      %781 = vmatmul.mubr.bf16.gmra.mrb[0].mxu0 %v657
      %v782 = vpop.f32.mrb[0].mxu0
      %v783 = vadd.f32 %v607, %v782
      %v784 = vpop.f32.mrb[0].mxu0
      %v785 = vpop.f32.mrb[0].mxu0
      %v786 = vadd.f32 %v610, %v785
      %v787 = vpop.f32.mrb[0].mxu0
      %788 = vmatprep.mubr.bf16.mxu0 0
      %789 = vmatmul.mubr.bf16.gmra.mrb[0].mxu0 %v659
      %v790 = vpop.f32.mrb[0].mxu0
      %v791 = vadd.f32 %v615, %v790
      %v792 = vpop.f32.mrb[0].mxu0
      %v793 = vpop.f32.mrb[0].mxu0
      %v794 = vadd.f32 %v618, %v793
      %v795 = vpop.f32.mrb[0].mxu0
      %796 = vmatprep.mubr.bf16.mxu0 0
      %797 = vmatmul.mubr.bf16.gmra.mrb[0].mxu0 %v661
      %v798 = vpop.f32.mrb[0].mxu0
      %v799 = vadd.f32 %v623, %v798
      %v800 = vpop.f32.mrb[0].mxu0
      %v801 = vpop.f32.mrb[0].mxu0
      %v802 = vadd.f32 %v626, %v801
      %v803 = vpop.f32.mrb[0].mxu0
      %804 = vmatprep.mubr.bf16.mxu0 0
      %805 = vmatmul.mubr.bf16.gmra.mrb[0].mxu0 %v663
      %v806 = vpop.f32.mrb[0].mxu0
      %v807 = vadd.f32 %v631, %v806
      %v808 = vpop.f32.mrb[0].mxu0
      %v809 = vpop.f32.mrb[0].mxu0
      %v810 = vadd.f32 %v634, %v809
      %v811 = vpop.f32.mrb[0].mxu0
      %812 = vdwg.mxu0
      %v813 = vld [vmem:[%s206] sm:$0xe]
      %s814 = scalar_lea.vmem %s210, 4
      %v815 = vld [vmem:[%s814] sm:$0x3]
      %v817 = vunpack.c.l.b16 %v813
      %v818 = vpack.c.b16 %v285, %v817
      %vm819 = vcmask 1046528
      %v820 = vrot.slane %v818, 1
      %v821 = vrot.slane %v314, 1
      %v822 = vsel %vm819, %v820, %v821
      %v823 = vrot.slane %v315, 1
      %v824 = vsel %vm819, %v821, %v823
      %v825 = vrot.slane %v316, 1
      %v826 = vsel %vm819, %v823, %v825
      %v827 = vrot.slane %v317, 1
      %v828 = vsel %vm819, %v825, %v827
      %v829 = vrot.slane %v318, 1
      %v830 = vsel %vm819, %v827, %v829
      %v831 = vrot.slane %v319, 1
      %v832 = vsel %vm819, %v829, %v831
      %v833 = vrot.slane %v320, 1
      %v834 = vsel %vm819, %v831, %v833
      %v835 = vrot.slane %v321, 1
      %v836 = vsel %vm819, %v833, %v835
      %v837 = vrot.slane %v322, 1
      %v838 = vsel %vm819, %v835, %v837
      %v839 = vrot.slane %v323, 1
      %v840 = vsel %vm819, %v837, %v839
      %v841 = vrot.slane %v324, 1
      %v842 = vsel %vm819, %v839, %v841
      %v843 = vrot.slane %v325, 1
      %v844 = vsel %vm819, %v841, %v843
      %v845 = vrot.slane %v326, 1
      %v846 = vsel %vm819, %v843, %v845
      %v847 = vrot.slane %v327, 1
      %v848 = vsel %vm819, %v845, %v847
      %v850 = vsel %vm445, %v822, 0
      %v853 = vsel %vm445, %v824, 0
      %v856 = vsel %vm445, %v826, 0
      %v859 = vsel %vm445, %v828, 0
      %v862 = vsel %vm445, %v830, 0
      %v865 = vsel %vm445, %v832, 0
      %v868 = vsel %vm445, %v834, 0
      %v871 = vsel %vm445, %v836, 0
      %v874 = vsel %vm445, %v838, 0
      %v877 = vsel %vm445, %v840, 0
      %v880 = vsel %vm445, %v842, 0
      %v883 = vsel %vm445, %v844, 0
      %v886 = vsel %vm445, %v846, 0
      %v889 = vsel %vm445, %v848, 0
      %v892 = vsel %vm488, %v815, 0
      %894 = vmatprep.subr.bf16.mxu0 0
      %895 = vmatpush1.bf16.msra.mxu0 %v892
      %896 = vmatprep.subr.bf16.mxu0 0
      %897 = vmatpush1.bf16.msra.mxu0 0
      %898 = vmatprep.subr.bf16.mxu0 0
      %899 = vmatpush1.bf16.msra.mxu0 0
      %900 = vmatprep.subr.bf16.mxu0 0
      %901 = vmatpush1.bf16.msra.mxu0 0
      %902 = vmatprep.subr.bf16.mxu0 0
      %903 = vmatpush1.bf16.msra.mxu0 0
      %904 = vmatprep.subr.bf16.mxu0 0
      %905 = vmatpush1.bf16.msra.mxu0 0
      %906 = vmatprep.subr.bf16.mxu0 0
      %907 = vmatpush1.bf16.msra.mxu0 0
      %908 = vmatprep.subr.bf16.mxu0 0
      %909 = vmatpush1.bf16.msra.mxu0 0
      %910 = vmatprep.subr.bf16.mxu0 0
      %911 = vmatpush1.bf16.msra.mxu0 0
      %912 = vmatprep.subr.bf16.mxu0 0
      %913 = vmatpush1.bf16.msra.mxu0 0
      %914 = vmatprep.subr.bf16.mxu0 0
      %915 = vmatpush1.bf16.msra.mxu0 0
      %916 = vmatprep.subr.bf16.mxu0 0
      %917 = vmatpush1.bf16.msra.mxu0 0
      %918 = vmatprep.subr.bf16.mxu0 0
      %919 = vmatpush1.bf16.msra.mxu0 0
      %920 = vmatprep.subr.bf16.mxu0 0
      %921 = vmatpush1.bf16.msra.mxu0 0
      %922 = vmatprep.subr.bf16.mxu0 0
      %923 = vmatpush1.bf16.msra.mxu0 0
      %924 = vmatprep.subr.bf16.mxu0 0
      %925 = vmatpush1.bf16.msra.mxu0 0
      %926 = vmatprep.mubr.bf16.mxu0 0
      %927 = vmatmul.mubr.bf16.gmra.mrb[0].mxu0 %v850
      %v928 = vpop.f32.mrb[0].mxu0
      %v929 = vadd.f32 0.0, %v928
      %v930 = vpop.f32.mrb[0].mxu0
      %v931 = vpop.f32.mrb[0].mxu0
      %v932 = vadd.f32 0.0, %v931
      %v933 = vpop.f32.mrb[0].mxu0
      %934 = vmatprep.mubr.bf16.mxu0 0
      %935 = vmatmul.mubr.bf16.gmra.mrb[0].mxu0 %v853
      %v936 = vpop.f32.mrb[0].mxu0
      %v937 = vadd.f32 0.0, %v936
      %v938 = vpop.f32.mrb[0].mxu0
      %v939 = vpop.f32.mrb[0].mxu0
      %v940 = vadd.f32 0.0, %v939
      %v941 = vpop.f32.mrb[0].mxu0
      %942 = vmatprep.mubr.bf16.mxu0 0
      %943 = vmatmul.mubr.bf16.gmra.mrb[0].mxu0 %v856
      %v944 = vpop.f32.mrb[0].mxu0
      %v945 = vadd.f32 0.0, %v944
      %v946 = vpop.f32.mrb[0].mxu0
      %v947 = vpop.f32.mrb[0].mxu0
      %v948 = vadd.f32 0.0, %v947
      %v949 = vpop.f32.mrb[0].mxu0
      %950 = vmatprep.mubr.bf16.mxu0 0
      %951 = vmatmul.mubr.bf16.gmra.mrb[0].mxu0 %v859
      %v952 = vpop.f32.mrb[0].mxu0
      %v953 = vadd.f32 0.0, %v952
      %v954 = vpop.f32.mrb[0].mxu0
      %v955 = vpop.f32.mrb[0].mxu0
      %v956 = vadd.f32 0.0, %v955
      %v957 = vpop.f32.mrb[0].mxu0
      %958 = vmatprep.mubr.bf16.mxu0 0
      %959 = vmatmul.mubr.bf16.gmra.mrb[0].mxu0 %v862
      %v960 = vpop.f32.mrb[0].mxu0
      %v961 = vadd.f32 0.0, %v960
      %v962 = vpop.f32.mrb[0].mxu0
      %v963 = vpop.f32.mrb[0].mxu0
      %v964 = vadd.f32 0.0, %v963
      %v965 = vpop.f32.mrb[0].mxu0
      %966 = vmatprep.mubr.bf16.mxu0 0
      %967 = vmatmul.mubr.bf16.gmra.mrb[0].mxu0 %v865
      %v968 = vpop.f32.mrb[0].mxu0
      %v969 = vadd.f32 0.0, %v968
      %v970 = vpop.f32.mrb[0].mxu0
      %v971 = vpop.f32.mrb[0].mxu0
      %v972 = vadd.f32 0.0, %v971
      %v973 = vpop.f32.mrb[0].mxu0
      %974 = vmatprep.mubr.bf16.mxu0 0
      %975 = vmatmul.mubr.bf16.gmra.mrb[0].mxu0 %v868
      %v976 = vpop.f32.mrb[0].mxu0
      %v977 = vadd.f32 0.0, %v976
      %v978 = vpop.f32.mrb[0].mxu0
      %v979 = vpop.f32.mrb[0].mxu0
      %v980 = vadd.f32 0.0, %v979
      %v981 = vpop.f32.mrb[0].mxu0
      %982 = vmatprep.mubr.bf16.mxu0 0
      %983 = vmatmul.mubr.bf16.gmra.mrb[0].mxu0 %v871
      %v984 = vpop.f32.mrb[0].mxu0
      %v985 = vadd.f32 0.0, %v984
      %v986 = vpop.f32.mrb[0].mxu0
      %v987 = vpop.f32.mrb[0].mxu0
      %v988 = vadd.f32 0.0, %v987
      %v989 = vpop.f32.mrb[0].mxu0
      %990 = vmatprep.mubr.bf16.mxu0 0
      %991 = vmatmul.mubr.bf16.gmra.mrb[0].mxu0 %v874
      %v992 = vpop.f32.mrb[0].mxu0
      %v993 = vadd.f32 0.0, %v992
      %v994 = vpop.f32.mrb[0].mxu0
      %v995 = vpop.f32.mrb[0].mxu0
      %v996 = vadd.f32 0.0, %v995
      %v997 = vpop.f32.mrb[0].mxu0
      %998 = vmatprep.mubr.bf16.mxu0 0
      %999 = vmatmul.mubr.bf16.gmra.mrb[0].mxu0 %v877
      %v1000 = vpop.f32.mrb[0].mxu0
      %v1001 = vadd.f32 0.0, %v1000
      %v1002 = vpop.f32.mrb[0].mxu0
      %v1003 = vpop.f32.mrb[0].mxu0
      %v1004 = vadd.f32 0.0, %v1003
      %v1005 = vpop.f32.mrb[0].mxu0
      %1006 = vmatprep.mubr.bf16.mxu0 0
      %1007 = vmatmul.mubr.bf16.gmra.mrb[0].mxu0 %v880
      %v1008 = vpop.f32.mrb[0].mxu0
      %v1009 = vadd.f32 0.0, %v1008
      %v1010 = vpop.f32.mrb[0].mxu0
      %v1011 = vpop.f32.mrb[0].mxu0
      %v1012 = vadd.f32 0.0, %v1011
      %v1013 = vpop.f32.mrb[0].mxu0
      %1014 = vmatprep.mubr.bf16.mxu0 0
      %1015 = vmatmul.mubr.bf16.gmra.mrb[0].mxu0 %v883
      %v1016 = vpop.f32.mrb[0].mxu0
      %v1017 = vadd.f32 0.0, %v1016
      %v1018 = vpop.f32.mrb[0].mxu0
      %v1019 = vpop.f32.mrb[0].mxu0
      %v1020 = vadd.f32 0.0, %v1019
      %v1021 = vpop.f32.mrb[0].mxu0
      %1022 = vmatprep.mubr.bf16.mxu0 0
      %1023 = vmatmul.mubr.bf16.gmra.mrb[0].mxu0 %v886
      %v1024 = vpop.f32.mrb[0].mxu0
      %v1025 = vadd.f32 0.0, %v1024
      %v1026 = vpop.f32.mrb[0].mxu0
      %v1027 = vpop.f32.mrb[0].mxu0
      %v1028 = vadd.f32 0.0, %v1027
      %v1029 = vpop.f32.mrb[0].mxu0
      %1030 = vmatprep.mubr.bf16.mxu0 0
      %1031 = vmatmul.mubr.bf16.gmra.mrb[0].mxu0 %v889
      %v1032 = vpop.f32.mrb[0].mxu0
      %v1033 = vadd.f32 0.0, %v1032
      %v1034 = vpop.f32.mrb[0].mxu0
      %v1035 = vpop.f32.mrb[0].mxu0
      %v1036 = vadd.f32 0.0, %v1035
      %v1037 = vpop.f32.mrb[0].mxu0
      %1038 = vdwg.mxu0
      %v1039 = vadd.f32 %v703, %v929
      %v1040 = vadd.f32 %v706, %v932
      %v1041 = vadd.f32 %v711, %v937
      %v1042 = vadd.f32 %v714, %v940
      %v1043 = vadd.f32 %v719, %v945
      %v1044 = vadd.f32 %v722, %v948
      %v1045 = vadd.f32 %v727, %v953
      %v1046 = vadd.f32 %v730, %v956
      %v1047 = vadd.f32 %v735, %v961
      %v1048 = vadd.f32 %v738, %v964
      %v1049 = vadd.f32 %v743, %v969
      %v1050 = vadd.f32 %v746, %v972
      %v1051 = vadd.f32 %v751, %v977
      %v1052 = vadd.f32 %v754, %v980
      %v1053 = vadd.f32 %v759, %v985
      %v1054 = vadd.f32 %v762, %v988
      %v1055 = vadd.f32 %v767, %v993
      %v1056 = vadd.f32 %v770, %v996
      %v1057 = vadd.f32 %v775, %v1001
      %v1058 = vadd.f32 %v778, %v1004
      %v1059 = vadd.f32 %v783, %v1009
      %v1060 = vadd.f32 %v786, %v1012
      %v1061 = vadd.f32 %v791, %v1017
      %v1062 = vadd.f32 %v794, %v1020
      %v1063 = vadd.f32 %v799, %v1025
      %v1064 = vadd.f32 %v802, %v1028
      %v1065 = vadd.f32 %v807, %v1033
      %v1066 = vadd.f32 %v810, %v1036
      %v1067 = vld [vmem:[%s206 + $0x8] sm:$0xf]
      %v1068 = vld [vmem:[%s206 + $0xc] sm:$0xf]
      %v1069 = vld [vmem:[%s206 + $0x10] sm:$0xf]
      %v1070 = vld [vmem:[%s206 + $0x14] sm:$0xf]
      %v1071 = vld [vmem:[%s206 + $0x18] sm:$0xf]
      %v1072 = vld [vmem:[%s206 + $0x1c] sm:$0xf]
      %v1073 = vld [vmem:[%s206 + $0x20] sm:$0xf]
      %v1074 = vld [vmem:[%s206 + $0x24] sm:$0xf]
      %v1075 = vld [vmem:[%s206 + $0x28] sm:$0xf]
      %v1076 = vld [vmem:[%s206 + $0x2c] sm:$0xf]
      %v1077 = vld [vmem:[%s206 + $0x30] sm:$0xf]
      %v1078 = vld [vmem:[%s206 + $0x34] sm:$0xf]
      %v1079 = vld [vmem:[%s206 + $0x38] sm:$0xf]
      %v1080 = vld [vmem:[%s206 + $0x3c] sm:$0xf]
      %v1081 = vld [vmem:[%s206 + $0x40] sm:$0xf]
      %v1082 = vld [vmem:[%s206 + $0x44] sm:$0xf]
      %v1083 = vld [vmem:[%s206 + $0x48] sm:$0xf]
      %v1084 = vld [vmem:[%s206 + $0x4c] sm:$0xf]
      %v1085 = vld [vmem:[%s206 + $0x50] sm:$0xf]
      %v1086 = vld [vmem:[%s206 + $0x54] sm:$0xf]
      %v1087 = vld [vmem:[%s206 + $0x58] sm:$0xf]
      %v1088 = vld [vmem:[%s206 + $0x5c] sm:$0xf]
      %v1089 = vld [vmem:[%s206 + $0x60] sm:$0xf]
      %v1090 = vld [vmem:[%s206 + $0x64] sm:$0xf]
      %v1091 = vld [vmem:[%s206 + $0x68] sm:$0xf]
      %v1092 = vld [vmem:[%s206 + $0x6c] sm:$0xf]
      %v1093 = vld [vmem:[%s206 + $0x70] sm:$0xf]
      %v1094 = vld [vmem:[%s206 + $0x74] sm:$0xf]
      %s1095 = scalar_lea.vmem %s210, 6
      %v1096 = vld [vmem:[%s1095] sm:$0x3]
      %v1125 = vunpack.c.l.b16 %v1067
      %v1126 = vunpack.c.l.b16 %v1068
      %v1127 = vunpack.c.l.b16 %v1069
      %v1128 = vunpack.c.l.b16 %v1070
      %v1129 = vunpack.c.l.b16 %v1071
      %v1130 = vunpack.c.l.b16 %v1072
      %v1131 = vunpack.c.l.b16 %v1073
      %v1132 = vunpack.c.l.b16 %v1074
      %v1133 = vunpack.c.l.b16 %v1075
      %v1134 = vunpack.c.l.b16 %v1076
      %v1135 = vunpack.c.l.b16 %v1077
      %v1136 = vunpack.c.l.b16 %v1078
      %v1137 = vunpack.c.l.b16 %v1079
      %v1138 = vunpack.c.l.b16 %v1080
      %v1139 = vunpack.c.l.b16 %v1081
      %v1140 = vunpack.c.l.b16 %v1082
      %v1141 = vunpack.c.l.b16 %v1083
      %v1142 = vunpack.c.l.b16 %v1084
      %v1143 = vunpack.c.l.b16 %v1085
      %v1144 = vunpack.c.l.b16 %v1086
      %v1145 = vunpack.c.l.b16 %v1087
      %v1146 = vunpack.c.l.b16 %v1088
      %v1147 = vunpack.c.l.b16 %v1089
      %v1148 = vunpack.c.l.b16 %v1090
      %v1149 = vunpack.c.l.b16 %v1091
      %v1150 = vunpack.c.l.b16 %v1092
      %v1151 = vunpack.c.l.b16 %v1093
      %v1152 = vunpack.c.l.b16 %v1094
      %v1153 = vpack.c.b16 %v1126, %v1125
      %v1154 = vpack.c.b16 %v1128, %v1127
      %v1155 = vpack.c.b16 %v1130, %v1129
      %v1156 = vpack.c.b16 %v1132, %v1131
      %v1157 = vpack.c.b16 %v1134, %v1133
      %v1158 = vpack.c.b16 %v1136, %v1135
      %v1159 = vpack.c.b16 %v1138, %v1137
      %v1160 = vpack.c.b16 %v1140, %v1139
      %v1161 = vpack.c.b16 %v1142, %v1141
      %v1162 = vpack.c.b16 %v1144, %v1143
      %v1163 = vpack.c.b16 %v1146, %v1145
      %v1164 = vpack.c.b16 %v1148, %v1147
      %v1165 = vpack.c.b16 %v1150, %v1149
      %v1166 = vpack.c.b16 %v1152, %v1151
      %v1168 = vsel %vm445, %v1153, 0
      %v1171 = vsel %vm445, %v1154, 0
      %v1174 = vsel %vm445, %v1155, 0
      %v1177 = vsel %vm445, %v1156, 0
      %v1180 = vsel %vm445, %v1157, 0
      %v1183 = vsel %vm445, %v1158, 0
      %v1186 = vsel %vm445, %v1159, 0
      %v1189 = vsel %vm445, %v1160, 0
      %v1192 = vsel %vm445, %v1161, 0
      %v1195 = vsel %vm445, %v1162, 0
      %v1198 = vsel %vm445, %v1163, 0
      %v1201 = vsel %vm445, %v1164, 0
      %v1204 = vsel %vm445, %v1165, 0
      %v1207 = vsel %vm445, %v1166, 0
      %v1210 = vsel %vm488, %v1096, 0
      %1212 = vmatprep.subr.bf16.mxu0 0
      %1213 = vmatpush1.bf16.msra.mxu0 %v1210
      %1214 = vmatprep.subr.bf16.mxu0 0
      %1215 = vmatpush1.bf16.msra.mxu0 0
      %1216 = vmatprep.subr.bf16.mxu0 0
      %1217 = vmatpush1.bf16.msra.mxu0 0
      %1218 = vmatprep.subr.bf16.mxu0 0
      %1219 = vmatpush1.bf16.msra.mxu0 0
      %1220 = vmatprep.subr.bf16.mxu0 0
      %1221 = vmatpush1.bf16.msra.mxu0 0
      %1222 = vmatprep.subr.bf16.mxu0 0
      %1223 = vmatpush1.bf16.msra.mxu0 0
      %1224 = vmatprep.subr.bf16.mxu0 0
      %1225 = vmatpush1.bf16.msra.mxu0 0
      %1226 = vmatprep.subr.bf16.mxu0 0
      %1227 = vmatpush1.bf16.msra.mxu0 0
      %1228 = vmatprep.subr.bf16.mxu0 0
      %1229 = vmatpush1.bf16.msra.mxu0 0
      %1230 = vmatprep.subr.bf16.mxu0 0
      %1231 = vmatpush1.bf16.msra.mxu0 0
      %1232 = vmatprep.subr.bf16.mxu0 0
      %1233 = vmatpush1.bf16.msra.mxu0 0
      %1234 = vmatprep.subr.bf16.mxu0 0
      %1235 = vmatpush1.bf16.msra.mxu0 0
      %1236 = vmatprep.subr.bf16.mxu0 0
      %1237 = vmatpush1.bf16.msra.mxu0 0
      %1238 = vmatprep.subr.bf16.mxu0 0
      %1239 = vmatpush1.bf16.msra.mxu0 0
      %1240 = vmatprep.subr.bf16.mxu0 0
      %1241 = vmatpush1.bf16.msra.mxu0 0
      %1242 = vmatprep.subr.bf16.mxu0 0
      %1243 = vmatpush1.bf16.msra.mxu0 0
      %1244 = vmatprep.mubr.bf16.mxu0 0
      %1245 = vmatmul.mubr.bf16.gmra.mrb[0].mxu0 %v1168
      %v1246 = vpop.f32.mrb[0].mxu0
      %v1247 = vadd.f32 0.0, %v1246
      %v1248 = vpop.f32.mrb[0].mxu0
      %v1249 = vpop.f32.mrb[0].mxu0
      %v1250 = vadd.f32 0.0, %v1249
      %v1251 = vpop.f32.mrb[0].mxu0
      %1252 = vmatprep.mubr.bf16.mxu0 0
      %1253 = vmatmul.mubr.bf16.gmra.mrb[0].mxu0 %v1171
      %v1254 = vpop.f32.mrb[0].mxu0
      %v1255 = vadd.f32 0.0, %v1254
      %v1256 = vpop.f32.mrb[0].mxu0
      %v1257 = vpop.f32.mrb[0].mxu0
      %v1258 = vadd.f32 0.0, %v1257
      %v1259 = vpop.f32.mrb[0].mxu0
      %1260 = vmatprep.mubr.bf16.mxu0 0
      %1261 = vmatmul.mubr.bf16.gmra.mrb[0].mxu0 %v1174
      %v1262 = vpop.f32.mrb[0].mxu0
      %v1263 = vadd.f32 0.0, %v1262
      %v1264 = vpop.f32.mrb[0].mxu0
      %v1265 = vpop.f32.mrb[0].mxu0
      %v1266 = vadd.f32 0.0, %v1265
      %v1267 = vpop.f32.mrb[0].mxu0
      %1268 = vmatprep.mubr.bf16.mxu0 0
      %1269 = vmatmul.mubr.bf16.gmra.mrb[0].mxu0 %v1177
      %v1270 = vpop.f32.mrb[0].mxu0
      %v1271 = vadd.f32 0.0, %v1270
      %v1272 = vpop.f32.mrb[0].mxu0
      %v1273 = vpop.f32.mrb[0].mxu0
      %v1274 = vadd.f32 0.0, %v1273
      %v1275 = vpop.f32.mrb[0].mxu0
      %1276 = vmatprep.mubr.bf16.mxu0 0
      %1277 = vmatmul.mubr.bf16.gmra.mrb[0].mxu0 %v1180
      %v1278 = vpop.f32.mrb[0].mxu0
      %v1279 = vadd.f32 0.0, %v1278
      %v1280 = vpop.f32.mrb[0].mxu0
      %v1281 = vpop.f32.mrb[0].mxu0
      %v1282 = vadd.f32 0.0, %v1281
      %v1283 = vpop.f32.mrb[0].mxu0
      %1284 = vmatprep.mubr.bf16.mxu0 0
      %1285 = vmatmul.mubr.bf16.gmra.mrb[0].mxu0 %v1183
      %v1286 = vpop.f32.mrb[0].mxu0
      %v1287 = vadd.f32 0.0, %v1286
      %v1288 = vpop.f32.mrb[0].mxu0
      %v1289 = vpop.f32.mrb[0].mxu0
      %v1290 = vadd.f32 0.0, %v1289
      %v1291 = vpop.f32.mrb[0].mxu0
      %1292 = vmatprep.mubr.bf16.mxu0 0
      %1293 = vmatmul.mubr.bf16.gmra.mrb[0].mxu0 %v1186
      %v1294 = vpop.f32.mrb[0].mxu0
      %v1295 = vadd.f32 0.0, %v1294
      %v1296 = vpop.f32.mrb[0].mxu0
      %v1297 = vpop.f32.mrb[0].mxu0
      %v1298 = vadd.f32 0.0, %v1297
      %v1299 = vpop.f32.mrb[0].mxu0
      %1300 = vmatprep.mubr.bf16.mxu0 0
      %1301 = vmatmul.mubr.bf16.gmra.mrb[0].mxu0 %v1189
      %v1302 = vpop.f32.mrb[0].mxu0
      %v1303 = vadd.f32 0.0, %v1302
      %v1304 = vpop.f32.mrb[0].mxu0
      %v1305 = vpop.f32.mrb[0].mxu0
      %v1306 = vadd.f32 0.0, %v1305
      %v1307 = vpop.f32.mrb[0].mxu0
      %1308 = vmatprep.mubr.bf16.mxu0 0
      %1309 = vmatmul.mubr.bf16.gmra.mrb[0].mxu0 %v1192
      %v1310 = vpop.f32.mrb[0].mxu0
      %v1311 = vadd.f32 0.0, %v1310
      %v1312 = vpop.f32.mrb[0].mxu0
      %v1313 = vpop.f32.mrb[0].mxu0
      %v1314 = vadd.f32 0.0, %v1313
      %v1315 = vpop.f32.mrb[0].mxu0
      %1316 = vmatprep.mubr.bf16.mxu0 0
      %1317 = vmatmul.mubr.bf16.gmra.mrb[0].mxu0 %v1195
      %v1318 = vpop.f32.mrb[0].mxu0
      %v1319 = vadd.f32 0.0, %v1318
      %v1320 = vpop.f32.mrb[0].mxu0
      %v1321 = vpop.f32.mrb[0].mxu0
      %v1322 = vadd.f32 0.0, %v1321
      %v1323 = vpop.f32.mrb[0].mxu0
      %1324 = vmatprep.mubr.bf16.mxu0 0
      %1325 = vmatmul.mubr.bf16.gmra.mrb[0].mxu0 %v1198
      %v1326 = vpop.f32.mrb[0].mxu0
      %v1327 = vadd.f32 0.0, %v1326
      %v1328 = vpop.f32.mrb[0].mxu0
      %v1329 = vpop.f32.mrb[0].mxu0
      %v1330 = vadd.f32 0.0, %v1329
      %v1331 = vpop.f32.mrb[0].mxu0
      %1332 = vmatprep.mubr.bf16.mxu0 0
      %1333 = vmatmul.mubr.bf16.gmra.mrb[0].mxu0 %v1201
      %v1334 = vpop.f32.mrb[0].mxu0
      %v1335 = vadd.f32 0.0, %v1334
      %v1336 = vpop.f32.mrb[0].mxu0
      %v1337 = vpop.f32.mrb[0].mxu0
      %v1338 = vadd.f32 0.0, %v1337
      %v1339 = vpop.f32.mrb[0].mxu0
      %1340 = vmatprep.mubr.bf16.mxu0 0
      %1341 = vmatmul.mubr.bf16.gmra.mrb[0].mxu0 %v1204
      %v1342 = vpop.f32.mrb[0].mxu0
      %v1343 = vadd.f32 0.0, %v1342
      %v1344 = vpop.f32.mrb[0].mxu0
      %v1345 = vpop.f32.mrb[0].mxu0
      %v1346 = vadd.f32 0.0, %v1345
      %v1347 = vpop.f32.mrb[0].mxu0
      %1348 = vmatprep.mubr.bf16.mxu0 0
      %1349 = vmatmul.mubr.bf16.gmra.mrb[0].mxu0 %v1207
      %v1350 = vpop.f32.mrb[0].mxu0
      %v1351 = vadd.f32 0.0, %v1350
      %v1352 = vpop.f32.mrb[0].mxu0
      %v1353 = vpop.f32.mrb[0].mxu0
      %v1354 = vadd.f32 0.0, %v1353
      %v1355 = vpop.f32.mrb[0].mxu0
      %1356 = vdwg.mxu0
      %v1357 = vadd.f32 %v1039, %v1247
      %v1358 = vadd.f32 %v1040, %v1250
      %v1359 = vadd.f32 %v1041, %v1255
      %v1360 = vadd.f32 %v1042, %v1258
      %v1361 = vadd.f32 %v1043, %v1263
      %v1362 = vadd.f32 %v1044, %v1266
      %v1363 = vadd.f32 %v1045, %v1271
      %v1364 = vadd.f32 %v1046, %v1274
      %v1365 = vadd.f32 %v1047, %v1279
      %v1366 = vadd.f32 %v1048, %v1282
      %v1367 = vadd.f32 %v1049, %v1287
      %v1368 = vadd.f32 %v1050, %v1290
      %v1369 = vadd.f32 %v1051, %v1295
      %v1370 = vadd.f32 %v1052, %v1298
      %v1371 = vadd.f32 %v1053, %v1303
      %v1372 = vadd.f32 %v1054, %v1306
      %v1373 = vadd.f32 %v1055, %v1311
      %v1374 = vadd.f32 %v1056, %v1314
      %v1375 = vadd.f32 %v1057, %v1319
      %v1376 = vadd.f32 %v1058, %v1322
      %v1377 = vadd.f32 %v1059, %v1327
      %v1378 = vadd.f32 %v1060, %v1330
      %v1379 = vadd.f32 %v1061, %v1335
      %v1380 = vadd.f32 %v1062, %v1338
      %v1381 = vadd.f32 %v1063, %v1343
      %v1382 = vadd.f32 %v1064, %v1346
      %v1383 = vadd.f32 %v1065, %v1351
      %v1384 = vadd.f32 %v1066, %v1354
      %v1385 = vld [vmem:[%s206 + $0x8] sm:$0xf]
      %v1386 = vld [vmem:[%s206 + $0xc] sm:$0xf]
      %v1387 = vld [vmem:[%s206 + $0x10] sm:$0xf]
      %v1388 = vld [vmem:[%s206 + $0x14] sm:$0xf]
      %v1389 = vld [vmem:[%s206 + $0x18] sm:$0xf]
      %v1390 = vld [vmem:[%s206 + $0x1c] sm:$0xf]
      %v1391 = vld [vmem:[%s206 + $0x20] sm:$0xf]
      %v1392 = vld [vmem:[%s206 + $0x24] sm:$0xf]
      %v1393 = vld [vmem:[%s206 + $0x28] sm:$0xf]
      %v1394 = vld [vmem:[%s206 + $0x2c] sm:$0xf]
      %v1395 = vld [vmem:[%s206 + $0x30] sm:$0xf]
      %v1396 = vld [vmem:[%s206 + $0x34] sm:$0xf]
      %v1397 = vld [vmem:[%s206 + $0x38] sm:$0xf]
      %v1398 = vld [vmem:[%s206 + $0x3c] sm:$0xf]
      %v1399 = vld [vmem:[%s206 + $0x40] sm:$0xf]
      %v1400 = vld [vmem:[%s206 + $0x44] sm:$0xf]
      %v1401 = vld [vmem:[%s206 + $0x48] sm:$0xf]
      %v1402 = vld [vmem:[%s206 + $0x4c] sm:$0xf]
      %v1403 = vld [vmem:[%s206 + $0x50] sm:$0xf]
      %v1404 = vld [vmem:[%s206 + $0x54] sm:$0xf]
      %v1405 = vld [vmem:[%s206 + $0x58] sm:$0xf]
      %v1406 = vld [vmem:[%s206 + $0x5c] sm:$0xf]
      %v1407 = vld [vmem:[%s206 + $0x60] sm:$0xf]
      %v1408 = vld [vmem:[%s206 + $0x64] sm:$0xf]
      %v1409 = vld [vmem:[%s206 + $0x68] sm:$0xf]
      %v1410 = vld [vmem:[%s206 + $0x6c] sm:$0xf]
      %v1411 = vld [vmem:[%s206 + $0x70] sm:$0xf]
      %v1412 = vld [vmem:[%s206 + $0x74] sm:$0xf]
      %v1413 = vld [vmem:[%s206 + $0x78] sm:$0x1]
      %s1414 = scalar_lea.vmem %s210, 8
      %v1415 = vld [vmem:[%s1414] sm:$0x3]
      %v1445 = vunpack.c.l.b16 %v1385
      %v1446 = vunpack.c.l.b16 %v1386
      %v1447 = vunpack.c.l.b16 %v1387
      %v1448 = vunpack.c.l.b16 %v1388
      %v1449 = vunpack.c.l.b16 %v1389
      %v1450 = vunpack.c.l.b16 %v1390
      %v1451 = vunpack.c.l.b16 %v1391
      %v1452 = vunpack.c.l.b16 %v1392
      %v1453 = vunpack.c.l.b16 %v1393
      %v1454 = vunpack.c.l.b16 %v1394
      %v1455 = vunpack.c.l.b16 %v1395
      %v1456 = vunpack.c.l.b16 %v1396
      %v1457 = vunpack.c.l.b16 %v1397
      %v1458 = vunpack.c.l.b16 %v1398
      %v1459 = vunpack.c.l.b16 %v1399
      %v1460 = vunpack.c.l.b16 %v1400
      %v1461 = vunpack.c.l.b16 %v1401
      %v1462 = vunpack.c.l.b16 %v1402
      %v1463 = vunpack.c.l.b16 %v1403
      %v1464 = vunpack.c.l.b16 %v1404
      %v1465 = vunpack.c.l.b16 %v1405
      %v1466 = vunpack.c.l.b16 %v1406
      %v1467 = vunpack.c.l.b16 %v1407
      %v1468 = vunpack.c.l.b16 %v1408
      %v1469 = vunpack.c.l.b16 %v1409
      %v1470 = vunpack.c.l.b16 %v1410
      %v1471 = vunpack.c.l.b16 %v1411
      %v1472 = vunpack.c.l.b16 %v1412
      %v1473 = vunpack.c.l.b16 %v1413
      %v1474 = vpack.c.b16 %v1446, %v1445
      %v1475 = vpack.c.b16 %v1448, %v1447
      %v1476 = vpack.c.b16 %v1450, %v1449
      %v1477 = vpack.c.b16 %v1452, %v1451
      %v1478 = vpack.c.b16 %v1454, %v1453
      %v1479 = vpack.c.b16 %v1456, %v1455
      %v1480 = vpack.c.b16 %v1458, %v1457
      %v1481 = vpack.c.b16 %v1460, %v1459
      %v1482 = vpack.c.b16 %v1462, %v1461
      %v1483 = vpack.c.b16 %v1464, %v1463
      %v1484 = vpack.c.b16 %v1466, %v1465
      %v1485 = vpack.c.b16 %v1468, %v1467
      %v1486 = vpack.c.b16 %v1470, %v1469
      %v1487 = vpack.c.b16 %v1472, %v1471
      %v1488 = vpack.c.b16 %v1473, %v1473
      %v1490 = vshrl.u32 %v1474, 16
      %v1492 = vshll.u32 %v1474, 16
      %v1494 = vrot.slane %v1492, 1
      %v1495 = vor.u32 %v1490, %v1494
      %v1497 = vshll.u32 %v1475, 16
      %v1499 = vrot.slane %v1497, 1
      %v1500 = vsel %vm328, %v1495, %v1499
      %v1501 = vshrl.u32 %v1475, 16
      %v1503 = vor.u32 %v1501, %v1499
      %v1505 = vshll.u32 %v1476, 16
      %v1507 = vrot.slane %v1505, 1
      %v1508 = vsel %vm328, %v1503, %v1507
      %v1509 = vshrl.u32 %v1476, 16
      %v1511 = vor.u32 %v1509, %v1507
      %v1513 = vshll.u32 %v1477, 16
      %v1515 = vrot.slane %v1513, 1
      %v1516 = vsel %vm328, %v1511, %v1515
      %v1517 = vshrl.u32 %v1477, 16
      %v1519 = vor.u32 %v1517, %v1515
      %v1521 = vshll.u32 %v1478, 16
      %v1523 = vrot.slane %v1521, 1
      %v1524 = vsel %vm328, %v1519, %v1523
      %v1525 = vshrl.u32 %v1478, 16
      %v1527 = vor.u32 %v1525, %v1523
      %v1529 = vshll.u32 %v1479, 16
      %v1531 = vrot.slane %v1529, 1
      %v1532 = vsel %vm328, %v1527, %v1531
      %v1533 = vshrl.u32 %v1479, 16
      %v1535 = vor.u32 %v1533, %v1531
      %v1537 = vshll.u32 %v1480, 16
      %v1539 = vrot.slane %v1537, 1
      %v1540 = vsel %vm328, %v1535, %v1539
      %v1541 = vshrl.u32 %v1480, 16
      %v1543 = vor.u32 %v1541, %v1539
      %v1545 = vshll.u32 %v1481, 16
      %v1547 = vrot.slane %v1545, 1
      %v1548 = vsel %vm328, %v1543, %v1547
      %v1549 = vshrl.u32 %v1481, 16
      %v1551 = vor.u32 %v1549, %v1547
      %v1553 = vshll.u32 %v1482, 16
      %v1555 = vrot.slane %v1553, 1
      %v1556 = vsel %vm328, %v1551, %v1555
      %v1557 = vshrl.u32 %v1482, 16
      %v1559 = vor.u32 %v1557, %v1555
      %v1561 = vshll.u32 %v1483, 16
      %v1563 = vrot.slane %v1561, 1
      %v1564 = vsel %vm328, %v1559, %v1563
      %v1565 = vshrl.u32 %v1483, 16
      %v1567 = vor.u32 %v1565, %v1563
      %v1569 = vshll.u32 %v1484, 16
      %v1571 = vrot.slane %v1569, 1
      %v1572 = vsel %vm328, %v1567, %v1571
      %v1573 = vshrl.u32 %v1484, 16
      %v1575 = vor.u32 %v1573, %v1571
      %v1577 = vshll.u32 %v1485, 16
      %v1579 = vrot.slane %v1577, 1
      %v1580 = vsel %vm328, %v1575, %v1579
      %v1581 = vshrl.u32 %v1485, 16
      %v1583 = vor.u32 %v1581, %v1579
      %v1585 = vshll.u32 %v1486, 16
      %v1587 = vrot.slane %v1585, 1
      %v1588 = vsel %vm328, %v1583, %v1587
      %v1589 = vshrl.u32 %v1486, 16
      %v1591 = vor.u32 %v1589, %v1587
      %v1593 = vshll.u32 %v1487, 16
      %v1595 = vrot.slane %v1593, 1
      %v1596 = vsel %vm328, %v1591, %v1595
      %v1597 = vshrl.u32 %v1487, 16
      %v1599 = vor.u32 %v1597, %v1595
      %v1601 = vshll.u32 %v1488, 16
      %v1603 = vrot.slane %v1601, 1
      %v1604 = vsel %vm328, %v1599, %v1603
      %v1606 = vsel %vm445, %v1500, 0
      %v1609 = vsel %vm445, %v1508, 0
      %v1612 = vsel %vm445, %v1516, 0
      %v1615 = vsel %vm445, %v1524, 0
      %v1618 = vsel %vm445, %v1532, 0
      %v1621 = vsel %vm445, %v1540, 0
      %v1624 = vsel %vm445, %v1548, 0
      %v1627 = vsel %vm445, %v1556, 0
      %v1630 = vsel %vm445, %v1564, 0
      %v1633 = vsel %vm445, %v1572, 0
      %v1636 = vsel %vm445, %v1580, 0
      %v1639 = vsel %vm445, %v1588, 0
      %v1642 = vsel %vm445, %v1596, 0
      %v1645 = vsel %vm445, %v1604, 0
      %v1648 = vsel %vm488, %v1415, 0
      %1650 = vmatprep.subr.bf16.mxu0 0
      %1651 = vmatpush1.bf16.msra.mxu0 %v1648
      %1652 = vmatprep.subr.bf16.mxu0 0
      %1653 = vmatpush1.bf16.msra.mxu0 0
      %1654 = vmatprep.subr.bf16.mxu0 0
      %1655 = vmatpush1.bf16.msra.mxu0 0
      %1656 = vmatprep.subr.bf16.mxu0 0
      %1657 = vmatpush1.bf16.msra.mxu0 0
      %1658 = vmatprep.subr.bf16.mxu0 0
      %1659 = vmatpush1.bf16.msra.mxu0 0
      %1660 = vmatprep.subr.bf16.mxu0 0
      %1661 = vmatpush1.bf16.msra.mxu0 0
      %1662 = vmatprep.subr.bf16.mxu0 0
      %1663 = vmatpush1.bf16.msra.mxu0 0
      %1664 = vmatprep.subr.bf16.mxu0 0
      %1665 = vmatpush1.bf16.msra.mxu0 0
      %1666 = vmatprep.subr.bf16.mxu0 0
      %1667 = vmatpush1.bf16.msra.mxu0 0
      %1668 = vmatprep.subr.bf16.mxu0 0
      %1669 = vmatpush1.bf16.msra.mxu0 0
      %1670 = vmatprep.subr.bf16.mxu0 0
      %1671 = vmatpush1.bf16.msra.mxu0 0
      %1672 = vmatprep.subr.bf16.mxu0 0
      %1673 = vmatpush1.bf16.msra.mxu0 0
      %1674 = vmatprep.subr.bf16.mxu0 0
      %1675 = vmatpush1.bf16.msra.mxu0 0
      %1676 = vmatprep.subr.bf16.mxu0 0
      %1677 = vmatpush1.bf16.msra.mxu0 0
      %1678 = vmatprep.subr.bf16.mxu0 0
      %1679 = vmatpush1.bf16.msra.mxu0 0
      %1680 = vmatprep.subr.bf16.mxu0 0
      %1681 = vmatpush1.bf16.msra.mxu0 0
      %1682 = vmatprep.mubr.bf16.mxu0 0
      %1683 = vmatmul.mubr.bf16.gmra.mrb[0].mxu0 %v1606
      %v1684 = vpop.f32.mrb[0].mxu0
      %v1685 = vadd.f32 0.0, %v1684
      %v1686 = vpop.f32.mrb[0].mxu0
      %v1687 = vpop.f32.mrb[0].mxu0
      %v1688 = vadd.f32 0.0, %v1687
      %v1689 = vpop.f32.mrb[0].mxu0
      %1690 = vmatprep.mubr.bf16.mxu0 0
      %1691 = vmatmul.mubr.bf16.gmra.mrb[0].mxu0 %v1609
      %v1692 = vpop.f32.mrb[0].mxu0
      %v1693 = vadd.f32 0.0, %v1692
      %v1694 = vpop.f32.mrb[0].mxu0
      %v1695 = vpop.f32.mrb[0].mxu0
      %v1696 = vadd.f32 0.0, %v1695
      %v1697 = vpop.f32.mrb[0].mxu0
      %1698 = vmatprep.mubr.bf16.mxu0 0
      %1699 = vmatmul.mubr.bf16.gmra.mrb[0].mxu0 %v1612
      %v1700 = vpop.f32.mrb[0].mxu0
      %v1701 = vadd.f32 0.0, %v1700
      %v1702 = vpop.f32.mrb[0].mxu0
      %v1703 = vpop.f32.mrb[0].mxu0
      %v1704 = vadd.f32 0.0, %v1703
      %v1705 = vpop.f32.mrb[0].mxu0
      %1706 = vmatprep.mubr.bf16.mxu0 0
      %1707 = vmatmul.mubr.bf16.gmra.mrb[0].mxu0 %v1615
      %v1708 = vpop.f32.mrb[0].mxu0
      %v1709 = vadd.f32 0.0, %v1708
      %v1710 = vpop.f32.mrb[0].mxu0
      %v1711 = vpop.f32.mrb[0].mxu0
      %v1712 = vadd.f32 0.0, %v1711
      %v1713 = vpop.f32.mrb[0].mxu0
      %1714 = vmatprep.mubr.bf16.mxu0 0
      %1715 = vmatmul.mubr.bf16.gmra.mrb[0].mxu0 %v1618
      %v1716 = vpop.f32.mrb[0].mxu0
      %v1717 = vadd.f32 0.0, %v1716
      %v1718 = vpop.f32.mrb[0].mxu0
      %v1719 = vpop.f32.mrb[0].mxu0
      %v1720 = vadd.f32 0.0, %v1719
      %v1721 = vpop.f32.mrb[0].mxu0
      %1722 = vmatprep.mubr.bf16.mxu0 0
      %1723 = vmatmul.mubr.bf16.gmra.mrb[0].mxu0 %v1621
      %v1724 = vpop.f32.mrb[0].mxu0
      %v1725 = vadd.f32 0.0, %v1724
      %v1726 = vpop.f32.mrb[0].mxu0
      %v1727 = vpop.f32.mrb[0].mxu0
      %v1728 = vadd.f32 0.0, %v1727
      %v1729 = vpop.f32.mrb[0].mxu0
      %1730 = vmatprep.mubr.bf16.mxu0 0
      %1731 = vmatmul.mubr.bf16.gmra.mrb[0].mxu0 %v1624
      %v1732 = vpop.f32.mrb[0].mxu0
      %v1733 = vadd.f32 0.0, %v1732
      %v1734 = vpop.f32.mrb[0].mxu0
      %v1735 = vpop.f32.mrb[0].mxu0
      %v1736 = vadd.f32 0.0, %v1735
      %v1737 = vpop.f32.mrb[0].mxu0
      %1738 = vmatprep.mubr.bf16.mxu0 0
      %1739 = vmatmul.mubr.bf16.gmra.mrb[0].mxu0 %v1627
      %v1740 = vpop.f32.mrb[0].mxu0
      %v1741 = vadd.f32 0.0, %v1740
      %v1742 = vpop.f32.mrb[0].mxu0
      %v1743 = vpop.f32.mrb[0].mxu0
      %v1744 = vadd.f32 0.0, %v1743
      %v1745 = vpop.f32.mrb[0].mxu0
      %1746 = vmatprep.mubr.bf16.mxu0 0
      %1747 = vmatmul.mubr.bf16.gmra.mrb[0].mxu0 %v1630
      %v1748 = vpop.f32.mrb[0].mxu0
      %v1749 = vadd.f32 0.0, %v1748
      %v1750 = vpop.f32.mrb[0].mxu0
      %v1751 = vpop.f32.mrb[0].mxu0
      %v1752 = vadd.f32 0.0, %v1751
      %v1753 = vpop.f32.mrb[0].mxu0
      %1754 = vmatprep.mubr.bf16.mxu0 0
      %1755 = vmatmul.mubr.bf16.gmra.mrb[0].mxu0 %v1633
      %v1756 = vpop.f32.mrb[0].mxu0
      %v1757 = vadd.f32 0.0, %v1756
      %v1758 = vpop.f32.mrb[0].mxu0
      %v1759 = vpop.f32.mrb[0].mxu0
      %v1760 = vadd.f32 0.0, %v1759
      %v1761 = vpop.f32.mrb[0].mxu0
      %1762 = vmatprep.mubr.bf16.mxu0 0
      %1763 = vmatmul.mubr.bf16.gmra.mrb[0].mxu0 %v1636
      %v1764 = vpop.f32.mrb[0].mxu0
      %v1765 = vadd.f32 0.0, %v1764
      %v1766 = vpop.f32.mrb[0].mxu0
      %v1767 = vpop.f32.mrb[0].mxu0
      %v1768 = vadd.f32 0.0, %v1767
      %v1769 = vpop.f32.mrb[0].mxu0
      %1770 = vmatprep.mubr.bf16.mxu0 0
      %1771 = vmatmul.mubr.bf16.gmra.mrb[0].mxu0 %v1639
      %v1772 = vpop.f32.mrb[0].mxu0
      %v1773 = vadd.f32 0.0, %v1772
      %v1774 = vpop.f32.mrb[0].mxu0
      %v1775 = vpop.f32.mrb[0].mxu0
      %v1776 = vadd.f32 0.0, %v1775
      %v1777 = vpop.f32.mrb[0].mxu0
      %1778 = vmatprep.mubr.bf16.mxu0 0
      %1779 = vmatmul.mubr.bf16.gmra.mrb[0].mxu0 %v1642
      %v1780 = vpop.f32.mrb[0].mxu0
      %v1781 = vadd.f32 0.0, %v1780
      %v1782 = vpop.f32.mrb[0].mxu0
      %v1783 = vpop.f32.mrb[0].mxu0
      %v1784 = vadd.f32 0.0, %v1783
      %v1785 = vpop.f32.mrb[0].mxu0
      %1786 = vmatprep.mubr.bf16.mxu0 0
      %1787 = vmatmul.mubr.bf16.gmra.mrb[0].mxu0 %v1645
      %v1788 = vpop.f32.mrb[0].mxu0
      %v1789 = vadd.f32 0.0, %v1788
      %v1790 = vpop.f32.mrb[0].mxu0
      %v1791 = vpop.f32.mrb[0].mxu0
      %v1792 = vadd.f32 0.0, %v1791
      %v1793 = vpop.f32.mrb[0].mxu0
      %1794 = vdwg.mxu0
      %v1795 = vadd.f32 %v1357, %v1685
      %v1796 = vadd.f32 %v1358, %v1688
      %v1797 = vadd.f32 %v1359, %v1693
      %v1798 = vadd.f32 %v1360, %v1696
      %v1799 = vadd.f32 %v1361, %v1701
      %v1800 = vadd.f32 %v1362, %v1704
      %v1801 = vadd.f32 %v1363, %v1709
      %v1802 = vadd.f32 %v1364, %v1712
      %v1803 = vadd.f32 %v1365, %v1717
      %v1804 = vadd.f32 %v1366, %v1720
      %v1805 = vadd.f32 %v1367, %v1725
      %v1806 = vadd.f32 %v1368, %v1728
      %v1807 = vadd.f32 %v1369, %v1733
      %v1808 = vadd.f32 %v1370, %v1736
      %v1809 = vadd.f32 %v1371, %v1741
      %v1810 = vadd.f32 %v1372, %v1744
      %v1811 = vadd.f32 %v1373, %v1749
      %v1812 = vadd.f32 %v1374, %v1752
      %v1813 = vadd.f32 %v1375, %v1757
      %v1814 = vadd.f32 %v1376, %v1760
      %v1815 = vadd.f32 %v1377, %v1765
      %v1816 = vadd.f32 %v1378, %v1768
      %v1817 = vadd.f32 %v1379, %v1773
      %v1818 = vadd.f32 %v1380, %v1776
      %v1819 = vadd.f32 %v1381, %v1781
      %v1820 = vadd.f32 %v1382, %v1784
      %v1821 = vadd.f32 %v1383, %v1789
      %v1822 = vadd.f32 %v1384, %v1792
      %v1823 = vld [vmem:[%s206 + $0x8] sm:$0xe]
      %s1824 = scalar_lea.vmem %s210, 10
      %v1825 = vld [vmem:[%s1824] sm:$0x3]
      %v1827 = vunpack.c.l.b16 %v1823
      %v1828 = vpack.c.b16 %v1446, %v1827
      %v1829 = vrot.slane %v1828, 1
      %v1830 = vrot.slane %v1475, 1
      %v1831 = vsel %vm819, %v1829, %v1830
      %v1832 = vrot.slane %v1476, 1
      %v1833 = vsel %vm819, %v1830, %v1832
      %v1834 = vrot.slane %v1477, 1
      %v1835 = vsel %vm819, %v1832, %v1834
      %v1836 = vrot.slane %v1478, 1
      %v1837 = vsel %vm819, %v1834, %v1836
      %v1838 = vrot.slane %v1479, 1
      %v1839 = vsel %vm819, %v1836, %v1838
      %v1840 = vrot.slane %v1480, 1
      %v1841 = vsel %vm819, %v1838, %v1840
      %v1842 = vrot.slane %v1481, 1
      %v1843 = vsel %vm819, %v1840, %v1842
      %v1844 = vrot.slane %v1482, 1
      %v1845 = vsel %vm819, %v1842, %v1844
      %v1846 = vrot.slane %v1483, 1
      %v1847 = vsel %vm819, %v1844, %v1846
      %v1848 = vrot.slane %v1484, 1
      %v1849 = vsel %vm819, %v1846, %v1848
      %v1850 = vrot.slane %v1485, 1
      %v1851 = vsel %vm819, %v1848, %v1850
      %v1852 = vrot.slane %v1486, 1
      %v1853 = vsel %vm819, %v1850, %v1852
      %v1854 = vrot.slane %v1487, 1
      %v1855 = vsel %vm819, %v1852, %v1854
      %v1856 = vrot.slane %v1488, 1
      %v1857 = vsel %vm819, %v1854, %v1856
      %v1859 = vsel %vm445, %v1831, 0
      %v1862 = vsel %vm445, %v1833, 0
      %v1865 = vsel %vm445, %v1835, 0
      %v1868 = vsel %vm445, %v1837, 0
      %v1871 = vsel %vm445, %v1839, 0
      %v1874 = vsel %vm445, %v1841, 0
      %v1877 = vsel %vm445, %v1843, 0
      %v1880 = vsel %vm445, %v1845, 0
      %v1883 = vsel %vm445, %v1847, 0
      %v1886 = vsel %vm445, %v1849, 0
      %v1889 = vsel %vm445, %v1851, 0
      %v1892 = vsel %vm445, %v1853, 0
      %v1895 = vsel %vm445, %v1855, 0
      %v1898 = vsel %vm445, %v1857, 0
      %v1901 = vsel %vm488, %v1825, 0
      %1903 = vmatprep.subr.bf16.mxu0 0
      %1904 = vmatpush1.bf16.msra.mxu0 %v1901
      %1905 = vmatprep.subr.bf16.mxu0 0
      %1906 = vmatpush1.bf16.msra.mxu0 0
      %1907 = vmatprep.subr.bf16.mxu0 0
      %1908 = vmatpush1.bf16.msra.mxu0 0
      %1909 = vmatprep.subr.bf16.mxu0 0
      %1910 = vmatpush1.bf16.msra.mxu0 0
      %1911 = vmatprep.subr.bf16.mxu0 0
      %1912 = vmatpush1.bf16.msra.mxu0 0
      %1913 = vmatprep.subr.bf16.mxu0 0
      %1914 = vmatpush1.bf16.msra.mxu0 0
      %1915 = vmatprep.subr.bf16.mxu0 0
      %1916 = vmatpush1.bf16.msra.mxu0 0
      %1917 = vmatprep.subr.bf16.mxu0 0
      %1918 = vmatpush1.bf16.msra.mxu0 0
      %1919 = vmatprep.subr.bf16.mxu0 0
      %1920 = vmatpush1.bf16.msra.mxu0 0
      %1921 = vmatprep.subr.bf16.mxu0 0
      %1922 = vmatpush1.bf16.msra.mxu0 0
      %1923 = vmatprep.subr.bf16.mxu0 0
      %1924 = vmatpush1.bf16.msra.mxu0 0
      %1925 = vmatprep.subr.bf16.mxu0 0
      %1926 = vmatpush1.bf16.msra.mxu0 0
      %1927 = vmatprep.subr.bf16.mxu0 0
      %1928 = vmatpush1.bf16.msra.mxu0 0
      %1929 = vmatprep.subr.bf16.mxu0 0
      %1930 = vmatpush1.bf16.msra.mxu0 0
      %1931 = vmatprep.subr.bf16.mxu0 0
      %1932 = vmatpush1.bf16.msra.mxu0 0
      %1933 = vmatprep.subr.bf16.mxu0 0
      %1934 = vmatpush1.bf16.msra.mxu0 0
      %1935 = vmatprep.mubr.bf16.mxu0 0
      %1936 = vmatmul.mubr.bf16.gmra.mrb[0].mxu0 %v1859
      %v1937 = vpop.f32.mrb[0].mxu0
      %v1938 = vadd.f32 0.0, %v1937
      %v1939 = vpop.f32.mrb[0].mxu0
      %v1940 = vpop.f32.mrb[0].mxu0
      %v1941 = vadd.f32 0.0, %v1940
      %v1942 = vpop.f32.mrb[0].mxu0
      %1943 = vmatprep.mubr.bf16.mxu0 0
      %1944 = vmatmul.mubr.bf16.gmra.mrb[0].mxu0 %v1862
      %v1945 = vpop.f32.mrb[0].mxu0
      %v1946 = vadd.f32 0.0, %v1945
      %v1947 = vpop.f32.mrb[0].mxu0
      %v1948 = vpop.f32.mrb[0].mxu0
      %v1949 = vadd.f32 0.0, %v1948
      %v1950 = vpop.f32.mrb[0].mxu0
      %1951 = vmatprep.mubr.bf16.mxu0 0
      %1952 = vmatmul.mubr.bf16.gmra.mrb[0].mxu0 %v1865
      %v1953 = vpop.f32.mrb[0].mxu0
      %v1954 = vadd.f32 0.0, %v1953
      %v1955 = vpop.f32.mrb[0].mxu0
      %v1956 = vpop.f32.mrb[0].mxu0
      %v1957 = vadd.f32 0.0, %v1956
      %v1958 = vpop.f32.mrb[0].mxu0
      %1959 = vmatprep.mubr.bf16.mxu0 0
      %1960 = vmatmul.mubr.bf16.gmra.mrb[0].mxu0 %v1868
      %v1961 = vpop.f32.mrb[0].mxu0
      %v1962 = vadd.f32 0.0, %v1961
      %v1963 = vpop.f32.mrb[0].mxu0
      %v1964 = vpop.f32.mrb[0].mxu0
      %v1965 = vadd.f32 0.0, %v1964
      %v1966 = vpop.f32.mrb[0].mxu0
      %1967 = vmatprep.mubr.bf16.mxu0 0
      %1968 = vmatmul.mubr.bf16.gmra.mrb[0].mxu0 %v1871
      %v1969 = vpop.f32.mrb[0].mxu0
      %v1970 = vadd.f32 0.0, %v1969
      %v1971 = vpop.f32.mrb[0].mxu0
      %v1972 = vpop.f32.mrb[0].mxu0
      %v1973 = vadd.f32 0.0, %v1972
      %v1974 = vpop.f32.mrb[0].mxu0
      %1975 = vmatprep.mubr.bf16.mxu0 0
      %1976 = vmatmul.mubr.bf16.gmra.mrb[0].mxu0 %v1874
      %v1977 = vpop.f32.mrb[0].mxu0
      %v1978 = vadd.f32 0.0, %v1977
      %v1979 = vpop.f32.mrb[0].mxu0
      %v1980 = vpop.f32.mrb[0].mxu0
      %v1981 = vadd.f32 0.0, %v1980
      %v1982 = vpop.f32.mrb[0].mxu0
      %1983 = vmatprep.mubr.bf16.mxu0 0
      %1984 = vmatmul.mubr.bf16.gmra.mrb[0].mxu0 %v1877
      %v1985 = vpop.f32.mrb[0].mxu0
      %v1986 = vadd.f32 0.0, %v1985
      %v1987 = vpop.f32.mrb[0].mxu0
      %v1988 = vpop.f32.mrb[0].mxu0
      %v1989 = vadd.f32 0.0, %v1988
      %v1990 = vpop.f32.mrb[0].mxu0
      %1991 = vmatprep.mubr.bf16.mxu0 0
      %1992 = vmatmul.mubr.bf16.gmra.mrb[0].mxu0 %v1880
      %v1993 = vpop.f32.mrb[0].mxu0
      %v1994 = vadd.f32 0.0, %v1993
      %v1995 = vpop.f32.mrb[0].mxu0
      %v1996 = vpop.f32.mrb[0].mxu0
      %v1997 = vadd.f32 0.0, %v1996
      %v1998 = vpop.f32.mrb[0].mxu0
      %1999 = vmatprep.mubr.bf16.mxu0 0
      %2000 = vmatmul.mubr.bf16.gmra.mrb[0].mxu0 %v1883
      %v2001 = vpop.f32.mrb[0].mxu0
      %v2002 = vadd.f32 0.0, %v2001
      %v2003 = vpop.f32.mrb[0].mxu0
      %v2004 = vpop.f32.mrb[0].mxu0
      %v2005 = vadd.f32 0.0, %v2004
      %v2006 = vpop.f32.mrb[0].mxu0
      %2007 = vmatprep.mubr.bf16.mxu0 0
      %2008 = vmatmul.mubr.bf16.gmra.mrb[0].mxu0 %v1886
      %v2009 = vpop.f32.mrb[0].mxu0
      %v2010 = vadd.f32 0.0, %v2009
      %v2011 = vpop.f32.mrb[0].mxu0
      %v2012 = vpop.f32.mrb[0].mxu0
      %v2013 = vadd.f32 0.0, %v2012
      %v2014 = vpop.f32.mrb[0].mxu0
      %2015 = vmatprep.mubr.bf16.mxu0 0
      %2016 = vmatmul.mubr.bf16.gmra.mrb[0].mxu0 %v1889
      %v2017 = vpop.f32.mrb[0].mxu0
      %v2018 = vadd.f32 0.0, %v2017
      %v2019 = vpop.f32.mrb[0].mxu0
      %v2020 = vpop.f32.mrb[0].mxu0
      %v2021 = vadd.f32 0.0, %v2020
      %v2022 = vpop.f32.mrb[0].mxu0
      %2023 = vmatprep.mubr.bf16.mxu0 0
      %2024 = vmatmul.mubr.bf16.gmra.mrb[0].mxu0 %v1892
      %v2025 = vpop.f32.mrb[0].mxu0
      %v2026 = vadd.f32 0.0, %v2025
      %v2027 = vpop.f32.mrb[0].mxu0
      %v2028 = vpop.f32.mrb[0].mxu0
      %v2029 = vadd.f32 0.0, %v2028
      %v2030 = vpop.f32.mrb[0].mxu0
      %2031 = vmatprep.mubr.bf16.mxu0 0
      %2032 = vmatmul.mubr.bf16.gmra.mrb[0].mxu0 %v1895
      %v2033 = vpop.f32.mrb[0].mxu0
      %v2034 = vadd.f32 0.0, %v2033
      %v2035 = vpop.f32.mrb[0].mxu0
      %v2036 = vpop.f32.mrb[0].mxu0
      %v2037 = vadd.f32 0.0, %v2036
      %v2038 = vpop.f32.mrb[0].mxu0
      %2039 = vmatprep.mubr.bf16.mxu0 0
      %2040 = vmatmul.mubr.bf16.gmra.mrb[0].mxu0 %v1898
      %v2041 = vpop.f32.mrb[0].mxu0
      %v2042 = vadd.f32 0.0, %v2041
      %v2043 = vpop.f32.mrb[0].mxu0
      %v2044 = vpop.f32.mrb[0].mxu0
      %v2045 = vadd.f32 0.0, %v2044
      %v2046 = vpop.f32.mrb[0].mxu0
      %2047 = vdwg.mxu0
      %v2048 = vadd.f32 %v1795, %v1938
      %v2049 = vadd.f32 %v1796, %v1941
      %v2050 = vadd.f32 %v1797, %v1946
      %v2051 = vadd.f32 %v1798, %v1949
      %v2052 = vadd.f32 %v1799, %v1954
      %v2053 = vadd.f32 %v1800, %v1957
      %v2054 = vadd.f32 %v1801, %v1962
      %v2055 = vadd.f32 %v1802, %v1965
      %v2056 = vadd.f32 %v1803, %v1970
      %v2057 = vadd.f32 %v1804, %v1973
      %v2058 = vadd.f32 %v1805, %v1978
      %v2059 = vadd.f32 %v1806, %v1981
      %v2060 = vadd.f32 %v1807, %v1986
      %v2061 = vadd.f32 %v1808, %v1989
      %v2062 = vadd.f32 %v1809, %v1994
      %v2063 = vadd.f32 %v1810, %v1997
      %v2064 = vadd.f32 %v1811, %v2002
      %v2065 = vadd.f32 %v1812, %v2005
      %v2066 = vadd.f32 %v1813, %v2010
      %v2067 = vadd.f32 %v1814, %v2013
      %v2068 = vadd.f32 %v1815, %v2018
      %v2069 = vadd.f32 %v1816, %v2021
      %v2070 = vadd.f32 %v1817, %v2026
      %v2071 = vadd.f32 %v1818, %v2029
      %v2072 = vadd.f32 %v1819, %v2034
      %v2073 = vadd.f32 %v1820, %v2037
      %v2074 = vadd.f32 %v1821, %v2042
      %v2075 = vadd.f32 %v1822, %v2045
      %v2076 = vld [vmem:[%s206 + $0x10] sm:$0xf]
      %v2077 = vld [vmem:[%s206 + $0x14] sm:$0xf]
      %v2078 = vld [vmem:[%s206 + $0x18] sm:$0xf]
      %v2079 = vld [vmem:[%s206 + $0x1c] sm:$0xf]
      %v2080 = vld [vmem:[%s206 + $0x20] sm:$0xf]
      %v2081 = vld [vmem:[%s206 + $0x24] sm:$0xf]
      %v2082 = vld [vmem:[%s206 + $0x28] sm:$0xf]
      %v2083 = vld [vmem:[%s206 + $0x2c] sm:$0xf]
      %v2084 = vld [vmem:[%s206 + $0x30] sm:$0xf]
      %v2085 = vld [vmem:[%s206 + $0x34] sm:$0xf]
      %v2086 = vld [vmem:[%s206 + $0x38] sm:$0xf]
      %v2087 = vld [vmem:[%s206 + $0x3c] sm:$0xf]
      %v2088 = vld [vmem:[%s206 + $0x40] sm:$0xf]
      %v2089 = vld [vmem:[%s206 + $0x44] sm:$0xf]
      %v2090 = vld [vmem:[%s206 + $0x48] sm:$0xf]
      %v2091 = vld [vmem:[%s206 + $0x4c] sm:$0xf]
      %v2092 = vld [vmem:[%s206 + $0x50] sm:$0xf]
      %v2093 = vld [vmem:[%s206 + $0x54] sm:$0xf]
      %v2094 = vld [vmem:[%s206 + $0x58] sm:$0xf]
      %v2095 = vld [vmem:[%s206 + $0x5c] sm:$0xf]
      %v2096 = vld [vmem:[%s206 + $0x60] sm:$0xf]
      %v2097 = vld [vmem:[%s206 + $0x64] sm:$0xf]
      %v2098 = vld [vmem:[%s206 + $0x68] sm:$0xf]
      %v2099 = vld [vmem:[%s206 + $0x6c] sm:$0xf]
      %v2100 = vld [vmem:[%s206 + $0x70] sm:$0xf]
      %v2101 = vld [vmem:[%s206 + $0x74] sm:$0xf]
      %v2102 = vld [vmem:[%s206 + $0x78] sm:$0xf]
      %v2103 = vld [vmem:[%s206 + $0x7c] sm:$0xf]
      %s2104 = scalar_lea.vmem %s210, 12
      %v2105 = vld [vmem:[%s2104] sm:$0x3]
      %v2134 = vunpack.c.l.b16 %v2076
      %v2135 = vunpack.c.l.b16 %v2077
      %v2136 = vunpack.c.l.b16 %v2078
      %v2137 = vunpack.c.l.b16 %v2079
      %v2138 = vunpack.c.l.b16 %v2080
      %v2139 = vunpack.c.l.b16 %v2081
      %v2140 = vunpack.c.l.b16 %v2082
      %v2141 = vunpack.c.l.b16 %v2083
      %v2142 = vunpack.c.l.b16 %v2084
      %v2143 = vunpack.c.l.b16 %v2085
      %v2144 = vunpack.c.l.b16 %v2086
      %v2145 = vunpack.c.l.b16 %v2087
      %v2146 = vunpack.c.l.b16 %v2088
      %v2147 = vunpack.c.l.b16 %v2089
      %v2148 = vunpack.c.l.b16 %v2090
      %v2149 = vunpack.c.l.b16 %v2091
      %v2150 = vunpack.c.l.b16 %v2092
      %v2151 = vunpack.c.l.b16 %v2093
      %v2152 = vunpack.c.l.b16 %v2094
      %v2153 = vunpack.c.l.b16 %v2095
      %v2154 = vunpack.c.l.b16 %v2096
      %v2155 = vunpack.c.l.b16 %v2097
      %v2156 = vunpack.c.l.b16 %v2098
      %v2157 = vunpack.c.l.b16 %v2099
      %v2158 = vunpack.c.l.b16 %v2100
      %v2159 = vunpack.c.l.b16 %v2101
      %v2160 = vunpack.c.l.b16 %v2102
      %v2161 = vunpack.c.l.b16 %v2103
      %v2162 = vpack.c.b16 %v2135, %v2134
      %v2163 = vpack.c.b16 %v2137, %v2136
      %v2164 = vpack.c.b16 %v2139, %v2138
      %v2165 = vpack.c.b16 %v2141, %v2140
      %v2166 = vpack.c.b16 %v2143, %v2142
      %v2167 = vpack.c.b16 %v2145, %v2144
      %v2168 = vpack.c.b16 %v2147, %v2146
      %v2169 = vpack.c.b16 %v2149, %v2148
      %v2170 = vpack.c.b16 %v2151, %v2150
      %v2171 = vpack.c.b16 %v2153, %v2152
      %v2172 = vpack.c.b16 %v2155, %v2154
      %v2173 = vpack.c.b16 %v2157, %v2156
      %v2174 = vpack.c.b16 %v2159, %v2158
      %v2175 = vpack.c.b16 %v2161, %v2160
      %v2177 = vsel %vm445, %v2162, 0
      %v2180 = vsel %vm445, %v2163, 0
      %v2183 = vsel %vm445, %v2164, 0
      %v2186 = vsel %vm445, %v2165, 0
      %v2189 = vsel %vm445, %v2166, 0
      %v2192 = vsel %vm445, %v2167, 0
      %v2195 = vsel %vm445, %v2168, 0
      %v2198 = vsel %vm445, %v2169, 0
      %v2201 = vsel %vm445, %v2170, 0
      %v2204 = vsel %vm445, %v2171, 0
      %v2207 = vsel %vm445, %v2172, 0
      %v2210 = vsel %vm445, %v2173, 0
      %v2213 = vsel %vm445, %v2174, 0
      %v2216 = vsel %vm445, %v2175, 0
      %v2219 = vsel %vm488, %v2105, 0
      %2221 = vmatprep.subr.bf16.mxu0 0
      %2222 = vmatpush1.bf16.msra.mxu0 %v2219
      %2223 = vmatprep.subr.bf16.mxu0 0
      %2224 = vmatpush1.bf16.msra.mxu0 0
      %2225 = vmatprep.subr.bf16.mxu0 0
      %2226 = vmatpush1.bf16.msra.mxu0 0
      %2227 = vmatprep.subr.bf16.mxu0 0
      %2228 = vmatpush1.bf16.msra.mxu0 0
      %2229 = vmatprep.subr.bf16.mxu0 0
      %2230 = vmatpush1.bf16.msra.mxu0 0
      %2231 = vmatprep.subr.bf16.mxu0 0
      %2232 = vmatpush1.bf16.msra.mxu0 0
      %2233 = vmatprep.subr.bf16.mxu0 0
      %2234 = vmatpush1.bf16.msra.mxu0 0
      %2235 = vmatprep.subr.bf16.mxu0 0
      %2236 = vmatpush1.bf16.msra.mxu0 0
      %2237 = vmatprep.subr.bf16.mxu0 0
      %2238 = vmatpush1.bf16.msra.mxu0 0
      %2239 = vmatprep.subr.bf16.mxu0 0
      %2240 = vmatpush1.bf16.msra.mxu0 0
      %2241 = vmatprep.subr.bf16.mxu0 0
      %2242 = vmatpush1.bf16.msra.mxu0 0
      %2243 = vmatprep.subr.bf16.mxu0 0
      %2244 = vmatpush1.bf16.msra.mxu0 0
      %2245 = vmatprep.subr.bf16.mxu0 0
      %2246 = vmatpush1.bf16.msra.mxu0 0
      %2247 = vmatprep.subr.bf16.mxu0 0
      %2248 = vmatpush1.bf16.msra.mxu0 0
      %2249 = vmatprep.subr.bf16.mxu0 0
      %2250 = vmatpush1.bf16.msra.mxu0 0
      %2251 = vmatprep.subr.bf16.mxu0 0
      %2252 = vmatpush1.bf16.msra.mxu0 0
      %2253 = vmatprep.mubr.bf16.mxu0 0
      %2254 = vmatmul.mubr.bf16.gmra.mrb[0].mxu0 %v2177
      %v2255 = vpop.f32.mrb[0].mxu0
      %v2256 = vadd.f32 0.0, %v2255
      %v2257 = vpop.f32.mrb[0].mxu0
      %v2258 = vpop.f32.mrb[0].mxu0
      %v2259 = vadd.f32 0.0, %v2258
      %v2260 = vpop.f32.mrb[0].mxu0
      %2261 = vmatprep.mubr.bf16.mxu0 0
      %2262 = vmatmul.mubr.bf16.gmra.mrb[0].mxu0 %v2180
      %v2263 = vpop.f32.mrb[0].mxu0
      %v2264 = vadd.f32 0.0, %v2263
      %v2265 = vpop.f32.mrb[0].mxu0
      %v2266 = vpop.f32.mrb[0].mxu0
      %v2267 = vadd.f32 0.0, %v2266
      %v2268 = vpop.f32.mrb[0].mxu0
      %2269 = vmatprep.mubr.bf16.mxu0 0
      %2270 = vmatmul.mubr.bf16.gmra.mrb[0].mxu0 %v2183
      %v2271 = vpop.f32.mrb[0].mxu0
      %v2272 = vadd.f32 0.0, %v2271
      %v2273 = vpop.f32.mrb[0].mxu0
      %v2274 = vpop.f32.mrb[0].mxu0
      %v2275 = vadd.f32 0.0, %v2274
      %v2276 = vpop.f32.mrb[0].mxu0
      %2277 = vmatprep.mubr.bf16.mxu0 0
      %2278 = vmatmul.mubr.bf16.gmra.mrb[0].mxu0 %v2186
      %v2279 = vpop.f32.mrb[0].mxu0
      %v2280 = vadd.f32 0.0, %v2279
      %v2281 = vpop.f32.mrb[0].mxu0
      %v2282 = vpop.f32.mrb[0].mxu0
      %v2283 = vadd.f32 0.0, %v2282
      %v2284 = vpop.f32.mrb[0].mxu0
      %2285 = vmatprep.mubr.bf16.mxu0 0
      %2286 = vmatmul.mubr.bf16.gmra.mrb[0].mxu0 %v2189
      %v2287 = vpop.f32.mrb[0].mxu0
      %v2288 = vadd.f32 0.0, %v2287
      %v2289 = vpop.f32.mrb[0].mxu0
      %v2290 = vpop.f32.mrb[0].mxu0
      %v2291 = vadd.f32 0.0, %v2290
      %v2292 = vpop.f32.mrb[0].mxu0
      %2293 = vmatprep.mubr.bf16.mxu0 0
      %2294 = vmatmul.mubr.bf16.gmra.mrb[0].mxu0 %v2192
      %v2295 = vpop.f32.mrb[0].mxu0
      %v2296 = vadd.f32 0.0, %v2295
      %v2297 = vpop.f32.mrb[0].mxu0
      %v2298 = vpop.f32.mrb[0].mxu0
      %v2299 = vadd.f32 0.0, %v2298
      %v2300 = vpop.f32.mrb[0].mxu0
      %2301 = vmatprep.mubr.bf16.mxu0 0
      %2302 = vmatmul.mubr.bf16.gmra.mrb[0].mxu0 %v2195
      %v2303 = vpop.f32.mrb[0].mxu0
      %v2304 = vadd.f32 0.0, %v2303
      %v2305 = vpop.f32.mrb[0].mxu0
      %v2306 = vpop.f32.mrb[0].mxu0
      %v2307 = vadd.f32 0.0, %v2306
      %v2308 = vpop.f32.mrb[0].mxu0
      %2309 = vmatprep.mubr.bf16.mxu0 0
      %2310 = vmatmul.mubr.bf16.gmra.mrb[0].mxu0 %v2198
      %v2311 = vpop.f32.mrb[0].mxu0
      %v2312 = vadd.f32 0.0, %v2311
      %v2313 = vpop.f32.mrb[0].mxu0
      %v2314 = vpop.f32.mrb[0].mxu0
      %v2315 = vadd.f32 0.0, %v2314
      %v2316 = vpop.f32.mrb[0].mxu0
      %2317 = vmatprep.mubr.bf16.mxu0 0
      %2318 = vmatmul.mubr.bf16.gmra.mrb[0].mxu0 %v2201
      %v2319 = vpop.f32.mrb[0].mxu0
      %v2320 = vadd.f32 0.0, %v2319
      %v2321 = vpop.f32.mrb[0].mxu0
      %v2322 = vpop.f32.mrb[0].mxu0
      %v2323 = vadd.f32 0.0, %v2322
      %v2324 = vpop.f32.mrb[0].mxu0
      %2325 = vmatprep.mubr.bf16.mxu0 0
      %2326 = vmatmul.mubr.bf16.gmra.mrb[0].mxu0 %v2204
      %v2327 = vpop.f32.mrb[0].mxu0
      %v2328 = vadd.f32 0.0, %v2327
      %v2329 = vpop.f32.mrb[0].mxu0
      %v2330 = vpop.f32.mrb[0].mxu0
      %v2331 = vadd.f32 0.0, %v2330
      %v2332 = vpop.f32.mrb[0].mxu0
      %2333 = vmatprep.mubr.bf16.mxu0 0
      %2334 = vmatmul.mubr.bf16.gmra.mrb[0].mxu0 %v2207
      %v2335 = vpop.f32.mrb[0].mxu0
      %v2336 = vadd.f32 0.0, %v2335
      %v2337 = vpop.f32.mrb[0].mxu0
      %v2338 = vpop.f32.mrb[0].mxu0
      %v2339 = vadd.f32 0.0, %v2338
      %v2340 = vpop.f32.mrb[0].mxu0
      %2341 = vmatprep.mubr.bf16.mxu0 0
      %2342 = vmatmul.mubr.bf16.gmra.mrb[0].mxu0 %v2210
      %v2343 = vpop.f32.mrb[0].mxu0
      %v2344 = vadd.f32 0.0, %v2343
      %v2345 = vpop.f32.mrb[0].mxu0
      %v2346 = vpop.f32.mrb[0].mxu0
      %v2347 = vadd.f32 0.0, %v2346
      %v2348 = vpop.f32.mrb[0].mxu0
      %2349 = vmatprep.mubr.bf16.mxu0 0
      %2350 = vmatmul.mubr.bf16.gmra.mrb[0].mxu0 %v2213
      %v2351 = vpop.f32.mrb[0].mxu0
      %v2352 = vadd.f32 0.0, %v2351
      %v2353 = vpop.f32.mrb[0].mxu0
      %v2354 = vpop.f32.mrb[0].mxu0
      %v2355 = vadd.f32 0.0, %v2354
      %v2356 = vpop.f32.mrb[0].mxu0
      %2357 = vmatprep.mubr.bf16.mxu0 0
      %2358 = vmatmul.mubr.bf16.gmra.mrb[0].mxu0 %v2216
      %v2359 = vpop.f32.mrb[0].mxu0
      %v2360 = vadd.f32 0.0, %v2359
      %v2361 = vpop.f32.mrb[0].mxu0
      %v2362 = vpop.f32.mrb[0].mxu0
      %v2363 = vadd.f32 0.0, %v2362
      %v2364 = vpop.f32.mrb[0].mxu0
      %2365 = vdwg.mxu0
      %v2366 = vadd.f32 %v2048, %v2256
      %v2367 = vadd.f32 %v2049, %v2259
      %v2368 = vadd.f32 %v2050, %v2264
      %v2369 = vadd.f32 %v2051, %v2267
      %v2370 = vadd.f32 %v2052, %v2272
      %v2371 = vadd.f32 %v2053, %v2275
      %v2372 = vadd.f32 %v2054, %v2280
      %v2373 = vadd.f32 %v2055, %v2283
      %v2374 = vadd.f32 %v2056, %v2288
      %v2375 = vadd.f32 %v2057, %v2291
      %v2376 = vadd.f32 %v2058, %v2296
      %v2377 = vadd.f32 %v2059, %v2299
      %v2378 = vadd.f32 %v2060, %v2304
      %v2379 = vadd.f32 %v2061, %v2307
      %v2380 = vadd.f32 %v2062, %v2312
      %v2381 = vadd.f32 %v2063, %v2315
      %v2382 = vadd.f32 %v2064, %v2320
      %v2383 = vadd.f32 %v2065, %v2323
      %v2384 = vadd.f32 %v2066, %v2328
      %v2385 = vadd.f32 %v2067, %v2331
      %v2386 = vadd.f32 %v2068, %v2336
      %v2387 = vadd.f32 %v2069, %v2339
      %v2388 = vadd.f32 %v2070, %v2344
      %v2389 = vadd.f32 %v2071, %v2347
      %v2390 = vadd.f32 %v2072, %v2352
      %v2391 = vadd.f32 %v2073, %v2355
      %v2392 = vadd.f32 %v2074, %v2360
      %v2393 = vadd.f32 %v2075, %v2363
      %v2394 = vld [vmem:[%s206 + $0x10] sm:$0xf]
      %v2395 = vld [vmem:[%s206 + $0x14] sm:$0xf]
      %v2396 = vld [vmem:[%s206 + $0x18] sm:$0xf]
      %v2397 = vld [vmem:[%s206 + $0x1c] sm:$0xf]
      %v2398 = vld [vmem:[%s206 + $0x20] sm:$0xf]
      %v2399 = vld [vmem:[%s206 + $0x24] sm:$0xf]
      %v2400 = vld [vmem:[%s206 + $0x28] sm:$0xf]
      %v2401 = vld [vmem:[%s206 + $0x2c] sm:$0xf]
      %v2402 = vld [vmem:[%s206 + $0x30] sm:$0xf]
      %v2403 = vld [vmem:[%s206 + $0x34] sm:$0xf]
      %v2404 = vld [vmem:[%s206 + $0x38] sm:$0xf]
      %v2405 = vld [vmem:[%s206 + $0x3c] sm:$0xf]
      %v2406 = vld [vmem:[%s206 + $0x40] sm:$0xf]
      %v2407 = vld [vmem:[%s206 + $0x44] sm:$0xf]
      %v2408 = vld [vmem:[%s206 + $0x48] sm:$0xf]
      %v2409 = vld [vmem:[%s206 + $0x4c] sm:$0xf]
      %v2410 = vld [vmem:[%s206 + $0x50] sm:$0xf]
      %v2411 = vld [vmem:[%s206 + $0x54] sm:$0xf]
      %v2412 = vld [vmem:[%s206 + $0x58] sm:$0xf]
      %v2413 = vld [vmem:[%s206 + $0x5c] sm:$0xf]
      %v2414 = vld [vmem:[%s206 + $0x60] sm:$0xf]
      %v2415 = vld [vmem:[%s206 + $0x64] sm:$0xf]
      %v2416 = vld [vmem:[%s206 + $0x68] sm:$0xf]
      %v2417 = vld [vmem:[%s206 + $0x6c] sm:$0xf]
      %v2418 = vld [vmem:[%s206 + $0x70] sm:$0xf]
      %v2419 = vld [vmem:[%s206 + $0x74] sm:$0xf]
      %v2420 = vld [vmem:[%s206 + $0x78] sm:$0xf]
      %v2421 = vld [vmem:[%s206 + $0x7c] sm:$0xf]
      %v2422 = vld [vmem:[%s206 + $0x80] sm:$0x1]
      %s2423 = scalar_lea.vmem %s210, 14
      %v2424 = vld [vmem:[%s2423] sm:$0x3]
      %v2454 = vunpack.c.l.b16 %v2394
      %v2455 = vunpack.c.l.b16 %v2395
      %v2456 = vunpack.c.l.b16 %v2396
      %v2457 = vunpack.c.l.b16 %v2397
      %v2458 = vunpack.c.l.b16 %v2398
      %v2459 = vunpack.c.l.b16 %v2399
      %v2460 = vunpack.c.l.b16 %v2400
      %v2461 = vunpack.c.l.b16 %v2401
      %v2462 = vunpack.c.l.b16 %v2402
      %v2463 = vunpack.c.l.b16 %v2403
      %v2464 = vunpack.c.l.b16 %v2404
      %v2465 = vunpack.c.l.b16 %v2405
      %v2466 = vunpack.c.l.b16 %v2406
      %v2467 = vunpack.c.l.b16 %v2407
      %v2468 = vunpack.c.l.b16 %v2408
      %v2469 = vunpack.c.l.b16 %v2409
      %v2470 = vunpack.c.l.b16 %v2410
      %v2471 = vunpack.c.l.b16 %v2411
      %v2472 = vunpack.c.l.b16 %v2412
      %v2473 = vunpack.c.l.b16 %v2413
      %v2474 = vunpack.c.l.b16 %v2414
      %v2475 = vunpack.c.l.b16 %v2415
      %v2476 = vunpack.c.l.b16 %v2416
      %v2477 = vunpack.c.l.b16 %v2417
      %v2478 = vunpack.c.l.b16 %v2418
      %v2479 = vunpack.c.l.b16 %v2419
      %v2480 = vunpack.c.l.b16 %v2420
      %v2481 = vunpack.c.l.b16 %v2421
      %v2482 = vunpack.c.l.b16 %v2422
      %v2483 = vpack.c.b16 %v2455, %v2454
      %v2484 = vpack.c.b16 %v2457, %v2456
      %v2485 = vpack.c.b16 %v2459, %v2458
      %v2486 = vpack.c.b16 %v2461, %v2460
      %v2487 = vpack.c.b16 %v2463, %v2462
      %v2488 = vpack.c.b16 %v2465, %v2464
      %v2489 = vpack.c.b16 %v2467, %v2466
      %v2490 = vpack.c.b16 %v2469, %v2468
      %v2491 = vpack.c.b16 %v2471, %v2470
      %v2492 = vpack.c.b16 %v2473, %v2472
      %v2493 = vpack.c.b16 %v2475, %v2474
      %v2494 = vpack.c.b16 %v2477, %v2476
      %v2495 = vpack.c.b16 %v2479, %v2478
      %v2496 = vpack.c.b16 %v2481, %v2480
      %v2497 = vpack.c.b16 %v2482, %v2482
      %v2499 = vshrl.u32 %v2483, 16
      %v2501 = vshll.u32 %v2483, 16
      %v2503 = vrot.slane %v2501, 1
      %v2504 = vor.u32 %v2499, %v2503
      %v2506 = vshll.u32 %v2484, 16
      %v2508 = vrot.slane %v2506, 1
      %v2509 = vsel %vm328, %v2504, %v2508
      %v2510 = vshrl.u32 %v2484, 16
      %v2512 = vor.u32 %v2510, %v2508
      %v2514 = vshll.u32 %v2485, 16
      %v2516 = vrot.slane %v2514, 1
      %v2517 = vsel %vm328, %v2512, %v2516
      %v2518 = vshrl.u32 %v2485, 16
      %v2520 = vor.u32 %v2518, %v2516
      %v2522 = vshll.u32 %v2486, 16
      %v2524 = vrot.slane %v2522, 1
      %v2525 = vsel %vm328, %v2520, %v2524
      %v2526 = vshrl.u32 %v2486, 16
      %v2528 = vor.u32 %v2526, %v2524
      %v2530 = vshll.u32 %v2487, 16
      %v2532 = vrot.slane %v2530, 1
      %v2533 = vsel %vm328, %v2528, %v2532
      %v2534 = vshrl.u32 %v2487, 16
      %v2536 = vor.u32 %v2534, %v2532
      %v2538 = vshll.u32 %v2488, 16
      %v2540 = vrot.slane %v2538, 1
      %v2541 = vsel %vm328, %v2536, %v2540
      %v2542 = vshrl.u32 %v2488, 16
      %v2544 = vor.u32 %v2542, %v2540
      %v2546 = vshll.u32 %v2489, 16
      %v2548 = vrot.slane %v2546, 1
      %v2549 = vsel %vm328, %v2544, %v2548
      %v2550 = vshrl.u32 %v2489, 16
      %v2552 = vor.u32 %v2550, %v2548
      %v2554 = vshll.u32 %v2490, 16
      %v2556 = vrot.slane %v2554, 1
      %v2557 = vsel %vm328, %v2552, %v2556
      %v2558 = vshrl.u32 %v2490, 16
      %v2560 = vor.u32 %v2558, %v2556
      %v2562 = vshll.u32 %v2491, 16
      %v2564 = vrot.slane %v2562, 1
      %v2565 = vsel %vm328, %v2560, %v2564
      %v2566 = vshrl.u32 %v2491, 16
      %v2568 = vor.u32 %v2566, %v2564
      %v2570 = vshll.u32 %v2492, 16
      %v2572 = vrot.slane %v2570, 1
      %v2573 = vsel %vm328, %v2568, %v2572
      %v2574 = vshrl.u32 %v2492, 16
      %v2576 = vor.u32 %v2574, %v2572
      %v2578 = vshll.u32 %v2493, 16
      %v2580 = vrot.slane %v2578, 1
      %v2581 = vsel %vm328, %v2576, %v2580
      %v2582 = vshrl.u32 %v2493, 16
      %v2584 = vor.u32 %v2582, %v2580
      %v2586 = vshll.u32 %v2494, 16
      %v2588 = vrot.slane %v2586, 1
      %v2589 = vsel %vm328, %v2584, %v2588
      %v2590 = vshrl.u32 %v2494, 16
      %v2592 = vor.u32 %v2590, %v2588
      %v2594 = vshll.u32 %v2495, 16
      %v2596 = vrot.slane %v2594, 1
      %v2597 = vsel %vm328, %v2592, %v2596
      %v2598 = vshrl.u32 %v2495, 16
      %v2600 = vor.u32 %v2598, %v2596
      %v2602 = vshll.u32 %v2496, 16
      %v2604 = vrot.slane %v2602, 1
      %v2605 = vsel %vm328, %v2600, %v2604
      %v2606 = vshrl.u32 %v2496, 16
      %v2608 = vor.u32 %v2606, %v2604
      %v2610 = vshll.u32 %v2497, 16
      %v2612 = vrot.slane %v2610, 1
      %v2613 = vsel %vm328, %v2608, %v2612
      %v2615 = vsel %vm445, %v2509, 0
      %v2618 = vsel %vm445, %v2517, 0
      %v2621 = vsel %vm445, %v2525, 0
      %v2624 = vsel %vm445, %v2533, 0
      %v2627 = vsel %vm445, %v2541, 0
      %v2630 = vsel %vm445, %v2549, 0
      %v2633 = vsel %vm445, %v2557, 0
      %v2636 = vsel %vm445, %v2565, 0
      %v2639 = vsel %vm445, %v2573, 0
      %v2642 = vsel %vm445, %v2581, 0
      %v2645 = vsel %vm445, %v2589, 0
      %v2648 = vsel %vm445, %v2597, 0
      %v2651 = vsel %vm445, %v2605, 0
      %v2654 = vsel %vm445, %v2613, 0
      %v2657 = vsel %vm488, %v2424, 0
      %2659 = vmatprep.subr.bf16.mxu0 0
      %2660 = vmatpush1.bf16.msra.mxu0 %v2657
      %2661 = vmatprep.subr.bf16.mxu0 0
      %2662 = vmatpush1.bf16.msra.mxu0 0
      %2663 = vmatprep.subr.bf16.mxu0 0
      %2664 = vmatpush1.bf16.msra.mxu0 0
      %2665 = vmatprep.subr.bf16.mxu0 0
      %2666 = vmatpush1.bf16.msra.mxu0 0
      %2667 = vmatprep.subr.bf16.mxu0 0
      %2668 = vmatpush1.bf16.msra.mxu0 0
      %2669 = vmatprep.subr.bf16.mxu0 0
      %2670 = vmatpush1.bf16.msra.mxu0 0
      %2671 = vmatprep.subr.bf16.mxu0 0
      %2672 = vmatpush1.bf16.msra.mxu0 0
      %2673 = vmatprep.subr.bf16.mxu0 0
      %2674 = vmatpush1.bf16.msra.mxu0 0
      %2675 = vmatprep.subr.bf16.mxu0 0
      %2676 = vmatpush1.bf16.msra.mxu0 0
      %2677 = vmatprep.subr.bf16.mxu0 0
      %2678 = vmatpush1.bf16.msra.mxu0 0
      %2679 = vmatprep.subr.bf16.mxu0 0
      %2680 = vmatpush1.bf16.msra.mxu0 0
      %2681 = vmatprep.subr.bf16.mxu0 0
      %2682 = vmatpush1.bf16.msra.mxu0 0
      %2683 = vmatprep.subr.bf16.mxu0 0
      %2684 = vmatpush1.bf16.msra.mxu0 0
      %2685 = vmatprep.subr.bf16.mxu0 0
      %2686 = vmatpush1.bf16.msra.mxu0 0
      %2687 = vmatprep.subr.bf16.mxu0 0
      %2688 = vmatpush1.bf16.msra.mxu0 0
      %2689 = vmatprep.subr.bf16.mxu0 0
      %2690 = vmatpush1.bf16.msra.mxu0 0
      %2691 = vmatprep.mubr.bf16.mxu0 0
      %2692 = vmatmul.mubr.bf16.gmra.mrb[0].mxu0 %v2615
      %v2693 = vpop.f32.mrb[0].mxu0
      %v2694 = vadd.f32 0.0, %v2693
      %v2695 = vpop.f32.mrb[0].mxu0
      %v2696 = vpop.f32.mrb[0].mxu0
      %v2697 = vadd.f32 0.0, %v2696
      %v2698 = vpop.f32.mrb[0].mxu0
      %2699 = vmatprep.mubr.bf16.mxu0 0
      %2700 = vmatmul.mubr.bf16.gmra.mrb[0].mxu0 %v2618
      %v2701 = vpop.f32.mrb[0].mxu0
      %v2702 = vadd.f32 0.0, %v2701
      %v2703 = vpop.f32.mrb[0].mxu0
      %v2704 = vpop.f32.mrb[0].mxu0
      %v2705 = vadd.f32 0.0, %v2704
      %v2706 = vpop.f32.mrb[0].mxu0
      %2707 = vmatprep.mubr.bf16.mxu0 0
      %2708 = vmatmul.mubr.bf16.gmra.mrb[0].mxu0 %v2621
      %v2709 = vpop.f32.mrb[0].mxu0
      %v2710 = vadd.f32 0.0, %v2709
      %v2711 = vpop.f32.mrb[0].mxu0
      %v2712 = vpop.f32.mrb[0].mxu0
      %v2713 = vadd.f32 0.0, %v2712
      %v2714 = vpop.f32.mrb[0].mxu0
      %2715 = vmatprep.mubr.bf16.mxu0 0
      %2716 = vmatmul.mubr.bf16.gmra.mrb[0].mxu0 %v2624
      %v2717 = vpop.f32.mrb[0].mxu0
      %v2718 = vadd.f32 0.0, %v2717
      %v2719 = vpop.f32.mrb[0].mxu0
      %v2720 = vpop.f32.mrb[0].mxu0
      %v2721 = vadd.f32 0.0, %v2720
      %v2722 = vpop.f32.mrb[0].mxu0
      %2723 = vmatprep.mubr.bf16.mxu0 0
      %2724 = vmatmul.mubr.bf16.gmra.mrb[0].mxu0 %v2627
      %v2725 = vpop.f32.mrb[0].mxu0
      %v2726 = vadd.f32 0.0, %v2725
      %v2727 = vpop.f32.mrb[0].mxu0
      %v2728 = vpop.f32.mrb[0].mxu0
      %v2729 = vadd.f32 0.0, %v2728
      %v2730 = vpop.f32.mrb[0].mxu0
      %2731 = vmatprep.mubr.bf16.mxu0 0
      %2732 = vmatmul.mubr.bf16.gmra.mrb[0].mxu0 %v2630
      %v2733 = vpop.f32.mrb[0].mxu0
      %v2734 = vadd.f32 0.0, %v2733
      %v2735 = vpop.f32.mrb[0].mxu0
      %v2736 = vpop.f32.mrb[0].mxu0
      %v2737 = vadd.f32 0.0, %v2736
      %v2738 = vpop.f32.mrb[0].mxu0
      %2739 = vmatprep.mubr.bf16.mxu0 0
      %2740 = vmatmul.mubr.bf16.gmra.mrb[0].mxu0 %v2633
      %v2741 = vpop.f32.mrb[0].mxu0
      %v2742 = vadd.f32 0.0, %v2741
      %v2743 = vpop.f32.mrb[0].mxu0
      %v2744 = vpop.f32.mrb[0].mxu0
      %v2745 = vadd.f32 0.0, %v2744
      %v2746 = vpop.f32.mrb[0].mxu0
      %2747 = vmatprep.mubr.bf16.mxu0 0
      %2748 = vmatmul.mubr.bf16.gmra.mrb[0].mxu0 %v2636
      %v2749 = vpop.f32.mrb[0].mxu0
      %v2750 = vadd.f32 0.0, %v2749
      %v2751 = vpop.f32.mrb[0].mxu0
      %v2752 = vpop.f32.mrb[0].mxu0
      %v2753 = vadd.f32 0.0, %v2752
      %v2754 = vpop.f32.mrb[0].mxu0
      %2755 = vmatprep.mubr.bf16.mxu0 0
      %2756 = vmatmul.mubr.bf16.gmra.mrb[0].mxu0 %v2639
      %v2757 = vpop.f32.mrb[0].mxu0
      %v2758 = vadd.f32 0.0, %v2757
      %v2759 = vpop.f32.mrb[0].mxu0
      %v2760 = vpop.f32.mrb[0].mxu0
      %v2761 = vadd.f32 0.0, %v2760
      %v2762 = vpop.f32.mrb[0].mxu0
      %2763 = vmatprep.mubr.bf16.mxu0 0
      %2764 = vmatmul.mubr.bf16.gmra.mrb[0].mxu0 %v2642
      %v2765 = vpop.f32.mrb[0].mxu0
      %v2766 = vadd.f32 0.0, %v2765
      %v2767 = vpop.f32.mrb[0].mxu0
      %v2768 = vpop.f32.mrb[0].mxu0
      %v2769 = vadd.f32 0.0, %v2768
      %v2770 = vpop.f32.mrb[0].mxu0
      %2771 = vmatprep.mubr.bf16.mxu0 0
      %2772 = vmatmul.mubr.bf16.gmra.mrb[0].mxu0 %v2645
      %v2773 = vpop.f32.mrb[0].mxu0
      %v2774 = vadd.f32 0.0, %v2773
      %v2775 = vpop.f32.mrb[0].mxu0
      %v2776 = vpop.f32.mrb[0].mxu0
      %v2777 = vadd.f32 0.0, %v2776
      %v2778 = vpop.f32.mrb[0].mxu0
      %2779 = vmatprep.mubr.bf16.mxu0 0
      %2780 = vmatmul.mubr.bf16.gmra.mrb[0].mxu0 %v2648
      %v2781 = vpop.f32.mrb[0].mxu0
      %v2782 = vadd.f32 0.0, %v2781
      %v2783 = vpop.f32.mrb[0].mxu0
      %v2784 = vpop.f32.mrb[0].mxu0
      %v2785 = vadd.f32 0.0, %v2784
      %v2786 = vpop.f32.mrb[0].mxu0
      %2787 = vmatprep.mubr.bf16.mxu0 0
      %2788 = vmatmul.mubr.bf16.gmra.mrb[0].mxu0 %v2651
      %v2789 = vpop.f32.mrb[0].mxu0
      %v2790 = vadd.f32 0.0, %v2789
      %v2791 = vpop.f32.mrb[0].mxu0
      %v2792 = vpop.f32.mrb[0].mxu0
      %v2793 = vadd.f32 0.0, %v2792
      %v2794 = vpop.f32.mrb[0].mxu0
      %2795 = vmatprep.mubr.bf16.mxu0 0
      %2796 = vmatmul.mubr.bf16.gmra.mrb[0].mxu0 %v2654
      %v2797 = vpop.f32.mrb[0].mxu0
      %v2798 = vadd.f32 0.0, %v2797
      %v2799 = vpop.f32.mrb[0].mxu0
      %v2800 = vpop.f32.mrb[0].mxu0
      %v2801 = vadd.f32 0.0, %v2800
      %v2802 = vpop.f32.mrb[0].mxu0
      %2803 = vdwg.mxu0
      %v2804 = vadd.f32 %v2366, %v2694
      %v2805 = vadd.f32 %v2367, %v2697
      %v2806 = vadd.f32 %v2368, %v2702
      %v2807 = vadd.f32 %v2369, %v2705
      %v2808 = vadd.f32 %v2370, %v2710
      %v2809 = vadd.f32 %v2371, %v2713
      %v2810 = vadd.f32 %v2372, %v2718
      %v2811 = vadd.f32 %v2373, %v2721
      %v2812 = vadd.f32 %v2374, %v2726
      %v2813 = vadd.f32 %v2375, %v2729
      %v2814 = vadd.f32 %v2376, %v2734
      %v2815 = vadd.f32 %v2377, %v2737
      %v2816 = vadd.f32 %v2378, %v2742
      %v2817 = vadd.f32 %v2379, %v2745
      %v2818 = vadd.f32 %v2380, %v2750
      %v2819 = vadd.f32 %v2381, %v2753
      %v2820 = vadd.f32 %v2382, %v2758
      %v2821 = vadd.f32 %v2383, %v2761
      %v2822 = vadd.f32 %v2384, %v2766
      %v2823 = vadd.f32 %v2385, %v2769
      %v2824 = vadd.f32 %v2386, %v2774
      %v2825 = vadd.f32 %v2387, %v2777
      %v2826 = vadd.f32 %v2388, %v2782
      %v2827 = vadd.f32 %v2389, %v2785
      %v2828 = vadd.f32 %v2390, %v2790
      %v2829 = vadd.f32 %v2391, %v2793
      %v2830 = vadd.f32 %v2392, %v2798
      %v2831 = vadd.f32 %v2393, %v2801
      %v2832 = vld [vmem:[%s206 + $0x10] sm:$0xe]
      %s2833 = scalar_lea.vmem %s210, 16
      %v2834 = vld [vmem:[%s2833] sm:$0x3]
      %v2836 = vunpack.c.l.b16 %v2832
      %v2837 = vpack.c.b16 %v2455, %v2836
      %v2838 = vrot.slane %v2837, 1
      %v2839 = vrot.slane %v2484, 1
      %v2840 = vsel %vm819, %v2838, %v2839
      %v2841 = vrot.slane %v2485, 1
      %v2842 = vsel %vm819, %v2839, %v2841
      %v2843 = vrot.slane %v2486, 1
      %v2844 = vsel %vm819, %v2841, %v2843
      %v2845 = vrot.slane %v2487, 1
      %v2846 = vsel %vm819, %v2843, %v2845
      %v2847 = vrot.slane %v2488, 1
      %v2848 = vsel %vm819, %v2845, %v2847
      %v2849 = vrot.slane %v2489, 1
      %v2850 = vsel %vm819, %v2847, %v2849
      %v2851 = vrot.slane %v2490, 1
      %v2852 = vsel %vm819, %v2849, %v2851
      %v2853 = vrot.slane %v2491, 1
      %v2854 = vsel %vm819, %v2851, %v2853
      %v2855 = vrot.slane %v2492, 1
      %v2856 = vsel %vm819, %v2853, %v2855
      %v2857 = vrot.slane %v2493, 1
      %v2858 = vsel %vm819, %v2855, %v2857
      %v2859 = vrot.slane %v2494, 1
      %v2860 = vsel %vm819, %v2857, %v2859
      %v2861 = vrot.slane %v2495, 1
      %v2862 = vsel %vm819, %v2859, %v2861
      %v2863 = vrot.slane %v2496, 1
      %v2864 = vsel %vm819, %v2861, %v2863
      %v2865 = vrot.slane %v2497, 1
      %v2866 = vsel %vm819, %v2863, %v2865
      %v2868 = vsel %vm445, %v2840, 0
      %v2871 = vsel %vm445, %v2842, 0
      %v2874 = vsel %vm445, %v2844, 0
      %v2877 = vsel %vm445, %v2846, 0
      %v2880 = vsel %vm445, %v2848, 0
      %v2883 = vsel %vm445, %v2850, 0
      %v2886 = vsel %vm445, %v2852, 0
      %v2889 = vsel %vm445, %v2854, 0
      %v2892 = vsel %vm445, %v2856, 0
      %v2895 = vsel %vm445, %v2858, 0
      %v2898 = vsel %vm445, %v2860, 0
      %v2901 = vsel %vm445, %v2862, 0
      %v2904 = vsel %vm445, %v2864, 0
      %v2907 = vsel %vm445, %v2866, 0
      %v2910 = vsel %vm488, %v2834, 0
      %2912 = vmatprep.subr.bf16.mxu0 0
      %2913 = vmatpush1.bf16.msra.mxu0 %v2910
      %2914 = vmatprep.subr.bf16.mxu0 0
      %2915 = vmatpush1.bf16.msra.mxu0 0
      %2916 = vmatprep.subr.bf16.mxu0 0
      %2917 = vmatpush1.bf16.msra.mxu0 0
      %2918 = vmatprep.subr.bf16.mxu0 0
      %2919 = vmatpush1.bf16.msra.mxu0 0
      %2920 = vmatprep.subr.bf16.mxu0 0
      %2921 = vmatpush1.bf16.msra.mxu0 0
      %2922 = vmatprep.subr.bf16.mxu0 0
      %2923 = vmatpush1.bf16.msra.mxu0 0
      %2924 = vmatprep.subr.bf16.mxu0 0
      %2925 = vmatpush1.bf16.msra.mxu0 0
      %2926 = vmatprep.subr.bf16.mxu0 0
      %2927 = vmatpush1.bf16.msra.mxu0 0
      %2928 = vmatprep.subr.bf16.mxu0 0
      %2929 = vmatpush1.bf16.msra.mxu0 0
      %2930 = vmatprep.subr.bf16.mxu0 0
      %2931 = vmatpush1.bf16.msra.mxu0 0
      %2932 = vmatprep.subr.bf16.mxu0 0
      %2933 = vmatpush1.bf16.msra.mxu0 0
      %2934 = vmatprep.subr.bf16.mxu0 0
      %2935 = vmatpush1.bf16.msra.mxu0 0
      %2936 = vmatprep.subr.bf16.mxu0 0
      %2937 = vmatpush1.bf16.msra.mxu0 0
      %2938 = vmatprep.subr.bf16.mxu0 0
      %2939 = vmatpush1.bf16.msra.mxu0 0
      %2940 = vmatprep.subr.bf16.mxu0 0
      %2941 = vmatpush1.bf16.msra.mxu0 0
      %2942 = vmatprep.subr.bf16.mxu0 0
      %2943 = vmatpush1.bf16.msra.mxu0 0
      %2944 = vmatprep.mubr.bf16.mxu0 0
      %2945 = vmatmul.mubr.bf16.gmra.mrb[0].mxu0 %v2868
      %v2946 = vpop.f32.mrb[0].mxu0
      %v2947 = vadd.f32 0.0, %v2946
      %v2948 = vpop.f32.mrb[0].mxu0
      %v2949 = vpop.f32.mrb[0].mxu0
      %v2950 = vadd.f32 0.0, %v2949
      %v2951 = vpop.f32.mrb[0].mxu0
      %2952 = vmatprep.mubr.bf16.mxu0 0
      %2953 = vmatmul.mubr.bf16.gmra.mrb[0].mxu0 %v2871
      %v2954 = vpop.f32.mrb[0].mxu0
      %v2955 = vadd.f32 0.0, %v2954
      %v2956 = vpop.f32.mrb[0].mxu0
      %v2957 = vpop.f32.mrb[0].mxu0
      %v2958 = vadd.f32 0.0, %v2957
      %v2959 = vpop.f32.mrb[0].mxu0
      %2960 = vmatprep.mubr.bf16.mxu0 0
      %2961 = vmatmul.mubr.bf16.gmra.mrb[0].mxu0 %v2874
      %v2962 = vpop.f32.mrb[0].mxu0
      %v2963 = vadd.f32 0.0, %v2962
      %v2964 = vpop.f32.mrb[0].mxu0
      %v2965 = vpop.f32.mrb[0].mxu0
      %v2966 = vadd.f32 0.0, %v2965
      %v2967 = vpop.f32.mrb[0].mxu0
      %2968 = vmatprep.mubr.bf16.mxu0 0
      %2969 = vmatmul.mubr.bf16.gmra.mrb[0].mxu0 %v2877
      %v2970 = vpop.f32.mrb[0].mxu0
      %v2971 = vadd.f32 0.0, %v2970
      %v2972 = vpop.f32.mrb[0].mxu0
      %v2973 = vpop.f32.mrb[0].mxu0
      %v2974 = vadd.f32 0.0, %v2973
      %v2975 = vpop.f32.mrb[0].mxu0
      %2976 = vmatprep.mubr.bf16.mxu0 0
      %2977 = vmatmul.mubr.bf16.gmra.mrb[0].mxu0 %v2880
      %v2978 = vpop.f32.mrb[0].mxu0
      %v2979 = vadd.f32 0.0, %v2978
      %v2980 = vpop.f32.mrb[0].mxu0
      %v2981 = vpop.f32.mrb[0].mxu0
      %v2982 = vadd.f32 0.0, %v2981
      %v2983 = vpop.f32.mrb[0].mxu0
      %2984 = vmatprep.mubr.bf16.mxu0 0
      %2985 = vmatmul.mubr.bf16.gmra.mrb[0].mxu0 %v2883
      %v2986 = vpop.f32.mrb[0].mxu0
      %v2987 = vadd.f32 0.0, %v2986
      %v2988 = vpop.f32.mrb[0].mxu0
      %v2989 = vpop.f32.mrb[0].mxu0
      %v2990 = vadd.f32 0.0, %v2989
      %v2991 = vpop.f32.mrb[0].mxu0
      %2992 = vmatprep.mubr.bf16.mxu0 0
      %2993 = vmatmul.mubr.bf16.gmra.mrb[0].mxu0 %v2886
      %v2994 = vpop.f32.mrb[0].mxu0
      %v2995 = vadd.f32 0.0, %v2994
      %v2996 = vpop.f32.mrb[0].mxu0
      %v2997 = vpop.f32.mrb[0].mxu0
      %v2998 = vadd.f32 0.0, %v2997
      %v2999 = vpop.f32.mrb[0].mxu0
      %3000 = vmatprep.mubr.bf16.mxu0 0
      %3001 = vmatmul.mubr.bf16.gmra.mrb[0].mxu0 %v2889
      %v3002 = vpop.f32.mrb[0].mxu0
      %v3003 = vadd.f32 0.0, %v3002
      %v3004 = vpop.f32.mrb[0].mxu0
      %v3005 = vpop.f32.mrb[0].mxu0
      %v3006 = vadd.f32 0.0, %v3005
      %v3007 = vpop.f32.mrb[0].mxu0
      %3008 = vmatprep.mubr.bf16.mxu0 0
      %3009 = vmatmul.mubr.bf16.gmra.mrb[0].mxu0 %v2892
      %v3010 = vpop.f32.mrb[0].mxu0
      %v3011 = vadd.f32 0.0, %v3010
      %v3012 = vpop.f32.mrb[0].mxu0
      %v3013 = vpop.f32.mrb[0].mxu0
      %v3014 = vadd.f32 0.0, %v3013
      %v3015 = vpop.f32.mrb[0].mxu0
      %3016 = vmatprep.mubr.bf16.mxu0 0
      %3017 = vmatmul.mubr.bf16.gmra.mrb[0].mxu0 %v2895
      %v3018 = vpop.f32.mrb[0].mxu0
      %v3019 = vadd.f32 0.0, %v3018
      %v3020 = vpop.f32.mrb[0].mxu0
      %v3021 = vpop.f32.mrb[0].mxu0
      %v3022 = vadd.f32 0.0, %v3021
      %v3023 = vpop.f32.mrb[0].mxu0
      %3024 = vmatprep.mubr.bf16.mxu0 0
      %3025 = vmatmul.mubr.bf16.gmra.mrb[0].mxu0 %v2898
      %v3026 = vpop.f32.mrb[0].mxu0
      %v3027 = vadd.f32 0.0, %v3026
      %v3028 = vpop.f32.mrb[0].mxu0
      %v3029 = vpop.f32.mrb[0].mxu0
      %v3030 = vadd.f32 0.0, %v3029
      %v3031 = vpop.f32.mrb[0].mxu0
      %3032 = vmatprep.mubr.bf16.mxu0 0
      %3033 = vmatmul.mubr.bf16.gmra.mrb[0].mxu0 %v2901
      %v3034 = vpop.f32.mrb[0].mxu0
      %v3035 = vadd.f32 0.0, %v3034
      %v3036 = vpop.f32.mrb[0].mxu0
      %v3037 = vpop.f32.mrb[0].mxu0
      %v3038 = vadd.f32 0.0, %v3037
      %v3039 = vpop.f32.mrb[0].mxu0
      %3040 = vmatprep.mubr.bf16.mxu0 0
      %3041 = vmatmul.mubr.bf16.gmra.mrb[0].mxu0 %v2904
      %v3042 = vpop.f32.mrb[0].mxu0
      %v3043 = vadd.f32 0.0, %v3042
      %v3044 = vpop.f32.mrb[0].mxu0
      %v3045 = vpop.f32.mrb[0].mxu0
      %v3046 = vadd.f32 0.0, %v3045
      %v3047 = vpop.f32.mrb[0].mxu0
      %3048 = vmatprep.mubr.bf16.mxu0 0
      %3049 = vmatmul.mubr.bf16.gmra.mrb[0].mxu0 %v2907
      %v3050 = vpop.f32.mrb[0].mxu0
      %v3051 = vadd.f32 0.0, %v3050
      %v3052 = vpop.f32.mrb[0].mxu0
      %v3053 = vpop.f32.mrb[0].mxu0
      %v3054 = vadd.f32 0.0, %v3053
      %v3055 = vpop.f32.mrb[0].mxu0
      %3056 = vdwg.mxu0
      %v3057 = vadd.f32 %v2804, %v2947
      %v3058 = vadd.f32 %v2805, %v2950
      %v3059 = vadd.f32 %v2806, %v2955
      %v3060 = vadd.f32 %v2807, %v2958
      %v3061 = vadd.f32 %v2808, %v2963
      %v3062 = vadd.f32 %v2809, %v2966
      %v3063 = vadd.f32 %v2810, %v2971
      %v3064 = vadd.f32 %v2811, %v2974
      %v3065 = vadd.f32 %v2812, %v2979
      %v3066 = vadd.f32 %v2813, %v2982
      %v3067 = vadd.f32 %v2814, %v2987
      %v3068 = vadd.f32 %v2815, %v2990
      %v3069 = vadd.f32 %v2816, %v2995
      %v3070 = vadd.f32 %v2817, %v2998
      %v3071 = vadd.f32 %v2818, %v3003
      %v3072 = vadd.f32 %v2819, %v3006
      %v3073 = vadd.f32 %v2820, %v3011
      %v3074 = vadd.f32 %v2821, %v3014
      %v3075 = vadd.f32 %v2822, %v3019
      %v3076 = vadd.f32 %v2823, %v3022
      %v3077 = vadd.f32 %v2824, %v3027
      %v3078 = vadd.f32 %v2825, %v3030
      %v3079 = vadd.f32 %v2826, %v3035
      %v3080 = vadd.f32 %v2827, %v3038
      %v3081 = vadd.f32 %v2828, %v3043
      %v3082 = vadd.f32 %v2829, %v3046
      %v3083 = vadd.f32 %v2830, %v3051
      %v3084 = vadd.f32 %v2831, %v3054
      %v3085 = vld [vmem:[%s213] sm:$0x1]
      %v3087 = vlaneseq
      %v3088 = vshrl.u32 %v3087, 7
      %v3089 = vsub.s32 0, %v3088
      %v3090 = vrot.slane %v3085, %v3089
      %v3092 = vadd.f32 %v3057, %v3090
      %v3093 = vadd.f32 %v3058, %v3090
      %v3094 = vadd.f32 %v3059, %v3090
      %v3095 = vadd.f32 %v3060, %v3090
      %v3096 = vadd.f32 %v3061, %v3090
      %v3097 = vadd.f32 %v3062, %v3090
      %v3098 = vadd.f32 %v3063, %v3090
      %v3099 = vadd.f32 %v3064, %v3090
      %v3100 = vadd.f32 %v3065, %v3090
      %v3101 = vadd.f32 %v3066, %v3090
      %v3102 = vadd.f32 %v3067, %v3090
      %v3103 = vadd.f32 %v3068, %v3090
      %v3104 = vadd.f32 %v3069, %v3090
      %v3105 = vadd.f32 %v3070, %v3090
      %v3106 = vadd.f32 %v3071, %v3090
      %v3107 = vadd.f32 %v3072, %v3090
      %v3108 = vadd.f32 %v3073, %v3090
      %v3109 = vadd.f32 %v3074, %v3090
      %v3110 = vadd.f32 %v3075, %v3090
      %v3111 = vadd.f32 %v3076, %v3090
      %v3112 = vadd.f32 %v3077, %v3090
      %v3113 = vadd.f32 %v3078, %v3090
      %v3114 = vadd.f32 %v3079, %v3090
      %v3115 = vadd.f32 %v3080, %v3090
      %v3116 = vadd.f32 %v3081, %v3090
      %v3117 = vadd.f32 %v3082, %v3090
      %v3118 = vadd.f32 %v3083, %v3090
      %v3119 = vadd.f32 %v3084, %v3090
      %v3120 = vmax.f32 %v3092, 0.0
      %v3121 = vmax.f32 %v3093, 0.0
      %v3122 = vmax.f32 %v3094, 0.0
      %v3123 = vmax.f32 %v3095, 0.0
      %v3124 = vmax.f32 %v3096, 0.0
      %v3125 = vmax.f32 %v3097, 0.0
      %v3126 = vmax.f32 %v3098, 0.0
      %v3127 = vmax.f32 %v3099, 0.0
      %v3128 = vmax.f32 %v3100, 0.0
      %v3129 = vmax.f32 %v3101, 0.0
      %v3130 = vmax.f32 %v3102, 0.0
      %v3131 = vmax.f32 %v3103, 0.0
      %v3132 = vmax.f32 %v3104, 0.0
      %v3133 = vmax.f32 %v3105, 0.0
      %v3134 = vmax.f32 %v3106, 0.0
      %v3135 = vmax.f32 %v3107, 0.0
      %v3136 = vmax.f32 %v3108, 0.0
      %v3137 = vmax.f32 %v3109, 0.0
      %v3138 = vmax.f32 %v3110, 0.0
      %v3139 = vmax.f32 %v3111, 0.0
      %v3140 = vmax.f32 %v3112, 0.0
      %v3141 = vmax.f32 %v3113, 0.0
      %v3142 = vmax.f32 %v3114, 0.0
      %v3143 = vmax.f32 %v3115, 0.0
      %v3144 = vmax.f32 %v3116, 0.0
      %v3145 = vmax.f32 %v3117, 0.0
      %v3146 = vmax.f32 %v3118, 0.0
      %v3147 = vmax.f32 %v3119, 0.0
      %vm3148 = vcmask 130048
      %3149 = vst.msk [vmem:[%s221] sm:$0xff] %vm3148, %v3120
      %3150 = vst.msk [vmem:[%s221 + $0x8] sm:$0xff] %vm3148, %v3121
      %3151 = vst.msk [vmem:[%s221 + $0x10] sm:$0xff] %vm3148, %v3122
      %3152 = vst.msk [vmem:[%s221 + $0x18] sm:$0xff] %vm3148, %v3123
      %3153 = vst.msk [vmem:[%s221 + $0x20] sm:$0xff] %vm3148, %v3124
      %3154 = vst.msk [vmem:[%s221 + $0x28] sm:$0xff] %vm3148, %v3125
      %3155 = vst.msk [vmem:[%s221 + $0x30] sm:$0xff] %vm3148, %v3126
      %3156 = vst.msk [vmem:[%s221 + $0x38] sm:$0xff] %vm3148, %v3127
      %3157 = vst.msk [vmem:[%s221 + $0x40] sm:$0xff] %vm3148, %v3128
      %3158 = vst.msk [vmem:[%s221 + $0x48] sm:$0xff] %vm3148, %v3129
      %3159 = vst.msk [vmem:[%s221 + $0x50] sm:$0xff] %vm3148, %v3130
      %3160 = vst.msk [vmem:[%s221 + $0x58] sm:$0xff] %vm3148, %v3131
      %3161 = vst.msk [vmem:[%s221 + $0x60] sm:$0xff] %vm3148, %v3132
      %3162 = vst.msk [vmem:[%s221 + $0x68] sm:$0xff] %vm3148, %v3133
      %3163 = vst.msk [vmem:[%s221 + $0x70] sm:$0xff] %vm3148, %v3134
      %3164 = vst.msk [vmem:[%s221 + $0x78] sm:$0xff] %vm3148, %v3135
      %3165 = vst.msk [vmem:[%s221 + $0x80] sm:$0xff] %vm3148, %v3136
      %3166 = vst.msk [vmem:[%s221 + $0x88] sm:$0xff] %vm3148, %v3137
      %3167 = vst.msk [vmem:[%s221 + $0x90] sm:$0xff] %vm3148, %v3138
      %3168 = vst.msk [vmem:[%s221 + $0x98] sm:$0xff] %vm3148, %v3139
      %3169 = vst.msk [vmem:[%s221 + $0xa0] sm:$0xff] %vm3148, %v3140
      %3170 = vst.msk [vmem:[%s221 + $0xa8] sm:$0xff] %vm3148, %v3141
      %3171 = vst.msk [vmem:[%s221 + $0xb0] sm:$0xff] %vm3148, %v3142
      %3172 = vst.msk [vmem:[%s221 + $0xb8] sm:$0xff] %vm3148, %v3143
      %3173 = vst.msk [vmem:[%s221 + $0xc0] sm:$0xff] %vm3148, %v3144
      %3174 = vst.msk [vmem:[%s221 + $0xc8] sm:$0xff] %vm3148, %v3145
      %3175 = vst.msk [vmem:[%s221 + $0xd0] sm:$0xff] %vm3148, %v3146
      %3176 = vst.msk [vmem:[%s221 + $0xd8] sm:$0xff] %vm3148, %v3147
      %p3177 = scmp.lt.s32.totalorder %s18, 1
      %s3178 = scalar_select %p3177, %s18, 1
      %p3179 = scmp.lt.s32.totalorder %s19, 0
      %s3180 = scalar_select %p3179, %s19, 0
      %s3181 = smul.addr %s3178, 28
      %s3182 = sadd.s32 %s3180, %s3181
      %s3183 = smul.addr %s3182, 8
      %s3184 = scalar_lea.vmem %s3, %s3183
      // Predicated region
      $region33: #{depthwise_xcorr_forward.4} parent=31 // pred_check
        %p3185 = pneg %p124
      $region34: #{depthwise_xcorr_forward.4} parent=31 // pred_check_branch
        %3187 = sbr.rel (%p3185) target = $region36
      $region35: #{depthwise_xcorr_forward.4} parent=31 // pred_region
        _
      $region36: #{depthwise_xcorr_forward.4} parent=31 // pred_fallthru
        _
    $region32: #{depthwise_xcorr_forward.4} parent=5 // pred_fallthru
      _
    %p3188 = scmp.le.s32.totalorder 2, %s9
    // Predicated region
    $region37: #{depthwise_xcorr_forward.4} parent=5 // pred_check
      %p3189 = pneg %p3188
    $region38: #{depthwise_xcorr_forward.4} parent=5 // pred_check_branch
      %3191 = sbr.rel (%p3189) target = $region40
    $region39: #{depthwise_xcorr_forward.4} parent=5 // pred_region
      %s3192 = ssub.s32 %s9, 2
      // Predicated region
      $region41: #{depthwise_xcorr_forward.4} parent=39 // pred_check
        %p3193 = pneg %p130
      $region42: #{depthwise_xcorr_forward.4} parent=39 // pred_check_branch
        %3195 = sbr.rel (%p3193) target = $region44
      $region43: #{depthwise_xcorr_forward.4} parent=39 // pred_region
        %p3196 = scmp.lt.s32.totalorder %s20, 1
        %s3197 = scalar_select %p3196, %s20, 1
        %p3198 = scmp.lt.s32.totalorder %s21, 0
        %s3199 = scalar_select %p3198, %s21, 0
        %s3200 = smul.addr %s3197, 28
        %s3201 = sadd.s32 %s3199, %s3200
        %s3202 = smul.addr %s3201, 8
        %s3203 = scalar_lea.vmem %s3, %s3202
      $region44: #{depthwise_xcorr_forward.4} parent=39 // pred_fallthru
        _
    $region40: #{depthwise_xcorr_forward.4} parent=5 // pred_fallthru
      _
  $region6: #{depthwise_xcorr_forward.4} parent=0 // loop_footer
    %s13 = sadd.s32 1, %s9
  $region7: #{depthwise_xcorr_forward.4} parent=0 // loop_footer_branch
    %8 = sbr.rel target = $region3
  $region8: #{depthwise_xcorr_forward.4} parent=0 // loop_exit
    _

// kernel: depthwise_xcorr_forward.5
$region0: #{depthwise_xcorr_forward.5}
  #allocation0 [shape = 'u32[]', space=smem, size = 0x4, offset = 0x4, fixed_abs, tag = 'smem constant byte address 0x4 - core index']
  #allocation1 [shape = 'u32[144,128]{1,0:T(1,128)}', space=vmem, size = 0x12000, scoped, tag = 'internal scratch']
  %s0 = inlined_call_operand.vmem [shape: f32[2,14,16,16], index: 0, kind: input, shape index: {}]
  %s1 = inlined_call_operand.vmem [shape: f32[2,6,8,16], index: 1, kind: input, shape index: {}]
  %s2 = inlined_call_operand.vmem [shape: bf16[16,16], index: 2, kind: input, shape index: {}]
  %s3 = inlined_call_operand.vmem [shape: f32[1,16], index: 3, kind: input, shape index: {}]
  %s4 = inlined_call_operand.vmem [shape: bf16[16,128], index: 4, kind: input, shape index: {}]
  %s5 = inlined_call_operand.vmem [shape: f32[1,128], index: 5, kind: input, shape index: {}]
  %s6 = inlined_call_operand.vmem [shape: f32[2,9,9,128], index: 6, kind: output, shape index: {}]
  %s7 = sld [smem:[#allocation0]]
  $region57: #{depthwise_xcorr_forward.5} parent=0
    _
  %s9 = ssub.s32 1, %s7
  %s10 = scalar_select 0, %s9, %s7
  loop: start=0, step=1, limit=8
  $region2: #{depthwise_xcorr_forward.5} parent=0 // loop_pre_header
    _
  $region3: #{depthwise_xcorr_forward.5} parent=0 // loop_header
    %s12 = sphi 0, %s16
    %p13 = scmp.ge.s32.totalorder %s12, 8
    %s19 = sphi 0, %s31
    %s20 = sphi 0, %s27
    %s21 = sphi 0, %s19
    %s22 = sphi 0, %s20
    %s23 = sphi 0, %s21
    %s24 = sphi 0, %s22
    %s34 = sphi 0, %s36
    %s37 = sphi 0, %s34
    %s38 = sphi 0, %s37
    %s54 = sphi 0, %s38
    %s60 = sphi 0, %s62
    %s63 = sphi 0, %s60
    %s64 = sphi 0, %s63
    %s80 = sphi 0, %s64
    %s84 = sphi 0, %s84
    %s86 = sphi 0, %s84
    %s87 = sphi 0, %s86
    %s101 = sphi 0, %s87
    %s105 = sphi 0, %s105
    %s107 = sphi 0, %s105
    %s108 = sphi 0, %s107
    %s122 = sphi 0, %s108
    %s126 = sphi 0, %s126
    %s128 = sphi 0, %s126
    %s129 = sphi 0, %s128
    %s143 = sphi 0, %s129
    %s147 = sphi 0, %s147
    %s149 = sphi 0, %s147
    %s150 = sphi 0, %s149
    %s164 = sphi 0, %s150
    %s172 = sphi 0, %s174
    %s175 = sphi 0, %s172
    %s176 = sphi 0, %s175
    %s192 = sphi 0, %s176
  $region4: #{depthwise_xcorr_forward.5} parent=0 // loop_header_branch
    %15 = sbr.rel (%p13) target = $region8
  $region5: #{depthwise_xcorr_forward.5} parent=0 // loop_body
    %s17 = ssub.s32 %s12, 1
    %s18 = ssub.s32 %s12, 2
    %s25 = sadd.s32 1, %s20
    %p26 = scmp.ge.s32.totalorder %s25, 3
    %s27 = scalar_select %p26, 0, %s25
    %s28 = sadd.s32 1, %s19
    %s29 = scalar_select %p26, %s28, %s19
    %p30 = scmp.ge.s32.totalorder %s29, 2
    %s31 = scalar_select %p30, 0, %s29
    %s32 = ssub.s32 %s19, %s31
    %p33 = scmp.eq.s32.totalorder %s32, 0
    %s35 = sadd.s32 %s34, 1
    %s36 = scalar_select %p33, %s34, %s35
    %p39 = pneg %p33
    %p40 = scmp.eq.s32.totalorder %s12, 5
    %p41 = por %p39, %p40
    %p42 = scmp.ne.s32.totalorder %s34, %s37
    %p43 = scmp.eq.s32.totalorder %s12, 0
    %p44 = por %p42, %p43
    %p45 = scmp.ne.s32.totalorder %s34, %s37
    %p46 = scmp.eq.s32.totalorder %s17, 5
    %p47 = por %p45, %p46
    %p48 = scmp.ne.s32.totalorder %s37, %s38
    %p49 = scmp.eq.s32.totalorder %s17, 0
    %p50 = por %p48, %p49
    %p51 = scmp.ne.s32.totalorder %s37, %s38
    %p52 = scmp.eq.s32.totalorder %s18, 5
    %p53 = por %p51, %p52
    %p55 = scmp.ne.s32.totalorder %s38, %s54
    %p56 = scmp.eq.s32.totalorder %s18, 0
    %p57 = por %p55, %p56
    %s58 = ssub.s32 %s19, %s31
    %p59 = scmp.eq.s32.totalorder %s58, 0
    %s61 = sadd.s32 %s60, 1
    %s62 = scalar_select %p59, %s60, %s61
    %p65 = pneg %p59
    %p66 = scmp.eq.s32.totalorder %s12, 5
    %p67 = por %p65, %p66
    %p68 = scmp.ne.s32.totalorder %s60, %s63
    %p69 = scmp.eq.s32.totalorder %s12, 0
    %p70 = por %p68, %p69
    %p71 = scmp.ne.s32.totalorder %s60, %s63
    %p72 = scmp.eq.s32.totalorder %s17, 5
    %p73 = por %p71, %p72
    %p74 = scmp.ne.s32.totalorder %s63, %s64
    %p75 = scmp.eq.s32.totalorder %s17, 0
    %p76 = por %p74, %p75
    %p77 = scmp.ne.s32.totalorder %s63, %s64
    %p78 = scmp.eq.s32.totalorder %s18, 5
    %p79 = por %p77, %p78
    %p81 = scmp.ne.s32.totalorder %s64, %s80
    %p82 = scmp.eq.s32.totalorder %s18, 0
    %p83 = por %p81, %p82
    %s85 = sadd.s32 %s84, 1
    %p88 = scmp.eq.s32.totalorder %s12, 5
    %p89 = scmp.ne.s32.totalorder %s84, %s86
    %p90 = scmp.eq.s32.totalorder %s12, 0
    %p91 = por %p89, %p90
    %p92 = scmp.ne.s32.totalorder %s84, %s86
    %p93 = scmp.eq.s32.totalorder %s17, 5
    %p94 = por %p92, %p93
    %p95 = scmp.ne.s32.totalorder %s86, %s87
    %p96 = scmp.eq.s32.totalorder %s17, 0
    %p97 = por %p95, %p96
    %p98 = scmp.ne.s32.totalorder %s86, %s87
    %p99 = scmp.eq.s32.totalorder %s18, 5
    %p100 = por %p98, %p99
    %p102 = scmp.ne.s32.totalorder %s87, %s101
    %p103 = scmp.eq.s32.totalorder %s18, 0
    %p104 = por %p102, %p103
    %s106 = sadd.s32 %s105, 1
    %p109 = scmp.eq.s32.totalorder %s12, 5
    %p110 = scmp.ne.s32.totalorder %s105, %s107
    %p111 = scmp.eq.s32.totalorder %s12, 0
    %p112 = por %p110, %p111
    %p113 = scmp.ne.s32.totalorder %s105, %s107
    %p114 = scmp.eq.s32.totalorder %s17, 5
    %p115 = por %p113, %p114
    %p116 = scmp.ne.s32.totalorder %s107, %s108
    %p117 = scmp.eq.s32.totalorder %s17, 0
    %p118 = por %p116, %p117
    %p119 = scmp.ne.s32.totalorder %s107, %s108
    %p120 = scmp.eq.s32.totalorder %s18, 5
    %p121 = por %p119, %p120
    %p123 = scmp.ne.s32.totalorder %s108, %s122
    %p124 = scmp.eq.s32.totalorder %s18, 0
    %p125 = por %p123, %p124
    %s127 = sadd.s32 %s126, 1
    %p130 = scmp.eq.s32.totalorder %s12, 5
    %p131 = scmp.ne.s32.totalorder %s126, %s128
    %p132 = scmp.eq.s32.totalorder %s12, 0
    %p133 = por %p131, %p132
    %p134 = scmp.ne.s32.totalorder %s126, %s128
    %p135 = scmp.eq.s32.totalorder %s17, 5
    %p136 = por %p134, %p135
    %p137 = scmp.ne.s32.totalorder %s128, %s129
    %p138 = scmp.eq.s32.totalorder %s17, 0
    %p139 = por %p137, %p138
    %p140 = scmp.ne.s32.totalorder %s128, %s129
    %p141 = scmp.eq.s32.totalorder %s18, 5
    %p142 = por %p140, %p141
    %p144 = scmp.ne.s32.totalorder %s129, %s143
    %p145 = scmp.eq.s32.totalorder %s18, 0
    %p146 = por %p144, %p145
    %s148 = sadd.s32 %s147, 1
    %p151 = scmp.eq.s32.totalorder %s12, 5
    %p152 = scmp.ne.s32.totalorder %s147, %s149
    %p153 = scmp.eq.s32.totalorder %s12, 0
    %p154 = por %p152, %p153
    %p155 = scmp.ne.s32.totalorder %s147, %s149
    %p156 = scmp.eq.s32.totalorder %s17, 5
    %p157 = por %p155, %p156
    %p158 = scmp.ne.s32.totalorder %s149, %s150
    %p159 = scmp.eq.s32.totalorder %s17, 0
    %p160 = por %p158, %p159
    %p161 = scmp.ne.s32.totalorder %s149, %s150
    %p162 = scmp.eq.s32.totalorder %s18, 5
    %p163 = por %p161, %p162
    %p165 = scmp.ne.s32.totalorder %s150, %s164
    %p166 = scmp.eq.s32.totalorder %s18, 0
    %p167 = por %p165, %p166
    %s168 = ssub.s32 %s19, %s31
    %s169 = ssub.s32 %s20, %s27
    %s170 = sor.u32 %s168, %s169
    %p171 = scmp.eq.s32.totalorder %s170, 0
    %s173 = sadd.s32 %s172, 1
    %s174 = scalar_select %p171, %s172, %s173
    %p177 = pneg %p171
    %p178 = scmp.eq.s32.totalorder %s12, 5
    %p179 = por %p177, %p178
    %p180 = scmp.ne.s32.totalorder %s172, %s175
    %p181 = scmp.eq.s32.totalorder %s12, 0
    %p182 = por %p180, %p181
    %p183 = scmp.ne.s32.totalorder %s172, %s175
    %p184 = scmp.eq.s32.totalorder %s17, 5
    %p185 = por %p183, %p184
    %p186 = scmp.ne.s32.totalorder %s175, %s176
    %p187 = scmp.eq.s32.totalorder %s17, 0
    %p188 = por %p186, %p187
    %p189 = scmp.ne.s32.totalorder %s175, %s176
    %p190 = scmp.eq.s32.totalorder %s18, 5
    %p191 = por %p189, %p190
    %p193 = scmp.ne.s32.totalorder %s176, %s192
    %p194 = scmp.eq.s32.totalorder %s18, 0
    %p195 = por %p193, %p194
    %p196 = scmp.le.s32.totalorder 1, %s12
    %p197 = scmp.lt.s32.totalorder %s12, 7
    %p198 = pnand %p196, %p197
    %p199 = pneg %p198
    // Predicated region
    $region9: #{depthwise_xcorr_forward.5} parent=5 // pred_check
      _
    $region10: #{depthwise_xcorr_forward.5} parent=5 // pred_check_branch
      %201 = sbr.rel (%p198) target = $region12
    $region11: #{depthwise_xcorr_forward.5} parent=5 // pred_region
      %s202 = ssub.s32 %s12, 1
      // Predicated region
      $region13: #{depthwise_xcorr_forward.5} parent=11 // pred_check
        %p203 = pneg %p97
      $region14: #{depthwise_xcorr_forward.5} parent=11 // pred_check_branch
        %205 = sbr.rel (%p203) target = $region16
      $region15: #{depthwise_xcorr_forward.5} parent=11 // pred_region
        _
      $region16: #{depthwise_xcorr_forward.5} parent=11 // pred_fallthru
        _
      // Predicated region
      $region17: #{depthwise_xcorr_forward.5} parent=11 // pred_check
        %p206 = pneg %p118
      $region18: #{depthwise_xcorr_forward.5} parent=11 // pred_check_branch
        %208 = sbr.rel (%p206) target = $region20
      $region19: #{depthwise_xcorr_forward.5} parent=11 // pred_region
        _
      $region20: #{depthwise_xcorr_forward.5} parent=11 // pred_fallthru
        _
      // Predicated region
      $region21: #{depthwise_xcorr_forward.5} parent=11 // pred_check
        %p209 = pneg %p139
      $region22: #{depthwise_xcorr_forward.5} parent=11 // pred_check_branch
        %211 = sbr.rel (%p209) target = $region24
      $region23: #{depthwise_xcorr_forward.5} parent=11 // pred_region
        _
      $region24: #{depthwise_xcorr_forward.5} parent=11 // pred_fallthru
        _
      // Predicated region
      $region25: #{depthwise_xcorr_forward.5} parent=11 // pred_check
        %p212 = pneg %p160
      $region26: #{depthwise_xcorr_forward.5} parent=11 // pred_check_branch
        %214 = sbr.rel (%p212) target = $region28
      $region27: #{depthwise_xcorr_forward.5} parent=11 // pred_region
        _
      $region28: #{depthwise_xcorr_forward.5} parent=11 // pred_fallthru
        _
    $region12: #{depthwise_xcorr_forward.5} parent=5 // pred_fallthru
      _
    %p215 = scmp.lt.s32.totalorder %s12, 6
    // Predicated region
    $region29: #{depthwise_xcorr_forward.5} parent=5 // pred_check
      %p216 = pneg %p215
    $region30: #{depthwise_xcorr_forward.5} parent=5 // pred_check_branch
      %218 = sbr.rel (%p216) target = $region32
    $region31: #{depthwise_xcorr_forward.5} parent=5 // pred_region
      // Predicated region
      $region33: #{depthwise_xcorr_forward.5} parent=31 // pred_check
        %p219 = pneg %p44
      $region34: #{depthwise_xcorr_forward.5} parent=31 // pred_check_branch
        %221 = sbr.rel (%p219) target = $region36
      $region35: #{depthwise_xcorr_forward.5} parent=31 // pred_region
        %p222 = scmp.lt.s32.totalorder %s19, 1
        %s223 = scalar_select %p222, %s19, 1
        %s224 = smul.addr %s223, 28
        %s225 = smul.addr %s224, 8
        %s226 = scalar_lea.vmem %s0, %s225
      $region36: #{depthwise_xcorr_forward.5} parent=31 // pred_fallthru
        _
      // Predicated region
      $region37: #{depthwise_xcorr_forward.5} parent=31 // pred_check
        %p227 = pneg %p70
      $region38: #{depthwise_xcorr_forward.5} parent=31 // pred_check_branch
        %229 = sbr.rel (%p227) target = $region40
      $region39: #{depthwise_xcorr_forward.5} parent=31 // pred_region
        %p230 = scmp.lt.s32.totalorder %s19, 1
        %s231 = scalar_select %p230, %s19, 1
        %s232 = smul.addr %s231, 6
        %s233 = smul.addr %s232, 8
        %s234 = scalar_lea.vmem %s1, %s233
      $region40: #{depthwise_xcorr_forward.5} parent=31 // pred_fallthru
        _
    $region32: #{depthwise_xcorr_forward.5} parent=5 // pred_fallthru
      _
    %p235 = scmp.le.s32.totalorder 1, %s12
    %p236 = scmp.lt.s32.totalorder %s12, 7
    %p237 = pnand %p235, %p236
    %p238 = pneg %p237
    // Predicated region
    $region41: #{depthwise_xcorr_forward.5} parent=5 // pred_check
      _
    $region42: #{depthwise_xcorr_forward.5} parent=5 // pred_check_branch
      %240 = sbr.rel (%p237) target = $region44
    $region43: #{depthwise_xcorr_forward.5} parent=5 // pred_region
      %s241 = ssub.s32 %s12, 1
      %p242 = scmp.lt.s32.totalorder %s21, 1
      %s243 = scalar_select %p242, %s21, 1
      %s244 = smul.addr %s243, 28
      %s245 = smul.addr %s244, 8
      %s246 = scalar_lea.vmem %s0, %s245
      %p247 = pneg %p50
      %p248 = pneg %p47
      %p249 = scmp.lt.s32.totalorder %s21, 1
      %s250 = scalar_select %p249, %s21, 1
      %s251 = smul.addr %s250, 6
      %s252 = smul.addr %s251, 8
      %s253 = scalar_lea.vmem %s1, %s252
      %p254 = pneg %p76
      %p255 = pneg %p73
      %p256 = pneg %p97
      %p257 = pneg %p94
      %p258 = pneg %p118
      %p259 = pneg %p115
      %p260 = pneg %p139
      %p261 = pneg %p136
      %p262 = pneg %p160
      %p263 = pneg %p157
      %p264 = pneg %p188
      %p265 = pneg %p185
      %s266 = smul.u32 3, %s22
      %p267 = scmp.lt.s32.totalorder %s21, 1
      %s268 = scalar_select %p267, %s21, 1
      %p269 = scmp.lt.s32.totalorder %s266, 8
      %s270 = scalar_select %p269, %s266, 8
      %s271 = smul.addr %s270, 2
      %s272 = smul.addr %s268, 18
      %s273 = sadd.s32 %s271, %s272
      %s274 = smul.addr %s273, 8
      %s275 = scalar_lea.vmem %s6, %s274
      %p276 = scmp.lt.s32.totalorder %s21, 1
      %s277 = scalar_select %p276, %s21, 1
      %s278 = smul.addr %s277, 28
      %s279 = smul.addr %s278, 8
      %s280 = scalar_lea.vmem %s0, %s279
      %p281 = scmp.lt.s32.totalorder %s21, 1
      %s282 = scalar_select %p281, %s21, 1
      %s283 = smul.addr %s282, 6
      %s284 = smul.addr %s283, 8
      %s285 = scalar_lea.vmem %s1, %s284
      %s286 = smul.u32 3, %s22
      %p287 = scmp.lt.s32.totalorder %s21, 1
      %s288 = scalar_select %p287, %s21, 1
      %p289 = scmp.lt.s32.totalorder %s286, 8
      %s290 = scalar_select %p289, %s286, 8
      %s291 = smul.addr %s290, 2
      %s292 = smul.addr %s288, 18
      %s293 = sadd.s32 %s291, %s292
      %s294 = smul.addr %s293, 8
      %s295 = scalar_lea.vmem %s6, %s294
      %s296 = smul.u32 3, %s22
      %s298 = smul.u32 %s22, 3
      %s299 = smul.u32 %s298, 16
      %s300 = scalar_lea.vmem %s280, %s299
      %v301 = vld [vmem:[%s300] sm:$0xff]
      %v302 = vld [vmem:[%s300 + $0x8] sm:$0x1]
      %v303 = vld [vmem:[%s300 + $0x10] sm:$0xff]
      %v304 = vld [vmem:[%s300 + $0x18] sm:$0x1]
      %v305 = vld [vmem:[%s300 + $0x20] sm:$0xff]
      %v306 = vld [vmem:[%s300 + $0x28] sm:$0x1]
      %v307 = vld [vmem:[%s285] sm:$0x1]
      %v308 = vlaneseq
      %v309 = vshrl.u32 %v308, 7
      %v310 = vsub.s32 0, %v309
      %v311 = vrot.slane %v307, %v310
      %v312 = vmul.f32 %v301, %v311
      %v313 = vmul.f32 %v302, %v311
      %v314 = vmul.f32 %v303, %v311
      %v315 = vmul.f32 %v304, %v311
      %v316 = vmul.f32 %v305, %v311
      %v317 = vmul.f32 %v306, %v311
      %v318 = vld [vmem:[%s300 + $0x1] sm:$0xff]
      %v319 = vld [vmem:[%s300 + $0x9] sm:$0x1]
      %v320 = vld [vmem:[%s300 + $0x11] sm:$0xff]
      %v321 = vld [vmem:[%s300 + $0x19] sm:$0x1]
      %v322 = vld [vmem:[%s300 + $0x21] sm:$0xff]
      %v323 = vld [vmem:[%s300 + $0x29] sm:$0x1]
      %v324 = vld [vmem:[%s285 + $0x1] sm:$0x1]
      %v325 = vlaneseq
      %v326 = vshrl.u32 %v325, 7
      %v327 = vsub.s32 0, %v326
      %v328 = vrot.slane %v324, %v327
      %v329 = vmul.f32 %v318, %v328
      %v330 = vmul.f32 %v319, %v328
      %v331 = vmul.f32 %v320, %v328
      %v332 = vmul.f32 %v321, %v328
      %v333 = vmul.f32 %v322, %v328
      %v334 = vmul.f32 %v323, %v328
      %v335 = vadd.f32 %v312, %v329
      %v336 = vadd.f32 %v313, %v330
      %v337 = vadd.f32 %v314, %v331
      %v338 = vadd.f32 %v315, %v332
      %v339 = vadd.f32 %v316, %v333
      %v340 = vadd.f32 %v317, %v334
      %v341 = vld [vmem:[%s300 + $0x2] sm:$0xff]
      %v342 = vld [vmem:[%s300 + $0xa] sm:$0x1]
      %v343 = vld [vmem:[%s300 + $0x12] sm:$0xff]
      %v344 = vld [vmem:[%s300 + $0x1a] sm:$0x1]
      %v345 = vld [vmem:[%s300 + $0x22] sm:$0xff]
      %v346 = vld [vmem:[%s300 + $0x2a] sm:$0x1]
      %v347 = vld [vmem:[%s285 + $0x2] sm:$0x1]
      %v348 = vlaneseq
      %v349 = vshrl.u32 %v348, 7
      %v350 = vsub.s32 0, %v349
      %v351 = vrot.slane %v347, %v350
      %v352 = vmul.f32 %v341, %v351
      %v353 = vmul.f32 %v342, %v351
      %v354 = vmul.f32 %v343, %v351
      %v355 = vmul.f32 %v344, %v351
      %v356 = vmul.f32 %v345, %v351
      %v357 = vmul.f32 %v346, %v351
      %v358 = vadd.f32 %v335, %v352
      %v359 = vadd.f32 %v336, %v353
      %v360 = vadd.f32 %v337, %v354
      %v361 = vadd.f32 %v338, %v355
      %v362 = vadd.f32 %v339, %v356
      %v363 = vadd.f32 %v340, %v357
      %v364 = vld [vmem:[%s300 + $0x3] sm:$0xff]
      %v365 = vld [vmem:[%s300 + $0xb] sm:$0x1]
      %v366 = vld [vmem:[%s300 + $0x13] sm:$0xff]
      %v367 = vld [vmem:[%s300 + $0x1b] sm:$0x1]
      %v368 = vld [vmem:[%s300 + $0x23] sm:$0xff]
      %v369 = vld [vmem:[%s300 + $0x2b] sm:$0x1]
      %v370 = vld [vmem:[%s285 + $0x3] sm:$0x1]
      %v371 = vlaneseq
      %v372 = vshrl.u32 %v371, 7
      %v373 = vsub.s32 0, %v372
      %v374 = vrot.slane %v370, %v373
      %v375 = vmul.f32 %v364, %v374
      %v376 = vmul.f32 %v365, %v374
      %v377 = vmul.f32 %v366, %v374
      %v378 = vmul.f32 %v367, %v374
      %v379 = vmul.f32 %v368, %v374
      %v380 = vmul.f32 %v369, %v374
      %v381 = vadd.f32 %v358, %v375
      %v382 = vadd.f32 %v359, %v376
      %v383 = vadd.f32 %v360, %v377
      %v384 = vadd.f32 %v361, %v378
      %v385 = vadd.f32 %v362, %v379
      %v386 = vadd.f32 %v363, %v380
      %v387 = vld [vmem:[%s300 + $0x4] sm:$0xff]
      %v388 = vld [vmem:[%s300 + $0xc] sm:$0x1]
      %v389 = vld [vmem:[%s300 + $0x14] sm:$0xff]
      %v390 = vld [vmem:[%s300 + $0x1c] sm:$0x1]
      %v391 = vld [vmem:[%s300 + $0x24] sm:$0xff]
      %v392 = vld [vmem:[%s300 + $0x2c] sm:$0x1]
      %v393 = vld [vmem:[%s285 + $0x4] sm:$0x1]
      %v394 = vlaneseq
      %v395 = vshrl.u32 %v394, 7
      %v396 = vsub.s32 0, %v395
      %v397 = vrot.slane %v393, %v396
      %v398 = vmul.f32 %v387, %v397
      %v399 = vmul.f32 %v388, %v397
      %v400 = vmul.f32 %v389, %v397
      %v401 = vmul.f32 %v390, %v397
      %v402 = vmul.f32 %v391, %v397
      %v403 = vmul.f32 %v392, %v397
      %v404 = vadd.f32 %v381, %v398
      %v405 = vadd.f32 %v382, %v399
      %v406 = vadd.f32 %v383, %v400
      %v407 = vadd.f32 %v384, %v401
      %v408 = vadd.f32 %v385, %v402
      %v409 = vadd.f32 %v386, %v403
      %v410 = vld [vmem:[%s300 + $0x5] sm:$0xff]
      %v411 = vld [vmem:[%s300 + $0xd] sm:$0x1]
      %v412 = vld [vmem:[%s300 + $0x15] sm:$0xff]
      %v413 = vld [vmem:[%s300 + $0x1d] sm:$0x1]
      %v414 = vld [vmem:[%s300 + $0x25] sm:$0xff]
      %v415 = vld [vmem:[%s300 + $0x2d] sm:$0x1]
      %v416 = vld [vmem:[%s285 + $0x5] sm:$0x1]
      %v417 = vlaneseq
      %v418 = vshrl.u32 %v417, 7
      %v419 = vsub.s32 0, %v418
      %v420 = vrot.slane %v416, %v419
      %v421 = vmul.f32 %v410, %v420
      %v422 = vmul.f32 %v411, %v420
      %v423 = vmul.f32 %v412, %v420
      %v424 = vmul.f32 %v413, %v420
      %v425 = vmul.f32 %v414, %v420
      %v426 = vmul.f32 %v415, %v420
      %v427 = vadd.f32 %v404, %v421
      %v428 = vadd.f32 %v405, %v422
      %v429 = vadd.f32 %v406, %v423
      %v430 = vadd.f32 %v407, %v424
      %v431 = vadd.f32 %v408, %v425
      %v432 = vadd.f32 %v409, %v426
      %s433 = sadd.s32 %s298, 1
      %s434 = smul.u32 %s433, 16
      %s435 = scalar_lea.vmem %s280, %s434
      %v436 = vld [vmem:[%s435] sm:$0xff]
      %v437 = vld [vmem:[%s435 + $0x8] sm:$0x1]
      %v438 = vld [vmem:[%s435 + $0x10] sm:$0xff]
      %v439 = vld [vmem:[%s435 + $0x18] sm:$0x1]
      %v440 = vld [vmem:[%s435 + $0x20] sm:$0xff]
      %v441 = vld [vmem:[%s435 + $0x28] sm:$0x1]
      %s442 = scalar_lea.vmem %s285, 8
      %v443 = vld [vmem:[%s442] sm:$0x1]
      %v444 = vlaneseq
      %v445 = vshrl.u32 %v444, 7
      %v446 = vsub.s32 0, %v445
      %v447 = vrot.slane %v443, %v446
      %v448 = vmul.f32 %v436, %v447
      %v449 = vmul.f32 %v437, %v447
      %v450 = vmul.f32 %v438, %v447
      %v451 = vmul.f32 %v439, %v447
      %v452 = vmul.f32 %v440, %v447
      %v453 = vmul.f32 %v441, %v447
      %v454 = vadd.f32 %v427, %v448
      %v455 = vadd.f32 %v428, %v449
      %v456 = vadd.f32 %v429, %v450
      %v457 = vadd.f32 %v430, %v451
      %v458 = vadd.f32 %v431, %v452
      %v459 = vadd.f32 %v432, %v453
      %v460 = vld [vmem:[%s435 + $0x1] sm:$0xff]
      %v461 = vld [vmem:[%s435 + $0x9] sm:$0x1]
      %v462 = vld [vmem:[%s435 + $0x11] sm:$0xff]
      %v463 = vld [vmem:[%s435 + $0x19] sm:$0x1]
      %v464 = vld [vmem:[%s435 + $0x21] sm:$0xff]
      %v465 = vld [vmem:[%s435 + $0x29] sm:$0x1]
      %v466 = vld [vmem:[%s442 + $0x1] sm:$0x1]
      %v467 = vlaneseq
      %v468 = vshrl.u32 %v467, 7
      %v469 = vsub.s32 0, %v468
      %v470 = vrot.slane %v466, %v469
      %v471 = vmul.f32 %v460, %v470
      %v472 = vmul.f32 %v461, %v470
      %v473 = vmul.f32 %v462, %v470
      %v474 = vmul.f32 %v463, %v470
      %v475 = vmul.f32 %v464, %v470
      %v476 = vmul.f32 %v465, %v470
      %v477 = vadd.f32 %v454, %v471
      %v478 = vadd.f32 %v455, %v472
      %v479 = vadd.f32 %v456, %v473
      %v480 = vadd.f32 %v457, %v474
      %v481 = vadd.f32 %v458, %v475
      %v482 = vadd.f32 %v459, %v476
      %v483 = vld [vmem:[%s435 + $0x2] sm:$0xff]
      %v484 = vld [vmem:[%s435 + $0xa] sm:$0x1]
      %v485 = vld [vmem:[%s435 + $0x12] sm:$0xff]
      %v486 = vld [vmem:[%s435 + $0x1a] sm:$0x1]
      %v487 = vld [vmem:[%s435 + $0x22] sm:$0xff]
      %v488 = vld [vmem:[%s435 + $0x2a] sm:$0x1]
      %v489 = vld [vmem:[%s442 + $0x2] sm:$0x1]
      %v490 = vlaneseq
      %v491 = vshrl.u32 %v490, 7
      %v492 = vsub.s32 0, %v491
      %v493 = vrot.slane %v489, %v492
      %v494 = vmul.f32 %v483, %v493
      %v495 = vmul.f32 %v484, %v493
      %v496 = vmul.f32 %v485, %v493
      %v497 = vmul.f32 %v486, %v493
      %v498 = vmul.f32 %v487, %v493
      %v499 = vmul.f32 %v488, %v493
      %v500 = vadd.f32 %v477, %v494
      %v501 = vadd.f32 %v478, %v495
      %v502 = vadd.f32 %v479, %v496
      %v503 = vadd.f32 %v480, %v497
      %v504 = vadd.f32 %v481, %v498
      %v505 = vadd.f32 %v482, %v499
      %v506 = vld [vmem:[%s435 + $0x3] sm:$0xff]
      %v507 = vld [vmem:[%s435 + $0xb] sm:$0x1]
      %v508 = vld [vmem:[%s435 + $0x13] sm:$0xff]
      %v509 = vld [vmem:[%s435 + $0x1b] sm:$0x1]
      %v510 = vld [vmem:[%s435 + $0x23] sm:$0xff]
      %v511 = vld [vmem:[%s435 + $0x2b] sm:$0x1]
      %v512 = vld [vmem:[%s442 + $0x3] sm:$0x1]
      %v513 = vlaneseq
      %v514 = vshrl.u32 %v513, 7
      %v515 = vsub.s32 0, %v514
      %v516 = vrot.slane %v512, %v515
      %v517 = vmul.f32 %v506, %v516
      %v518 = vmul.f32 %v507, %v516
      %v519 = vmul.f32 %v508, %v516
      %v520 = vmul.f32 %v509, %v516
      %v521 = vmul.f32 %v510, %v516
      %v522 = vmul.f32 %v511, %v516
      %v523 = vadd.f32 %v500, %v517
      %v524 = vadd.f32 %v501, %v518
      %v525 = vadd.f32 %v502, %v519
      %v526 = vadd.f32 %v503, %v520
      %v527 = vadd.f32 %v504, %v521
      %v528 = vadd.f32 %v505, %v522
      %v529 = vld [vmem:[%s435 + $0x4] sm:$0xff]
      %v530 = vld [vmem:[%s435 + $0xc] sm:$0x1]
      %v531 = vld [vmem:[%s435 + $0x14] sm:$0xff]
      %v532 = vld [vmem:[%s435 + $0x1c] sm:$0x1]
      %v533 = vld [vmem:[%s435 + $0x24] sm:$0xff]
      %v534 = vld [vmem:[%s435 + $0x2c] sm:$0x1]
      %v535 = vld [vmem:[%s442 + $0x4] sm:$0x1]
      %v536 = vlaneseq
      %v537 = vshrl.u32 %v536, 7
      %v538 = vsub.s32 0, %v537
      %v539 = vrot.slane %v535, %v538
      %v540 = vmul.f32 %v529, %v539
      %v541 = vmul.f32 %v530, %v539
      %v542 = vmul.f32 %v531, %v539
      %v543 = vmul.f32 %v532, %v539
      %v544 = vmul.f32 %v533, %v539
      %v545 = vmul.f32 %v534, %v539
      %v546 = vadd.f32 %v523, %v540
      %v547 = vadd.f32 %v524, %v541
      %v548 = vadd.f32 %v525, %v542
      %v549 = vadd.f32 %v526, %v543
      %v550 = vadd.f32 %v527, %v544
      %v551 = vadd.f32 %v528, %v545
      %v552 = vld [vmem:[%s435 + $0x5] sm:$0xff]
      %v553 = vld [vmem:[%s435 + $0xd] sm:$0x1]
      %v554 = vld [vmem:[%s435 + $0x15] sm:$0xff]
      %v555 = vld [vmem:[%s435 + $0x1d] sm:$0x1]
      %v556 = vld [vmem:[%s435 + $0x25] sm:$0xff]
      %v557 = vld [vmem:[%s435 + $0x2d] sm:$0x1]
      %v558 = vld [vmem:[%s442 + $0x5] sm:$0x1]
      %v559 = vlaneseq
      %v560 = vshrl.u32 %v559, 7
      %v561 = vsub.s32 0, %v560
      %v562 = vrot.slane %v558, %v561
      %v563 = vmul.f32 %v552, %v562
      %v564 = vmul.f32 %v553, %v562
      %v565 = vmul.f32 %v554, %v562
      %v566 = vmul.f32 %v555, %v562
      %v567 = vmul.f32 %v556, %v562
      %v568 = vmul.f32 %v557, %v562
      %v569 = vadd.f32 %v546, %v563
      %v570 = vadd.f32 %v547, %v564
      %v571 = vadd.f32 %v548, %v565
      %v572 = vadd.f32 %v549, %v566
      %v573 = vadd.f32 %v550, %v567
      %v574 = vadd.f32 %v551, %v568
      %s575 = sadd.s32 %s298, 2
      %s576 = smul.u32 %s575, 16
      %s577 = scalar_lea.vmem %s280, %s576
      %v578 = vld [vmem:[%s577] sm:$0xff]
      %v579 = vld [vmem:[%s577 + $0x8] sm:$0x1]
      %v580 = vld [vmem:[%s577 + $0x10] sm:$0xff]
      %v581 = vld [vmem:[%s577 + $0x18] sm:$0x1]
      %v582 = vld [vmem:[%s577 + $0x20] sm:$0xff]
      %v583 = vld [vmem:[%s577 + $0x28] sm:$0x1]
      %s584 = scalar_lea.vmem %s285, 16
      %v585 = vld [vmem:[%s584] sm:$0x1]
      %v586 = vlaneseq
      %v587 = vshrl.u32 %v586, 7
      %v588 = vsub.s32 0, %v587
      %v589 = vrot.slane %v585, %v588
      %v590 = vmul.f32 %v578, %v589
      %v591 = vmul.f32 %v579, %v589
      %v592 = vmul.f32 %v580, %v589
      %v593 = vmul.f32 %v581, %v589
      %v594 = vmul.f32 %v582, %v589
      %v595 = vmul.f32 %v583, %v589
      %v596 = vadd.f32 %v569, %v590
      %v597 = vadd.f32 %v570, %v591
      %v598 = vadd.f32 %v571, %v592
      %v599 = vadd.f32 %v572, %v593
      %v600 = vadd.f32 %v573, %v594
      %v601 = vadd.f32 %v574, %v595
      %v602 = vld [vmem:[%s577 + $0x1] sm:$0xff]
      %v603 = vld [vmem:[%s577 + $0x9] sm:$0x1]
      %v604 = vld [vmem:[%s577 + $0x11] sm:$0xff]
      %v605 = vld [vmem:[%s577 + $0x19] sm:$0x1]
      %v606 = vld [vmem:[%s577 + $0x21] sm:$0xff]
      %v607 = vld [vmem:[%s577 + $0x29] sm:$0x1]
      %v608 = vld [vmem:[%s584 + $0x1] sm:$0x1]
      %v609 = vlaneseq
      %v610 = vshrl.u32 %v609, 7
      %v611 = vsub.s32 0, %v610
      %v612 = vrot.slane %v608, %v611
      %v613 = vmul.f32 %v602, %v612
      %v614 = vmul.f32 %v603, %v612
      %v615 = vmul.f32 %v604, %v612
      %v616 = vmul.f32 %v605, %v612
      %v617 = vmul.f32 %v606, %v612
      %v618 = vmul.f32 %v607, %v612
      %v619 = vadd.f32 %v596, %v613
      %v620 = vadd.f32 %v597, %v614
      %v621 = vadd.f32 %v598, %v615
      %v622 = vadd.f32 %v599, %v616
      %v623 = vadd.f32 %v600, %v617
      %v624 = vadd.f32 %v601, %v618
      %v625 = vld [vmem:[%s577 + $0x2] sm:$0xff]
      %v626 = vld [vmem:[%s577 + $0xa] sm:$0x1]
      %v627 = vld [vmem:[%s577 + $0x12] sm:$0xff]
      %v628 = vld [vmem:[%s577 + $0x1a] sm:$0x1]
      %v629 = vld [vmem:[%s577 + $0x22] sm:$0xff]
      %v630 = vld [vmem:[%s577 + $0x2a] sm:$0x1]
      %v631 = vld [vmem:[%s584 + $0x2] sm:$0x1]
      %v632 = vlaneseq
      %v633 = vshrl.u32 %v632, 7
      %v634 = vsub.s32 0, %v633
      %v635 = vrot.slane %v631, %v634
      %v636 = vmul.f32 %v625, %v635
      %v637 = vmul.f32 %v626, %v635
      %v638 = vmul.f32 %v627, %v635
      %v639 = vmul.f32 %v628, %v635
      %v640 = vmul.f32 %v629, %v635
      %v641 = vmul.f32 %v630, %v635
      %v642 = vadd.f32 %v619, %v636
      %v643 = vadd.f32 %v620, %v637
      %v644 = vadd.f32 %v621, %v638
      %v645 = vadd.f32 %v622, %v639
      %v646 = vadd.f32 %v623, %v640
      %v647 = vadd.f32 %v624, %v641
      %v648 = vld [vmem:[%s577 + $0x3] sm:$0xff]
      %v649 = vld [vmem:[%s577 + $0xb] sm:$0x1]
      %v650 = vld [vmem:[%s577 + $0x13] sm:$0xff]
      %v651 = vld [vmem:[%s577 + $0x1b] sm:$0x1]
      %v652 = vld [vmem:[%s577 + $0x23] sm:$0xff]
      %v653 = vld [vmem:[%s577 + $0x2b] sm:$0x1]
      %v654 = vld [vmem:[%s584 + $0x3] sm:$0x1]
      %v655 = vlaneseq
      %v656 = vshrl.u32 %v655, 7
      %v657 = vsub.s32 0, %v656
      %v658 = vrot.slane %v654, %v657
      %v659 = vmul.f32 %v648, %v658
      %v660 = vmul.f32 %v649, %v658
      %v661 = vmul.f32 %v650, %v658
      %v662 = vmul.f32 %v651, %v658
      %v663 = vmul.f32 %v652, %v658
      %v664 = vmul.f32 %v653, %v658
      %v665 = vadd.f32 %v642, %v659
      %v666 = vadd.f32 %v643, %v660
      %v667 = vadd.f32 %v644, %v661
      %v668 = vadd.f32 %v645, %v662
      %v669 = vadd.f32 %v646, %v663
      %v670 = vadd.f32 %v647, %v664
      %v671 = vld [vmem:[%s577 + $0x4] sm:$0xff]
      %v672 = vld [vmem:[%s577 + $0xc] sm:$0x1]
      %v673 = vld [vmem:[%s577 + $0x14] sm:$0xff]
      %v674 = vld [vmem:[%s577 + $0x1c] sm:$0x1]
      %v675 = vld [vmem:[%s577 + $0x24] sm:$0xff]
      %v676 = vld [vmem:[%s577 + $0x2c] sm:$0x1]
      %v677 = vld [vmem:[%s584 + $0x4] sm:$0x1]
      %v678 = vlaneseq
      %v679 = vshrl.u32 %v678, 7
      %v680 = vsub.s32 0, %v679
      %v681 = vrot.slane %v677, %v680
      %v682 = vmul.f32 %v671, %v681
      %v683 = vmul.f32 %v672, %v681
      %v684 = vmul.f32 %v673, %v681
      %v685 = vmul.f32 %v674, %v681
      %v686 = vmul.f32 %v675, %v681
      %v687 = vmul.f32 %v676, %v681
      %v688 = vadd.f32 %v665, %v682
      %v689 = vadd.f32 %v666, %v683
      %v690 = vadd.f32 %v667, %v684
      %v691 = vadd.f32 %v668, %v685
      %v692 = vadd.f32 %v669, %v686
      %v693 = vadd.f32 %v670, %v687
      %v694 = vld [vmem:[%s577 + $0x5] sm:$0xff]
      %v695 = vld [vmem:[%s577 + $0xd] sm:$0x1]
      %v696 = vld [vmem:[%s577 + $0x15] sm:$0xff]
      %v697 = vld [vmem:[%s577 + $0x1d] sm:$0x1]
      %v698 = vld [vmem:[%s577 + $0x25] sm:$0xff]
      %v699 = vld [vmem:[%s577 + $0x2d] sm:$0x1]
      %v700 = vld [vmem:[%s584 + $0x5] sm:$0x1]
      %v701 = vlaneseq
      %v702 = vshrl.u32 %v701, 7
      %v703 = vsub.s32 0, %v702
      %v704 = vrot.slane %v700, %v703
      %v705 = vmul.f32 %v694, %v704
      %v706 = vmul.f32 %v695, %v704
      %v707 = vmul.f32 %v696, %v704
      %v708 = vmul.f32 %v697, %v704
      %v709 = vmul.f32 %v698, %v704
      %v710 = vmul.f32 %v699, %v704
      %v711 = vadd.f32 %v688, %v705
      %v712 = vadd.f32 %v689, %v706
      %v713 = vadd.f32 %v690, %v707
      %v714 = vadd.f32 %v691, %v708
      %v715 = vadd.f32 %v692, %v709
      %v716 = vadd.f32 %v693, %v710
      %s717 = sadd.s32 %s298, 3
      %s718 = smul.u32 %s717, 16
      %s719 = scalar_lea.vmem %s280, %s718
      %v720 = vld [vmem:[%s719] sm:$0xff]
      %v721 = vld [vmem:[%s719 + $0x8] sm:$0x1]
      %v722 = vld [vmem:[%s719 + $0x10] sm:$0xff]
      %v723 = vld [vmem:[%s719 + $0x18] sm:$0x1]
      %v724 = vld [vmem:[%s719 + $0x20] sm:$0xff]
      %v725 = vld [vmem:[%s719 + $0x28] sm:$0x1]
      %s726 = scalar_lea.vmem %s285, 24
      %v727 = vld [vmem:[%s726] sm:$0x1]
      %v728 = vlaneseq
      %v729 = vshrl.u32 %v728, 7
      %v730 = vsub.s32 0, %v729
      %v731 = vrot.slane %v727, %v730
      %v732 = vmul.f32 %v720, %v731
      %v733 = vmul.f32 %v721, %v731
      %v734 = vmul.f32 %v722, %v731
      %v735 = vmul.f32 %v723, %v731
      %v736 = vmul.f32 %v724, %v731
      %v737 = vmul.f32 %v725, %v731
      %v738 = vadd.f32 %v711, %v732
      %v739 = vadd.f32 %v712, %v733
      %v740 = vadd.f32 %v713, %v734
      %v741 = vadd.f32 %v714, %v735
      %v742 = vadd.f32 %v715, %v736
      %v743 = vadd.f32 %v716, %v737
      %v744 = vld [vmem:[%s719 + $0x1] sm:$0xff]
      %v745 = vld [vmem:[%s719 + $0x9] sm:$0x1]
      %v746 = vld [vmem:[%s719 + $0x11] sm:$0xff]
      %v747 = vld [vmem:[%s719 + $0x19] sm:$0x1]
      %v748 = vld [vmem:[%s719 + $0x21] sm:$0xff]
      %v749 = vld [vmem:[%s719 + $0x29] sm:$0x1]
      %v750 = vld [vmem:[%s726 + $0x1] sm:$0x1]
      %v751 = vlaneseq
      %v752 = vshrl.u32 %v751, 7
      %v753 = vsub.s32 0, %v752
      %v754 = vrot.slane %v750, %v753
      %v755 = vmul.f32 %v744, %v754
      %v756 = vmul.f32 %v745, %v754
      %v757 = vmul.f32 %v746, %v754
      %v758 = vmul.f32 %v747, %v754
      %v759 = vmul.f32 %v748, %v754
      %v760 = vmul.f32 %v749, %v754
      %v761 = vadd.f32 %v738, %v755
      %v762 = vadd.f32 %v739, %v756
      %v763 = vadd.f32 %v740, %v757
      %v764 = vadd.f32 %v741, %v758
      %v765 = vadd.f32 %v742, %v759
      %v766 = vadd.f32 %v743, %v760
      %v767 = vld [vmem:[%s719 + $0x2] sm:$0xff]
      %v768 = vld [vmem:[%s719 + $0xa] sm:$0x1]
      %v769 = vld [vmem:[%s719 + $0x12] sm:$0xff]
      %v770 = vld [vmem:[%s719 + $0x1a] sm:$0x1]
      %v771 = vld [vmem:[%s719 + $0x22] sm:$0xff]
      %v772 = vld [vmem:[%s719 + $0x2a] sm:$0x1]
      %v773 = vld [vmem:[%s726 + $0x2] sm:$0x1]
      %v774 = vlaneseq
      %v775 = vshrl.u32 %v774, 7
      %v776 = vsub.s32 0, %v775
      %v777 = vrot.slane %v773, %v776
      %v778 = vmul.f32 %v767, %v777
      %v779 = vmul.f32 %v768, %v777
      %v780 = vmul.f32 %v769, %v777
      %v781 = vmul.f32 %v770, %v777
      %v782 = vmul.f32 %v771, %v777
      %v783 = vmul.f32 %v772, %v777
      %v784 = vadd.f32 %v761, %v778
      %v785 = vadd.f32 %v762, %v779
      %v786 = vadd.f32 %v763, %v780
      %v787 = vadd.f32 %v764, %v781
      %v788 = vadd.f32 %v765, %v782
      %v789 = vadd.f32 %v766, %v783
      %v790 = vld [vmem:[%s719 + $0x3] sm:$0xff]
      %v791 = vld [vmem:[%s719 + $0xb] sm:$0x1]
      %v792 = vld [vmem:[%s719 + $0x13] sm:$0xff]
      %v793 = vld [vmem:[%s719 + $0x1b] sm:$0x1]
      %v794 = vld [vmem:[%s719 + $0x23] sm:$0xff]
      %v795 = vld [vmem:[%s719 + $0x2b] sm:$0x1]
      %v796 = vld [vmem:[%s726 + $0x3] sm:$0x1]
      %v797 = vlaneseq
      %v798 = vshrl.u32 %v797, 7
      %v799 = vsub.s32 0, %v798
      %v800 = vrot.slane %v796, %v799
      %v801 = vmul.f32 %v790, %v800
      %v802 = vmul.f32 %v791, %v800
      %v803 = vmul.f32 %v792, %v800
      %v804 = vmul.f32 %v793, %v800
      %v805 = vmul.f32 %v794, %v800
      %v806 = vmul.f32 %v795, %v800
      %v807 = vadd.f32 %v784, %v801
      %v808 = vadd.f32 %v785, %v802
      %v809 = vadd.f32 %v786, %v803
      %v810 = vadd.f32 %v787, %v804
      %v811 = vadd.f32 %v788, %v805
      %v812 = vadd.f32 %v789, %v806
      %v813 = vld [vmem:[%s719 + $0x4] sm:$0xff]
      %v814 = vld [vmem:[%s719 + $0xc] sm:$0x1]
      %v815 = vld [vmem:[%s719 + $0x14] sm:$0xff]
      %v816 = vld [vmem:[%s719 + $0x1c] sm:$0x1]
      %v817 = vld [vmem:[%s719 + $0x24] sm:$0xff]
      %v818 = vld [vmem:[%s719 + $0x2c] sm:$0x1]
      %v819 = vld [vmem:[%s726 + $0x4] sm:$0x1]
      %v820 = vlaneseq
      %v821 = vshrl.u32 %v820, 7
      %v822 = vsub.s32 0, %v821
      %v823 = vrot.slane %v819, %v822
      %v824 = vmul.f32 %v813, %v823
      %v825 = vmul.f32 %v814, %v823
      %v826 = vmul.f32 %v815, %v823
      %v827 = vmul.f32 %v816, %v823
      %v828 = vmul.f32 %v817, %v823
      %v829 = vmul.f32 %v818, %v823
      %v830 = vadd.f32 %v807, %v824
      %v831 = vadd.f32 %v808, %v825
      %v832 = vadd.f32 %v809, %v826
      %v833 = vadd.f32 %v810, %v827
      %v834 = vadd.f32 %v811, %v828
      %v835 = vadd.f32 %v812, %v829
      %v836 = vld [vmem:[%s719 + $0x5] sm:$0xff]
      %v837 = vld [vmem:[%s719 + $0xd] sm:$0x1]
      %v838 = vld [vmem:[%s719 + $0x15] sm:$0xff]
      %v839 = vld [vmem:[%s719 + $0x1d] sm:$0x1]
      %v840 = vld [vmem:[%s719 + $0x25] sm:$0xff]
      %v841 = vld [vmem:[%s719 + $0x2d] sm:$0x1]
      %v842 = vld [vmem:[%s726 + $0x5] sm:$0x1]
      %v843 = vlaneseq
      %v844 = vshrl.u32 %v843, 7
      %v845 = vsub.s32 0, %v844
      %v846 = vrot.slane %v842, %v845
      %v847 = vmul.f32 %v836, %v846
      %v848 = vmul.f32 %v837, %v846
      %v849 = vmul.f32 %v838, %v846
      %v850 = vmul.f32 %v839, %v846
      %v851 = vmul.f32 %v840, %v846
      %v852 = vmul.f32 %v841, %v846
      %v853 = vadd.f32 %v830, %v847
      %v854 = vadd.f32 %v831, %v848
      %v855 = vadd.f32 %v832, %v849
      %v856 = vadd.f32 %v833, %v850
      %v857 = vadd.f32 %v834, %v851
      %v858 = vadd.f32 %v835, %v852
      %s859 = sadd.s32 %s298, 4
      %s860 = smul.u32 %s859, 16
      %s861 = scalar_lea.vmem %s280, %s860
      %v862 = vld [vmem:[%s861] sm:$0xff]
      %v863 = vld [vmem:[%s861 + $0x8] sm:$0x1]
      %v864 = vld [vmem:[%s861 + $0x10] sm:$0xff]
      %v865 = vld [vmem:[%s861 + $0x18] sm:$0x1]
      %v866 = vld [vmem:[%s861 + $0x20] sm:$0xff]
      %v867 = vld [vmem:[%s861 + $0x28] sm:$0x1]
      %s868 = scalar_lea.vmem %s285, 32
      %v869 = vld [vmem:[%s868] sm:$0x1]
      %v870 = vlaneseq
      %v871 = vshrl.u32 %v870, 7
      %v872 = vsub.s32 0, %v871
      %v873 = vrot.slane %v869, %v872
      %v874 = vmul.f32 %v862, %v873
      %v875 = vmul.f32 %v863, %v873
      %v876 = vmul.f32 %v864, %v873
      %v877 = vmul.f32 %v865, %v873
      %v878 = vmul.f32 %v866, %v873
      %v879 = vmul.f32 %v867, %v873
      %v880 = vadd.f32 %v853, %v874
      %v881 = vadd.f32 %v854, %v875
      %v882 = vadd.f32 %v855, %v876
      %v883 = vadd.f32 %v856, %v877
      %v884 = vadd.f32 %v857, %v878
      %v885 = vadd.f32 %v858, %v879
      %v886 = vld [vmem:[%s861 + $0x1] sm:$0xff]
      %v887 = vld [vmem:[%s861 + $0x9] sm:$0x1]
      %v888 = vld [vmem:[%s861 + $0x11] sm:$0xff]
      %v889 = vld [vmem:[%s861 + $0x19] sm:$0x1]
      %v890 = vld [vmem:[%s861 + $0x21] sm:$0xff]
      %v891 = vld [vmem:[%s861 + $0x29] sm:$0x1]
      %v892 = vld [vmem:[%s868 + $0x1] sm:$0x1]
      %v893 = vlaneseq
      %v894 = vshrl.u32 %v893, 7
      %v895 = vsub.s32 0, %v894
      %v896 = vrot.slane %v892, %v895
      %v897 = vmul.f32 %v886, %v896
      %v898 = vmul.f32 %v887, %v896
      %v899 = vmul.f32 %v888, %v896
      %v900 = vmul.f32 %v889, %v896
      %v901 = vmul.f32 %v890, %v896
      %v902 = vmul.f32 %v891, %v896
      %v903 = vadd.f32 %v880, %v897
      %v904 = vadd.f32 %v881, %v898
      %v905 = vadd.f32 %v882, %v899
      %v906 = vadd.f32 %v883, %v900
      %v907 = vadd.f32 %v884, %v901
      %v908 = vadd.f32 %v885, %v902
      %v909 = vld [vmem:[%s861 + $0x2] sm:$0xff]
      %v910 = vld [vmem:[%s861 + $0xa] sm:$0x1]
      %v911 = vld [vmem:[%s861 + $0x12] sm:$0xff]
      %v912 = vld [vmem:[%s861 + $0x1a] sm:$0x1]
      %v913 = vld [vmem:[%s861 + $0x22] sm:$0xff]
      %v914 = vld [vmem:[%s861 + $0x2a] sm:$0x1]
      %v915 = vld [vmem:[%s868 + $0x2] sm:$0x1]
      %v916 = vlaneseq
      %v917 = vshrl.u32 %v916, 7
      %v918 = vsub.s32 0, %v917
      %v919 = vrot.slane %v915, %v918
      %v920 = vmul.f32 %v909, %v919
      %v921 = vmul.f32 %v910, %v919
      %v922 = vmul.f32 %v911, %v919
      %v923 = vmul.f32 %v912, %v919
      %v924 = vmul.f32 %v913, %v919
      %v925 = vmul.f32 %v914, %v919
      %v926 = vadd.f32 %v903, %v920
      %v927 = vadd.f32 %v904, %v921
      %v928 = vadd.f32 %v905, %v922
      %v929 = vadd.f32 %v906, %v923
      %v930 = vadd.f32 %v907, %v924
      %v931 = vadd.f32 %v908, %v925
      %v932 = vld [vmem:[%s861 + $0x3] sm:$0xff]
      %v933 = vld [vmem:[%s861 + $0xb] sm:$0x1]
      %v934 = vld [vmem:[%s861 + $0x13] sm:$0xff]
      %v935 = vld [vmem:[%s861 + $0x1b] sm:$0x1]
      %v936 = vld [vmem:[%s861 + $0x23] sm:$0xff]
      %v937 = vld [vmem:[%s861 + $0x2b] sm:$0x1]
      %v938 = vld [vmem:[%s868 + $0x3] sm:$0x1]
      %v939 = vlaneseq
      %v940 = vshrl.u32 %v939, 7
      %v941 = vsub.s32 0, %v940
      %v942 = vrot.slane %v938, %v941
      %v943 = vmul.f32 %v932, %v942
      %v944 = vmul.f32 %v933, %v942
      %v945 = vmul.f32 %v934, %v942
      %v946 = vmul.f32 %v935, %v942
      %v947 = vmul.f32 %v936, %v942
      %v948 = vmul.f32 %v937, %v942
      %v949 = vadd.f32 %v926, %v943
      %v950 = vadd.f32 %v927, %v944
      %v951 = vadd.f32 %v928, %v945
      %v952 = vadd.f32 %v929, %v946
      %v953 = vadd.f32 %v930, %v947
      %v954 = vadd.f32 %v931, %v948
      %v955 = vld [vmem:[%s861 + $0x4] sm:$0xff]
      %v956 = vld [vmem:[%s861 + $0xc] sm:$0x1]
      %v957 = vld [vmem:[%s861 + $0x14] sm:$0xff]
      %v958 = vld [vmem:[%s861 + $0x1c] sm:$0x1]
      %v959 = vld [vmem:[%s861 + $0x24] sm:$0xff]
      %v960 = vld [vmem:[%s861 + $0x2c] sm:$0x1]
      %v961 = vld [vmem:[%s868 + $0x4] sm:$0x1]
      %v962 = vlaneseq
      %v963 = vshrl.u32 %v962, 7
      %v964 = vsub.s32 0, %v963
      %v965 = vrot.slane %v961, %v964
      %v966 = vmul.f32 %v955, %v965
      %v967 = vmul.f32 %v956, %v965
      %v968 = vmul.f32 %v957, %v965
      %v969 = vmul.f32 %v958, %v965
      %v970 = vmul.f32 %v959, %v965
      %v971 = vmul.f32 %v960, %v965
      %v972 = vadd.f32 %v949, %v966
      %v973 = vadd.f32 %v950, %v967
      %v974 = vadd.f32 %v951, %v968
      %v975 = vadd.f32 %v952, %v969
      %v976 = vadd.f32 %v953, %v970
      %v977 = vadd.f32 %v954, %v971
      %v978 = vld [vmem:[%s861 + $0x5] sm:$0xff]
      %v979 = vld [vmem:[%s861 + $0xd] sm:$0x1]
      %v980 = vld [vmem:[%s861 + $0x15] sm:$0xff]
      %v981 = vld [vmem:[%s861 + $0x1d] sm:$0x1]
      %v982 = vld [vmem:[%s861 + $0x25] sm:$0xff]
      %v983 = vld [vmem:[%s861 + $0x2d] sm:$0x1]
      %v984 = vld [vmem:[%s868 + $0x5] sm:$0x1]
      %v985 = vlaneseq
      %v986 = vshrl.u32 %v985, 7
      %v987 = vsub.s32 0, %v986
      %v988 = vrot.slane %v984, %v987
      %v989 = vmul.f32 %v978, %v988
      %v990 = vmul.f32 %v979, %v988
      %v991 = vmul.f32 %v980, %v988
      %v992 = vmul.f32 %v981, %v988
      %v993 = vmul.f32 %v982, %v988
      %v994 = vmul.f32 %v983, %v988
      %v995 = vadd.f32 %v972, %v989
      %v996 = vadd.f32 %v973, %v990
      %v997 = vadd.f32 %v974, %v991
      %v998 = vadd.f32 %v975, %v992
      %v999 = vadd.f32 %v976, %v993
      %v1000 = vadd.f32 %v977, %v994
      %s1001 = sadd.s32 %s298, 5
      %s1002 = smul.u32 %s1001, 16
      %s1003 = scalar_lea.vmem %s280, %s1002
      %v1004 = vld [vmem:[%s1003] sm:$0xff]
      %v1005 = vld [vmem:[%s1003 + $0x8] sm:$0x1]
      %v1006 = vld [vmem:[%s1003 + $0x10] sm:$0xff]
      %v1007 = vld [vmem:[%s1003 + $0x18] sm:$0x1]
      %v1008 = vld [vmem:[%s1003 + $0x20] sm:$0xff]
      %v1009 = vld [vmem:[%s1003 + $0x28] sm:$0x1]
      %s1010 = scalar_lea.vmem %s285, 40
      %v1011 = vld [vmem:[%s1010] sm:$0x1]
      %v1012 = vlaneseq
      %v1013 = vshrl.u32 %v1012, 7
      %v1014 = vsub.s32 0, %v1013
      %v1015 = vrot.slane %v1011, %v1014
      %v1016 = vmul.f32 %v1004, %v1015
      %v1017 = vmul.f32 %v1005, %v1015
      %v1018 = vmul.f32 %v1006, %v1015
      %v1019 = vmul.f32 %v1007, %v1015
      %v1020 = vmul.f32 %v1008, %v1015
      %v1021 = vmul.f32 %v1009, %v1015
      %v1022 = vadd.f32 %v995, %v1016
      %v1023 = vadd.f32 %v996, %v1017
      %v1024 = vadd.f32 %v997, %v1018
      %v1025 = vadd.f32 %v998, %v1019
      %v1026 = vadd.f32 %v999, %v1020
      %v1027 = vadd.f32 %v1000, %v1021
      %v1028 = vld [vmem:[%s1003 + $0x1] sm:$0xff]
      %v1029 = vld [vmem:[%s1003 + $0x9] sm:$0x1]
      %v1030 = vld [vmem:[%s1003 + $0x11] sm:$0xff]
      %v1031 = vld [vmem:[%s1003 + $0x19] sm:$0x1]
      %v1032 = vld [vmem:[%s1003 + $0x21] sm:$0xff]
      %v1033 = vld [vmem:[%s1003 + $0x29] sm:$0x1]
      %v1034 = vld [vmem:[%s1010 + $0x1] sm:$0x1]
      %v1035 = vlaneseq
      %v1036 = vshrl.u32 %v1035, 7
      %v1037 = vsub.s32 0, %v1036
      %v1038 = vrot.slane %v1034, %v1037
      %v1039 = vmul.f32 %v1028, %v1038
      %v1040 = vmul.f32 %v1029, %v1038
      %v1041 = vmul.f32 %v1030, %v1038
      %v1042 = vmul.f32 %v1031, %v1038
      %v1043 = vmul.f32 %v1032, %v1038
      %v1044 = vmul.f32 %v1033, %v1038
      %v1045 = vadd.f32 %v1022, %v1039
      %v1046 = vadd.f32 %v1023, %v1040
      %v1047 = vadd.f32 %v1024, %v1041
      %v1048 = vadd.f32 %v1025, %v1042
      %v1049 = vadd.f32 %v1026, %v1043
      %v1050 = vadd.f32 %v1027, %v1044
      %v1051 = vld [vmem:[%s1003 + $0x2] sm:$0xff]
      %v1052 = vld [vmem:[%s1003 + $0xa] sm:$0x1]
      %v1053 = vld [vmem:[%s1003 + $0x12] sm:$0xff]
      %v1054 = vld [vmem:[%s1003 + $0x1a] sm:$0x1]
      %v1055 = vld [vmem:[%s1003 + $0x22] sm:$0xff]
      %v1056 = vld [vmem:[%s1003 + $0x2a] sm:$0x1]
      %v1057 = vld [vmem:[%s1010 + $0x2] sm:$0x1]
      %v1058 = vlaneseq
      %v1059 = vshrl.u32 %v1058, 7
      %v1060 = vsub.s32 0, %v1059
      %v1061 = vrot.slane %v1057, %v1060
      %v1062 = vmul.f32 %v1051, %v1061
      %v1063 = vmul.f32 %v1052, %v1061
      %v1064 = vmul.f32 %v1053, %v1061
      %v1065 = vmul.f32 %v1054, %v1061
      %v1066 = vmul.f32 %v1055, %v1061
      %v1067 = vmul.f32 %v1056, %v1061
      %v1068 = vadd.f32 %v1045, %v1062
      %v1069 = vadd.f32 %v1046, %v1063
      %v1070 = vadd.f32 %v1047, %v1064
      %v1071 = vadd.f32 %v1048, %v1065
      %v1072 = vadd.f32 %v1049, %v1066
      %v1073 = vadd.f32 %v1050, %v1067
      %v1074 = vld [vmem:[%s1003 + $0x3] sm:$0xff]
      %v1075 = vld [vmem:[%s1003 + $0xb] sm:$0x1]
      %v1076 = vld [vmem:[%s1003 + $0x13] sm:$0xff]
      %v1077 = vld [vmem:[%s1003 + $0x1b] sm:$0x1]
      %v1078 = vld [vmem:[%s1003 + $0x23] sm:$0xff]
      %v1079 = vld [vmem:[%s1003 + $0x2b] sm:$0x1]
      %v1080 = vld [vmem:[%s1010 + $0x3] sm:$0x1]
      %v1081 = vlaneseq
      %v1082 = vshrl.u32 %v1081, 7
      %v1083 = vsub.s32 0, %v1082
      %v1084 = vrot.slane %v1080, %v1083
      %v1085 = vmul.f32 %v1074, %v1084
      %v1086 = vmul.f32 %v1075, %v1084
      %v1087 = vmul.f32 %v1076, %v1084
      %v1088 = vmul.f32 %v1077, %v1084
      %v1089 = vmul.f32 %v1078, %v1084
      %v1090 = vmul.f32 %v1079, %v1084
      %v1091 = vadd.f32 %v1068, %v1085
      %v1092 = vadd.f32 %v1069, %v1086
      %v1093 = vadd.f32 %v1070, %v1087
      %v1094 = vadd.f32 %v1071, %v1088
      %v1095 = vadd.f32 %v1072, %v1089
      %v1096 = vadd.f32 %v1073, %v1090
      %v1097 = vld [vmem:[%s1003 + $0x4] sm:$0xff]
      %v1098 = vld [vmem:[%s1003 + $0xc] sm:$0x1]
      %v1099 = vld [vmem:[%s1003 + $0x14] sm:$0xff]
      %v1100 = vld [vmem:[%s1003 + $0x1c] sm:$0x1]
      %v1101 = vld [vmem:[%s1003 + $0x24] sm:$0xff]
      %v1102 = vld [vmem:[%s1003 + $0x2c] sm:$0x1]
      %v1103 = vld [vmem:[%s1010 + $0x4] sm:$0x1]
      %v1104 = vlaneseq
      %v1105 = vshrl.u32 %v1104, 7
      %v1106 = vsub.s32 0, %v1105
      %v1107 = vrot.slane %v1103, %v1106
      %v1108 = vmul.f32 %v1097, %v1107
      %v1109 = vmul.f32 %v1098, %v1107
      %v1110 = vmul.f32 %v1099, %v1107
      %v1111 = vmul.f32 %v1100, %v1107
      %v1112 = vmul.f32 %v1101, %v1107
      %v1113 = vmul.f32 %v1102, %v1107
      %v1114 = vadd.f32 %v1091, %v1108
      %v1115 = vadd.f32 %v1092, %v1109
      %v1116 = vadd.f32 %v1093, %v1110
      %v1117 = vadd.f32 %v1094, %v1111
      %v1118 = vadd.f32 %v1095, %v1112
      %v1119 = vadd.f32 %v1096, %v1113
      %v1120 = vld [vmem:[%s1003 + $0x5] sm:$0xff]
      %v1121 = vld [vmem:[%s1003 + $0xd] sm:$0x1]
      %v1122 = vld [vmem:[%s1003 + $0x15] sm:$0xff]
      %v1123 = vld [vmem:[%s1003 + $0x1d] sm:$0x1]
      %v1124 = vld [vmem:[%s1003 + $0x25] sm:$0xff]
      %v1125 = vld [vmem:[%s1003 + $0x2d] sm:$0x1]
      %v1126 = vld [vmem:[%s1010 + $0x5] sm:$0x1]
      %v1127 = vlaneseq
      %v1128 = vshrl.u32 %v1127, 7
      %v1129 = vsub.s32 0, %v1128
      %v1130 = vrot.slane %v1126, %v1129
      %v1131 = vmul.f32 %v1120, %v1130
      %v1132 = vmul.f32 %v1121, %v1130
      %v1133 = vmul.f32 %v1122, %v1130
      %v1134 = vmul.f32 %v1123, %v1130
      %v1135 = vmul.f32 %v1124, %v1130
      %v1136 = vmul.f32 %v1125, %v1130
      %v1137 = vadd.f32 %v1114, %v1131
      %v1138 = vadd.f32 %v1115, %v1132
      %v1139 = vadd.f32 %v1116, %v1133
      %v1140 = vadd.f32 %v1117, %v1134
      %v1141 = vadd.f32 %v1118, %v1135
      %v1142 = vadd.f32 %v1119, %v1136
      %v1143 = vld [vmem:[%s2] sm:$0xf]
      %v1144 = vld [vmem:[%s2 + $0x4] sm:$0xf]
      %v1145 = vld [vmem:[%s4] sm:$0xf]
      %v1146 = vld [vmem:[%s4 + $0x4] sm:$0xf]
      %v1147 = vld [vmem:[%s3] sm:$0x1]
      %v1148 = vld [vmem:[%s5] sm:$0x1]
      %v1149 = vpack.c.bf16 %v1138, %v1137
      %v1151 = vlaneseq
      %v1152 = vshrl.u32 %v1151, 7
      %v1153 = vsub.s32 0, %v1152
      %v1154 = vrot.slane %v1147, %v1153
      %v1158 = vunpack.c.l.b16 %v1143
      %v1159 = vunpack.c.l.b16 %v1144
      %v1160 = vpack.c.b16 %v1159, %v1158
      %vm1162 = vcmask 130048
      %v1164 = vsel %vm1162, %v1149, 0
      %1166 = vmatprep.subr.bf16.mxu0 0
      %1167 = vmatpush1.bf16.msra.mxu0 %v1160
      %1168 = vmatprep.subr.bf16.mxu0 0
      %1169 = vmatpush1.bf16.msra.mxu0 0
      %1170 = vmatprep.subr.bf16.mxu0 0
      %1171 = vmatpush1.bf16.msra.mxu0 0
      %1172 = vmatprep.subr.bf16.mxu0 0
      %1173 = vmatpush1.bf16.msra.mxu0 0
      %1174 = vmatprep.subr.bf16.mxu0 0
      %1175 = vmatpush1.bf16.msra.mxu0 0
      %1176 = vmatprep.subr.bf16.mxu0 0
      %1177 = vmatpush1.bf16.msra.mxu0 0
      %1178 = vmatprep.subr.bf16.mxu0 0
      %1179 = vmatpush1.bf16.msra.mxu0 0
      %1180 = vmatprep.subr.bf16.mxu0 0
      %1181 = vmatpush1.bf16.msra.mxu0 0
      %1182 = vmatprep.subr.bf16.mxu0 0
      %1183 = vmatpush1.bf16.msra.mxu0 0
      %1184 = vmatprep.subr.bf16.mxu0 0
      %1185 = vmatpush1.bf16.msra.mxu0 0
      %1186 = vmatprep.subr.bf16.mxu0 0
      %1187 = vmatpush1.bf16.msra.mxu0 0
      %1188 = vmatprep.subr.bf16.mxu0 0
      %1189 = vmatpush1.bf16.msra.mxu0 0
      %1190 = vmatprep.subr.bf16.mxu0 0
      %1191 = vmatpush1.bf16.msra.mxu0 0
      %1192 = vmatprep.subr.bf16.mxu0 0
      %1193 = vmatpush1.bf16.msra.mxu0 0
      %1194 = vmatprep.subr.bf16.mxu0 0
      %1195 = vmatpush1.bf16.msra.mxu0 0
      %1196 = vmatprep.subr.bf16.mxu0 0
      %1197 = vmatpush1.bf16.msra.mxu0 0
      %1198 = vmatprep.mubr.bf16.mxu0 0
      %1199 = vmatmul.mubr.bf16.gmra.mrb[0].mxu0 %v1164
      %v1200 = vpop.f32.mrb[0].mxu0
      %v1201 = vadd.f32 %v1154, %v1200
      %v1202 = vpop.f32.mrb[0].mxu0
      %v1203 = vpop.f32.mrb[0].mxu0
      %v1204 = vadd.f32 %v1154, %v1203
      %v1205 = vpop.f32.mrb[0].mxu0
      %1206 = vdwg.mxu0
      %v1207 = vmax.f32 %v1201, 0.0
      %v1208 = vmax.f32 %v1204, 0.0
      %v1209 = vpack.c.bf16 %v1208, %v1207
      %v1211 = vlaneseq
      %v1212 = vshrl.u32 %v1211, 7
      %v1213 = vsub.s32 0, %v1212
      %v1214 = vrot.slane %v1148, %v1213
      %v1218 = vunpack.c.l.b16 %v1145
      %v1219 = vunpack.c.l.b16 %v1146
      %v1220 = vpack.c.b16 %v1219, %v1218
      %v1223 = vsel %vm1162, %v1209, 0
      %1225 = vmatprep.subr.bf16.mxu0 0
      %1226 = vmatpush1.bf16.msra.mxu0 %v1220
      %1227 = vmatprep.subr.bf16.mxu0 0
      %1228 = vmatpush1.bf16.msra.mxu0 0
      %1229 = vmatprep.subr.bf16.mxu0 0
      %1230 = vmatpush1.bf16.msra.mxu0 0
      %1231 = vmatprep.subr.bf16.mxu0 0
      %1232 = vmatpush1.bf16.msra.mxu0 0
      %1233 = vmatprep.subr.bf16.mxu0 0
      %1234 = vmatpush1.bf16.msra.mxu0 0
      %1235 = vmatprep.subr.bf16.mxu0 0
      %1236 = vmatpush1.bf16.msra.mxu0 0
      %1237 = vmatprep.subr.bf16.mxu0 0
      %1238 = vmatpush1.bf16.msra.mxu0 0
      %1239 = vmatprep.subr.bf16.mxu0 0
      %1240 = vmatpush1.bf16.msra.mxu0 0
      %1241 = vmatprep.subr.bf16.mxu0 0
      %1242 = vmatpush1.bf16.msra.mxu0 0
      %1243 = vmatprep.subr.bf16.mxu0 0
      %1244 = vmatpush1.bf16.msra.mxu0 0
      %1245 = vmatprep.subr.bf16.mxu0 0
      %1246 = vmatpush1.bf16.msra.mxu0 0
      %1247 = vmatprep.subr.bf16.mxu0 0
      %1248 = vmatpush1.bf16.msra.mxu0 0
      %1249 = vmatprep.subr.bf16.mxu0 0
      %1250 = vmatpush1.bf16.msra.mxu0 0
      %1251 = vmatprep.subr.bf16.mxu0 0
      %1252 = vmatpush1.bf16.msra.mxu0 0
      %1253 = vmatprep.subr.bf16.mxu0 0
      %1254 = vmatpush1.bf16.msra.mxu0 0
      %1255 = vmatprep.subr.bf16.mxu0 0
      %1256 = vmatpush1.bf16.msra.mxu0 0
      %1257 = vmatprep.mubr.bf16.mxu0 0
      %1258 = vmatmul.mubr.bf16.gmra.mrb[0].mxu0 %v1223
      %v1259 = vpop.f32.mrb[0].mxu0
      %v1260 = vadd.f32 %v1214, %v1259
      %v1261 = vpop.f32.mrb[0].mxu0
      %v1262 = vpop.f32.mrb[0].mxu0
      %v1263 = vadd.f32 %v1214, %v1262
      %v1264 = vpop.f32.mrb[0].mxu0
      %1265 = vdwg.mxu0
      %1266 = vst [vmem:[%s295] sm:$0xff] %v1260
      %1267 = vst [vmem:[%s295 + $0x8] sm:$0x1] %v1263
      %v1268 = vpack.c.bf16 %v1140, %v1139
      %v1270 = vsel %vm1162, %v1268, 0
      %1272 = vmatprep.subr.bf16.mxu0 0
      %1273 = vmatpush1.bf16.msra.mxu0 %v1160
      %1274 = vmatprep.subr.bf16.mxu0 0
      %1275 = vmatpush1.bf16.msra.mxu0 0
      %1276 = vmatprep.subr.bf16.mxu0 0
      %1277 = vmatpush1.bf16.msra.mxu0 0
      %1278 = vmatprep.subr.bf16.mxu0 0
      %1279 = vmatpush1.bf16.msra.mxu0 0
      %1280 = vmatprep.subr.bf16.mxu0 0
      %1281 = vmatpush1.bf16.msra.mxu0 0
      %1282 = vmatprep.subr.bf16.mxu0 0
      %1283 = vmatpush1.bf16.msra.mxu0 0
      %1284 = vmatprep.subr.bf16.mxu0 0
      %1285 = vmatpush1.bf16.msra.mxu0 0
      %1286 = vmatprep.subr.bf16.mxu0 0
      %1287 = vmatpush1.bf16.msra.mxu0 0
      %1288 = vmatprep.subr.bf16.mxu0 0
      %1289 = vmatpush1.bf16.msra.mxu0 0
      %1290 = vmatprep.subr.bf16.mxu0 0
      %1291 = vmatpush1.bf16.msra.mxu0 0
      %1292 = vmatprep.subr.bf16.mxu0 0
      %1293 = vmatpush1.bf16.msra.mxu0 0
      %1294 = vmatprep.subr.bf16.mxu0 0
      %1295 = vmatpush1.bf16.msra.mxu0 0
      %1296 = vmatprep.subr.bf16.mxu0 0
      %1297 = vmatpush1.bf16.msra.mxu0 0
      %1298 = vmatprep.subr.bf16.mxu0 0
      %1299 = vmatpush1.bf16.msra.mxu0 0
      %1300 = vmatprep.subr.bf16.mxu0 0
      %1301 = vmatpush1.bf16.msra.mxu0 0
      %1302 = vmatprep.subr.bf16.mxu0 0
      %1303 = vmatpush1.bf16.msra.mxu0 0
      %1304 = vmatprep.mubr.bf16.mxu0 0
      %1305 = vmatmul.mubr.bf16.gmra.mrb[0].mxu0 %v1270
      %v1306 = vpop.f32.mrb[0].mxu0
      %v1307 = vadd.f32 %v1154, %v1306
      %v1308 = vpop.f32.mrb[0].mxu0
      %v1309 = vpop.f32.mrb[0].mxu0
      %v1310 = vadd.f32 %v1154, %v1309
      %v1311 = vpop.f32.mrb[0].mxu0
      %1312 = vdwg.mxu0
      %v1313 = vmax.f32 %v1307, 0.0
      %v1314 = vmax.f32 %v1310, 0.0
      %v1315 = vpack.c.bf16 %v1314, %v1313
      %v1317 = vsel %vm1162, %v1315, 0
      %1319 = vmatprep.subr.bf16.mxu0 0
      %1320 = vmatpush1.bf16.msra.mxu0 %v1220
      %1321 = vmatprep.subr.bf16.mxu0 0
      %1322 = vmatpush1.bf16.msra.mxu0 0
      %1323 = vmatprep.subr.bf16.mxu0 0
      %1324 = vmatpush1.bf16.msra.mxu0 0
      %1325 = vmatprep.subr.bf16.mxu0 0
      %1326 = vmatpush1.bf16.msra.mxu0 0
      %1327 = vmatprep.subr.bf16.mxu0 0
      %1328 = vmatpush1.bf16.msra.mxu0 0
      %1329 = vmatprep.subr.bf16.mxu0 0
      %1330 = vmatpush1.bf16.msra.mxu0 0
      %1331 = vmatprep.subr.bf16.mxu0 0
      %1332 = vmatpush1.bf16.msra.mxu0 0
      %1333 = vmatprep.subr.bf16.mxu0 0
      %1334 = vmatpush1.bf16.msra.mxu0 0
      %1335 = vmatprep.subr.bf16.mxu0 0
      %1336 = vmatpush1.bf16.msra.mxu0 0
      %1337 = vmatprep.subr.bf16.mxu0 0
      %1338 = vmatpush1.bf16.msra.mxu0 0
      %1339 = vmatprep.subr.bf16.mxu0 0
      %1340 = vmatpush1.bf16.msra.mxu0 0
      %1341 = vmatprep.subr.bf16.mxu0 0
      %1342 = vmatpush1.bf16.msra.mxu0 0
      %1343 = vmatprep.subr.bf16.mxu0 0
      %1344 = vmatpush1.bf16.msra.mxu0 0
      %1345 = vmatprep.subr.bf16.mxu0 0
      %1346 = vmatpush1.bf16.msra.mxu0 0
      %1347 = vmatprep.subr.bf16.mxu0 0
      %1348 = vmatpush1.bf16.msra.mxu0 0
      %1349 = vmatprep.subr.bf16.mxu0 0
      %1350 = vmatpush1.bf16.msra.mxu0 0
      %1351 = vmatprep.mubr.bf16.mxu0 0
      %1352 = vmatmul.mubr.bf16.gmra.mrb[0].mxu0 %v1317
      %v1353 = vpop.f32.mrb[0].mxu0
      %v1354 = vadd.f32 %v1214, %v1353
      %v1355 = vpop.f32.mrb[0].mxu0
      %v1356 = vpop.f32.mrb[0].mxu0
      %v1357 = vadd.f32 %v1214, %v1356
      %v1358 = vpop.f32.mrb[0].mxu0
      %1359 = vdwg.mxu0
      %s1360 = scalar_lea.vmem %s295, 16
      %1361 = vst [vmem:[%s1360] sm:$0xff] %v1354
      %1362 = vst [vmem:[%s1360 + $0x8] sm:$0x1] %v1357
      %v1363 = vpack.c.bf16 %v1142, %v1141
      %v1365 = vsel %vm1162, %v1363, 0
      %1367 = vmatprep.subr.bf16.mxu0 0
      %1368 = vmatpush1.bf16.msra.mxu0 %v1160
      %1369 = vmatprep.subr.bf16.mxu0 0
      %1370 = vmatpush1.bf16.msra.mxu0 0
      %1371 = vmatprep.subr.bf16.mxu0 0
      %1372 = vmatpush1.bf16.msra.mxu0 0
      %1373 = vmatprep.subr.bf16.mxu0 0
      %1374 = vmatpush1.bf16.msra.mxu0 0
      %1375 = vmatprep.subr.bf16.mxu0 0
      %1376 = vmatpush1.bf16.msra.mxu0 0
      %1377 = vmatprep.subr.bf16.mxu0 0
      %1378 = vmatpush1.bf16.msra.mxu0 0
      %1379 = vmatprep.subr.bf16.mxu0 0
      %1380 = vmatpush1.bf16.msra.mxu0 0
      %1381 = vmatprep.subr.bf16.mxu0 0
      %1382 = vmatpush1.bf16.msra.mxu0 0
      %1383 = vmatprep.subr.bf16.mxu0 0
      %1384 = vmatpush1.bf16.msra.mxu0 0
      %1385 = vmatprep.subr.bf16.mxu0 0
      %1386 = vmatpush1.bf16.msra.mxu0 0
      %1387 = vmatprep.subr.bf16.mxu0 0
      %1388 = vmatpush1.bf16.msra.mxu0 0
      %1389 = vmatprep.subr.bf16.mxu0 0
      %1390 = vmatpush1.bf16.msra.mxu0 0
      %1391 = vmatprep.subr.bf16.mxu0 0
      %1392 = vmatpush1.bf16.msra.mxu0 0
      %1393 = vmatprep.subr.bf16.mxu0 0
      %1394 = vmatpush1.bf16.msra.mxu0 0
      %1395 = vmatprep.subr.bf16.mxu0 0
      %1396 = vmatpush1.bf16.msra.mxu0 0
      %1397 = vmatprep.subr.bf16.mxu0 0
      %1398 = vmatpush1.bf16.msra.mxu0 0
      %1399 = vmatprep.mubr.bf16.mxu0 0
      %1400 = vmatmul.mubr.bf16.gmra.mrb[0].mxu0 %v1365
      %v1401 = vpop.f32.mrb[0].mxu0
      %v1402 = vadd.f32 %v1154, %v1401
      %v1403 = vpop.f32.mrb[0].mxu0
      %v1404 = vpop.f32.mrb[0].mxu0
      %v1405 = vadd.f32 %v1154, %v1404
      %v1406 = vpop.f32.mrb[0].mxu0
      %1407 = vdwg.mxu0
      %v1408 = vmax.f32 %v1402, 0.0
      %v1409 = vmax.f32 %v1405, 0.0
      %v1410 = vpack.c.bf16 %v1409, %v1408
      %v1412 = vsel %vm1162, %v1410, 0
      %1414 = vmatprep.subr.bf16.mxu0 0
      %1415 = vmatpush1.bf16.msra.mxu0 %v1220
      %1416 = vmatprep.subr.bf16.mxu0 0
      %1417 = vmatpush1.bf16.msra.mxu0 0
      %1418 = vmatprep.subr.bf16.mxu0 0
      %1419 = vmatpush1.bf16.msra.mxu0 0
      %1420 = vmatprep.subr.bf16.mxu0 0
      %1421 = vmatpush1.bf16.msra.mxu0 0
      %1422 = vmatprep.subr.bf16.mxu0 0
      %1423 = vmatpush1.bf16.msra.mxu0 0
      %1424 = vmatprep.subr.bf16.mxu0 0
      %1425 = vmatpush1.bf16.msra.mxu0 0
      %1426 = vmatprep.subr.bf16.mxu0 0
      %1427 = vmatpush1.bf16.msra.mxu0 0
      %1428 = vmatprep.subr.bf16.mxu0 0
      %1429 = vmatpush1.bf16.msra.mxu0 0
      %1430 = vmatprep.subr.bf16.mxu0 0
      %1431 = vmatpush1.bf16.msra.mxu0 0
      %1432 = vmatprep.subr.bf16.mxu0 0
      %1433 = vmatpush1.bf16.msra.mxu0 0
      %1434 = vmatprep.subr.bf16.mxu0 0
      %1435 = vmatpush1.bf16.msra.mxu0 0
      %1436 = vmatprep.subr.bf16.mxu0 0
      %1437 = vmatpush1.bf16.msra.mxu0 0
      %1438 = vmatprep.subr.bf16.mxu0 0
      %1439 = vmatpush1.bf16.msra.mxu0 0
      %1440 = vmatprep.subr.bf16.mxu0 0
      %1441 = vmatpush1.bf16.msra.mxu0 0
      %1442 = vmatprep.subr.bf16.mxu0 0
      %1443 = vmatpush1.bf16.msra.mxu0 0
      %1444 = vmatprep.subr.bf16.mxu0 0
      %1445 = vmatpush1.bf16.msra.mxu0 0
      %1446 = vmatprep.mubr.bf16.mxu0 0
      %1447 = vmatmul.mubr.bf16.gmra.mrb[0].mxu0 %v1412
      %v1448 = vpop.f32.mrb[0].mxu0
      %v1449 = vadd.f32 %v1214, %v1448
      %v1450 = vpop.f32.mrb[0].mxu0
      %v1451 = vpop.f32.mrb[0].mxu0
      %v1452 = vadd.f32 %v1214, %v1451
      %v1453 = vpop.f32.mrb[0].mxu0
      %1454 = vdwg.mxu0
      %s1455 = scalar_lea.vmem %s295, 32
      %1456 = vst [vmem:[%s1455] sm:$0xff] %v1449
      %1457 = vst [vmem:[%s1455 + $0x8] sm:$0x1] %v1452
      %s1458 = smul.u32 3, %s22
      %p1459 = scmp.lt.s32.totalorder %s21, 1
      %s1460 = scalar_select %p1459, %s21, 1
      %p1461 = scmp.lt.s32.totalorder %s1458, 8
      %s1462 = scalar_select %p1461, %s1458, 8
      %s1463 = smul.addr %s1462, 2
      %s1464 = smul.addr %s1460, 18
      %s1465 = sadd.s32 %s1463, %s1464
      %s1466 = smul.addr %s1465, 8
      %s1467 = scalar_lea.vmem %s6, %s1466
      // Predicated region
      $region45: #{depthwise_xcorr_forward.5} parent=43 // pred_check
        %p1468 = pneg %p185
      $region46: #{depthwise_xcorr_forward.5} parent=43 // pred_check_branch
        %1470 = sbr.rel (%p1468) target = $region48
      $region47: #{depthwise_xcorr_forward.5} parent=43 // pred_region
        %s1471 = smul.u32 3, %s22
      $region48: #{depthwise_xcorr_forward.5} parent=43 // pred_fallthru
        _
    $region44: #{depthwise_xcorr_forward.5} parent=5 // pred_fallthru
      _
    %p1472 = scmp.le.s32.totalorder 2, %s12
    // Predicated region
    $region49: #{depthwise_xcorr_forward.5} parent=5 // pred_check
      %p1473 = pneg %p1472
    $region50: #{depthwise_xcorr_forward.5} parent=5 // pred_check_branch
      %1475 = sbr.rel (%p1473) target = $region52
    $region51: #{depthwise_xcorr_forward.5} parent=5 // pred_region
      %s1476 = ssub.s32 %s12, 2
      // Predicated region
      $region53: #{depthwise_xcorr_forward.5} parent=51 // pred_check
        %p1477 = pneg %p191
      $region54: #{depthwise_xcorr_forward.5} parent=51 // pred_check_branch
        %1479 = sbr.rel (%p1477) target = $region56
      $region55: #{depthwise_xcorr_forward.5} parent=51 // pred_region
        %s1480 = smul.u32 3, %s24
        %p1481 = scmp.lt.s32.totalorder %s23, 1
        %s1482 = scalar_select %p1481, %s23, 1
        %p1483 = scmp.lt.s32.totalorder %s1480, 8
        %s1484 = scalar_select %p1483, %s1480, 8
        %s1485 = smul.addr %s1484, 2
        %s1486 = smul.addr %s1482, 18
        %s1487 = sadd.s32 %s1485, %s1486
        %s1488 = smul.addr %s1487, 8
        %s1489 = scalar_lea.vmem %s6, %s1488
      $region56: #{depthwise_xcorr_forward.5} parent=51 // pred_fallthru
        _
    $region52: #{depthwise_xcorr_forward.5} parent=5 // pred_fallthru
      _
  $region6: #{depthwise_xcorr_forward.5} parent=0 // loop_footer
    %s16 = sadd.s32 1, %s12
  $region7: #{depthwise_xcorr_forward.5} parent=0 // loop_footer_branch
    %11 = sbr.rel target = $region3
  $region8: #{depthwise_xcorr_forward.5} parent=0 // loop_exit
    _

</llo_original>
